<compile_context>
chip_gen: v7x
topology: tpu7x:2x2x1
jax: 0.10.0
libtpu: 0.0.40
codegen_flags: <defaults>
</compile_context>

<pallas_src>
import functools
import math

import jax
import jax.numpy as jnp
from jax.experimental import pallas as pl
from jax.experimental.pallas import tpu as pltpu


# ------------------------------ fused kernel --------------------------------
def _generator_kernel(x_ref, pair_ref,
                      w0_ref, b0_ref, g0_ref, t0_ref,
                      w1_ref, b1_ref, g1_ref, t1_ref,
                      wbig_ref, bbig_ref, gbig_ref, tbig_ref,
                      w4_ref, b4_ref,
                      o_ref, h_ref, acc_ref, *, batch, tk, eps, slope):
    p = pl.program_id(0)          # which 2048x2048 layer (0 -> layer2, 1 -> layer3)
    k = pl.program_id(1)          # K-chunk index within that layer
    nk = pl.num_programs(1)

    def bn_lrelu(y, gamma_rows, beta_rows):
        # Rows r, r+S, r+2S, ... share a BatchNorm1d channel.  Reduce lanes
        # (features) first, then combine same-channel rows with a tiny
        # (M,M)x(M,1) pairing dot -> training-mode batch stats with biased
        # variance (matches PyTorch BatchNorm1d in train mode).
        pair = pair_ref[...]
        inv_count = 1.0 / (batch * y.shape[1])
        ch_sum = jnp.dot(pair, jnp.sum(y, axis=1, keepdims=True),
                         preferred_element_type=jnp.float32)
        mean = ch_sum * inv_count
        d = y - mean
        ch_ss = jnp.dot(pair, jnp.sum(d * d, axis=1, keepdims=True),
                        preferred_element_type=jnp.float32)
        var = ch_ss * inv_count
        out = d * jax.lax.rsqrt(var + eps) * gamma_rows + beta_rows
        return jnp.where(out >= 0, out, slope * out)

    def linear(h_f32, w_ref, b_ref):
        return jnp.dot(h_f32.astype(jnp.bfloat16), w_ref[...],
                       preferred_element_type=jnp.float32) + b_ref[...]

    # ---- front layers (32 -> 128 -> 2048), once, at the very first step ----
    @pl.when((p == 0) & (k == 0))
    def _():
        h0 = bn_lrelu(linear(x_ref[...], w0_ref, b0_ref),
                      g0_ref[...], t0_ref[...])
        h1 = bn_lrelu(linear(h0, w1_ref, b1_ref),
                      g1_ref[...], t1_ref[...])
        h_ref[...] = h1.astype(h_ref.dtype)

    # ---- reset the big-layer accumulator at the start of each phase --------
    @pl.when(k == 0)
    def _():
        acc_ref[...] = jnp.zeros_like(acc_ref)

    # ---- accumulate one K-chunk of the current 2048x2048 matmul ------------
    chunk_start = pl.multiple_of(k * tk, tk)
    h_chunk = h_ref[:, pl.ds(chunk_start, tk)]          # bf16 (M, TK)
    acc_ref[...] += jnp.dot(h_chunk, wbig_ref[...],
                            preferred_element_type=jnp.float32)

    # ---- layer-2 epilogue: BN + LeakyReLU, feed h back for phase 1 ---------
    @pl.when((p == 0) & (k == nk - 1))
    def _():
        h2 = bn_lrelu(acc_ref[...] + bbig_ref[...],
                      gbig_ref[...], tbig_ref[...])
        h_ref[...] = h2.astype(h_ref.dtype)

    # ---- layer-3 epilogue + final Linear -> Tanh ----------------------------
    @pl.when((p == 1) & (k == nk - 1))
    def _():
        h3 = bn_lrelu(acc_ref[...] + bbig_ref[...],
                      gbig_ref[...], tbig_ref[...])
        o_ref[...] = jnp.tanh(linear(h3, w4_ref, b4_ref)).astype(o_ref.dtype)


def _generator_forward_fused(x2d, pair,
                             w0, b0, g0r, t0r,
                             w1, b1, g1r, t1r,
                             w_big, b_big, g_bigr, t_bigr,
                             w4, b4, *, batch, tk=512, eps=1e-5, slope=0.2):
    M, K0 = x2d.shape
    H1 = w1.shape[0]          # 128
    H = w_big.shape[-1]       # 2048
    Nout = w4.shape[-1]
    assert H % tk == 0
    nk = H // tk

    kernel = functools.partial(_generator_kernel,
                               batch=batch, tk=tk, eps=eps, slope=slope)
    const = lambda p, k: (0, 0)          # resident, fetched once
    per_phase = lambda p, k: (p, 0, 0)   # refetched only when p changes
    chunked = lambda p, k: (p, k, 0)     # streamed K-chunk per grid step

    return pl.pallas_call(
        kernel,
        out_shape=jax.ShapeDtypeStruct((M, Nout), jnp.float32),
        grid_spec=pltpu.PrefetchScalarGridSpec(
            num_scalar_prefetch=0,
            grid=(2, nk),
            in_specs=[
                pl.BlockSpec((M, K0), const),           # x
                pl.BlockSpec((M, M), const),            # same-channel pairing
                pl.BlockSpec((K0, H1), const),          # w0 (bf16)
                pl.BlockSpec((1, H1), const),           # b0
                pl.BlockSpec((M, 1), const),            # gamma0 per-row
                pl.BlockSpec((M, 1), const),            # beta0  per-row
                pl.BlockSpec((H1, H), const),           # w1 (bf16)
                pl.BlockSpec((1, H), const),            # b1
                pl.BlockSpec((M, 1), const),            # gamma1 per-row
                pl.BlockSpec((M, 1), const),            # beta1  per-row
                pl.BlockSpec((None, tk, H), chunked),   # w2/w3 K-chunks (bf16)
                pl.BlockSpec((None, 1, H), per_phase),  # b2/b3
                pl.BlockSpec((None, M, 1), per_phase),  # gamma2/3 per-row
                pl.BlockSpec((None, M, 1), per_phase),  # beta2/3  per-row
                pl.BlockSpec((H, Nout), const),         # w4 (bf16)
                pl.BlockSpec((1, Nout), const),         # b4
            ],
            out_specs=pl.BlockSpec((M, Nout), const),
            scratch_shapes=[pltpu.VMEM((M, H), jnp.bfloat16),   # activation
                            pltpu.VMEM((M, H), jnp.float32)],   # f32 accumulator
        ),
        compiler_params=pltpu.CompilerParams(
            # Both axes carry state (h scratch across p, acc across k):
            # they must stay "arbitrary".
            dimension_semantics=("arbitrary", "arbitrary"),
            vmem_limit_bytes=16 * 1024 * 1024,
        ),
    )(x2d, pair, w0, b0, g0r, t0r, w1, b1, g1r, t1r,
      w_big, b_big, g_bigr, t_bigr, w4, b4)


# ------------------------------- Generator ----------------------------------
def init_generator_params(key, mu_dim, noise_dim, img_shape, update_set_size):
    out_dim = math.prod(img_shape)
    dims = [mu_dim + noise_dim, 128, 2048, 2048, 2048, out_dim]
    ws, bs = [], []
    for i in range(5):
        fan_in, fan_out = dims[i], dims[i + 1]
        key, kw, kb = jax.random.split(key, 3)
        bound = 1.0 / math.sqrt(fan_in)
        ws.append(jax.random.uniform(kw, (fan_in, fan_out), jnp.float32,
                                     -bound, bound))
        bs.append(jax.random.uniform(kb, (fan_out,), jnp.float32,
                                     -bound, bound))
    params = {
        # weights kept in bf16: halves the HBM weight stream
        # TODO(synk): optional int8 (v5e/v6e) / fp8 (v7x) weight quantization
        # with per-channel scales folded into gamma would halve it again.
        "w0": ws[0].astype(jnp.bfloat16),
        "w1": ws[1].astype(jnp.bfloat16),
        # the two 2048x2048 matrices pre-stacked for K-chunk streaming
        "w_big": jnp.stack([ws[2], ws[3]]).astype(jnp.bfloat16),
        "w4": ws[4].astype(jnp.bfloat16),
    }
    for i in range(5):
        params[f"b{i}"] = bs[i]
    for i in range(4):  # blocks 0..3 carry BatchNorm1d(update_set_size)
        params[f"gamma{i}"] = jnp.ones((update_set_size,), jnp.float32)
        params[f"beta{i}"] = jnp.zeros((update_set_size,), jnp.float32)
    return params


@functools.partial(jax.jit, static_argnums=(3,))
def generator_forward(params, mu, noise, img_shape):
    """mu: (B, S, mu_dim), noise: (B, S, noise_dim) -> imgs: (B, S, *img_shape)."""
    B, S, _ = mu.shape
    M = B * S
    x = jnp.concatenate([mu, noise], axis=2).astype(jnp.float32).reshape(M, -1)

    # (M, M) indicator: rows b*S + s with equal s share a BatchNorm channel.
    ridx = jnp.arange(M) % S
    pair = (ridx[:, None] == ridx[None, :]).astype(jnp.float32)

    def rows(v):  # (S,) -> per-row (M, 1)
        return jnp.tile(v, (B,)).reshape(M, 1).astype(jnp.float32)

    out2d = _generator_forward_fused(
        x, pair,
        params["w0"], params["b0"].reshape(1, -1),
        rows(params["gamma0"]), rows(params["beta0"]),
        params["w1"], params["b1"].reshape(1, -1),
        rows(params["gamma1"]), rows(params["beta1"]),
        params["w_big"],
        jnp.stack([params["b2"], params["b3"]]).reshape(2, 1, -1),
        jnp.stack([rows(params["gamma2"]), rows(params["gamma3"])]),
        jnp.stack([rows(params["beta2"]), rows(params["beta3"])]),
        params["w4"], params["b4"].reshape(1, -1),
        batch=B)
    return out2d.reshape(B, S, *img_shape)
    # TODO(synk): BatchNorm running_mean/running_var buffer updates (training
    # side effect) are not modeled; forward output does not depend on them.


# ----------------------------- pure-JAX reference ----------------------------
def generator_reference(params, mu, noise, img_shape):
    B, S, _ = mu.shape
    h = jnp.concatenate([mu, noise], axis=2).astype(jnp.float32).reshape(B * S, -1)
    ws = [params["w0"], params["w1"], params["w_big"][0], params["w_big"][1],
          params["w4"]]
    for i in range(4):
        y = jnp.dot(h.astype(jnp.bfloat16), ws[i],
                    preferred_element_type=jnp.float32) + params[f"b{i}"]
        y = y.reshape(B, S, -1)
        mean = jnp.mean(y, axis=(0, 2), keepdims=True)
        var = jnp.mean((y - mean) ** 2, axis=(0, 2), keepdims=True)
        yn = (y - mean) * jax.lax.rsqrt(var + 1e-5)
        yn = yn * params[f"gamma{i}"].reshape(1, S, 1) \
                + params[f"beta{i}"].reshape(1, S, 1)
        h = jnp.where(yn >= 0, yn, 0.2 * yn).reshape(B * S, -1)
    y = jnp.tanh(jnp.dot(h.astype(jnp.bfloat16), ws[4],
                         preferred_element_type=jnp.float32) + params["b4"])
    return y.reshape(B, S, *img_shape)


# --------------------------------- main --------------------------------------
if __name__ == "__main__":
    B = 2                    # batch
    S = 8                    # update_set_size
    MU_DIM = 16
    NOISE_DIM = 16
    IMG_SHAPE = (1, 8, 8)    # prod = 64

    key = jax.random.PRNGKey(0)
    k_params, k_mu, k_noise = jax.random.split(key, 3)

    params = init_generator_params(k_params, MU_DIM, NOISE_DIM, IMG_SHAPE, S)
    mu = jax.random.normal(k_mu, (B, S, MU_DIM), jnp.float32)
    noise = jax.random.normal(k_noise, (B, S, NOISE_DIM), jnp.float32)

    imgs = generator_forward(params, mu, noise, IMG_SHAPE)
    imgs = jax.block_until_ready(imgs)
    ref = jax.block_until_ready(generator_reference(params, mu, noise, IMG_SHAPE))

    assert imgs.shape == (B, S) + IMG_SHAPE, imgs.shape
    assert bool(jnp.all(jnp.isfinite(imgs)))
    assert bool(jnp.all(jnp.abs(imgs) <= 1.0 + 1e-6))      # tanh range
    err = float(jnp.max(jnp.abs(imgs - ref)))
    assert err < 2e-2, f"max abs err vs reference: {err}"
    print("KERNEL_OK")
</pallas_src>

<mosaic_0001>
module attributes {stable_mosaic.version = 11 : i64} {
  func.func @_generator_kernel(%arg0: i32, %arg1: i32, %arg2: memref<16x32xf32, #tpu.memory_space<vmem>>, %arg3: memref<16x16xf32, #tpu.memory_space<vmem>>, %arg4: memref<32x128xbf16, #tpu.memory_space<vmem>>, %arg5: memref<1x128xf32, #tpu.memory_space<vmem>>, %arg6: memref<16x1xf32, #tpu.memory_space<vmem>>, %arg7: memref<16x1xf32, #tpu.memory_space<vmem>>, %arg8: memref<128x2048xbf16, #tpu.memory_space<vmem>>, %arg9: memref<1x2048xf32, #tpu.memory_space<vmem>>, %arg10: memref<16x1xf32, #tpu.memory_space<vmem>>, %arg11: memref<16x1xf32, #tpu.memory_space<vmem>>, %arg12: memref<1x512x2048xbf16, #tpu.memory_space<vmem>>, %arg13: memref<1x1x2048xf32, #tpu.memory_space<vmem>>, %arg14: memref<1x16x1xf32, #tpu.memory_space<vmem>>, %arg15: memref<1x16x1xf32, #tpu.memory_space<vmem>>, %arg16: memref<2048x64xbf16, #tpu.memory_space<vmem>>, %arg17: memref<1x64xf32, #tpu.memory_space<vmem>>, %arg18: memref<16x64xf32, #tpu.memory_space<vmem>>, %arg19: memref<16x2048xbf16, #tpu.memory_space<vmem>>, %arg20: memref<16x2048xf32, #tpu.memory_space<vmem>>) attributes {dimension_semantics = [#tpu.dimension_semantics<arbitrary>, #tpu.dimension_semantics<arbitrary>], iteration_bounds = array<i64: 2, 4>, scalar_prefetch = 0 : i64, scratch_operands = 2 : i64, tpu.core_type = #tpu.core_type<tc>, window_params = [{pipeline_mode = #tpu.pipeline_mode<synchronous>, transform_indices = @transform_0, window_bounds = array<i64: 16, 32>}, {pipeline_mode = #tpu.pipeline_mode<synchronous>, transform_indices = @transform_1, window_bounds = array<i64: 16, 16>}, {pipeline_mode = #tpu.pipeline_mode<synchronous>, transform_indices = @transform_2, window_bounds = array<i64: 32, 128>}, {pipeline_mode = #tpu.pipeline_mode<synchronous>, transform_indices = @transform_3, window_bounds = array<i64: 1, 128>}, {pipeline_mode = #tpu.pipeline_mode<synchronous>, transform_indices = @transform_4, window_bounds = array<i64: 16, 1>}, {pipeline_mode = #tpu.pipeline_mode<synchronous>, transform_indices = @transform_5, window_bounds = array<i64: 16, 1>}, {pipeline_mode = #tpu.pipeline_mode<synchronous>, transform_indices = @transform_6, window_bounds = array<i64: 128, 2048>}, {pipeline_mode = #tpu.pipeline_mode<synchronous>, transform_indices = @transform_7, window_bounds = array<i64: 1, 2048>}, {pipeline_mode = #tpu.pipeline_mode<synchronous>, transform_indices = @transform_8, window_bounds = array<i64: 16, 1>}, {pipeline_mode = #tpu.pipeline_mode<synchronous>, transform_indices = @transform_9, window_bounds = array<i64: 16, 1>}, {transform_indices = @transform_10, window_bounds = array<i64: 1, 512, 2048>}, {transform_indices = @transform_11, window_bounds = array<i64: 1, 1, 2048>}, {transform_indices = @transform_12, window_bounds = array<i64: 1, 16, 1>}, {transform_indices = @transform_13, window_bounds = array<i64: 1, 16, 1>}, {pipeline_mode = #tpu.pipeline_mode<synchronous>, transform_indices = @transform_14, window_bounds = array<i64: 2048, 64>}, {pipeline_mode = #tpu.pipeline_mode<synchronous>, transform_indices = @transform_15, window_bounds = array<i64: 1, 64>}, {pipeline_mode = #tpu.pipeline_mode<synchronous>, transform_indices = @transform_16, window_bounds = array<i64: 16, 64>}]} {
    %c0_i32 = arith.constant 0 : i32
    %0 = arith.cmpi eq, %arg0, %c0_i32 : i32
    %c0_i32_0 = arith.constant 0 : i32
    %1 = arith.cmpi eq, %arg1, %c0_i32_0 : i32
    %2 = arith.andi %0, %1 : i1
    %3 = arith.extui %2 : i1 to i32
    %c0_i32_1 = arith.constant 0 : i32
    %4 = arith.cmpi ne, %3, %c0_i32_1 : i32
    scf.if %4 {
      %c0_15 = arith.constant 0 : index
      %c0_16 = arith.constant 0 : index
      %28 = vector.load %arg2[%c0_15, %c0_16] : memref<16x32xf32, #tpu.memory_space<vmem>>, vector<16x32xf32>
      %29 = arith.truncf %28 : vector<16x32xf32> to vector<16x32xbf16>
      %c0_17 = arith.constant 0 : index
      %c0_18 = arith.constant 0 : index
      %30 = vector.load %arg4[%c0_17, %c0_18] : memref<32x128xbf16, #tpu.memory_space<vmem>>, vector<32x128xbf16>
      %cst_19 = arith.constant dense<0.000000e+00> : vector<16x128xf32>
      %31 = tpu.matmul %29, %30, %cst_19 {dimension_numbers = #tpu.dot_dimension_numbers<[1], [0], [0], [1], [0, 0, 1, 1], [], []>} : vector<16x32xbf16>, vector<32x128xbf16>, vector<16x128xf32> -> vector<16x128xf32>
      %c0_20 = arith.constant 0 : index
      %c0_21 = arith.constant 0 : index
      %32 = vector.load %arg5[%c0_20, %c0_21] : memref<1x128xf32, #tpu.memory_space<vmem>>, vector<1x128xf32>
      %33 = vector.broadcast %32 : vector<1x128xf32> to vector<16x128xf32>
      %34 = arith.addf %31, %33 : vector<16x128xf32>
      %c0_22 = arith.constant 0 : index
      %c0_23 = arith.constant 0 : index
      %35 = vector.load %arg6[%c0_22, %c0_23] : memref<16x1xf32, #tpu.memory_space<vmem>>, vector<16x1xf32>
      %c0_24 = arith.constant 0 : index
      %c0_25 = arith.constant 0 : index
      %36 = vector.load %arg7[%c0_24, %c0_25] : memref<16x1xf32, #tpu.memory_space<vmem>>, vector<16x1xf32>
      %c0_26 = arith.constant 0 : index
      %c0_27 = arith.constant 0 : index
      %37 = vector.load %arg3[%c0_26, %c0_27] : memref<16x16xf32, #tpu.memory_space<vmem>>, vector<16x16xf32>
      %cst_28 = arith.constant dense<0.000000e+00> : vector<16xf32>
      %38 = vector.multi_reduction <add>, %34, %cst_28 [1] : vector<16x128xf32> to vector<16xf32>
      %39 = vector.shape_cast %38 : vector<16xf32> to vector<16x1xf32>
      %cst_29 = arith.constant dense<0.000000e+00> : vector<16x1xf32>
      %40 = tpu.matmul %37, %39, %cst_29 {dimension_numbers = #tpu.dot_dimension_numbers<[1], [0], [0], [1], [0, 0, 1, 1], [], []>} : vector<16x16xf32>, vector<16x1xf32>, vector<16x1xf32> -> vector<16x1xf32>
      %cst_30 = arith.constant 3.906250e-03 : f32
      %41 = vector.broadcast %cst_30 : f32 to vector<16x1xf32>
      %42 = arith.mulf %40, %41 : vector<16x1xf32>
      %43 = vector.broadcast %42 : vector<16x1xf32> to vector<16x128xf32>
      %44 = arith.subf %34, %43 : vector<16x128xf32>
      %45 = arith.mulf %44, %44 : vector<16x128xf32>
      %cst_31 = arith.constant dense<0.000000e+00> : vector<16xf32>
      %46 = vector.multi_reduction <add>, %45, %cst_31 [1] : vector<16x128xf32> to vector<16xf32>
      %47 = vector.shape_cast %46 : vector<16xf32> to vector<16x1xf32>
      %cst_32 = arith.constant dense<0.000000e+00> : vector<16x1xf32>
      %48 = tpu.matmul %37, %47, %cst_32 {dimension_numbers = #tpu.dot_dimension_numbers<[1], [0], [0], [1], [0, 0, 1, 1], [], []>} : vector<16x16xf32>, vector<16x1xf32>, vector<16x1xf32> -> vector<16x1xf32>
      %cst_33 = arith.constant 3.906250e-03 : f32
      %49 = vector.broadcast %cst_33 : f32 to vector<16x1xf32>
      %50 = arith.mulf %48, %49 : vector<16x1xf32>
      %cst_34 = arith.constant 9.99999974E-6 : f32
      %51 = vector.broadcast %cst_34 : f32 to vector<16x1xf32>
      %52 = arith.addf %50, %51 : vector<16x1xf32>
      %53 = math.rsqrt %52 : vector<16x1xf32>
      %54 = vector.broadcast %53 : vector<16x1xf32> to vector<16x128xf32>
      %55 = arith.mulf %44, %54 : vector<16x128xf32>
      %56 = vector.broadcast %35 : vector<16x1xf32> to vector<16x128xf32>
      %57 = arith.mulf %55, %56 : vector<16x128xf32>
      %58 = vector.broadcast %36 : vector<16x1xf32> to vector<16x128xf32>
      %59 = arith.addf %57, %58 : vector<16x128xf32>
      %cst_35 = arith.constant 0.000000e+00 : f32
      %60 = vector.broadcast %cst_35 : f32 to vector<16x128xf32>
      %61 = arith.cmpf oge, %59, %60 : vector<16x128xf32>
      %cst_36 = arith.constant 2.000000e-01 : f32
      %62 = vector.broadcast %cst_36 : f32 to vector<16x128xf32>
      %63 = arith.mulf %62, %59 : vector<16x128xf32>
      %64 = arith.select %61, %59, %63 : vector<16x128xi1>, vector<16x128xf32>
      %65 = arith.truncf %64 : vector<16x128xf32> to vector<16x128xbf16>
      %c0_37 = arith.constant 0 : index
      %c0_38 = arith.constant 0 : index
      %66 = vector.load %arg8[%c0_37, %c0_38] : memref<128x2048xbf16, #tpu.memory_space<vmem>>, vector<128x2048xbf16>
      %cst_39 = arith.constant dense<0.000000e+00> : vector<16x2048xf32>
      %67 = tpu.matmul %65, %66, %cst_39 {dimension_numbers = #tpu.dot_dimension_numbers<[1], [0], [0], [1], [0, 0, 1, 1], [], []>} : vector<16x128xbf16>, vector<128x2048xbf16>, vector<16x2048xf32> -> vector<16x2048xf32>
      %c0_40 = arith.constant 0 : index
      %c0_41 = arith.constant 0 : index
      %68 = vector.load %arg9[%c0_40, %c0_41] : memref<1x2048xf32, #tpu.memory_space<vmem>>, vector<1x2048xf32>
      %69 = vector.broadcast %68 : vector<1x2048xf32> to vector<16x2048xf32>
      %70 = arith.addf %67, %69 : vector<16x2048xf32>
      %c0_42 = arith.constant 0 : index
      %c0_43 = arith.constant 0 : index
      %71 = vector.load %arg10[%c0_42, %c0_43] : memref<16x1xf32, #tpu.memory_space<vmem>>, vector<16x1xf32>
      %c0_44 = arith.constant 0 : index
      %c0_45 = arith.constant 0 : index
      %72 = vector.load %arg11[%c0_44, %c0_45] : memref<16x1xf32, #tpu.memory_space<vmem>>, vector<16x1xf32>
      %c0_46 = arith.constant 0 : index
      %c0_47 = arith.constant 0 : index
      %73 = vector.load %arg3[%c0_46, %c0_47] : memref<16x16xf32, #tpu.memory_space<vmem>>, vector<16x16xf32>
      %cst_48 = arith.constant dense<0.000000e+00> : vector<16xf32>
      %74 = vector.multi_reduction <add>, %70, %cst_48 [1] : vector<16x2048xf32> to vector<16xf32>
      %75 = vector.shape_cast %74 : vector<16xf32> to vector<16x1xf32>
      %cst_49 = arith.constant dense<0.000000e+00> : vector<16x1xf32>
      %76 = tpu.matmul %73, %75, %cst_49 {dimension_numbers = #tpu.dot_dimension_numbers<[1], [0], [0], [1], [0, 0, 1, 1], [], []>} : vector<16x16xf32>, vector<16x1xf32>, vector<16x1xf32> -> vector<16x1xf32>
      %cst_50 = arith.constant 2.44140625E-4 : f32
      %77 = vector.broadcast %cst_50 : f32 to vector<16x1xf32>
      %78 = arith.mulf %76, %77 : vector<16x1xf32>
      %79 = vector.broadcast %78 : vector<16x1xf32> to vector<16x2048xf32>
      %80 = arith.subf %70, %79 : vector<16x2048xf32>
      %81 = arith.mulf %80, %80 : vector<16x2048xf32>
      %cst_51 = arith.constant dense<0.000000e+00> : vector<16xf32>
      %82 = vector.multi_reduction <add>, %81, %cst_51 [1] : vector<16x2048xf32> to vector<16xf32>
      %83 = vector.shape_cast %82 : vector<16xf32> to vector<16x1xf32>
      %cst_52 = arith.constant dense<0.000000e+00> : vector<16x1xf32>
      %84 = tpu.matmul %73, %83, %cst_52 {dimension_numbers = #tpu.dot_dimension_numbers<[1], [0], [0], [1], [0, 0, 1, 1], [], []>} : vector<16x16xf32>, vector<16x1xf32>, vector<16x1xf32> -> vector<16x1xf32>
      %cst_53 = arith.constant 2.44140625E-4 : f32
      %85 = vector.broadcast %cst_53 : f32 to vector<16x1xf32>
      %86 = arith.mulf %84, %85 : vector<16x1xf32>
      %cst_54 = arith.constant 9.99999974E-6 : f32
      %87 = vector.broadcast %cst_54 : f32 to vector<16x1xf32>
      %88 = arith.addf %86, %87 : vector<16x1xf32>
      %89 = math.rsqrt %88 : vector<16x1xf32>
      %90 = vector.broadcast %89 : vector<16x1xf32> to vector<16x2048xf32>
      %91 = arith.mulf %80, %90 : vector<16x2048xf32>
      %92 = vector.broadcast %71 : vector<16x1xf32> to vector<16x2048xf32>
      %93 = arith.mulf %91, %92 : vector<16x2048xf32>
      %94 = vector.broadcast %72 : vector<16x1xf32> to vector<16x2048xf32>
      %95 = arith.addf %93, %94 : vector<16x2048xf32>
      %cst_55 = arith.constant 0.000000e+00 : f32
      %96 = vector.broadcast %cst_55 : f32 to vector<16x2048xf32>
      %97 = arith.cmpf oge, %95, %96 : vector<16x2048xf32>
      %cst_56 = arith.constant 2.000000e-01 : f32
      %98 = vector.broadcast %cst_56 : f32 to vector<16x2048xf32>
      %99 = arith.mulf %98, %95 : vector<16x2048xf32>
      %100 = arith.select %97, %95, %99 : vector<16x2048xi1>, vector<16x2048xf32>
      %101 = arith.truncf %100 : vector<16x2048xf32> to vector<16x2048xbf16>
      %c0_57 = arith.constant 0 : index
      %c0_58 = arith.constant 0 : index
      %102 = vector.load %arg19[%c0_57, %c0_58] : memref<16x2048xbf16, #tpu.memory_space<vmem>>, vector<16x2048xbf16>
      tpu.vector_store %arg19[%c0_57, %c0_58], %101 {strides = array<i32>} : memref<16x2048xbf16, #tpu.memory_space<vmem>>, vector<16x2048xbf16>,
    } else {
    }
    %c0_i32_2 = arith.constant 0 : i32
    %5 = arith.cmpi eq, %arg1, %c0_i32_2 : i32
    %6 = arith.extui %5 : i1 to i32
    %c0_i32_3 = arith.constant 0 : i32
    %7 = arith.cmpi ne, %6, %c0_i32_3 : i32
    scf.if %7 {
      %cst_15 = arith.constant 0.000000e+00 : f32
      %28 = vector.broadcast %cst_15 : f32 to vector<16x2048xf32>
      %c0_16 = arith.constant 0 : index
      %c0_17 = arith.constant 0 : index
      %29 = vector.load %arg20[%c0_16, %c0_17] : memref<16x2048xf32, #tpu.memory_space<vmem>>, vector<16x2048xf32>
      tpu.vector_store %arg20[%c0_16, %c0_17], %28 {strides = array<i32>} : memref<16x2048xf32, #tpu.memory_space<vmem>>, vector<16x2048xf32>,
    } else {
    }
    %c512_i32 = arith.constant 512 : i32
    %8 = arith.muli %arg1, %c512_i32 : i32
    %9 = tpu.assume_multiple %8, 512 : i32
    %c0 = arith.constant 0 : index
    %10 = arith.index_cast %9 : i32 to index
    %11 = vector.load %arg19[%c0, %10] : memref<16x2048xbf16, #tpu.memory_space<vmem>>, vector<16x512xbf16>
    %c0_4 = arith.constant 0 : index
    %c0_5 = arith.constant 0 : index
    %12 = vector.load %arg20[%c0_4, %c0_5] : memref<16x2048xf32, #tpu.memory_space<vmem>>, vector<16x2048xf32>
    %c0_6 = arith.constant 0 : index
    %c0_7 = arith.constant 0 : index
    %c0_8 = arith.constant 0 : index
    %13 = vector.load %arg12[%c0_6, %c0_7, %c0_8] : memref<1x512x2048xbf16, #tpu.memory_space<vmem>>, vector<1x512x2048xbf16>
    %14 = vector.shape_cast %13 : vector<1x512x2048xbf16> to vector<512x2048xbf16>
    %cst = arith.constant dense<0.000000e+00> : vector<16x2048xf32>
    %15 = tpu.matmul %11, %14, %cst {dimension_numbers = #tpu.dot_dimension_numbers<[1], [0], [0], [1], [0, 0, 1, 1], [], []>} : vector<16x512xbf16>, vector<512x2048xbf16>, vector<16x2048xf32> -> vector<16x2048xf32>
    %16 = arith.addf %12, %15 : vector<16x2048xf32>
    %c0_9 = arith.constant 0 : index
    %c0_10 = arith.constant 0 : index
    %17 = vector.load %arg20[%c0_9, %c0_10] : memref<16x2048xf32, #tpu.memory_space<vmem>>, vector<16x2048xf32>
    tpu.vector_store %arg20[%c0_9, %c0_10], %16 {strides = array<i32>} : memref<16x2048xf32, #tpu.memory_space<vmem>>, vector<16x2048xf32>,
    %c0_i32_11 = arith.constant 0 : i32
    %18 = arith.cmpi eq, %arg0, %c0_i32_11 : i32
    %c3_i32 = arith.constant 3 : i32
    %19 = arith.cmpi eq, %arg1, %c3_i32 : i32
    %20 = arith.andi %18, %19 : i1
    %21 = arith.extui %20 : i1 to i32
    %c0_i32_12 = arith.constant 0 : i32
    %22 = arith.cmpi ne, %21, %c0_i32_12 : i32
    scf.if %22 {
      %c0_15 = arith.constant 0 : index
      %c0_16 = arith.constant 0 : index
      %28 = vector.load %arg20[%c0_15, %c0_16] : memref<16x2048xf32, #tpu.memory_space<vmem>>, vector<16x2048xf32>
      %c0_17 = arith.constant 0 : index
      %c0_18 = arith.constant 0 : index
      %c0_19 = arith.constant 0 : index
      %29 = vector.load %arg13[%c0_17, %c0_18, %c0_19] : memref<1x1x2048xf32, #tpu.memory_space<vmem>>, vector<1x1x2048xf32>
      %30 = vector.shape_cast %29 : vector<1x1x2048xf32> to vector<1x2048xf32>
      %31 = vector.broadcast %30 : vector<1x2048xf32> to vector<16x2048xf32>
      %32 = arith.addf %28, %31 : vector<16x2048xf32>
      %c0_20 = arith.constant 0 : index
      %c0_21 = arith.constant 0 : index
      %c0_22 = arith.constant 0 : index
      %33 = vector.load %arg14[%c0_20, %c0_21, %c0_22] : memref<1x16x1xf32, #tpu.memory_space<vmem>>, vector<1x16x1xf32>
      %34 = vector.shape_cast %33 : vector<1x16x1xf32> to vector<16x1xf32>
      %c0_23 = arith.constant 0 : index
      %c0_24 = arith.constant 0 : index
      %c0_25 = arith.constant 0 : index
      %35 = vector.load %arg15[%c0_23, %c0_24, %c0_25] : memref<1x16x1xf32, #tpu.memory_space<vmem>>, vector<1x16x1xf32>
      %36 = vector.shape_cast %35 : vector<1x16x1xf32> to vector<16x1xf32>
      %c0_26 = arith.constant 0 : index
      %c0_27 = arith.constant 0 : index
      %37 = vector.load %arg3[%c0_26, %c0_27] : memref<16x16xf32, #tpu.memory_space<vmem>>, vector<16x16xf32>
      %cst_28 = arith.constant dense<0.000000e+00> : vector<16xf32>
      %38 = vector.multi_reduction <add>, %32, %cst_28 [1] : vector<16x2048xf32> to vector<16xf32>
      %39 = vector.shape_cast %38 : vector<16xf32> to vector<16x1xf32>
      %cst_29 = arith.constant dense<0.000000e+00> : vector<16x1xf32>
      %40 = tpu.matmul %37, %39, %cst_29 {dimension_numbers = #tpu.dot_dimension_numbers<[1], [0], [0], [1], [0, 0, 1, 1], [], []>} : vector<16x16xf32>, vector<16x1xf32>, vector<16x1xf32> -> vector<16x1xf32>
      %cst_30 = arith.constant 2.44140625E-4 : f32
      %41 = vector.broadcast %cst_30 : f32 to vector<16x1xf32>
      %42 = arith.mulf %40, %41 : vector<16x1xf32>
      %43 = vector.broadcast %42 : vector<16x1xf32> to vector<16x2048xf32>
      %44 = arith.subf %32, %43 : vector<16x2048xf32>
      %45 = arith.mulf %44, %44 : vector<16x2048xf32>
      %cst_31 = arith.constant dense<0.000000e+00> : vector<16xf32>
      %46 = vector.multi_reduction <add>, %45, %cst_31 [1] : vector<16x2048xf32> to vector<16xf32>
      %47 = vector.shape_cast %46 : vector<16xf32> to vector<16x1xf32>
      %cst_32 = arith.constant dense<0.000000e+00> : vector<16x1xf32>
      %48 = tpu.matmul %37, %47, %cst_32 {dimension_numbers = #tpu.dot_dimension_numbers<[1], [0], [0], [1], [0, 0, 1, 1], [], []>} : vector<16x16xf32>, vector<16x1xf32>, vector<16x1xf32> -> vector<16x1xf32>
      %cst_33 = arith.constant 2.44140625E-4 : f32
      %49 = vector.broadcast %cst_33 : f32 to vector<16x1xf32>
      %50 = arith.mulf %48, %49 : vector<16x1xf32>
      %cst_34 = arith.constant 9.99999974E-6 : f32
      %51 = vector.broadcast %cst_34 : f32 to vector<16x1xf32>
      %52 = arith.addf %50, %51 : vector<16x1xf32>
      %53 = math.rsqrt %52 : vector<16x1xf32>
      %54 = vector.broadcast %53 : vector<16x1xf32> to vector<16x2048xf32>
      %55 = arith.mulf %44, %54 : vector<16x2048xf32>
      %56 = vector.broadcast %34 : vector<16x1xf32> to vector<16x2048xf32>
      %57 = arith.mulf %55, %56 : vector<16x2048xf32>
      %58 = vector.broadcast %36 : vector<16x1xf32> to vector<16x2048xf32>
      %59 = arith.addf %57, %58 : vector<16x2048xf32>
      %cst_35 = arith.constant 0.000000e+00 : f32
      %60 = vector.broadcast %cst_35 : f32 to vector<16x2048xf32>
      %61 = arith.cmpf oge, %59, %60 : vector<16x2048xf32>
      %cst_36 = arith.constant 2.000000e-01 : f32
      %62 = vector.broadcast %cst_36 : f32 to vector<16x2048xf32>
      %63 = arith.mulf %62, %59 : vector<16x2048xf32>
      %64 = arith.select %61, %59, %63 : vector<16x2048xi1>, vector<16x2048xf32>
      %65 = arith.truncf %64 : vector<16x2048xf32> to vector<16x2048xbf16>
      %c0_37 = arith.constant 0 : index
      %c0_38 = arith.constant 0 : index
      %66 = vector.load %arg19[%c0_37, %c0_38] : memref<16x2048xbf16, #tpu.memory_space<vmem>>, vector<16x2048xbf16>
      tpu.vector_store %arg19[%c0_37, %c0_38], %65 {strides = array<i32>} : memref<16x2048xbf16, #tpu.memory_space<vmem>>, vector<16x2048xbf16>,
    } else {
    }
    %c1_i32 = arith.constant 1 : i32
    %23 = arith.cmpi eq, %arg0, %c1_i32 : i32
    %c3_i32_13 = arith.constant 3 : i32
    %24 = arith.cmpi eq, %arg1, %c3_i32_13 : i32
    %25 = arith.andi %23, %24 : i1
    %26 = arith.extui %25 : i1 to i32
    %c0_i32_14 = arith.constant 0 : i32
    %27 = arith.cmpi ne, %26, %c0_i32_14 : i32
    scf.if %27 {
      %c0_15 = arith.constant 0 : index
      %c0_16 = arith.constant 0 : index
      %28 = vector.load %arg20[%c0_15, %c0_16] : memref<16x2048xf32, #tpu.memory_space<vmem>>, vector<16x2048xf32>
      %c0_17 = arith.constant 0 : index
      %c0_18 = arith.constant 0 : index
      %c0_19 = arith.constant 0 : index
      %29 = vector.load %arg13[%c0_17, %c0_18, %c0_19] : memref<1x1x2048xf32, #tpu.memory_space<vmem>>, vector<1x1x2048xf32>
      %30 = vector.shape_cast %29 : vector<1x1x2048xf32> to vector<1x2048xf32>
      %31 = vector.broadcast %30 : vector<1x2048xf32> to vector<16x2048xf32>
      %32 = arith.addf %28, %31 : vector<16x2048xf32>
      %c0_20 = arith.constant 0 : index
      %c0_21 = arith.constant 0 : index
      %c0_22 = arith.constant 0 : index
      %33 = vector.load %arg14[%c0_20, %c0_21, %c0_22] : memref<1x16x1xf32, #tpu.memory_space<vmem>>, vector<1x16x1xf32>
      %34 = vector.shape_cast %33 : vector<1x16x1xf32> to vector<16x1xf32>
      %c0_23 = arith.constant 0 : index
      %c0_24 = arith.constant 0 : index
      %c0_25 = arith.constant 0 : index
      %35 = vector.load %arg15[%c0_23, %c0_24, %c0_25] : memref<1x16x1xf32, #tpu.memory_space<vmem>>, vector<1x16x1xf32>
      %36 = vector.shape_cast %35 : vector<1x16x1xf32> to vector<16x1xf32>
      %c0_26 = arith.constant 0 : index
      %c0_27 = arith.constant 0 : index
      %37 = vector.load %arg3[%c0_26, %c0_27] : memref<16x16xf32, #tpu.memory_space<vmem>>, vector<16x16xf32>
      %cst_28 = arith.constant dense<0.000000e+00> : vector<16xf32>
      %38 = vector.multi_reduction <add>, %32, %cst_28 [1] : vector<16x2048xf32> to vector<16xf32>
      %39 = vector.shape_cast %38 : vector<16xf32> to vector<16x1xf32>
      %cst_29 = arith.constant dense<0.000000e+00> : vector<16x1xf32>
      %40 = tpu.matmul %37, %39, %cst_29 {dimension_numbers = #tpu.dot_dimension_numbers<[1], [0], [0], [1], [0, 0, 1, 1], [], []>} : vector<16x16xf32>, vector<16x1xf32>, vector<16x1xf32> -> vector<16x1xf32>
      %cst_30 = arith.constant 2.44140625E-4 : f32
      %41 = vector.broadcast %cst_30 : f32 to vector<16x1xf32>
      %42 = arith.mulf %40, %41 : vector<16x1xf32>
      %43 = vector.broadcast %42 : vector<16x1xf32> to vector<16x2048xf32>
      %44 = arith.subf %32, %43 : vector<16x2048xf32>
      %45 = arith.mulf %44, %44 : vector<16x2048xf32>
      %cst_31 = arith.constant dense<0.000000e+00> : vector<16xf32>
      %46 = vector.multi_reduction <add>, %45, %cst_31 [1] : vector<16x2048xf32> to vector<16xf32>
      %47 = vector.shape_cast %46 : vector<16xf32> to vector<16x1xf32>
      %cst_32 = arith.constant dense<0.000000e+00> : vector<16x1xf32>
      %48 = tpu.matmul %37, %47, %cst_32 {dimension_numbers = #tpu.dot_dimension_numbers<[1], [0], [0], [1], [0, 0, 1, 1], [], []>} : vector<16x16xf32>, vector<16x1xf32>, vector<16x1xf32> -> vector<16x1xf32>
      %cst_33 = arith.constant 2.44140625E-4 : f32
      %49 = vector.broadcast %cst_33 : f32 to vector<16x1xf32>
      %50 = arith.mulf %48, %49 : vector<16x1xf32>
      %cst_34 = arith.constant 9.99999974E-6 : f32
      %51 = vector.broadcast %cst_34 : f32 to vector<16x1xf32>
      %52 = arith.addf %50, %51 : vector<16x1xf32>
      %53 = math.rsqrt %52 : vector<16x1xf32>
      %54 = vector.broadcast %53 : vector<16x1xf32> to vector<16x2048xf32>
      %55 = arith.mulf %44, %54 : vector<16x2048xf32>
      %56 = vector.broadcast %34 : vector<16x1xf32> to vector<16x2048xf32>
      %57 = arith.mulf %55, %56 : vector<16x2048xf32>
      %58 = vector.broadcast %36 : vector<16x1xf32> to vector<16x2048xf32>
      %59 = arith.addf %57, %58 : vector<16x2048xf32>
      %cst_35 = arith.constant 0.000000e+00 : f32
      %60 = vector.broadcast %cst_35 : f32 to vector<16x2048xf32>
      %61 = arith.cmpf oge, %59, %60 : vector<16x2048xf32>
      %cst_36 = arith.constant 2.000000e-01 : f32
      %62 = vector.broadcast %cst_36 : f32 to vector<16x2048xf32>
      %63 = arith.mulf %62, %59 : vector<16x2048xf32>
      %64 = arith.select %61, %59, %63 : vector<16x2048xi1>, vector<16x2048xf32>
      %65 = arith.truncf %64 : vector<16x2048xf32> to vector<16x2048xbf16>
      %c0_37 = arith.constant 0 : index
      %c0_38 = arith.constant 0 : index
      %66 = vector.load %arg16[%c0_37, %c0_38] : memref<2048x64xbf16, #tpu.memory_space<vmem>>, vector<2048x64xbf16>
      %cst_39 = arith.constant dense<0.000000e+00> : vector<16x64xf32>
      %67 = tpu.matmul %65, %66, %cst_39 {dimension_numbers = #tpu.dot_dimension_numbers<[1], [0], [0], [1], [0, 0, 1, 1], [], []>} : vector<16x2048xbf16>, vector<2048x64xbf16>, vector<16x64xf32> -> vector<16x64xf32>
      %c0_40 = arith.constant 0 : index
      %c0_41 = arith.constant 0 : index
      %68 = vector.load %arg17[%c0_40, %c0_41] : memref<1x64xf32, #tpu.memory_space<vmem>>, vector<1x64xf32>
      %69 = vector.broadcast %68 : vector<1x64xf32> to vector<16x64xf32>
      %70 = arith.addf %67, %69 : vector<16x64xf32>
      %71 = math.tanh %70 : vector<16x64xf32>
      %c0_42 = arith.constant 0 : index
      %c0_43 = arith.constant 0 : index
      %72 = vector.load %arg18[%c0_42, %c0_43] : memref<16x64xf32, #tpu.memory_space<vmem>>, vector<16x64xf32>
      tpu.vector_store %arg18[%c0_42, %c0_43], %71 {strides = array<i32>} : memref<16x64xf32, #tpu.memory_space<vmem>>, vector<16x64xf32>,
    } else {
    }
    return
  }
  func.func @transform_0(%arg0: i32, %arg1: i32) -> (i32, i32) {
    %c0_i32 = arith.constant 0 : i32
    %c0_i32_0 = arith.constant 0 : i32
    %c0_i32_1 = arith.constant 0 : i32
    return %c0_i32, %c0_i32_0 : i32, i32
  }
  func.func @transform_1(%arg0: i32, %arg1: i32) -> (i32, i32) {
    %c0_i32 = arith.constant 0 : i32
    %c0_i32_0 = arith.constant 0 : i32
    %c0_i32_1 = arith.constant 0 : i32
    return %c0_i32, %c0_i32_0 : i32, i32
  }
  func.func @transform_2(%arg0: i32, %arg1: i32) -> (i32, i32) {
    %c0_i32 = arith.constant 0 : i32
    %c0_i32_0 = arith.constant 0 : i32
    %c0_i32_1 = arith.constant 0 : i32
    return %c0_i32, %c0_i32_0 : i32, i32
  }
  func.func @transform_3(%arg0: i32, %arg1: i32) -> (i32, i32) {
    %c0_i32 = arith.constant 0 : i32
    %c0_i32_0 = arith.constant 0 : i32
    %c0_i32_1 = arith.constant 0 : i32
    return %c0_i32, %c0_i32_0 : i32, i32
  }
  func.func @transform_4(%arg0: i32, %arg1: i32) -> (i32, i32) {
    %c0_i32 = arith.constant 0 : i32
    %c0_i32_0 = arith.constant 0 : i32
    %c0_i32_1 = arith.constant 0 : i32
    return %c0_i32, %c0_i32_0 : i32, i32
  }
  func.func @transform_5(%arg0: i32, %arg1: i32) -> (i32, i32) {
    %c0_i32 = arith.constant 0 : i32
    %c0_i32_0 = arith.constant 0 : i32
    %c0_i32_1 = arith.constant 0 : i32
    return %c0_i32, %c0_i32_0 : i32, i32
  }
  func.func @transform_6(%arg0: i32, %arg1: i32) -> (i32, i32) {
    %c0_i32 = arith.constant 0 : i32
    %c0_i32_0 = arith.constant 0 : i32
    %c0_i32_1 = arith.constant 0 : i32
    return %c0_i32, %c0_i32_0 : i32, i32
  }
  func.func @transform_7(%arg0: i32, %arg1: i32) -> (i32, i32) {
    %c0_i32 = arith.constant 0 : i32
    %c0_i32_0 = arith.constant 0 : i32
    %c0_i32_1 = arith.constant 0 : i32
    return %c0_i32, %c0_i32_0 : i32, i32
  }
  func.func @transform_8(%arg0: i32, %arg1: i32) -> (i32, i32) {
    %c0_i32 = arith.constant 0 : i32
    %c0_i32_0 = arith.constant 0 : i32
    %c0_i32_1 = arith.constant 0 : i32
    return %c0_i32, %c0_i32_0 : i32, i32
  }
  func.func @transform_9(%arg0: i32, %arg1: i32) -> (i32, i32) {
    %c0_i32 = arith.constant 0 : i32
    %c0_i32_0 = arith.constant 0 : i32
    %c0_i32_1 = arith.constant 0 : i32
    return %c0_i32, %c0_i32_0 : i32, i32
  }
  func.func @transform_10(%arg0: i32, %arg1: i32) -> (i32, i32, i32) {
    %c0_i32 = arith.constant 0 : i32
    %c0_i32_0 = arith.constant 0 : i32
    return %arg0, %arg1, %c0_i32 : i32, i32, i32
  }
  func.func @transform_11(%arg0: i32, %arg1: i32) -> (i32, i32, i32) {
    %c0_i32 = arith.constant 0 : i32
    %c0_i32_0 = arith.constant 0 : i32
    %c0_i32_1 = arith.constant 0 : i32
    return %arg0, %c0_i32, %c0_i32_0 : i32, i32, i32
  }
  func.func @transform_12(%arg0: i32, %arg1: i32) -> (i32, i32, i32) {
    %c0_i32 = arith.constant 0 : i32
    %c0_i32_0 = arith.constant 0 : i32
    %c0_i32_1 = arith.constant 0 : i32
    return %arg0, %c0_i32, %c0_i32_0 : i32, i32, i32
  }
  func.func @transform_13(%arg0: i32, %arg1: i32) -> (i32, i32, i32) {
    %c0_i32 = arith.constant 0 : i32
    %c0_i32_0 = arith.constant 0 : i32
    %c0_i32_1 = arith.constant 0 : i32
    return %arg0, %c0_i32, %c0_i32_0 : i32, i32, i32
  }
  func.func @transform_14(%arg0: i32, %arg1: i32) -> (i32, i32) {
    %c0_i32 = arith.constant 0 : i32
    %c0_i32_0 = arith.constant 0 : i32
    %c0_i32_1 = arith.constant 0 : i32
    return %c0_i32, %c0_i32_0 : i32, i32
  }
  func.func @transform_15(%arg0: i32, %arg1: i32) -> (i32, i32) {
    %c0_i32 = arith.constant 0 : i32
    %c0_i32_0 = arith.constant 0 : i32
    %c0_i32_1 = arith.constant 0 : i32
    return %c0_i32, %c0_i32_0 : i32, i32
  }
  func.func @transform_16(%arg0: i32, %arg1: i32) -> (i32, i32) {
    %c0_i32 = arith.constant 0 : i32
    %c0_i32_0 = arith.constant 0 : i32
    %c0_i32_1 = arith.constant 0 : i32
    return %c0_i32, %c0_i32_0 : i32, i32
  }
}

</mosaic_0001>

<llo_original>
// kernel: tile.2
$region0: #{tile.2}
  %s0 = inlined_call_operand.vmem [shape: f32[2,8], index: 0, kind: input, shape index: {}]
  %s1 = inlined_call_operand.vmem [shape: f32[16,1], index: 1, kind: output, shape index: {}]
  $region1: #{tile.2} parent=0
    #allocation0 [shape = 'u8[4096]{0}', space=vmem, size = 0x1000, scoped, tag = 'scoped mem for input reshape']
    %s3 = sshllo.u32 0, 2
    %v4 = vld [vmem:[%s0] sm:%s3]
    %5 = vst [vmem:[#allocation0] sm:%s3] %v4
    %v6 = vld [vmem:[#allocation0] sm:$0x3]
    %vm7 = vcmask 7168
    %8 = vst.msk [vmem:[%s1] ss:$8 sm:$0x3] %vm7, %v6
    %v9 = vld [vmem:[#allocation0] sm:$0x3]
    %10 = vrot.lane.b32.xlu0 %v9, 127
    %v11 = vpop.permute.xlu0 %10
    %vm12 = vcmask 7168
    %s13 = scalar_lea.vmem %s1, 1
    %14 = vst.msk [vmem:[%s13] ss:$8 sm:$0x3] %vm12, %v11
    %v15 = vld [vmem:[#allocation0] sm:$0x3]
    %16 = vrot.lane.b32.xlu0 %v15, 126
    %v17 = vpop.permute.xlu0 %16
    %vm18 = vcmask 7168
    %s19 = scalar_lea.vmem %s1, 2
    %20 = vst.msk [vmem:[%s19] ss:$8 sm:$0x3] %vm18, %v17
    %v21 = vld [vmem:[#allocation0] sm:$0x3]
    %22 = vrot.lane.b32.xlu0 %v21, 125
    %v23 = vpop.permute.xlu0 %22
    %vm24 = vcmask 7168
    %s25 = scalar_lea.vmem %s1, 3
    %26 = vst.msk [vmem:[%s25] ss:$8 sm:$0x3] %vm24, %v23
    %v27 = vld [vmem:[#allocation0] sm:$0x3]
    %28 = vrot.lane.b32.xlu0 %v27, 124
    %v29 = vpop.permute.xlu0 %28
    %vm30 = vcmask 7168
    %s31 = scalar_lea.vmem %s1, 4
    %32 = vst.msk [vmem:[%s31] ss:$8 sm:$0x3] %vm30, %v29
    %v33 = vld [vmem:[#allocation0] sm:$0x3]
    %34 = vrot.lane.b32.xlu0 %v33, 123
    %v35 = vpop.permute.xlu0 %34
    %vm36 = vcmask 7168
    %s37 = scalar_lea.vmem %s1, 5
    %38 = vst.msk [vmem:[%s37] ss:$8 sm:$0x3] %vm36, %v35
    %v39 = vld [vmem:[#allocation0] sm:$0x3]
    %40 = vrot.lane.b32.xlu0 %v39, 122
    %v41 = vpop.permute.xlu0 %40
    %vm42 = vcmask 7168
    %s43 = scalar_lea.vmem %s1, 6
    %44 = vst.msk [vmem:[%s43] ss:$8 sm:$0x3] %vm42, %v41
    %v45 = vld [vmem:[#allocation0] sm:$0x3]
    %46 = vrot.lane.b32.xlu0 %v45, 121
    %v47 = vpop.permute.xlu0 %46
    %vm48 = vcmask 7168
    %s49 = scalar_lea.vmem %s1, 7
    %50 = vst.msk [vmem:[%s49] ss:$8 sm:$0x3] %vm48, %v47

// kernel: tile.5
$region0: #{tile.5}
  %s0 = inlined_call_operand.vmem [shape: f32[2,8], index: 0, kind: input, shape index: {}]
  %s1 = inlined_call_operand.vmem [shape: f32[1,16,1], index: 1, kind: output, shape index: {}]
  $region1: #{tile.5} parent=0
    #allocation0 [shape = 'u8[4096]{0}', space=vmem, size = 0x1000, scoped, tag = 'scoped mem for input reshape']
    %s3 = sshllo.u32 0, 2
    %v4 = vld [vmem:[%s0] sm:%s3]
    %5 = vst [vmem:[#allocation0] sm:%s3] %v4
    %v6 = vld [vmem:[#allocation0] sm:$0x3]
    %vm7 = vcmask 7168
    %8 = vst.msk [vmem:[%s1] ss:$8 sm:$0x3] %vm7, %v6
    %v9 = vld [vmem:[#allocation0] sm:$0x3]
    %10 = vrot.lane.b32.xlu0 %v9, 127
    %v11 = vpop.permute.xlu0 %10
    %vm12 = vcmask 7168
    %s13 = scalar_lea.vmem %s1, 1
    %14 = vst.msk [vmem:[%s13] ss:$8 sm:$0x3] %vm12, %v11
    %v15 = vld [vmem:[#allocation0] sm:$0x3]
    %16 = vrot.lane.b32.xlu0 %v15, 126
    %v17 = vpop.permute.xlu0 %16
    %vm18 = vcmask 7168
    %s19 = scalar_lea.vmem %s1, 2
    %20 = vst.msk [vmem:[%s19] ss:$8 sm:$0x3] %vm18, %v17
    %v21 = vld [vmem:[#allocation0] sm:$0x3]
    %22 = vrot.lane.b32.xlu0 %v21, 125
    %v23 = vpop.permute.xlu0 %22
    %vm24 = vcmask 7168
    %s25 = scalar_lea.vmem %s1, 3
    %26 = vst.msk [vmem:[%s25] ss:$8 sm:$0x3] %vm24, %v23
    %v27 = vld [vmem:[#allocation0] sm:$0x3]
    %28 = vrot.lane.b32.xlu0 %v27, 124
    %v29 = vpop.permute.xlu0 %28
    %vm30 = vcmask 7168
    %s31 = scalar_lea.vmem %s1, 4
    %32 = vst.msk [vmem:[%s31] ss:$8 sm:$0x3] %vm30, %v29
    %v33 = vld [vmem:[#allocation0] sm:$0x3]
    %34 = vrot.lane.b32.xlu0 %v33, 123
    %v35 = vpop.permute.xlu0 %34
    %vm36 = vcmask 7168
    %s37 = scalar_lea.vmem %s1, 5
    %38 = vst.msk [vmem:[%s37] ss:$8 sm:$0x3] %vm36, %v35
    %v39 = vld [vmem:[#allocation0] sm:$0x3]
    %40 = vrot.lane.b32.xlu0 %v39, 122
    %v41 = vpop.permute.xlu0 %40
    %vm42 = vcmask 7168
    %s43 = scalar_lea.vmem %s1, 6
    %44 = vst.msk [vmem:[%s43] ss:$8 sm:$0x3] %vm42, %v41
    %v45 = vld [vmem:[#allocation0] sm:$0x3]
    %46 = vrot.lane.b32.xlu0 %v45, 121
    %v47 = vpop.permute.xlu0 %46
    %vm48 = vcmask 7168
    %s49 = scalar_lea.vmem %s1, 7
    %50 = vst.msk [vmem:[%s49] ss:$8 sm:$0x3] %vm48, %v47

// kernel: tile.48
$region0: #{tile.48}
  #allocation2 [shape = 's32[1]{0}', space=sflag, size = 0x4, scoped, tag = 'scoped memory for tile.48']
  %s0 = inlined_call_operand.hbm [shape: f32[8], index: 0, kind: input, shape index: {}]
  %s1 = inlined_call_operand.vmem [shape: f32[2,8], index: 1, kind: output, shape index: {}]
  $region1: #{tile.48} parent=0
    #allocation0 [shape = 'u8[512]{0}', space=vmem, size = 0x400, scoped, tag = 'operand span for operand 0']
    #allocation1 [shape = 's32[1]{0}', space=sflag, size = 0x4, scoped, tag = 'scoped memory for tile.48']
    %2 = vsyncpa [#allocation1], 0
    // Predicated region
    $region2: #{tile.48} parent=1 // pred_check
      _
    $region3: #{tile.48} parent=1 // pred_check_branch
      %4 = sbr.rel (0) target = $region5
    $region4: #{tile.48} parent=1 // pred_region
      %s6 = ssub.s32 16, 16
      %7 = vsyncadd [#allocation1], %s6
      %s9 = sshll.u32 [#allocation0], 4
      %s10 = int_to_ptr.vmem [resolvable:$true] %s9
      %12 = dma.hbm_to_vmem [thread:$0]  %s0, 16, %s10, [#allocation1]
    $region5: #{tile.48} parent=1 // pred_fallthru
      _
    // Predicated region
    $region6: #{tile.48} parent=1 // pred_check
      _
    $region7: #{tile.48} parent=1 // pred_check_branch
      %14 = sbr.rel (0) target = $region9
    $region8: #{tile.48} parent=1 // pred_region
      %15 = dma.done [#allocation1], 16
    $region9: #{tile.48} parent=1 // pred_fallthru
      _
    %v16 = vld [vmem:[#allocation0] ss:$0 sm:$0xff]
    %17 = vst [vmem:[%s1] sm:$0x3] %v16
    %18 = vsyncpa [#allocation1], 1

// kernel: generator_forward.1
$region0: #{generator_forward.1}
  #allocation0 [shape = 'u32[]', space=smem, size = 0x4, offset = 0x4, fixed_abs, tag = 'smem constant byte address 0x4 - core index']
  #allocation1 [shape = 'u32[144,128]{1,0:T(1,128)}', space=vmem, size = 0x12000, scoped, tag = 'internal scratch']
  #allocation2 [shape = 'bf16[16,2048]{1,0:T(16,128)(2,1)}', space=vmem, size = 0x10000, scoped, tag = 'scratch operand']
  #allocation3 [shape = 'f32[16,2048]{1,0:T(8,128)}', space=vmem, size = 0x20000, scoped, tag = 'scratch operand']
  %s0 = inlined_call_operand.vmem [shape: f32[16,32], index: 0, kind: input, shape index: {}]
  %s1 = inlined_call_operand.vmem [shape: f32[16,16], index: 1, kind: input, shape index: {}]
  %s2 = inlined_call_operand.hbm [shape: bf16[32,128], index: 2, kind: input, shape index: {}]
  %s3 = inlined_call_operand.hbm [shape: f32[1,128], index: 3, kind: input, shape index: {}]
  %s4 = inlined_call_operand.vmem [shape: f32[16,1], index: 4, kind: input, shape index: {}]
  %s5 = inlined_call_operand.vmem [shape: f32[16,1], index: 5, kind: input, shape index: {}]
  %s6 = inlined_call_operand.hbm [shape: bf16[128,2048], index: 6, kind: input, shape index: {}]
  %s7 = inlined_call_operand.hbm [shape: f32[1,2048], index: 7, kind: input, shape index: {}]
  %s8 = inlined_call_operand.vmem [shape: f32[16,1], index: 8, kind: input, shape index: {}]
  %s9 = inlined_call_operand.vmem [shape: f32[16,1], index: 9, kind: input, shape index: {}]
  %s10 = inlined_call_operand.hbm [shape: bf16[2,2048,2048], index: 10, kind: input, shape index: {}]
  %s11 = inlined_call_operand.vmem [shape: f32[2,1,2048], index: 11, kind: input, shape index: {}]
  %s12 = inlined_call_operand.vmem [shape: f32[2,16,1], index: 12, kind: input, shape index: {}]
  %s13 = inlined_call_operand.vmem [shape: f32[2,16,1], index: 13, kind: input, shape index: {}]
  %s14 = inlined_call_operand.vmem [shape: bf16[2048,64], index: 14, kind: input, shape index: {}]
  %s15 = inlined_call_operand.hbm [shape: f32[1,64], index: 15, kind: input, shape index: {}]
  %s16 = inlined_call_operand.vmem [shape: f32[16,64], index: 16, kind: output, shape index: {}]
  %s17 = sld [smem:[#allocation0]]
  $region137: #{generator_forward.1} parent=0
    _
  %s19 = ssub.s32 1, %s17
  %s20 = scalar_select 0, %s19, %s17
  $region1: #{generator_forward.1} parent=0
    #allocation4 [shape = 'u8[8192]{0}', space=vmem, size = 0x2000, scoped, tag = 'input window, operand 2, single buffered']
    #allocation5 [shape = 's32[2]{0}', space=sflag, size = 0x8, scoped, tag = 'scoped memory for generator_forward.1']
    #allocation6 [shape = 'u8[512]{0}', space=vmem, size = 0x400, scoped, tag = 'input window, operand 3, single buffered']
    #allocation7 [shape = 's32[1]{0}', space=sflag, size = 0x4, scoped, tag = 'scoped memory for generator_forward.1']
    #allocation8 [shape = 'u8[524288]{0}', space=vmem, size = 0x80000, scoped, tag = 'input window, operand 6, single buffered']
    #allocation9 [shape = 'u8[8192]{0}', space=vmem, size = 0x2000, scoped, tag = 'input window, operand 7, single buffered']
    #allocation10 [shape = 's32[1]{0}', space=sflag, size = 0x4, scoped, tag = 'scoped memory for generator_forward.1']
    #allocation11 [shape = 'u8[4194304]{0}', space=vmem, size = 0x400000, scoped, tag = 'input window, operand 10']
    #allocation12 [shape = 'u8[512]{0}', space=vmem, size = 0x400, scoped, tag = 'input window, operand 15, single buffered']
    %21 = vsyncpa [#allocation5], 0
    %22 = vsyncpa [#allocation7], 0
    %23 = vsyncpa [#allocation10], 0
    loop: start=0, step=1, limit=10
    $region2: #{generator_forward.1} parent=1 // loop_pre_header
      _
    $region3: #{generator_forward.1} parent=1 // loop_header
      %s25 = sphi 0, %s29
      %p26 = scmp.ge.s32.totalorder %s25, 10
      %s32 = sphi 0, %s44
      %s33 = sphi 0, %s40
      %s34 = sphi 0, %s32
      %s35 = sphi 0, %s33
      %s36 = sphi 0, %s34
      %s37 = sphi 0, %s35
      %s45 = sphi 0, %s45
      %s47 = sphi 0, %s45
      %s48 = sphi 0, %s47
      %s62 = sphi 0, %s48
      %s66 = sphi 0, %s66
      %s68 = sphi 0, %s66
      %s69 = sphi 0, %s68
      %s83 = sphi 0, %s69
      %s87 = sphi 0, %s87
      %s89 = sphi 0, %s87
      %s90 = sphi 0, %s89
      %s104 = sphi 0, %s90
      %s108 = sphi 0, %s108
      %s110 = sphi 0, %s108
      %s111 = sphi 0, %s110
      %s125 = sphi 0, %s111
      %s129 = sphi 0, %s129
      %s131 = sphi 0, %s129
      %s132 = sphi 0, %s131
      %s146 = sphi 0, %s132
      %s150 = sphi 0, %s150
      %s152 = sphi 0, %s150
      %s153 = sphi 0, %s152
      %s167 = sphi 0, %s153
      %s171 = sphi 0, %s171
      %s173 = sphi 0, %s171
      %s174 = sphi 0, %s173
      %s188 = sphi 0, %s174
      %s192 = sphi 0, %s192
      %s194 = sphi 0, %s192
      %s195 = sphi 0, %s194
      %s209 = sphi 0, %s195
      %s213 = sphi 0, %s213
      %s215 = sphi 0, %s213
      %s216 = sphi 0, %s215
      %s230 = sphi 0, %s216
      %s234 = sphi 0, %s234
      %s236 = sphi 0, %s234
      %s237 = sphi 0, %s236
      %s251 = sphi 0, %s237
      %s259 = sphi 0, %s261
      %s262 = sphi 0, %s259
      %s263 = sphi 0, %s262
      %s279 = sphi 0, %s263
      %s285 = sphi 0, %s287
      %s288 = sphi 0, %s285
      %s289 = sphi 0, %s288
      %s305 = sphi 0, %s289
      %s311 = sphi 0, %s313
      %s314 = sphi 0, %s311
      %s315 = sphi 0, %s314
      %s331 = sphi 0, %s315
      %s337 = sphi 0, %s339
      %s340 = sphi 0, %s337
      %s341 = sphi 0, %s340
      %s357 = sphi 0, %s341
      %s361 = sphi 0, %s361
      %s363 = sphi 0, %s361
      %s364 = sphi 0, %s363
      %s378 = sphi 0, %s364
      %s382 = sphi 0, %s382
      %s384 = sphi 0, %s382
      %s385 = sphi 0, %s384
      %s399 = sphi 0, %s385
      %s403 = sphi 0, %s403
      %s405 = sphi 0, %s403
      %s406 = sphi 0, %s405
      %s420 = sphi 0, %s406
    $region4: #{generator_forward.1} parent=1 // loop_header_branch
      %28 = sbr.rel (%p26) target = $region8
    $region5: #{generator_forward.1} parent=1 // loop_body
      %s30 = ssub.s32 %s25, 1
      %s31 = ssub.s32 %s25, 2
      %s38 = sadd.s32 1, %s33
      %p39 = scmp.ge.s32.totalorder %s38, 4
      %s40 = scalar_select %p39, 0, %s38
      %s41 = sadd.s32 1, %s32
      %s42 = scalar_select %p39, %s41, %s32
      %p43 = scmp.ge.s32.totalorder %s42, 2
      %s44 = scalar_select %p43, 0, %s42
      %s46 = sadd.s32 %s45, 1
      %p49 = scmp.eq.s32.totalorder %s25, 7
      %p50 = scmp.ne.s32.totalorder %s45, %s47
      %p51 = scmp.eq.s32.totalorder %s25, 0
      %p52 = por %p50, %p51
      %p53 = scmp.ne.s32.totalorder %s45, %s47
      %p54 = scmp.eq.s32.totalorder %s30, 7
      %p55 = por %p53, %p54
      %p56 = scmp.ne.s32.totalorder %s47, %s48
      %p57 = scmp.eq.s32.totalorder %s30, 0
      %p58 = por %p56, %p57
      %p59 = scmp.ne.s32.totalorder %s47, %s48
      %p60 = scmp.eq.s32.totalorder %s31, 7
      %p61 = por %p59, %p60
      %p63 = scmp.ne.s32.totalorder %s48, %s62
      %p64 = scmp.eq.s32.totalorder %s31, 0
      %p65 = por %p63, %p64
      %s67 = sadd.s32 %s66, 1
      %p70 = scmp.eq.s32.totalorder %s25, 7
      %p71 = scmp.ne.s32.totalorder %s66, %s68
      %p72 = scmp.eq.s32.totalorder %s25, 0
      %p73 = por %p71, %p72
      %p74 = scmp.ne.s32.totalorder %s66, %s68
      %p75 = scmp.eq.s32.totalorder %s30, 7
      %p76 = por %p74, %p75
      %p77 = scmp.ne.s32.totalorder %s68, %s69
      %p78 = scmp.eq.s32.totalorder %s30, 0
      %p79 = por %p77, %p78
      %p80 = scmp.ne.s32.totalorder %s68, %s69
      %p81 = scmp.eq.s32.totalorder %s31, 7
      %p82 = por %p80, %p81
      %p84 = scmp.ne.s32.totalorder %s69, %s83
      %p85 = scmp.eq.s32.totalorder %s31, 0
      %p86 = por %p84, %p85
      %s88 = sadd.s32 %s87, 1
      %p91 = scmp.eq.s32.totalorder %s25, 7
      %p92 = scmp.ne.s32.totalorder %s87, %s89
      %p93 = scmp.eq.s32.totalorder %s25, 0
      %p94 = por %p92, %p93
      %p95 = scmp.ne.s32.totalorder %s87, %s89
      %p96 = scmp.eq.s32.totalorder %s30, 7
      %p97 = por %p95, %p96
      %p98 = scmp.ne.s32.totalorder %s89, %s90
      %p99 = scmp.eq.s32.totalorder %s30, 0
      %p100 = por %p98, %p99
      %p101 = scmp.ne.s32.totalorder %s89, %s90
      %p102 = scmp.eq.s32.totalorder %s31, 7
      %p103 = por %p101, %p102
      %p105 = scmp.ne.s32.totalorder %s90, %s104
      %p106 = scmp.eq.s32.totalorder %s31, 0
      %p107 = por %p105, %p106
      %s109 = sadd.s32 %s108, 1
      %p112 = scmp.eq.s32.totalorder %s25, 7
      %p113 = scmp.ne.s32.totalorder %s108, %s110
      %p114 = scmp.eq.s32.totalorder %s25, 0
      %p115 = por %p113, %p114
      %p116 = scmp.ne.s32.totalorder %s108, %s110
      %p117 = scmp.eq.s32.totalorder %s30, 7
      %p118 = por %p116, %p117
      %p119 = scmp.ne.s32.totalorder %s110, %s111
      %p120 = scmp.eq.s32.totalorder %s30, 0
      %p121 = por %p119, %p120
      %p122 = scmp.ne.s32.totalorder %s110, %s111
      %p123 = scmp.eq.s32.totalorder %s31, 7
      %p124 = por %p122, %p123
      %p126 = scmp.ne.s32.totalorder %s111, %s125
      %p127 = scmp.eq.s32.totalorder %s31, 0
      %p128 = por %p126, %p127
      %s130 = sadd.s32 %s129, 1
      %p133 = scmp.eq.s32.totalorder %s25, 7
      %p134 = scmp.ne.s32.totalorder %s129, %s131
      %p135 = scmp.eq.s32.totalorder %s25, 0
      %p136 = por %p134, %p135
      %p137 = scmp.ne.s32.totalorder %s129, %s131
      %p138 = scmp.eq.s32.totalorder %s30, 7
      %p139 = por %p137, %p138
      %p140 = scmp.ne.s32.totalorder %s131, %s132
      %p141 = scmp.eq.s32.totalorder %s30, 0
      %p142 = por %p140, %p141
      %p143 = scmp.ne.s32.totalorder %s131, %s132
      %p144 = scmp.eq.s32.totalorder %s31, 7
      %p145 = por %p143, %p144
      %p147 = scmp.ne.s32.totalorder %s132, %s146
      %p148 = scmp.eq.s32.totalorder %s31, 0
      %p149 = por %p147, %p148
      %s151 = sadd.s32 %s150, 1
      %p154 = scmp.eq.s32.totalorder %s25, 7
      %p155 = scmp.ne.s32.totalorder %s150, %s152
      %p156 = scmp.eq.s32.totalorder %s25, 0
      %p157 = por %p155, %p156
      %p158 = scmp.ne.s32.totalorder %s150, %s152
      %p159 = scmp.eq.s32.totalorder %s30, 7
      %p160 = por %p158, %p159
      %p161 = scmp.ne.s32.totalorder %s152, %s153
      %p162 = scmp.eq.s32.totalorder %s30, 0
      %p163 = por %p161, %p162
      %p164 = scmp.ne.s32.totalorder %s152, %s153
      %p165 = scmp.eq.s32.totalorder %s31, 7
      %p166 = por %p164, %p165
      %p168 = scmp.ne.s32.totalorder %s153, %s167
      %p169 = scmp.eq.s32.totalorder %s31, 0
      %p170 = por %p168, %p169
      %s172 = sadd.s32 %s171, 1
      %p175 = scmp.eq.s32.totalorder %s25, 7
      %p176 = scmp.ne.s32.totalorder %s171, %s173
      %p177 = scmp.eq.s32.totalorder %s25, 0
      %p178 = por %p176, %p177
      %p179 = scmp.ne.s32.totalorder %s171, %s173
      %p180 = scmp.eq.s32.totalorder %s30, 7
      %p181 = por %p179, %p180
      %p182 = scmp.ne.s32.totalorder %s173, %s174
      %p183 = scmp.eq.s32.totalorder %s30, 0
      %p184 = por %p182, %p183
      %p185 = scmp.ne.s32.totalorder %s173, %s174
      %p186 = scmp.eq.s32.totalorder %s31, 7
      %p187 = por %p185, %p186
      %p189 = scmp.ne.s32.totalorder %s174, %s188
      %p190 = scmp.eq.s32.totalorder %s31, 0
      %p191 = por %p189, %p190
      %s193 = sadd.s32 %s192, 1
      %p196 = scmp.eq.s32.totalorder %s25, 7
      %p197 = scmp.ne.s32.totalorder %s192, %s194
      %p198 = scmp.eq.s32.totalorder %s25, 0
      %p199 = por %p197, %p198
      %p200 = scmp.ne.s32.totalorder %s192, %s194
      %p201 = scmp.eq.s32.totalorder %s30, 7
      %p202 = por %p200, %p201
      %p203 = scmp.ne.s32.totalorder %s194, %s195
      %p204 = scmp.eq.s32.totalorder %s30, 0
      %p205 = por %p203, %p204
      %p206 = scmp.ne.s32.totalorder %s194, %s195
      %p207 = scmp.eq.s32.totalorder %s31, 7
      %p208 = por %p206, %p207
      %p210 = scmp.ne.s32.totalorder %s195, %s209
      %p211 = scmp.eq.s32.totalorder %s31, 0
      %p212 = por %p210, %p211
      %s214 = sadd.s32 %s213, 1
      %p217 = scmp.eq.s32.totalorder %s25, 7
      %p218 = scmp.ne.s32.totalorder %s213, %s215
      %p219 = scmp.eq.s32.totalorder %s25, 0
      %p220 = por %p218, %p219
      %p221 = scmp.ne.s32.totalorder %s213, %s215
      %p222 = scmp.eq.s32.totalorder %s30, 7
      %p223 = por %p221, %p222
      %p224 = scmp.ne.s32.totalorder %s215, %s216
      %p225 = scmp.eq.s32.totalorder %s30, 0
      %p226 = por %p224, %p225
      %p227 = scmp.ne.s32.totalorder %s215, %s216
      %p228 = scmp.eq.s32.totalorder %s31, 7
      %p229 = por %p227, %p228
      %p231 = scmp.ne.s32.totalorder %s216, %s230
      %p232 = scmp.eq.s32.totalorder %s31, 0
      %p233 = por %p231, %p232
      %s235 = sadd.s32 %s234, 1
      %p238 = scmp.eq.s32.totalorder %s25, 7
      %p239 = scmp.ne.s32.totalorder %s234, %s236
      %p240 = scmp.eq.s32.totalorder %s25, 0
      %p241 = por %p239, %p240
      %p242 = scmp.ne.s32.totalorder %s234, %s236
      %p243 = scmp.eq.s32.totalorder %s30, 7
      %p244 = por %p242, %p243
      %p245 = scmp.ne.s32.totalorder %s236, %s237
      %p246 = scmp.eq.s32.totalorder %s30, 0
      %p247 = por %p245, %p246
      %p248 = scmp.ne.s32.totalorder %s236, %s237
      %p249 = scmp.eq.s32.totalorder %s31, 7
      %p250 = por %p248, %p249
      %p252 = scmp.ne.s32.totalorder %s237, %s251
      %p253 = scmp.eq.s32.totalorder %s31, 0
      %p254 = por %p252, %p253
      %s255 = ssub.s32 %s32, %s44
      %s256 = ssub.s32 %s33, %s40
      %s257 = sor.u32 %s255, %s256
      %p258 = scmp.eq.s32.totalorder %s257, 0
      %s260 = sadd.s32 %s259, 1
      %s261 = scalar_select %p258, %s259, %s260
      %p264 = pneg %p258
      %p265 = scmp.eq.s32.totalorder %s25, 7
      %p266 = por %p264, %p265
      %p267 = scmp.ne.s32.totalorder %s259, %s262
      %p268 = scmp.eq.s32.totalorder %s25, 0
      %p269 = por %p267, %p268
      %p270 = scmp.ne.s32.totalorder %s259, %s262
      %p271 = scmp.eq.s32.totalorder %s30, 7
      %p272 = por %p270, %p271
      %p273 = scmp.ne.s32.totalorder %s262, %s263
      %p274 = scmp.eq.s32.totalorder %s30, 0
      %p275 = por %p273, %p274
      %p276 = scmp.ne.s32.totalorder %s262, %s263
      %p277 = scmp.eq.s32.totalorder %s31, 7
      %p278 = por %p276, %p277
      %p280 = scmp.ne.s32.totalorder %s263, %s279
      %p281 = scmp.eq.s32.totalorder %s31, 0
      %p282 = por %p280, %p281
      %s283 = ssub.s32 %s32, %s44
      %p284 = scmp.eq.s32.totalorder %s283, 0
      %s286 = sadd.s32 %s285, 1
      %s287 = scalar_select %p284, %s285, %s286
      %p290 = pneg %p284
      %p291 = scmp.eq.s32.totalorder %s25, 7
      %p292 = por %p290, %p291
      %p293 = scmp.ne.s32.totalorder %s285, %s288
      %p294 = scmp.eq.s32.totalorder %s25, 0
      %p295 = por %p293, %p294
      %p296 = scmp.ne.s32.totalorder %s285, %s288
      %p297 = scmp.eq.s32.totalorder %s30, 7
      %p298 = por %p296, %p297
      %p299 = scmp.ne.s32.totalorder %s288, %s289
      %p300 = scmp.eq.s32.totalorder %s30, 0
      %p301 = por %p299, %p300
      %p302 = scmp.ne.s32.totalorder %s288, %s289
      %p303 = scmp.eq.s32.totalorder %s31, 7
      %p304 = por %p302, %p303
      %p306 = scmp.ne.s32.totalorder %s289, %s305
      %p307 = scmp.eq.s32.totalorder %s31, 0
      %p308 = por %p306, %p307
      %s309 = ssub.s32 %s32, %s44
      %p310 = scmp.eq.s32.totalorder %s309, 0
      %s312 = sadd.s32 %s311, 1
      %s313 = scalar_select %p310, %s311, %s312
      %p316 = pneg %p310
      %p317 = scmp.eq.s32.totalorder %s25, 7
      %p318 = por %p316, %p317
      %p319 = scmp.ne.s32.totalorder %s311, %s314
      %p320 = scmp.eq.s32.totalorder %s25, 0
      %p321 = por %p319, %p320
      %p322 = scmp.ne.s32.totalorder %s311, %s314
      %p323 = scmp.eq.s32.totalorder %s30, 7
      %p324 = por %p322, %p323
      %p325 = scmp.ne.s32.totalorder %s314, %s315
      %p326 = scmp.eq.s32.totalorder %s30, 0
      %p327 = por %p325, %p326
      %p328 = scmp.ne.s32.totalorder %s314, %s315
      %p329 = scmp.eq.s32.totalorder %s31, 7
      %p330 = por %p328, %p329
      %p332 = scmp.ne.s32.totalorder %s315, %s331
      %p333 = scmp.eq.s32.totalorder %s31, 0
      %p334 = por %p332, %p333
      %s335 = ssub.s32 %s32, %s44
      %p336 = scmp.eq.s32.totalorder %s335, 0
      %s338 = sadd.s32 %s337, 1
      %s339 = scalar_select %p336, %s337, %s338
      %p342 = pneg %p336
      %p343 = scmp.eq.s32.totalorder %s25, 7
      %p344 = por %p342, %p343
      %p345 = scmp.ne.s32.totalorder %s337, %s340
      %p346 = scmp.eq.s32.totalorder %s25, 0
      %p347 = por %p345, %p346
      %p348 = scmp.ne.s32.totalorder %s337, %s340
      %p349 = scmp.eq.s32.totalorder %s30, 7
      %p350 = por %p348, %p349
      %p351 = scmp.ne.s32.totalorder %s340, %s341
      %p352 = scmp.eq.s32.totalorder %s30, 0
      %p353 = por %p351, %p352
      %p354 = scmp.ne.s32.totalorder %s340, %s341
      %p355 = scmp.eq.s32.totalorder %s31, 7
      %p356 = por %p354, %p355
      %p358 = scmp.ne.s32.totalorder %s341, %s357
      %p359 = scmp.eq.s32.totalorder %s31, 0
      %p360 = por %p358, %p359
      %s362 = sadd.s32 %s361, 1
      %p365 = scmp.eq.s32.totalorder %s25, 7
      %p366 = scmp.ne.s32.totalorder %s361, %s363
      %p367 = scmp.eq.s32.totalorder %s25, 0
      %p368 = por %p366, %p367
      %p369 = scmp.ne.s32.totalorder %s361, %s363
      %p370 = scmp.eq.s32.totalorder %s30, 7
      %p371 = por %p369, %p370
      %p372 = scmp.ne.s32.totalorder %s363, %s364
      %p373 = scmp.eq.s32.totalorder %s30, 0
      %p374 = por %p372, %p373
      %p375 = scmp.ne.s32.totalorder %s363, %s364
      %p376 = scmp.eq.s32.totalorder %s31, 7
      %p377 = por %p375, %p376
      %p379 = scmp.ne.s32.totalorder %s364, %s378
      %p380 = scmp.eq.s32.totalorder %s31, 0
      %p381 = por %p379, %p380
      %s383 = sadd.s32 %s382, 1
      %p386 = scmp.eq.s32.totalorder %s25, 7
      %p387 = scmp.ne.s32.totalorder %s382, %s384
      %p388 = scmp.eq.s32.totalorder %s25, 0
      %p389 = por %p387, %p388
      %p390 = scmp.ne.s32.totalorder %s382, %s384
      %p391 = scmp.eq.s32.totalorder %s30, 7
      %p392 = por %p390, %p391
      %p393 = scmp.ne.s32.totalorder %s384, %s385
      %p394 = scmp.eq.s32.totalorder %s30, 0
      %p395 = por %p393, %p394
      %p396 = scmp.ne.s32.totalorder %s384, %s385
      %p397 = scmp.eq.s32.totalorder %s31, 7
      %p398 = por %p396, %p397
      %p400 = scmp.ne.s32.totalorder %s385, %s399
      %p401 = scmp.eq.s32.totalorder %s31, 0
      %p402 = por %p400, %p401
      %s404 = sadd.s32 %s403, 1
      %p407 = scmp.eq.s32.totalorder %s25, 7
      %p408 = scmp.ne.s32.totalorder %s403, %s405
      %p409 = scmp.eq.s32.totalorder %s25, 0
      %p410 = por %p408, %p409
      %p411 = scmp.ne.s32.totalorder %s403, %s405
      %p412 = scmp.eq.s32.totalorder %s30, 7
      %p413 = por %p411, %p412
      %p414 = scmp.ne.s32.totalorder %s405, %s406
      %p415 = scmp.eq.s32.totalorder %s30, 0
      %p416 = por %p414, %p415
      %p417 = scmp.ne.s32.totalorder %s405, %s406
      %p418 = scmp.eq.s32.totalorder %s31, 7
      %p419 = por %p417, %p418
      %p421 = scmp.ne.s32.totalorder %s406, %s420
      %p422 = scmp.eq.s32.totalorder %s31, 0
      %p423 = por %p421, %p422
      %p424 = scmp.le.s32.totalorder 1, %s25
      %p425 = scmp.lt.s32.totalorder %s25, 9
      %p426 = pnand %p424, %p425
      %p427 = pneg %p426
      // Predicated region
      $region9: #{generator_forward.1} parent=5 // pred_check
        _
      $region10: #{generator_forward.1} parent=5 // pred_check_branch
        %429 = sbr.rel (%p426) target = $region12
      $region11: #{generator_forward.1} parent=5 // pred_region
        %s430 = ssub.s32 %s25, 1
        // Predicated region
        $region13: #{generator_forward.1} parent=11 // pred_check
          %p431 = pneg %p58
        $region14: #{generator_forward.1} parent=11 // pred_check_branch
          %433 = sbr.rel (%p431) target = $region16
        $region15: #{generator_forward.1} parent=11 // pred_region
          _
        $region16: #{generator_forward.1} parent=11 // pred_fallthru
          _
        // Predicated region
        $region17: #{generator_forward.1} parent=11 // pred_check
          %p434 = pneg %p79
        $region18: #{generator_forward.1} parent=11 // pred_check_branch
          %436 = sbr.rel (%p434) target = $region20
        $region19: #{generator_forward.1} parent=11 // pred_region
          _
        $region20: #{generator_forward.1} parent=11 // pred_fallthru
          _
        // Predicated region
        $region21: #{generator_forward.1} parent=11 // pred_check
          %p437 = pneg %p100
        $region22: #{generator_forward.1} parent=11 // pred_check_branch
          %439 = sbr.rel (%p437) target = $region24
        $region23: #{generator_forward.1} parent=11 // pred_region
          %s441 = ssub.s32 256, 256
          %442 = vsyncadd [#allocation5], %s441
          %s443 = sshll.u32 [#allocation4], 4
          %s444 = int_to_ptr.vmem [resolvable:$true] %s443
          %449 = dma.hbm_to_vmem [thread:$0]  %s2, 256, %s444, [#allocation5], 64, 64, 4
        $region24: #{generator_forward.1} parent=11 // pred_fallthru
          _
        // Predicated region
        $region25: #{generator_forward.1} parent=11 // pred_check
          %p450 = pneg %p121
        $region26: #{generator_forward.1} parent=11 // pred_check_branch
          %452 = sbr.rel (%p450) target = $region28
        $region27: #{generator_forward.1} parent=11 // pred_region
          %s454 = ssub.s32 16, 16
          %455 = vsyncadd [#allocation7], %s454
          %s457 = sshll.u32 [#allocation6], 4
          %s458 = int_to_ptr.vmem [resolvable:$true] %s457
          %460 = dma.hbm_to_vmem [thread:$0]  %s3, 16, %s458, [#allocation7]
        $region28: #{generator_forward.1} parent=11 // pred_fallthru
          _
        // Predicated region
        $region29: #{generator_forward.1} parent=11 // pred_check
          %p461 = pneg %p142
        $region30: #{generator_forward.1} parent=11 // pred_check_branch
          %463 = sbr.rel (%p461) target = $region32
        $region31: #{generator_forward.1} parent=11 // pred_region
          _
        $region32: #{generator_forward.1} parent=11 // pred_fallthru
          _
        // Predicated region
        $region33: #{generator_forward.1} parent=11 // pred_check
          %p464 = pneg %p163
        $region34: #{generator_forward.1} parent=11 // pred_check_branch
          %466 = sbr.rel (%p464) target = $region36
        $region35: #{generator_forward.1} parent=11 // pred_region
          _
        $region36: #{generator_forward.1} parent=11 // pred_fallthru
          _
        // Predicated region
        $region37: #{generator_forward.1} parent=11 // pred_check
          %p467 = pneg %p184
        $region38: #{generator_forward.1} parent=11 // pred_check_branch
          %469 = sbr.rel (%p467) target = $region40
        $region39: #{generator_forward.1} parent=11 // pred_region
          %s471 = ssub.s32 16384, 16384
          %472 = vsyncadd [#allocation7], %s471
          %s473 = sshll.u32 [#allocation8], 4
          %s474 = int_to_ptr.vmem [resolvable:$true] %s473
          %479 = dma.hbm_to_vmem [thread:$0]  %s6, 16384, %s474, [#allocation7], 1024, 1024, 64
        $region40: #{generator_forward.1} parent=11 // pred_fallthru
          _
        // Predicated region
        $region41: #{generator_forward.1} parent=11 // pred_check
          %p480 = pneg %p205
        $region42: #{generator_forward.1} parent=11 // pred_check_branch
          %482 = sbr.rel (%p480) target = $region44
        $region43: #{generator_forward.1} parent=11 // pred_region
          %s484 = ssub.s32 256, 256
          %485 = vsyncadd [#allocation10], %s484
          %s487 = sshll.u32 [#allocation9], 4
          %s488 = int_to_ptr.vmem [resolvable:$true] %s487
          %490 = dma.hbm_to_vmem [thread:$0]  %s7, 256, %s488, [#allocation10]
        $region44: #{generator_forward.1} parent=11 // pred_fallthru
          _
        // Predicated region
        $region45: #{generator_forward.1} parent=11 // pred_check
          %p491 = pneg %p226
        $region46: #{generator_forward.1} parent=11 // pred_check_branch
          %493 = sbr.rel (%p491) target = $region48
        $region47: #{generator_forward.1} parent=11 // pred_region
          _
        $region48: #{generator_forward.1} parent=11 // pred_fallthru
          _
        // Predicated region
        $region49: #{generator_forward.1} parent=11 // pred_check
          %p494 = pneg %p247
        $region50: #{generator_forward.1} parent=11 // pred_check_branch
          %496 = sbr.rel (%p494) target = $region52
        $region51: #{generator_forward.1} parent=11 // pred_region
          _
        $region52: #{generator_forward.1} parent=11 // pred_fallthru
          _
        // Predicated region
        $region53: #{generator_forward.1} parent=11 // pred_check
          %p497 = pneg %p374
        $region54: #{generator_forward.1} parent=11 // pred_check_branch
          %499 = sbr.rel (%p497) target = $region56
        $region55: #{generator_forward.1} parent=11 // pred_region
          _
        $region56: #{generator_forward.1} parent=11 // pred_fallthru
          _
        // Predicated region
        $region57: #{generator_forward.1} parent=11 // pred_check
          %p500 = pneg %p395
        $region58: #{generator_forward.1} parent=11 // pred_check_branch
          %502 = sbr.rel (%p500) target = $region60
        $region59: #{generator_forward.1} parent=11 // pred_region
          %s504 = ssub.s32 16, 16
          %505 = vsyncadd [#allocation7], %s504
          %s507 = sshll.u32 [#allocation12], 4
          %s508 = int_to_ptr.vmem [resolvable:$true] %s507
          %510 = dma.hbm_to_vmem [thread:$0]  %s15, 16, %s508, [#allocation7]
        $region60: #{generator_forward.1} parent=11 // pred_fallthru
          _
      $region12: #{generator_forward.1} parent=5 // pred_fallthru
        _
      %p511 = scmp.lt.s32.totalorder %s25, 8
      // Predicated region
      $region61: #{generator_forward.1} parent=5 // pred_check
        %p512 = pneg %p511
      $region62: #{generator_forward.1} parent=5 // pred_check_branch
        %514 = sbr.rel (%p512) target = $region64
      $region63: #{generator_forward.1} parent=5 // pred_region
        // Predicated region
        $region65: #{generator_forward.1} parent=63 // pred_check
          %p515 = pneg %p269
        $region66: #{generator_forward.1} parent=63 // pred_check_branch
          %517 = sbr.rel (%p515) target = $region68
        $region67: #{generator_forward.1} parent=63 // pred_region
          %s518 = sand.u32 %s25, 1
          %s519 = scalar_lea.sflag [#allocation5], %s518
          %s520 = sand.u32 %s259, 1
          %s521 = smul.addr %s520, 4096
          %s522 = scalar_lea.vmem [#allocation11], %s521
          %s523 = smul.u32 64, %s33
          %s525 = ssub.s32 65536, 65536
          %526 = vsyncadd %s519, %s525
          %s527 = smul.addr %s523, 16
          %s528 = smul.addr %s32, 4096
          %s529 = sadd.s32 %s527, %s528
          %s530 = smul.addr %s529, 64
          %s531 = scalar_lea.hbm %s10, %s530
          %s532 = sshll.u32 %s522, 4
          %s533 = int_to_ptr.vmem [resolvable:$true] %s532
          %538 = dma.hbm_to_vmem [thread:$0]  %s531, 65536, %s533, %s519, 1024, 1024, 64
        $region68: #{generator_forward.1} parent=63 // pred_fallthru
          _
        // Predicated region
        $region69: #{generator_forward.1} parent=63 // pred_check
          %p539 = pneg %p295
        $region70: #{generator_forward.1} parent=63 // pred_check_branch
          %541 = sbr.rel (%p539) target = $region72
        $region71: #{generator_forward.1} parent=63 // pred_region
          %p542 = scmp.lt.s32.totalorder %s32, 1
          %s543 = scalar_select %p542, %s32, 1
          %s544 = smul.addr %s543, 16
          %s545 = scalar_lea.vmem %s11, %s544
        $region72: #{generator_forward.1} parent=63 // pred_fallthru
          _
        // Predicated region
        $region73: #{generator_forward.1} parent=63 // pred_check
          %p546 = pneg %p321
        $region74: #{generator_forward.1} parent=63 // pred_check_branch
          %548 = sbr.rel (%p546) target = $region76
        $region75: #{generator_forward.1} parent=63 // pred_region
          %p549 = scmp.lt.s32.totalorder %s32, 1
          %s550 = scalar_select %p549, %s32, 1
          %s551 = smul.addr %s550, 2
          %s552 = smul.addr %s551, 8
          %s553 = scalar_lea.vmem %s12, %s552
        $region76: #{generator_forward.1} parent=63 // pred_fallthru
          _
        // Predicated region
        $region77: #{generator_forward.1} parent=63 // pred_check
          %p554 = pneg %p347
        $region78: #{generator_forward.1} parent=63 // pred_check_branch
          %556 = sbr.rel (%p554) target = $region80
        $region79: #{generator_forward.1} parent=63 // pred_region
          %p557 = scmp.lt.s32.totalorder %s32, 1
          %s558 = scalar_select %p557, %s32, 1
          %s559 = smul.addr %s558, 2
          %s560 = smul.addr %s559, 8
          %s561 = scalar_lea.vmem %s13, %s560
        $region80: #{generator_forward.1} parent=63 // pred_fallthru
          _
      $region64: #{generator_forward.1} parent=5 // pred_fallthru
        _
      %p562 = scmp.le.s32.totalorder 1, %s25
      %p563 = scmp.lt.s32.totalorder %s25, 9
      %p564 = pnand %p562, %p563
      %p565 = pneg %p564
      // Predicated region
      $region81: #{generator_forward.1} parent=5 // pred_check
        _
      $region82: #{generator_forward.1} parent=5 // pred_check_branch
        %567 = sbr.rel (%p564) target = $region84
      $region83: #{generator_forward.1} parent=5 // pred_region
        %s568 = ssub.s32 %s25, 1
        // Predicated region
        $region85: #{generator_forward.1} parent=83 // pred_check
          %p569 = pneg %p100
        $region86: #{generator_forward.1} parent=83 // pred_check_branch
          %571 = sbr.rel (%p569) target = $region88
        $region87: #{generator_forward.1} parent=83 // pred_region
          %572 = dma.done [#allocation5], 256
        $region88: #{generator_forward.1} parent=83 // pred_fallthru
          _
        // Predicated region
        $region89: #{generator_forward.1} parent=83 // pred_check
          %p573 = pneg %p121
        $region90: #{generator_forward.1} parent=83 // pred_check_branch
          %575 = sbr.rel (%p573) target = $region92
        $region91: #{generator_forward.1} parent=83 // pred_region
          %576 = dma.done [#allocation7], 16
        $region92: #{generator_forward.1} parent=83 // pred_fallthru
          _
        // Predicated region
        $region93: #{generator_forward.1} parent=83 // pred_check
          %p577 = pneg %p184
        $region94: #{generator_forward.1} parent=83 // pred_check_branch
          %579 = sbr.rel (%p577) target = $region96
        $region95: #{generator_forward.1} parent=83 // pred_region
          %580 = dma.done [#allocation7], 16384
        $region96: #{generator_forward.1} parent=83 // pred_fallthru
          _
        // Predicated region
        $region97: #{generator_forward.1} parent=83 // pred_check
          %p581 = pneg %p205
        $region98: #{generator_forward.1} parent=83 // pred_check_branch
          %583 = sbr.rel (%p581) target = $region100
        $region99: #{generator_forward.1} parent=83 // pred_region
          %584 = dma.done [#allocation10], 256
        $region100: #{generator_forward.1} parent=83 // pred_fallthru
          _
        %s585 = sand.u32 %s30, 1
        %s586 = scalar_lea.sflag [#allocation5], %s585
        %s587 = sand.u32 %s262, 1
        %s588 = smul.addr %s587, 4096
        %s589 = scalar_lea.vmem [#allocation11], %s588
        // Predicated region
        $region101: #{generator_forward.1} parent=83 // pred_check
          %p590 = pneg %p275
        $region102: #{generator_forward.1} parent=83 // pred_check_branch
          %592 = sbr.rel (%p590) target = $region104
        $region103: #{generator_forward.1} parent=83 // pred_region
          %593 = dma.done %s586, 65536
        $region104: #{generator_forward.1} parent=83 // pred_fallthru
          _
        // Predicated region
        $region105: #{generator_forward.1} parent=83 // pred_check
          %p594 = pneg %p395
        $region106: #{generator_forward.1} parent=83 // pred_check_branch
          %596 = sbr.rel (%p594) target = $region108
        $region107: #{generator_forward.1} parent=83 // pred_region
          %597 = dma.done [#allocation7], 16
        $region108: #{generator_forward.1} parent=83 // pred_fallthru
          _
        %p598 = pneg %p58
        %p599 = pneg %p55
        %p600 = pneg %p79
        %p601 = pneg %p76
        %p602 = pneg %p100
        %p603 = pneg %p97
        %p604 = pneg %p121
        %p605 = pneg %p118
        %p606 = pneg %p142
        %p607 = pneg %p139
        %p608 = pneg %p163
        %p609 = pneg %p160
        %p610 = pneg %p184
        %p611 = pneg %p181
        %p612 = pneg %p205
        %p613 = pneg %p202
        %p614 = pneg %p226
        %p615 = pneg %p223
        %p616 = pneg %p247
        %p617 = pneg %p244
        %s618 = sand.u32 %s30, 1
        %s619 = scalar_lea.sflag [#allocation5], %s618
        %s620 = sand.u32 %s262, 1
        %s621 = smul.addr %s620, 4096
        %s622 = scalar_lea.vmem [#allocation11], %s621
        %p623 = pneg %p275
        %p624 = pneg %p272
        %p625 = scmp.lt.s32.totalorder %s34, 1
        %s626 = scalar_select %p625, %s34, 1
        %s627 = smul.addr %s626, 16
        %s628 = scalar_lea.vmem %s11, %s627
        %p629 = pneg %p301
        %p630 = pneg %p298
        %p631 = scmp.lt.s32.totalorder %s34, 1
        %s632 = scalar_select %p631, %s34, 1
        %s633 = smul.addr %s632, 2
        %s634 = smul.addr %s633, 8
        %s635 = scalar_lea.vmem %s12, %s634
        %p636 = pneg %p327
        %p637 = pneg %p324
        %p638 = scmp.lt.s32.totalorder %s34, 1
        %s639 = scalar_select %p638, %s34, 1
        %s640 = smul.addr %s639, 2
        %s641 = smul.addr %s640, 8
        %s642 = scalar_lea.vmem %s13, %s641
        %p643 = pneg %p353
        %p644 = pneg %p350
        %p645 = pneg %p374
        %p646 = pneg %p371
        %p647 = pneg %p395
        %p648 = pneg %p392
        %p649 = pneg %p416
        %p650 = pneg %p413
        %s651 = smul.u32 64, %s35
        %p652 = scmp.lt.s32.totalorder %s34, 1
        %s653 = scalar_select %p652, %s34, 1
        %s654 = smul.addr %s653, 16
        %s655 = scalar_lea.vmem %s11, %s654
        %p656 = scmp.lt.s32.totalorder %s34, 1
        %s657 = scalar_select %p656, %s34, 1
        %s658 = smul.addr %s657, 2
        %s659 = smul.addr %s658, 8
        %s660 = scalar_lea.vmem %s12, %s659
        %p661 = scmp.lt.s32.totalorder %s34, 1
        %s662 = scalar_select %p661, %s34, 1
        %s663 = smul.addr %s662, 2
        %s664 = smul.addr %s663, 8
        %s665 = scalar_lea.vmem %s13, %s664
        %p667 = scmp.eq.s32.totalorder %s34, 0
        %p668 = scmp.eq.s32.totalorder %s35, 0
        %p669 = pnand %p667, %p668
        %p670 = pneg %p669
        // Predicated region
        $region109: #{generator_forward.1} parent=83 // pred_check
          _
        $region110: #{generator_forward.1} parent=83 // pred_check_branch
          %672 = sbr.rel (%p669) target = $region112
        $region111: #{generator_forward.1} parent=83 // pred_region
          %v673 = vld [vmem:[%s0] sm:$0xff]
          %v674 = vld [vmem:[%s0 + $0x8] sm:$0xff]
          %v675 = vpack.c.bf16 %v674, %v673
          %v676 = vld [vmem:[#allocation4] sm:$0xf]
          %v677 = vld [vmem:[#allocation4 + $0x4] sm:$0xf]
          %v678 = vld [vmem:[#allocation4 + $0x8] sm:$0xf]
          %v679 = vld [vmem:[#allocation4 + $0xc] sm:$0xf]
          %v680 = vld [vmem:[#allocation6] sm:$0x1]
          %v682 = vlaneseq
          %v683 = vshrl.u32 %v682, 7
          %v684 = vsub.s32 0, %v683
          %v685 = vrot.slane %v680, %v684
          %v691 = vunpack.c.l.b16 %v676
          %v692 = vunpack.c.l.b16 %v677
          %v693 = vunpack.c.l.b16 %v678
          %v694 = vunpack.c.l.b16 %v679
          %v695 = vpack.c.b16 %v692, %v691
          %v696 = vpack.c.b16 %v694, %v693
          %vm699 = vcmask 261120
          %v701 = vsel %vm699, %v675, 0
          %703 = vmatprep.subr.bf16.mxu0 0
          %704 = vmatpush1.bf16.msra.mxu0 %v695
          %705 = vmatprep.subr.bf16.mxu0 0
          %706 = vmatpush1.bf16.msra.mxu0 %v696
          %707 = vmatprep.subr.bf16.mxu0 0
          %708 = vmatpush1.bf16.msra.mxu0 0
          %709 = vmatprep.subr.bf16.mxu0 0
          %710 = vmatpush1.bf16.msra.mxu0 0
          %711 = vmatprep.subr.bf16.mxu0 0
          %712 = vmatpush1.bf16.msra.mxu0 0
          %713 = vmatprep.subr.bf16.mxu0 0
          %714 = vmatpush1.bf16.msra.mxu0 0
          %715 = vmatprep.subr.bf16.mxu0 0
          %716 = vmatpush1.bf16.msra.mxu0 0
          %717 = vmatprep.subr.bf16.mxu0 0
          %718 = vmatpush1.bf16.msra.mxu0 0
          %719 = vmatprep.subr.bf16.mxu0 0
          %720 = vmatpush1.bf16.msra.mxu0 0
          %721 = vmatprep.subr.bf16.mxu0 0
          %722 = vmatpush1.bf16.msra.mxu0 0
          %723 = vmatprep.subr.bf16.mxu0 0
          %724 = vmatpush1.bf16.msra.mxu0 0
          %725 = vmatprep.subr.bf16.mxu0 0
          %726 = vmatpush1.bf16.msra.mxu0 0
          %727 = vmatprep.subr.bf16.mxu0 0
          %728 = vmatpush1.bf16.msra.mxu0 0
          %729 = vmatprep.subr.bf16.mxu0 0
          %730 = vmatpush1.bf16.msra.mxu0 0
          %731 = vmatprep.subr.bf16.mxu0 0
          %732 = vmatpush1.bf16.msra.mxu0 0
          %733 = vmatprep.subr.bf16.mxu0 0
          %734 = vmatpush1.bf16.msra.mxu0 0
          %735 = vmatprep.mubr.bf16.mxu0 0
          %736 = vmatmul.mubr.bf16.gmra.mrb[0].mxu0 %v701
          %v737 = vpop.f32.mrb[0].mxu0
          %v738 = vadd.f32 %v685, %v737
          %v739 = vpop.f32.mrb[0].mxu0
          %v740 = vpop.f32.mrb[0].mxu0
          %v741 = vadd.f32 %v685, %v740
          %v742 = vpop.f32.mrb[0].mxu0
          %743 = vdwg.mxu0
          %v744 = vld [vmem:[%s4] sm:$0xff]
          %v745 = vld [vmem:[%s4 + $0x8] sm:$0xff]
          %v746 = vld [vmem:[%s5] sm:$0xff]
          %v747 = vld [vmem:[%s5 + $0x8] sm:$0xff]
          %v748 = vld [vmem:[%s1] sm:$0xff]
          %v749 = vld [vmem:[%s1 + $0x8] sm:$0xff]
          %750 = vadd.xlane.f32.xlu0 %v738
          %v751 = vpop.xlane.xlu0 %750
          %752 = vadd.xlane.f32.xlu0 %v741
          %v753 = vpop.xlane.xlu0 %752
          %vm754 = vcmask 130048
          %v756 = vsel %vm754, %v748, 0
          %v759 = vsel %vm754, %v749, 0
          %761 = vmatprep.subr.mxu0 0.0
          %762 = vmatpush1.msra.mxu0 %v751
          %763 = vmatprep.subr.mxu0 0.0
          %764 = vmatpush1.msra.mxu0 %v753
          %765 = vmatprep.subr.mxu0 0.0
          %766 = vmatpush1.msra.mxu0 0.0
          %767 = vmatprep.subr.mxu0 0.0
          %768 = vmatpush1.msra.mxu0 0.0
          %769 = vmatprep.subr.mxu0 0.0
          %770 = vmatpush1.msra.mxu0 0.0
          %771 = vmatprep.subr.mxu0 0.0
          %772 = vmatpush1.msra.mxu0 0.0
          %773 = vmatprep.subr.mxu0 0.0
          %774 = vmatpush1.msra.mxu0 0.0
          %775 = vmatprep.subr.mxu0 0.0
          %776 = vmatpush1.msra.mxu0 0.0
          %777 = vmatprep.subr.mxu0 0.0
          %778 = vmatpush1.msra.mxu0 0.0
          %779 = vmatprep.subr.mxu0 0.0
          %780 = vmatpush1.msra.mxu0 0.0
          %781 = vmatprep.subr.mxu0 0.0
          %782 = vmatpush1.msra.mxu0 0.0
          %783 = vmatprep.subr.mxu0 0.0
          %784 = vmatpush1.msra.mxu0 0.0
          %785 = vmatprep.subr.mxu0 0.0
          %786 = vmatpush1.msra.mxu0 0.0
          %787 = vmatprep.subr.mxu0 0.0
          %788 = vmatpush1.msra.mxu0 0.0
          %789 = vmatprep.subr.mxu0 0.0
          %790 = vmatpush1.msra.mxu0 0.0
          %791 = vmatprep.subr.mxu0 0.0
          %792 = vmatpush1.msra.mxu0 0.0
          %793 = vmatprep.subr.mxu0 0.0
          %794 = vmatpush1.msra.mxu0 0.0
          %795 = vmatprep.subr.mxu0 0.0
          %796 = vmatpush1.msra.mxu0 0.0
          %797 = vmatprep.subr.mxu0 0.0
          %798 = vmatpush1.msra.mxu0 0.0
          %799 = vmatprep.subr.mxu0 0.0
          %800 = vmatpush1.msra.mxu0 0.0
          %801 = vmatprep.subr.mxu0 0.0
          %802 = vmatpush1.msra.mxu0 0.0
          %803 = vmatprep.subr.mxu0 0.0
          %804 = vmatpush1.msra.mxu0 0.0
          %805 = vmatprep.subr.mxu0 0.0
          %806 = vmatpush1.msra.mxu0 0.0
          %807 = vmatprep.subr.mxu0 0.0
          %808 = vmatpush1.msra.mxu0 0.0
          %809 = vmatprep.subr.mxu0 0.0
          %810 = vmatpush1.msra.mxu0 0.0
          %811 = vmatprep.subr.mxu0 0.0
          %812 = vmatpush1.msra.mxu0 0.0
          %813 = vmatprep.subr.mxu0 0.0
          %814 = vmatpush1.msra.mxu0 0.0
          %815 = vmatprep.subr.mxu0 0.0
          %816 = vmatpush1.msra.mxu0 0.0
          %817 = vmatprep.subr.mxu0 0.0
          %818 = vmatpush1.msra.mxu0 0.0
          %819 = vmatprep.subr.mxu0 0.0
          %820 = vmatpush1.msra.mxu0 0.0
          %821 = vmatprep.subr.mxu0 0.0
          %822 = vmatpush1.msra.mxu0 0.0
          %823 = vmatprep.subr.mxu0 0.0
          %824 = vmatpush1.msra.mxu0 0.0
          %825 = vmatprep.mubr.f32.mxu0 0.0
          %826 = vmatmul.mubr.f32.gmra.mrb[0].mxu0 %v756
          %v827 = vpop.f32.mrb[0].mxu0
          %v828 = vadd.f32 0.0, %v827
          %v829 = vpop.f32.mrb[0].mxu0
          %830 = vmatprep.mubr.f32.mxu0 0.0
          %831 = vmatmul.mubr.f32.gmra.mrb[0].mxu0 %v759
          %v832 = vpop.f32.mrb[0].mxu0
          %v833 = vadd.f32 0.0, %v832
          %v834 = vpop.f32.mrb[0].mxu0
          %835 = vdwg.mxu0
          %v836 = vmul.f32 %v828, 0.00390625
          %v837 = vmul.f32 %v833, 0.00390625
          %839 = vset.pattern.permute.xlu0 0
          %840 = vperm.xlu0 %839, %v836
          %v841 = vpop.permute.xlu0 %840
          %844 = vset.pattern.permute.xlu0 0
          %845 = vperm.xlu0 %844, %v837
          %v846 = vpop.permute.xlu0 %845
          %v848 = vsub.f32 %v738, %v841
          %v849 = vsub.f32 %v741, %v846
          %v850 = vmul.f32 %v848, %v848
          %v851 = vmul.f32 %v849, %v849
          %852 = vadd.xlane.f32.xlu0 %v850
          %v853 = vpop.xlane.xlu0 %852
          %854 = vadd.xlane.f32.xlu0 %v851
          %v855 = vpop.xlane.xlu0 %854
          %856 = vmatprep.subr.mxu0 0.0
          %857 = vmatpush1.msra.mxu0 %v853
          %858 = vmatprep.subr.mxu0 0.0
          %859 = vmatpush1.msra.mxu0 %v855
          %860 = vmatprep.subr.mxu0 0.0
          %861 = vmatpush1.msra.mxu0 0.0
          %862 = vmatprep.subr.mxu0 0.0
          %863 = vmatpush1.msra.mxu0 0.0
          %864 = vmatprep.subr.mxu0 0.0
          %865 = vmatpush1.msra.mxu0 0.0
          %866 = vmatprep.subr.mxu0 0.0
          %867 = vmatpush1.msra.mxu0 0.0
          %868 = vmatprep.subr.mxu0 0.0
          %869 = vmatpush1.msra.mxu0 0.0
          %870 = vmatprep.subr.mxu0 0.0
          %871 = vmatpush1.msra.mxu0 0.0
          %872 = vmatprep.subr.mxu0 0.0
          %873 = vmatpush1.msra.mxu0 0.0
          %874 = vmatprep.subr.mxu0 0.0
          %875 = vmatpush1.msra.mxu0 0.0
          %876 = vmatprep.subr.mxu0 0.0
          %877 = vmatpush1.msra.mxu0 0.0
          %878 = vmatprep.subr.mxu0 0.0
          %879 = vmatpush1.msra.mxu0 0.0
          %880 = vmatprep.subr.mxu0 0.0
          %881 = vmatpush1.msra.mxu0 0.0
          %882 = vmatprep.subr.mxu0 0.0
          %883 = vmatpush1.msra.mxu0 0.0
          %884 = vmatprep.subr.mxu0 0.0
          %885 = vmatpush1.msra.mxu0 0.0
          %886 = vmatprep.subr.mxu0 0.0
          %887 = vmatpush1.msra.mxu0 0.0
          %888 = vmatprep.subr.mxu0 0.0
          %889 = vmatpush1.msra.mxu0 0.0
          %890 = vmatprep.subr.mxu0 0.0
          %891 = vmatpush1.msra.mxu0 0.0
          %892 = vmatprep.subr.mxu0 0.0
          %893 = vmatpush1.msra.mxu0 0.0
          %894 = vmatprep.subr.mxu0 0.0
          %895 = vmatpush1.msra.mxu0 0.0
          %896 = vmatprep.subr.mxu0 0.0
          %897 = vmatpush1.msra.mxu0 0.0
          %898 = vmatprep.subr.mxu0 0.0
          %899 = vmatpush1.msra.mxu0 0.0
          %900 = vmatprep.subr.mxu0 0.0
          %901 = vmatpush1.msra.mxu0 0.0
          %902 = vmatprep.subr.mxu0 0.0
          %903 = vmatpush1.msra.mxu0 0.0
          %904 = vmatprep.subr.mxu0 0.0
          %905 = vmatpush1.msra.mxu0 0.0
          %906 = vmatprep.subr.mxu0 0.0
          %907 = vmatpush1.msra.mxu0 0.0
          %908 = vmatprep.subr.mxu0 0.0
          %909 = vmatpush1.msra.mxu0 0.0
          %910 = vmatprep.subr.mxu0 0.0
          %911 = vmatpush1.msra.mxu0 0.0
          %912 = vmatprep.subr.mxu0 0.0
          %913 = vmatpush1.msra.mxu0 0.0
          %914 = vmatprep.subr.mxu0 0.0
          %915 = vmatpush1.msra.mxu0 0.0
          %916 = vmatprep.subr.mxu0 0.0
          %917 = vmatpush1.msra.mxu0 0.0
          %918 = vmatprep.subr.mxu0 0.0
          %919 = vmatpush1.msra.mxu0 0.0
          %920 = vmatprep.mubr.f32.mxu0 0.0
          %921 = vmatmul.mubr.f32.gmra.mrb[0].mxu0 %v756
          %v922 = vpop.f32.mrb[0].mxu0
          %v923 = vadd.f32 0.0, %v922
          %v924 = vpop.f32.mrb[0].mxu0
          %925 = vmatprep.mubr.f32.mxu0 0.0
          %926 = vmatmul.mubr.f32.gmra.mrb[0].mxu0 %v759
          %v927 = vpop.f32.mrb[0].mxu0
          %v928 = vadd.f32 0.0, %v927
          %v929 = vpop.f32.mrb[0].mxu0
          %930 = vdwg.mxu0
          %v931 = vmul.f32 %v923, 0.00390625
          %v932 = vmul.f32 %v928, 0.00390625
          %v933 = vadd.f32 %v931, 1e-05
          %v934 = vadd.f32 %v932, 1e-05
          %v935 = vrsqrt.pop %v933
          %v936 = vrsqrt.pop %v934
          %938 = vset.pattern.permute.xlu0 0
          %939 = vperm.xlu0 %938, %v935
          %v940 = vpop.permute.xlu0 %939
          %943 = vset.pattern.permute.xlu0 0
          %944 = vperm.xlu0 %943, %v936
          %v945 = vpop.permute.xlu0 %944
          %v947 = vmul.f32 %v848, %v940
          %v948 = vmul.f32 %v849, %v945
          %950 = vset.pattern.permute.xlu0 0
          %951 = vperm.xlu0 %950, %v744
          %v952 = vpop.permute.xlu0 %951
          %955 = vset.pattern.permute.xlu0 0
          %956 = vperm.xlu0 %955, %v745
          %v957 = vpop.permute.xlu0 %956
          %v959 = vmul.f32 %v947, %v952
          %v960 = vmul.f32 %v948, %v957
          %962 = vset.pattern.permute.xlu0 0
          %963 = vperm.xlu0 %962, %v746
          %v964 = vpop.permute.xlu0 %963
          %967 = vset.pattern.permute.xlu0 0
          %968 = vperm.xlu0 %967, %v747
          %v969 = vpop.permute.xlu0 %968
          %v971 = vadd.f32 %v959, %v964
          %v972 = vadd.f32 %v960, %v969
          %vm973 = vcmp.ge.f32.partialorder %v971, 0.0
          %vm974 = vcmp.ge.f32.partialorder %v972, 0.0
          %v975 = vmul.f32 %v971, 0.2
          %v976 = vmul.f32 %v972, 0.2
          %v977 = vsel %vm973, %v971, %v975
          %v978 = vsel %vm974, %v972, %v976
          %v979 = vpack.c.bf16 %v978, %v977
          %v980 = vld [vmem:[#allocation8] sm:$0xff]
          %v981 = vld [vmem:[#allocation8 + $0x8] sm:$0xff]
          %v982 = vld [vmem:[#allocation8 + $0x10] sm:$0xff]
          %v983 = vld [vmem:[#allocation8 + $0x18] sm:$0xff]
          %v984 = vld [vmem:[#allocation8 + $0x20] sm:$0xff]
          %v985 = vld [vmem:[#allocation8 + $0x28] sm:$0xff]
          %v986 = vld [vmem:[#allocation8 + $0x30] sm:$0xff]
          %v987 = vld [vmem:[#allocation8 + $0x38] sm:$0xff]
          %v988 = vld [vmem:[#allocation8 + $0x40] sm:$0xff]
          %v989 = vld [vmem:[#allocation8 + $0x48] sm:$0xff]
          %v990 = vld [vmem:[#allocation8 + $0x50] sm:$0xff]
          %v991 = vld [vmem:[#allocation8 + $0x58] sm:$0xff]
          %v992 = vld [vmem:[#allocation8 + $0x60] sm:$0xff]
          %v993 = vld [vmem:[#allocation8 + $0x68] sm:$0xff]
          %v994 = vld [vmem:[#allocation8 + $0x70] sm:$0xff]
          %v995 = vld [vmem:[#allocation8 + $0x78] sm:$0xff]
          %v996 = vld [vmem:[#allocation8 + $0x80] sm:$0xff]
          %v997 = vld [vmem:[#allocation8 + $0x88] sm:$0xff]
          %v998 = vld [vmem:[#allocation8 + $0x90] sm:$0xff]
          %v999 = vld [vmem:[#allocation8 + $0x98] sm:$0xff]
          %v1000 = vld [vmem:[#allocation8 + $0xa0] sm:$0xff]
          %v1001 = vld [vmem:[#allocation8 + $0xa8] sm:$0xff]
          %v1002 = vld [vmem:[#allocation8 + $0xb0] sm:$0xff]
          %v1003 = vld [vmem:[#allocation8 + $0xb8] sm:$0xff]
          %v1004 = vld [vmem:[#allocation8 + $0xc0] sm:$0xff]
          %v1005 = vld [vmem:[#allocation8 + $0xc8] sm:$0xff]
          %v1006 = vld [vmem:[#allocation8 + $0xd0] sm:$0xff]
          %v1007 = vld [vmem:[#allocation8 + $0xd8] sm:$0xff]
          %v1008 = vld [vmem:[#allocation8 + $0xe0] sm:$0xff]
          %v1009 = vld [vmem:[#allocation8 + $0xe8] sm:$0xff]
          %v1010 = vld [vmem:[#allocation8 + $0xf0] sm:$0xff]
          %v1011 = vld [vmem:[#allocation8 + $0xf8] sm:$0xff]
          %v1012 = vld [vmem:[#allocation8 + $0x100] sm:$0xff]
          %v1013 = vld [vmem:[#allocation8 + $0x108] sm:$0xff]
          %v1014 = vld [vmem:[#allocation8 + $0x110] sm:$0xff]
          %v1015 = vld [vmem:[#allocation8 + $0x118] sm:$0xff]
          %v1016 = vld [vmem:[#allocation8 + $0x120] sm:$0xff]
          %v1017 = vld [vmem:[#allocation8 + $0x128] sm:$0xff]
          %v1018 = vld [vmem:[#allocation8 + $0x130] sm:$0xff]
          %v1019 = vld [vmem:[#allocation8 + $0x138] sm:$0xff]
          %v1020 = vld [vmem:[#allocation8 + $0x140] sm:$0xff]
          %v1021 = vld [vmem:[#allocation8 + $0x148] sm:$0xff]
          %v1022 = vld [vmem:[#allocation8 + $0x150] sm:$0xff]
          %v1023 = vld [vmem:[#allocation8 + $0x158] sm:$0xff]
          %v1024 = vld [vmem:[#allocation8 + $0x160] sm:$0xff]
          %v1025 = vld [vmem:[#allocation8 + $0x168] sm:$0xff]
          %v1026 = vld [vmem:[#allocation8 + $0x170] sm:$0xff]
          %v1027 = vld [vmem:[#allocation8 + $0x178] sm:$0xff]
          %v1028 = vld [vmem:[#allocation8 + $0x180] sm:$0xff]
          %v1029 = vld [vmem:[#allocation8 + $0x188] sm:$0xff]
          %v1030 = vld [vmem:[#allocation8 + $0x190] sm:$0xff]
          %v1031 = vld [vmem:[#allocation8 + $0x198] sm:$0xff]
          %v1032 = vld [vmem:[#allocation8 + $0x1a0] sm:$0xff]
          %v1033 = vld [vmem:[#allocation8 + $0x1a8] sm:$0xff]
          %v1034 = vld [vmem:[#allocation8 + $0x1b0] sm:$0xff]
          %v1035 = vld [vmem:[#allocation8 + $0x1b8] sm:$0xff]
          %v1036 = vld [vmem:[#allocation8 + $0x1c0] sm:$0xff]
          %v1037 = vld [vmem:[#allocation8 + $0x1c8] sm:$0xff]
          %v1038 = vld [vmem:[#allocation8 + $0x1d0] sm:$0xff]
          %v1039 = vld [vmem:[#allocation8 + $0x1d8] sm:$0xff]
          %v1040 = vld [vmem:[#allocation8 + $0x1e0] sm:$0xff]
          %v1041 = vld [vmem:[#allocation8 + $0x1e8] sm:$0xff]
          %v1042 = vld [vmem:[#allocation8 + $0x1f0] sm:$0xff]
          %v1043 = vld [vmem:[#allocation8 + $0x1f8] sm:$0xff]
          %v1044 = vld [vmem:[#allocation8 + $0x200] sm:$0xff]
          %v1045 = vld [vmem:[#allocation8 + $0x208] sm:$0xff]
          %v1046 = vld [vmem:[#allocation8 + $0x210] sm:$0xff]
          %v1047 = vld [vmem:[#allocation8 + $0x218] sm:$0xff]
          %v1048 = vld [vmem:[#allocation8 + $0x220] sm:$0xff]
          %v1049 = vld [vmem:[#allocation8 + $0x228] sm:$0xff]
          %v1050 = vld [vmem:[#allocation8 + $0x230] sm:$0xff]
          %v1051 = vld [vmem:[#allocation8 + $0x238] sm:$0xff]
          %v1052 = vld [vmem:[#allocation8 + $0x240] sm:$0xff]
          %v1053 = vld [vmem:[#allocation8 + $0x248] sm:$0xff]
          %v1054 = vld [vmem:[#allocation8 + $0x250] sm:$0xff]
          %v1055 = vld [vmem:[#allocation8 + $0x258] sm:$0xff]
          %v1056 = vld [vmem:[#allocation8 + $0x260] sm:$0xff]
          %v1057 = vld [vmem:[#allocation8 + $0x268] sm:$0xff]
          %v1058 = vld [vmem:[#allocation8 + $0x270] sm:$0xff]
          %v1059 = vld [vmem:[#allocation8 + $0x278] sm:$0xff]
          %v1060 = vld [vmem:[#allocation8 + $0x280] sm:$0xff]
          %v1061 = vld [vmem:[#allocation8 + $0x288] sm:$0xff]
          %v1062 = vld [vmem:[#allocation8 + $0x290] sm:$0xff]
          %v1063 = vld [vmem:[#allocation8 + $0x298] sm:$0xff]
          %v1064 = vld [vmem:[#allocation8 + $0x2a0] sm:$0xff]
          %v1065 = vld [vmem:[#allocation8 + $0x2a8] sm:$0xff]
          %v1066 = vld [vmem:[#allocation8 + $0x2b0] sm:$0xff]
          %v1067 = vld [vmem:[#allocation8 + $0x2b8] sm:$0xff]
          %v1068 = vld [vmem:[#allocation8 + $0x2c0] sm:$0xff]
          %v1069 = vld [vmem:[#allocation8 + $0x2c8] sm:$0xff]
          %v1070 = vld [vmem:[#allocation8 + $0x2d0] sm:$0xff]
          %v1071 = vld [vmem:[#allocation8 + $0x2d8] sm:$0xff]
          %v1072 = vld [vmem:[#allocation8 + $0x2e0] sm:$0xff]
          %v1073 = vld [vmem:[#allocation8 + $0x2e8] sm:$0xff]
          %v1074 = vld [vmem:[#allocation8 + $0x2f0] sm:$0xff]
          %v1075 = vld [vmem:[#allocation8 + $0x2f8] sm:$0xff]
          %v1076 = vld [vmem:[#allocation8 + $0x300] sm:$0xff]
          %v1077 = vld [vmem:[#allocation8 + $0x308] sm:$0xff]
          %v1078 = vld [vmem:[#allocation8 + $0x310] sm:$0xff]
          %v1079 = vld [vmem:[#allocation8 + $0x318] sm:$0xff]
          %v1080 = vld [vmem:[#allocation8 + $0x320] sm:$0xff]
          %v1081 = vld [vmem:[#allocation8 + $0x328] sm:$0xff]
          %v1082 = vld [vmem:[#allocation8 + $0x330] sm:$0xff]
          %v1083 = vld [vmem:[#allocation8 + $0x338] sm:$0xff]
          %v1084 = vld [vmem:[#allocation8 + $0x340] sm:$0xff]
          %v1085 = vld [vmem:[#allocation8 + $0x348] sm:$0xff]
          %v1086 = vld [vmem:[#allocation8 + $0x350] sm:$0xff]
          %v1087 = vld [vmem:[#allocation8 + $0x358] sm:$0xff]
          %v1088 = vld [vmem:[#allocation8 + $0x360] sm:$0xff]
          %v1089 = vld [vmem:[#allocation8 + $0x368] sm:$0xff]
          %v1090 = vld [vmem:[#allocation8 + $0x370] sm:$0xff]
          %v1091 = vld [vmem:[#allocation8 + $0x378] sm:$0xff]
          %v1092 = vld [vmem:[#allocation8 + $0x380] sm:$0xff]
          %v1093 = vld [vmem:[#allocation8 + $0x388] sm:$0xff]
          %v1094 = vld [vmem:[#allocation8 + $0x390] sm:$0xff]
          %v1095 = vld [vmem:[#allocation8 + $0x398] sm:$0xff]
          %v1096 = vld [vmem:[#allocation8 + $0x3a0] sm:$0xff]
          %v1097 = vld [vmem:[#allocation8 + $0x3a8] sm:$0xff]
          %v1098 = vld [vmem:[#allocation8 + $0x3b0] sm:$0xff]
          %v1099 = vld [vmem:[#allocation8 + $0x3b8] sm:$0xff]
          %v1100 = vld [vmem:[#allocation8 + $0x3c0] sm:$0xff]
          %v1101 = vld [vmem:[#allocation8 + $0x3c8] sm:$0xff]
          %v1102 = vld [vmem:[#allocation8 + $0x3d0] sm:$0xff]
          %v1103 = vld [vmem:[#allocation8 + $0x3d8] sm:$0xff]
          %v1104 = vld [vmem:[#allocation8 + $0x3e0] sm:$0xff]
          %v1105 = vld [vmem:[#allocation8 + $0x3e8] sm:$0xff]
          %v1106 = vld [vmem:[#allocation8 + $0x3f0] sm:$0xff]
          %v1107 = vld [vmem:[#allocation8 + $0x3f8] sm:$0xff]
          %v1108 = vld [vmem:[#allocation9] sm:$0xff]
          %v1109 = vld [vmem:[#allocation9 + $0x8] sm:$0xff]
          %v1112 = vlaneseq
          %v1113 = vshrl.u32 %v1112, 7
          %v1114 = vsub.s32 0, %v1113
          %v1115 = vrot.slane %v1108, %v1114
          %v1116 = vlaneseq
          %v1117 = vshrl.u32 %v1116, 7
          %v1118 = vsub.s32 1, %v1117
          %v1119 = vrot.slane %v1108, %v1118
          %v1120 = vlaneseq
          %v1121 = vshrl.u32 %v1120, 7
          %v1122 = vsub.s32 2, %v1121
          %v1123 = vrot.slane %v1108, %v1122
          %v1124 = vlaneseq
          %v1125 = vshrl.u32 %v1124, 7
          %v1126 = vsub.s32 3, %v1125
          %v1127 = vrot.slane %v1108, %v1126
          %v1128 = vlaneseq
          %v1129 = vshrl.u32 %v1128, 7
          %v1130 = vsub.s32 4, %v1129
          %v1131 = vrot.slane %v1108, %v1130
          %v1132 = vlaneseq
          %v1133 = vshrl.u32 %v1132, 7
          %v1134 = vsub.s32 5, %v1133
          %v1135 = vrot.slane %v1108, %v1134
          %v1136 = vlaneseq
          %v1137 = vshrl.u32 %v1136, 7
          %v1138 = vsub.s32 6, %v1137
          %v1139 = vrot.slane %v1108, %v1138
          %v1140 = vlaneseq
          %v1141 = vshrl.u32 %v1140, 7
          %v1142 = vsub.s32 7, %v1141
          %v1143 = vrot.slane %v1108, %v1142
          %v1144 = vlaneseq
          %v1145 = vshrl.u32 %v1144, 7
          %v1146 = vsub.s32 0, %v1145
          %v1147 = vrot.slane %v1109, %v1146
          %v1148 = vlaneseq
          %v1149 = vshrl.u32 %v1148, 7
          %v1150 = vsub.s32 1, %v1149
          %v1151 = vrot.slane %v1109, %v1150
          %v1152 = vlaneseq
          %v1153 = vshrl.u32 %v1152, 7
          %v1154 = vsub.s32 2, %v1153
          %v1155 = vrot.slane %v1109, %v1154
          %v1156 = vlaneseq
          %v1157 = vshrl.u32 %v1156, 7
          %v1158 = vsub.s32 3, %v1157
          %v1159 = vrot.slane %v1109, %v1158
          %v1160 = vlaneseq
          %v1161 = vshrl.u32 %v1160, 7
          %v1162 = vsub.s32 4, %v1161
          %v1163 = vrot.slane %v1109, %v1162
          %v1164 = vlaneseq
          %v1165 = vshrl.u32 %v1164, 7
          %v1166 = vsub.s32 5, %v1165
          %v1167 = vrot.slane %v1109, %v1166
          %v1168 = vlaneseq
          %v1169 = vshrl.u32 %v1168, 7
          %v1170 = vsub.s32 6, %v1169
          %v1171 = vrot.slane %v1109, %v1170
          %v1172 = vlaneseq
          %v1173 = vshrl.u32 %v1172, 7
          %v1174 = vsub.s32 7, %v1173
          %v1175 = vrot.slane %v1109, %v1174
          %v1320 = vunpack.c.l.b16 %v980
          %v1321 = vunpack.c.h.b16 %v980
          %v1322 = vunpack.c.l.b16 %v981
          %v1323 = vunpack.c.h.b16 %v981
          %v1324 = vunpack.c.l.b16 %v982
          %v1325 = vunpack.c.h.b16 %v982
          %v1326 = vunpack.c.l.b16 %v983
          %v1327 = vunpack.c.h.b16 %v983
          %v1328 = vunpack.c.l.b16 %v984
          %v1329 = vunpack.c.h.b16 %v984
          %v1330 = vunpack.c.l.b16 %v985
          %v1331 = vunpack.c.h.b16 %v985
          %v1332 = vunpack.c.l.b16 %v986
          %v1333 = vunpack.c.h.b16 %v986
          %v1334 = vunpack.c.l.b16 %v987
          %v1335 = vunpack.c.h.b16 %v987
          %v1336 = vunpack.c.l.b16 %v988
          %v1337 = vunpack.c.h.b16 %v988
          %v1338 = vunpack.c.l.b16 %v989
          %v1339 = vunpack.c.h.b16 %v989
          %v1340 = vunpack.c.l.b16 %v990
          %v1341 = vunpack.c.h.b16 %v990
          %v1342 = vunpack.c.l.b16 %v991
          %v1343 = vunpack.c.h.b16 %v991
          %v1344 = vunpack.c.l.b16 %v992
          %v1345 = vunpack.c.h.b16 %v992
          %v1346 = vunpack.c.l.b16 %v993
          %v1347 = vunpack.c.h.b16 %v993
          %v1348 = vunpack.c.l.b16 %v994
          %v1349 = vunpack.c.h.b16 %v994
          %v1350 = vunpack.c.l.b16 %v995
          %v1351 = vunpack.c.h.b16 %v995
          %v1352 = vunpack.c.l.b16 %v996
          %v1353 = vunpack.c.h.b16 %v996
          %v1354 = vunpack.c.l.b16 %v997
          %v1355 = vunpack.c.h.b16 %v997
          %v1356 = vunpack.c.l.b16 %v998
          %v1357 = vunpack.c.h.b16 %v998
          %v1358 = vunpack.c.l.b16 %v999
          %v1359 = vunpack.c.h.b16 %v999
          %v1360 = vunpack.c.l.b16 %v1000
          %v1361 = vunpack.c.h.b16 %v1000
          %v1362 = vunpack.c.l.b16 %v1001
          %v1363 = vunpack.c.h.b16 %v1001
          %v1364 = vunpack.c.l.b16 %v1002
          %v1365 = vunpack.c.h.b16 %v1002
          %v1366 = vunpack.c.l.b16 %v1003
          %v1367 = vunpack.c.h.b16 %v1003
          %v1368 = vunpack.c.l.b16 %v1004
          %v1369 = vunpack.c.h.b16 %v1004
          %v1370 = vunpack.c.l.b16 %v1005
          %v1371 = vunpack.c.h.b16 %v1005
          %v1372 = vunpack.c.l.b16 %v1006
          %v1373 = vunpack.c.h.b16 %v1006
          %v1374 = vunpack.c.l.b16 %v1007
          %v1375 = vunpack.c.h.b16 %v1007
          %v1376 = vunpack.c.l.b16 %v1008
          %v1377 = vunpack.c.h.b16 %v1008
          %v1378 = vunpack.c.l.b16 %v1009
          %v1379 = vunpack.c.h.b16 %v1009
          %v1380 = vunpack.c.l.b16 %v1010
          %v1381 = vunpack.c.h.b16 %v1010
          %v1382 = vunpack.c.l.b16 %v1011
          %v1383 = vunpack.c.h.b16 %v1011
          %v1384 = vunpack.c.l.b16 %v1012
          %v1385 = vunpack.c.h.b16 %v1012
          %v1386 = vunpack.c.l.b16 %v1013
          %v1387 = vunpack.c.h.b16 %v1013
          %v1388 = vunpack.c.l.b16 %v1014
          %v1389 = vunpack.c.h.b16 %v1014
          %v1390 = vunpack.c.l.b16 %v1015
          %v1391 = vunpack.c.h.b16 %v1015
          %v1392 = vunpack.c.l.b16 %v1016
          %v1393 = vunpack.c.h.b16 %v1016
          %v1394 = vunpack.c.l.b16 %v1017
          %v1395 = vunpack.c.h.b16 %v1017
          %v1396 = vunpack.c.l.b16 %v1018
          %v1397 = vunpack.c.h.b16 %v1018
          %v1398 = vunpack.c.l.b16 %v1019
          %v1399 = vunpack.c.h.b16 %v1019
          %v1400 = vunpack.c.l.b16 %v1020
          %v1401 = vunpack.c.h.b16 %v1020
          %v1402 = vunpack.c.l.b16 %v1021
          %v1403 = vunpack.c.h.b16 %v1021
          %v1404 = vunpack.c.l.b16 %v1022
          %v1405 = vunpack.c.h.b16 %v1022
          %v1406 = vunpack.c.l.b16 %v1023
          %v1407 = vunpack.c.h.b16 %v1023
          %v1408 = vunpack.c.l.b16 %v1024
          %v1409 = vunpack.c.h.b16 %v1024
          %v1410 = vunpack.c.l.b16 %v1025
          %v1411 = vunpack.c.h.b16 %v1025
          %v1412 = vunpack.c.l.b16 %v1026
          %v1413 = vunpack.c.h.b16 %v1026
          %v1414 = vunpack.c.l.b16 %v1027
          %v1415 = vunpack.c.h.b16 %v1027
          %v1416 = vunpack.c.l.b16 %v1028
          %v1417 = vunpack.c.h.b16 %v1028
          %v1418 = vunpack.c.l.b16 %v1029
          %v1419 = vunpack.c.h.b16 %v1029
          %v1420 = vunpack.c.l.b16 %v1030
          %v1421 = vunpack.c.h.b16 %v1030
          %v1422 = vunpack.c.l.b16 %v1031
          %v1423 = vunpack.c.h.b16 %v1031
          %v1424 = vunpack.c.l.b16 %v1032
          %v1425 = vunpack.c.h.b16 %v1032
          %v1426 = vunpack.c.l.b16 %v1033
          %v1427 = vunpack.c.h.b16 %v1033
          %v1428 = vunpack.c.l.b16 %v1034
          %v1429 = vunpack.c.h.b16 %v1034
          %v1430 = vunpack.c.l.b16 %v1035
          %v1431 = vunpack.c.h.b16 %v1035
          %v1432 = vunpack.c.l.b16 %v1036
          %v1433 = vunpack.c.h.b16 %v1036
          %v1434 = vunpack.c.l.b16 %v1037
          %v1435 = vunpack.c.h.b16 %v1037
          %v1436 = vunpack.c.l.b16 %v1038
          %v1437 = vunpack.c.h.b16 %v1038
          %v1438 = vunpack.c.l.b16 %v1039
          %v1439 = vunpack.c.h.b16 %v1039
          %v1440 = vunpack.c.l.b16 %v1040
          %v1441 = vunpack.c.h.b16 %v1040
          %v1442 = vunpack.c.l.b16 %v1041
          %v1443 = vunpack.c.h.b16 %v1041
          %v1444 = vunpack.c.l.b16 %v1042
          %v1445 = vunpack.c.h.b16 %v1042
          %v1446 = vunpack.c.l.b16 %v1043
          %v1447 = vunpack.c.h.b16 %v1043
          %v1448 = vunpack.c.l.b16 %v1044
          %v1449 = vunpack.c.h.b16 %v1044
          %v1450 = vunpack.c.l.b16 %v1045
          %v1451 = vunpack.c.h.b16 %v1045
          %v1452 = vunpack.c.l.b16 %v1046
          %v1453 = vunpack.c.h.b16 %v1046
          %v1454 = vunpack.c.l.b16 %v1047
          %v1455 = vunpack.c.h.b16 %v1047
          %v1456 = vunpack.c.l.b16 %v1048
          %v1457 = vunpack.c.h.b16 %v1048
          %v1458 = vunpack.c.l.b16 %v1049
          %v1459 = vunpack.c.h.b16 %v1049
          %v1460 = vunpack.c.l.b16 %v1050
          %v1461 = vunpack.c.h.b16 %v1050
          %v1462 = vunpack.c.l.b16 %v1051
          %v1463 = vunpack.c.h.b16 %v1051
          %v1464 = vunpack.c.l.b16 %v1052
          %v1465 = vunpack.c.h.b16 %v1052
          %v1466 = vunpack.c.l.b16 %v1053
          %v1467 = vunpack.c.h.b16 %v1053
          %v1468 = vunpack.c.l.b16 %v1054
          %v1469 = vunpack.c.h.b16 %v1054
          %v1470 = vunpack.c.l.b16 %v1055
          %v1471 = vunpack.c.h.b16 %v1055
          %v1472 = vunpack.c.l.b16 %v1056
          %v1473 = vunpack.c.h.b16 %v1056
          %v1474 = vunpack.c.l.b16 %v1057
          %v1475 = vunpack.c.h.b16 %v1057
          %v1476 = vunpack.c.l.b16 %v1058
          %v1477 = vunpack.c.h.b16 %v1058
          %v1478 = vunpack.c.l.b16 %v1059
          %v1479 = vunpack.c.h.b16 %v1059
          %v1480 = vunpack.c.l.b16 %v1060
          %v1481 = vunpack.c.h.b16 %v1060
          %v1482 = vunpack.c.l.b16 %v1061
          %v1483 = vunpack.c.h.b16 %v1061
          %v1484 = vunpack.c.l.b16 %v1062
          %v1485 = vunpack.c.h.b16 %v1062
          %v1486 = vunpack.c.l.b16 %v1063
          %v1487 = vunpack.c.h.b16 %v1063
          %v1488 = vunpack.c.l.b16 %v1064
          %v1489 = vunpack.c.h.b16 %v1064
          %v1490 = vunpack.c.l.b16 %v1065
          %v1491 = vunpack.c.h.b16 %v1065
          %v1492 = vunpack.c.l.b16 %v1066
          %v1493 = vunpack.c.h.b16 %v1066
          %v1494 = vunpack.c.l.b16 %v1067
          %v1495 = vunpack.c.h.b16 %v1067
          %v1496 = vunpack.c.l.b16 %v1068
          %v1497 = vunpack.c.h.b16 %v1068
          %v1498 = vunpack.c.l.b16 %v1069
          %v1499 = vunpack.c.h.b16 %v1069
          %v1500 = vunpack.c.l.b16 %v1070
          %v1501 = vunpack.c.h.b16 %v1070
          %v1502 = vunpack.c.l.b16 %v1071
          %v1503 = vunpack.c.h.b16 %v1071
          %v1504 = vunpack.c.l.b16 %v1072
          %v1505 = vunpack.c.h.b16 %v1072
          %v1506 = vunpack.c.l.b16 %v1073
          %v1507 = vunpack.c.h.b16 %v1073
          %v1508 = vunpack.c.l.b16 %v1074
          %v1509 = vunpack.c.h.b16 %v1074
          %v1510 = vunpack.c.l.b16 %v1075
          %v1511 = vunpack.c.h.b16 %v1075
          %v1512 = vunpack.c.l.b16 %v1076
          %v1513 = vunpack.c.h.b16 %v1076
          %v1514 = vunpack.c.l.b16 %v1077
          %v1515 = vunpack.c.h.b16 %v1077
          %v1516 = vunpack.c.l.b16 %v1078
          %v1517 = vunpack.c.h.b16 %v1078
          %v1518 = vunpack.c.l.b16 %v1079
          %v1519 = vunpack.c.h.b16 %v1079
          %v1520 = vunpack.c.l.b16 %v1080
          %v1521 = vunpack.c.h.b16 %v1080
          %v1522 = vunpack.c.l.b16 %v1081
          %v1523 = vunpack.c.h.b16 %v1081
          %v1524 = vunpack.c.l.b16 %v1082
          %v1525 = vunpack.c.h.b16 %v1082
          %v1526 = vunpack.c.l.b16 %v1083
          %v1527 = vunpack.c.h.b16 %v1083
          %v1528 = vunpack.c.l.b16 %v1084
          %v1529 = vunpack.c.h.b16 %v1084
          %v1530 = vunpack.c.l.b16 %v1085
          %v1531 = vunpack.c.h.b16 %v1085
          %v1532 = vunpack.c.l.b16 %v1086
          %v1533 = vunpack.c.h.b16 %v1086
          %v1534 = vunpack.c.l.b16 %v1087
          %v1535 = vunpack.c.h.b16 %v1087
          %v1536 = vunpack.c.l.b16 %v1088
          %v1537 = vunpack.c.h.b16 %v1088
          %v1538 = vunpack.c.l.b16 %v1089
          %v1539 = vunpack.c.h.b16 %v1089
          %v1540 = vunpack.c.l.b16 %v1090
          %v1541 = vunpack.c.h.b16 %v1090
          %v1542 = vunpack.c.l.b16 %v1091
          %v1543 = vunpack.c.h.b16 %v1091
          %v1544 = vunpack.c.l.b16 %v1092
          %v1545 = vunpack.c.h.b16 %v1092
          %v1546 = vunpack.c.l.b16 %v1093
          %v1547 = vunpack.c.h.b16 %v1093
          %v1548 = vunpack.c.l.b16 %v1094
          %v1549 = vunpack.c.h.b16 %v1094
          %v1550 = vunpack.c.l.b16 %v1095
          %v1551 = vunpack.c.h.b16 %v1095
          %v1552 = vunpack.c.l.b16 %v1096
          %v1553 = vunpack.c.h.b16 %v1096
          %v1554 = vunpack.c.l.b16 %v1097
          %v1555 = vunpack.c.h.b16 %v1097
          %v1556 = vunpack.c.l.b16 %v1098
          %v1557 = vunpack.c.h.b16 %v1098
          %v1558 = vunpack.c.l.b16 %v1099
          %v1559 = vunpack.c.h.b16 %v1099
          %v1560 = vunpack.c.l.b16 %v1100
          %v1561 = vunpack.c.h.b16 %v1100
          %v1562 = vunpack.c.l.b16 %v1101
          %v1563 = vunpack.c.h.b16 %v1101
          %v1564 = vunpack.c.l.b16 %v1102
          %v1565 = vunpack.c.h.b16 %v1102
          %v1566 = vunpack.c.l.b16 %v1103
          %v1567 = vunpack.c.h.b16 %v1103
          %v1568 = vunpack.c.l.b16 %v1104
          %v1569 = vunpack.c.h.b16 %v1104
          %v1570 = vunpack.c.l.b16 %v1105
          %v1571 = vunpack.c.h.b16 %v1105
          %v1572 = vunpack.c.l.b16 %v1106
          %v1573 = vunpack.c.h.b16 %v1106
          %v1574 = vunpack.c.l.b16 %v1107
          %v1575 = vunpack.c.h.b16 %v1107
          %v1576 = vpack.c.b16 %v1336, %v1320
          %v1577 = vpack.c.b16 %v1337, %v1321
          %v1578 = vpack.c.b16 %v1338, %v1322
          %v1579 = vpack.c.b16 %v1339, %v1323
          %v1580 = vpack.c.b16 %v1340, %v1324
          %v1581 = vpack.c.b16 %v1341, %v1325
          %v1582 = vpack.c.b16 %v1342, %v1326
          %v1583 = vpack.c.b16 %v1343, %v1327
          %v1584 = vpack.c.b16 %v1344, %v1328
          %v1585 = vpack.c.b16 %v1345, %v1329
          %v1586 = vpack.c.b16 %v1346, %v1330
          %v1587 = vpack.c.b16 %v1347, %v1331
          %v1588 = vpack.c.b16 %v1348, %v1332
          %v1589 = vpack.c.b16 %v1349, %v1333
          %v1590 = vpack.c.b16 %v1350, %v1334
          %v1591 = vpack.c.b16 %v1351, %v1335
          %v1592 = vpack.c.b16 %v1368, %v1352
          %v1593 = vpack.c.b16 %v1369, %v1353
          %v1594 = vpack.c.b16 %v1370, %v1354
          %v1595 = vpack.c.b16 %v1371, %v1355
          %v1596 = vpack.c.b16 %v1372, %v1356
          %v1597 = vpack.c.b16 %v1373, %v1357
          %v1598 = vpack.c.b16 %v1374, %v1358
          %v1599 = vpack.c.b16 %v1375, %v1359
          %v1600 = vpack.c.b16 %v1376, %v1360
          %v1601 = vpack.c.b16 %v1377, %v1361
          %v1602 = vpack.c.b16 %v1378, %v1362
          %v1603 = vpack.c.b16 %v1379, %v1363
          %v1604 = vpack.c.b16 %v1380, %v1364
          %v1605 = vpack.c.b16 %v1381, %v1365
          %v1606 = vpack.c.b16 %v1382, %v1366
          %v1607 = vpack.c.b16 %v1383, %v1367
          %v1608 = vpack.c.b16 %v1400, %v1384
          %v1609 = vpack.c.b16 %v1401, %v1385
          %v1610 = vpack.c.b16 %v1402, %v1386
          %v1611 = vpack.c.b16 %v1403, %v1387
          %v1612 = vpack.c.b16 %v1404, %v1388
          %v1613 = vpack.c.b16 %v1405, %v1389
          %v1614 = vpack.c.b16 %v1406, %v1390
          %v1615 = vpack.c.b16 %v1407, %v1391
          %v1616 = vpack.c.b16 %v1408, %v1392
          %v1617 = vpack.c.b16 %v1409, %v1393
          %v1618 = vpack.c.b16 %v1410, %v1394
          %v1619 = vpack.c.b16 %v1411, %v1395
          %v1620 = vpack.c.b16 %v1412, %v1396
          %v1621 = vpack.c.b16 %v1413, %v1397
          %v1622 = vpack.c.b16 %v1414, %v1398
          %v1623 = vpack.c.b16 %v1415, %v1399
          %v1624 = vpack.c.b16 %v1432, %v1416
          %v1625 = vpack.c.b16 %v1433, %v1417
          %v1626 = vpack.c.b16 %v1434, %v1418
          %v1627 = vpack.c.b16 %v1435, %v1419
          %v1628 = vpack.c.b16 %v1436, %v1420
          %v1629 = vpack.c.b16 %v1437, %v1421
          %v1630 = vpack.c.b16 %v1438, %v1422
          %v1631 = vpack.c.b16 %v1439, %v1423
          %v1632 = vpack.c.b16 %v1440, %v1424
          %v1633 = vpack.c.b16 %v1441, %v1425
          %v1634 = vpack.c.b16 %v1442, %v1426
          %v1635 = vpack.c.b16 %v1443, %v1427
          %v1636 = vpack.c.b16 %v1444, %v1428
          %v1637 = vpack.c.b16 %v1445, %v1429
          %v1638 = vpack.c.b16 %v1446, %v1430
          %v1639 = vpack.c.b16 %v1447, %v1431
          %v1640 = vpack.c.b16 %v1464, %v1448
          %v1641 = vpack.c.b16 %v1465, %v1449
          %v1642 = vpack.c.b16 %v1466, %v1450
          %v1643 = vpack.c.b16 %v1467, %v1451
          %v1644 = vpack.c.b16 %v1468, %v1452
          %v1645 = vpack.c.b16 %v1469, %v1453
          %v1646 = vpack.c.b16 %v1470, %v1454
          %v1647 = vpack.c.b16 %v1471, %v1455
          %v1648 = vpack.c.b16 %v1472, %v1456
          %v1649 = vpack.c.b16 %v1473, %v1457
          %v1650 = vpack.c.b16 %v1474, %v1458
          %v1651 = vpack.c.b16 %v1475, %v1459
          %v1652 = vpack.c.b16 %v1476, %v1460
          %v1653 = vpack.c.b16 %v1477, %v1461
          %v1654 = vpack.c.b16 %v1478, %v1462
          %v1655 = vpack.c.b16 %v1479, %v1463
          %v1656 = vpack.c.b16 %v1496, %v1480
          %v1657 = vpack.c.b16 %v1497, %v1481
          %v1658 = vpack.c.b16 %v1498, %v1482
          %v1659 = vpack.c.b16 %v1499, %v1483
          %v1660 = vpack.c.b16 %v1500, %v1484
          %v1661 = vpack.c.b16 %v1501, %v1485
          %v1662 = vpack.c.b16 %v1502, %v1486
          %v1663 = vpack.c.b16 %v1503, %v1487
          %v1664 = vpack.c.b16 %v1504, %v1488
          %v1665 = vpack.c.b16 %v1505, %v1489
          %v1666 = vpack.c.b16 %v1506, %v1490
          %v1667 = vpack.c.b16 %v1507, %v1491
          %v1668 = vpack.c.b16 %v1508, %v1492
          %v1669 = vpack.c.b16 %v1509, %v1493
          %v1670 = vpack.c.b16 %v1510, %v1494
          %v1671 = vpack.c.b16 %v1511, %v1495
          %v1672 = vpack.c.b16 %v1528, %v1512
          %v1673 = vpack.c.b16 %v1529, %v1513
          %v1674 = vpack.c.b16 %v1530, %v1514
          %v1675 = vpack.c.b16 %v1531, %v1515
          %v1676 = vpack.c.b16 %v1532, %v1516
          %v1677 = vpack.c.b16 %v1533, %v1517
          %v1678 = vpack.c.b16 %v1534, %v1518
          %v1679 = vpack.c.b16 %v1535, %v1519
          %v1680 = vpack.c.b16 %v1536, %v1520
          %v1681 = vpack.c.b16 %v1537, %v1521
          %v1682 = vpack.c.b16 %v1538, %v1522
          %v1683 = vpack.c.b16 %v1539, %v1523
          %v1684 = vpack.c.b16 %v1540, %v1524
          %v1685 = vpack.c.b16 %v1541, %v1525
          %v1686 = vpack.c.b16 %v1542, %v1526
          %v1687 = vpack.c.b16 %v1543, %v1527
          %v1688 = vpack.c.b16 %v1560, %v1544
          %v1689 = vpack.c.b16 %v1561, %v1545
          %v1690 = vpack.c.b16 %v1562, %v1546
          %v1691 = vpack.c.b16 %v1563, %v1547
          %v1692 = vpack.c.b16 %v1564, %v1548
          %v1693 = vpack.c.b16 %v1565, %v1549
          %v1694 = vpack.c.b16 %v1566, %v1550
          %v1695 = vpack.c.b16 %v1567, %v1551
          %v1696 = vpack.c.b16 %v1568, %v1552
          %v1697 = vpack.c.b16 %v1569, %v1553
          %v1698 = vpack.c.b16 %v1570, %v1554
          %v1699 = vpack.c.b16 %v1571, %v1555
          %v1700 = vpack.c.b16 %v1572, %v1556
          %v1701 = vpack.c.b16 %v1573, %v1557
          %v1702 = vpack.c.b16 %v1574, %v1558
          %v1703 = vpack.c.b16 %v1575, %v1559
          %1832 = vmatprep.subr.bf16.mxu0 %v1577
          %1833 = vmatpush1.bf16.msra.mxu0 %v1576
          %1834 = vmatprep.subr.bf16.mxu0 %v1593
          %1835 = vmatpush1.bf16.msra.mxu0 %v1592
          %1836 = vmatprep.subr.bf16.mxu0 %v1609
          %1837 = vmatpush1.bf16.msra.mxu0 %v1608
          %1838 = vmatprep.subr.bf16.mxu0 %v1625
          %1839 = vmatpush1.bf16.msra.mxu0 %v1624
          %1840 = vmatprep.subr.bf16.mxu0 %v1641
          %1841 = vmatpush1.bf16.msra.mxu0 %v1640
          %1842 = vmatprep.subr.bf16.mxu0 %v1657
          %1843 = vmatpush1.bf16.msra.mxu0 %v1656
          %1844 = vmatprep.subr.bf16.mxu0 %v1673
          %1845 = vmatpush1.bf16.msra.mxu0 %v1672
          %1846 = vmatprep.subr.bf16.mxu0 %v1689
          %1847 = vmatpush1.bf16.msra.mxu0 %v1688
          %1848 = vmatprep.subr.bf16.mxu0 0
          %1849 = vmatpush1.bf16.msra.mxu0 0
          %1850 = vmatprep.subr.bf16.mxu0 0
          %1851 = vmatpush1.bf16.msra.mxu0 0
          %1852 = vmatprep.subr.bf16.mxu0 0
          %1853 = vmatpush1.bf16.msra.mxu0 0
          %1854 = vmatprep.subr.bf16.mxu0 0
          %1855 = vmatpush1.bf16.msra.mxu0 0
          %1856 = vmatprep.subr.bf16.mxu0 0
          %1857 = vmatpush1.bf16.msra.mxu0 0
          %1858 = vmatprep.subr.bf16.mxu0 0
          %1859 = vmatpush1.bf16.msra.mxu0 0
          %1860 = vmatprep.subr.bf16.mxu0 0
          %1861 = vmatpush1.bf16.msra.mxu0 0
          %1862 = vmatprep.subr.bf16.mxu0 0
          %1863 = vmatpush1.bf16.msra.mxu0 0
          %1864 = vmatprep.mubr.bf16.mxu0 0
          %1865 = vmatmul.mubr.bf16.gmra.mrb[0].mxu0 %v979
          %v1866 = vpop.f32.mrb[0].mxu0
          %v1867 = vadd.f32 %v1115, %v1866
          %v1868 = vpop.f32.mrb[0].mxu0
          %v1869 = vadd.f32 %v1119, %v1868
          %v1870 = vpop.f32.mrb[0].mxu0
          %v1871 = vadd.f32 %v1115, %v1870
          %v1872 = vpop.f32.mrb[0].mxu0
          %v1873 = vadd.f32 %v1119, %v1872
          %1874 = vdwg.mxu0
          %1875 = vmatprep.subr.bf16.mxu0 %v1579
          %1876 = vmatpush1.bf16.msra.mxu0 %v1578
          %1877 = vmatprep.subr.bf16.mxu0 %v1595
          %1878 = vmatpush1.bf16.msra.mxu0 %v1594
          %1879 = vmatprep.subr.bf16.mxu0 %v1611
          %1880 = vmatpush1.bf16.msra.mxu0 %v1610
          %1881 = vmatprep.subr.bf16.mxu0 %v1627
          %1882 = vmatpush1.bf16.msra.mxu0 %v1626
          %1883 = vmatprep.subr.bf16.mxu0 %v1643
          %1884 = vmatpush1.bf16.msra.mxu0 %v1642
          %1885 = vmatprep.subr.bf16.mxu0 %v1659
          %1886 = vmatpush1.bf16.msra.mxu0 %v1658
          %1887 = vmatprep.subr.bf16.mxu0 %v1675
          %1888 = vmatpush1.bf16.msra.mxu0 %v1674
          %1889 = vmatprep.subr.bf16.mxu0 %v1691
          %1890 = vmatpush1.bf16.msra.mxu0 %v1690
          %1891 = vmatprep.subr.bf16.mxu0 0
          %1892 = vmatpush1.bf16.msra.mxu0 0
          %1893 = vmatprep.subr.bf16.mxu0 0
          %1894 = vmatpush1.bf16.msra.mxu0 0
          %1895 = vmatprep.subr.bf16.mxu0 0
          %1896 = vmatpush1.bf16.msra.mxu0 0
          %1897 = vmatprep.subr.bf16.mxu0 0
          %1898 = vmatpush1.bf16.msra.mxu0 0
          %1899 = vmatprep.subr.bf16.mxu0 0
          %1900 = vmatpush1.bf16.msra.mxu0 0
          %1901 = vmatprep.subr.bf16.mxu0 0
          %1902 = vmatpush1.bf16.msra.mxu0 0
          %1903 = vmatprep.subr.bf16.mxu0 0
          %1904 = vmatpush1.bf16.msra.mxu0 0
          %1905 = vmatprep.subr.bf16.mxu0 0
          %1906 = vmatpush1.bf16.msra.mxu0 0
          %1907 = vmatprep.mubr.bf16.mxu0 0
          %1908 = vmatmul.mubr.bf16.gmra.mrb[0].mxu0 %v979
          %v1909 = vpop.f32.mrb[0].mxu0
          %v1910 = vadd.f32 %v1123, %v1909
          %v1911 = vpop.f32.mrb[0].mxu0
          %v1912 = vadd.f32 %v1127, %v1911
          %v1913 = vpop.f32.mrb[0].mxu0
          %v1914 = vadd.f32 %v1123, %v1913
          %v1915 = vpop.f32.mrb[0].mxu0
          %v1916 = vadd.f32 %v1127, %v1915
          %1917 = vdwg.mxu0
          %1918 = vmatprep.subr.bf16.mxu0 %v1581
          %1919 = vmatpush1.bf16.msra.mxu0 %v1580
          %1920 = vmatprep.subr.bf16.mxu0 %v1597
          %1921 = vmatpush1.bf16.msra.mxu0 %v1596
          %1922 = vmatprep.subr.bf16.mxu0 %v1613
          %1923 = vmatpush1.bf16.msra.mxu0 %v1612
          %1924 = vmatprep.subr.bf16.mxu0 %v1629
          %1925 = vmatpush1.bf16.msra.mxu0 %v1628
          %1926 = vmatprep.subr.bf16.mxu0 %v1645
          %1927 = vmatpush1.bf16.msra.mxu0 %v1644
          %1928 = vmatprep.subr.bf16.mxu0 %v1661
          %1929 = vmatpush1.bf16.msra.mxu0 %v1660
          %1930 = vmatprep.subr.bf16.mxu0 %v1677
          %1931 = vmatpush1.bf16.msra.mxu0 %v1676
          %1932 = vmatprep.subr.bf16.mxu0 %v1693
          %1933 = vmatpush1.bf16.msra.mxu0 %v1692
          %1934 = vmatprep.subr.bf16.mxu0 0
          %1935 = vmatpush1.bf16.msra.mxu0 0
          %1936 = vmatprep.subr.bf16.mxu0 0
          %1937 = vmatpush1.bf16.msra.mxu0 0
          %1938 = vmatprep.subr.bf16.mxu0 0
          %1939 = vmatpush1.bf16.msra.mxu0 0
          %1940 = vmatprep.subr.bf16.mxu0 0
          %1941 = vmatpush1.bf16.msra.mxu0 0
          %1942 = vmatprep.subr.bf16.mxu0 0
          %1943 = vmatpush1.bf16.msra.mxu0 0
          %1944 = vmatprep.subr.bf16.mxu0 0
          %1945 = vmatpush1.bf16.msra.mxu0 0
          %1946 = vmatprep.subr.bf16.mxu0 0
          %1947 = vmatpush1.bf16.msra.mxu0 0
          %1948 = vmatprep.subr.bf16.mxu0 0
          %1949 = vmatpush1.bf16.msra.mxu0 0
          %1950 = vmatprep.mubr.bf16.mxu0 0
          %1951 = vmatmul.mubr.bf16.gmra.mrb[0].mxu0 %v979
          %v1952 = vpop.f32.mrb[0].mxu0
          %v1953 = vadd.f32 %v1131, %v1952
          %v1954 = vpop.f32.mrb[0].mxu0
          %v1955 = vadd.f32 %v1135, %v1954
          %v1956 = vpop.f32.mrb[0].mxu0
          %v1957 = vadd.f32 %v1131, %v1956
          %v1958 = vpop.f32.mrb[0].mxu0
          %v1959 = vadd.f32 %v1135, %v1958
          %1960 = vdwg.mxu0
          %1961 = vmatprep.subr.bf16.mxu0 %v1583
          %1962 = vmatpush1.bf16.msra.mxu0 %v1582
          %1963 = vmatprep.subr.bf16.mxu0 %v1599
          %1964 = vmatpush1.bf16.msra.mxu0 %v1598
          %1965 = vmatprep.subr.bf16.mxu0 %v1615
          %1966 = vmatpush1.bf16.msra.mxu0 %v1614
          %1967 = vmatprep.subr.bf16.mxu0 %v1631
          %1968 = vmatpush1.bf16.msra.mxu0 %v1630
          %1969 = vmatprep.subr.bf16.mxu0 %v1647
          %1970 = vmatpush1.bf16.msra.mxu0 %v1646
          %1971 = vmatprep.subr.bf16.mxu0 %v1663
          %1972 = vmatpush1.bf16.msra.mxu0 %v1662
          %1973 = vmatprep.subr.bf16.mxu0 %v1679
          %1974 = vmatpush1.bf16.msra.mxu0 %v1678
          %1975 = vmatprep.subr.bf16.mxu0 %v1695
          %1976 = vmatpush1.bf16.msra.mxu0 %v1694
          %1977 = vmatprep.subr.bf16.mxu0 0
          %1978 = vmatpush1.bf16.msra.mxu0 0
          %1979 = vmatprep.subr.bf16.mxu0 0
          %1980 = vmatpush1.bf16.msra.mxu0 0
          %1981 = vmatprep.subr.bf16.mxu0 0
          %1982 = vmatpush1.bf16.msra.mxu0 0
          %1983 = vmatprep.subr.bf16.mxu0 0
          %1984 = vmatpush1.bf16.msra.mxu0 0
          %1985 = vmatprep.subr.bf16.mxu0 0
          %1986 = vmatpush1.bf16.msra.mxu0 0
          %1987 = vmatprep.subr.bf16.mxu0 0
          %1988 = vmatpush1.bf16.msra.mxu0 0
          %1989 = vmatprep.subr.bf16.mxu0 0
          %1990 = vmatpush1.bf16.msra.mxu0 0
          %1991 = vmatprep.subr.bf16.mxu0 0
          %1992 = vmatpush1.bf16.msra.mxu0 0
          %1993 = vmatprep.mubr.bf16.mxu0 0
          %1994 = vmatmul.mubr.bf16.gmra.mrb[0].mxu0 %v979
          %v1995 = vpop.f32.mrb[0].mxu0
          %v1996 = vadd.f32 %v1139, %v1995
          %v1997 = vpop.f32.mrb[0].mxu0
          %v1998 = vadd.f32 %v1143, %v1997
          %v1999 = vpop.f32.mrb[0].mxu0
          %v2000 = vadd.f32 %v1139, %v1999
          %v2001 = vpop.f32.mrb[0].mxu0
          %v2002 = vadd.f32 %v1143, %v2001
          %2003 = vdwg.mxu0
          %2004 = vmatprep.subr.bf16.mxu0 %v1585
          %2005 = vmatpush1.bf16.msra.mxu0 %v1584
          %2006 = vmatprep.subr.bf16.mxu0 %v1601
          %2007 = vmatpush1.bf16.msra.mxu0 %v1600
          %2008 = vmatprep.subr.bf16.mxu0 %v1617
          %2009 = vmatpush1.bf16.msra.mxu0 %v1616
          %2010 = vmatprep.subr.bf16.mxu0 %v1633
          %2011 = vmatpush1.bf16.msra.mxu0 %v1632
          %2012 = vmatprep.subr.bf16.mxu0 %v1649
          %2013 = vmatpush1.bf16.msra.mxu0 %v1648
          %2014 = vmatprep.subr.bf16.mxu0 %v1665
          %2015 = vmatpush1.bf16.msra.mxu0 %v1664
          %2016 = vmatprep.subr.bf16.mxu0 %v1681
          %2017 = vmatpush1.bf16.msra.mxu0 %v1680
          %2018 = vmatprep.subr.bf16.mxu0 %v1697
          %2019 = vmatpush1.bf16.msra.mxu0 %v1696
          %2020 = vmatprep.subr.bf16.mxu0 0
          %2021 = vmatpush1.bf16.msra.mxu0 0
          %2022 = vmatprep.subr.bf16.mxu0 0
          %2023 = vmatpush1.bf16.msra.mxu0 0
          %2024 = vmatprep.subr.bf16.mxu0 0
          %2025 = vmatpush1.bf16.msra.mxu0 0
          %2026 = vmatprep.subr.bf16.mxu0 0
          %2027 = vmatpush1.bf16.msra.mxu0 0
          %2028 = vmatprep.subr.bf16.mxu0 0
          %2029 = vmatpush1.bf16.msra.mxu0 0
          %2030 = vmatprep.subr.bf16.mxu0 0
          %2031 = vmatpush1.bf16.msra.mxu0 0
          %2032 = vmatprep.subr.bf16.mxu0 0
          %2033 = vmatpush1.bf16.msra.mxu0 0
          %2034 = vmatprep.subr.bf16.mxu0 0
          %2035 = vmatpush1.bf16.msra.mxu0 0
          %2036 = vmatprep.mubr.bf16.mxu0 0
          %2037 = vmatmul.mubr.bf16.gmra.mrb[0].mxu0 %v979
          %v2038 = vpop.f32.mrb[0].mxu0
          %v2039 = vadd.f32 %v1147, %v2038
          %v2040 = vpop.f32.mrb[0].mxu0
          %v2041 = vadd.f32 %v1151, %v2040
          %v2042 = vpop.f32.mrb[0].mxu0
          %v2043 = vadd.f32 %v1147, %v2042
          %v2044 = vpop.f32.mrb[0].mxu0
          %v2045 = vadd.f32 %v1151, %v2044
          %2046 = vdwg.mxu0
          %2047 = vmatprep.subr.bf16.mxu0 %v1587
          %2048 = vmatpush1.bf16.msra.mxu0 %v1586
          %2049 = vmatprep.subr.bf16.mxu0 %v1603
          %2050 = vmatpush1.bf16.msra.mxu0 %v1602
          %2051 = vmatprep.subr.bf16.mxu0 %v1619
          %2052 = vmatpush1.bf16.msra.mxu0 %v1618
          %2053 = vmatprep.subr.bf16.mxu0 %v1635
          %2054 = vmatpush1.bf16.msra.mxu0 %v1634
          %2055 = vmatprep.subr.bf16.mxu0 %v1651
          %2056 = vmatpush1.bf16.msra.mxu0 %v1650
          %2057 = vmatprep.subr.bf16.mxu0 %v1667
          %2058 = vmatpush1.bf16.msra.mxu0 %v1666
          %2059 = vmatprep.subr.bf16.mxu0 %v1683
          %2060 = vmatpush1.bf16.msra.mxu0 %v1682
          %2061 = vmatprep.subr.bf16.mxu0 %v1699
          %2062 = vmatpush1.bf16.msra.mxu0 %v1698
          %2063 = vmatprep.subr.bf16.mxu0 0
          %2064 = vmatpush1.bf16.msra.mxu0 0
          %2065 = vmatprep.subr.bf16.mxu0 0
          %2066 = vmatpush1.bf16.msra.mxu0 0
          %2067 = vmatprep.subr.bf16.mxu0 0
          %2068 = vmatpush1.bf16.msra.mxu0 0
          %2069 = vmatprep.subr.bf16.mxu0 0
          %2070 = vmatpush1.bf16.msra.mxu0 0
          %2071 = vmatprep.subr.bf16.mxu0 0
          %2072 = vmatpush1.bf16.msra.mxu0 0
          %2073 = vmatprep.subr.bf16.mxu0 0
          %2074 = vmatpush1.bf16.msra.mxu0 0
          %2075 = vmatprep.subr.bf16.mxu0 0
          %2076 = vmatpush1.bf16.msra.mxu0 0
          %2077 = vmatprep.subr.bf16.mxu0 0
          %2078 = vmatpush1.bf16.msra.mxu0 0
          %2079 = vmatprep.mubr.bf16.mxu0 0
          %2080 = vmatmul.mubr.bf16.gmra.mrb[0].mxu0 %v979
          %v2081 = vpop.f32.mrb[0].mxu0
          %v2082 = vadd.f32 %v1155, %v2081
          %v2083 = vpop.f32.mrb[0].mxu0
          %v2084 = vadd.f32 %v1159, %v2083
          %v2085 = vpop.f32.mrb[0].mxu0
          %v2086 = vadd.f32 %v1155, %v2085
          %v2087 = vpop.f32.mrb[0].mxu0
          %v2088 = vadd.f32 %v1159, %v2087
          %2089 = vdwg.mxu0
          %2090 = vmatprep.subr.bf16.mxu0 %v1589
          %2091 = vmatpush1.bf16.msra.mxu0 %v1588
          %2092 = vmatprep.subr.bf16.mxu0 %v1605
          %2093 = vmatpush1.bf16.msra.mxu0 %v1604
          %2094 = vmatprep.subr.bf16.mxu0 %v1621
          %2095 = vmatpush1.bf16.msra.mxu0 %v1620
          %2096 = vmatprep.subr.bf16.mxu0 %v1637
          %2097 = vmatpush1.bf16.msra.mxu0 %v1636
          %2098 = vmatprep.subr.bf16.mxu0 %v1653
          %2099 = vmatpush1.bf16.msra.mxu0 %v1652
          %2100 = vmatprep.subr.bf16.mxu0 %v1669
          %2101 = vmatpush1.bf16.msra.mxu0 %v1668
          %2102 = vmatprep.subr.bf16.mxu0 %v1685
          %2103 = vmatpush1.bf16.msra.mxu0 %v1684
          %2104 = vmatprep.subr.bf16.mxu0 %v1701
          %2105 = vmatpush1.bf16.msra.mxu0 %v1700
          %2106 = vmatprep.subr.bf16.mxu0 0
          %2107 = vmatpush1.bf16.msra.mxu0 0
          %2108 = vmatprep.subr.bf16.mxu0 0
          %2109 = vmatpush1.bf16.msra.mxu0 0
          %2110 = vmatprep.subr.bf16.mxu0 0
          %2111 = vmatpush1.bf16.msra.mxu0 0
          %2112 = vmatprep.subr.bf16.mxu0 0
          %2113 = vmatpush1.bf16.msra.mxu0 0
          %2114 = vmatprep.subr.bf16.mxu0 0
          %2115 = vmatpush1.bf16.msra.mxu0 0
          %2116 = vmatprep.subr.bf16.mxu0 0
          %2117 = vmatpush1.bf16.msra.mxu0 0
          %2118 = vmatprep.subr.bf16.mxu0 0
          %2119 = vmatpush1.bf16.msra.mxu0 0
          %2120 = vmatprep.subr.bf16.mxu0 0
          %2121 = vmatpush1.bf16.msra.mxu0 0
          %2122 = vmatprep.mubr.bf16.mxu0 0
          %2123 = vmatmul.mubr.bf16.gmra.mrb[0].mxu0 %v979
          %v2124 = vpop.f32.mrb[0].mxu0
          %v2125 = vadd.f32 %v1163, %v2124
          %v2126 = vpop.f32.mrb[0].mxu0
          %v2127 = vadd.f32 %v1167, %v2126
          %v2128 = vpop.f32.mrb[0].mxu0
          %v2129 = vadd.f32 %v1163, %v2128
          %v2130 = vpop.f32.mrb[0].mxu0
          %v2131 = vadd.f32 %v1167, %v2130
          %2132 = vdwg.mxu0
          %2133 = vmatprep.subr.bf16.mxu0 %v1591
          %2134 = vmatpush1.bf16.msra.mxu0 %v1590
          %2135 = vmatprep.subr.bf16.mxu0 %v1607
          %2136 = vmatpush1.bf16.msra.mxu0 %v1606
          %2137 = vmatprep.subr.bf16.mxu0 %v1623
          %2138 = vmatpush1.bf16.msra.mxu0 %v1622
          %2139 = vmatprep.subr.bf16.mxu0 %v1639
          %2140 = vmatpush1.bf16.msra.mxu0 %v1638
          %2141 = vmatprep.subr.bf16.mxu0 %v1655
          %2142 = vmatpush1.bf16.msra.mxu0 %v1654
          %2143 = vmatprep.subr.bf16.mxu0 %v1671
          %2144 = vmatpush1.bf16.msra.mxu0 %v1670
          %2145 = vmatprep.subr.bf16.mxu0 %v1687
          %2146 = vmatpush1.bf16.msra.mxu0 %v1686
          %2147 = vmatprep.subr.bf16.mxu0 %v1703
          %2148 = vmatpush1.bf16.msra.mxu0 %v1702
          %2149 = vmatprep.subr.bf16.mxu0 0
          %2150 = vmatpush1.bf16.msra.mxu0 0
          %2151 = vmatprep.subr.bf16.mxu0 0
          %2152 = vmatpush1.bf16.msra.mxu0 0
          %2153 = vmatprep.subr.bf16.mxu0 0
          %2154 = vmatpush1.bf16.msra.mxu0 0
          %2155 = vmatprep.subr.bf16.mxu0 0
          %2156 = vmatpush1.bf16.msra.mxu0 0
          %2157 = vmatprep.subr.bf16.mxu0 0
          %2158 = vmatpush1.bf16.msra.mxu0 0
          %2159 = vmatprep.subr.bf16.mxu0 0
          %2160 = vmatpush1.bf16.msra.mxu0 0
          %2161 = vmatprep.subr.bf16.mxu0 0
          %2162 = vmatpush1.bf16.msra.mxu0 0
          %2163 = vmatprep.subr.bf16.mxu0 0
          %2164 = vmatpush1.bf16.msra.mxu0 0
          %2165 = vmatprep.mubr.bf16.mxu0 0
          %2166 = vmatmul.mubr.bf16.gmra.mrb[0].mxu0 %v979
          %v2167 = vpop.f32.mrb[0].mxu0
          %v2168 = vadd.f32 %v1171, %v2167
          %v2169 = vpop.f32.mrb[0].mxu0
          %v2170 = vadd.f32 %v1175, %v2169
          %v2171 = vpop.f32.mrb[0].mxu0
          %v2172 = vadd.f32 %v1171, %v2171
          %v2173 = vpop.f32.mrb[0].mxu0
          %v2174 = vadd.f32 %v1175, %v2173
          %2175 = vdwg.mxu0
          %v2176 = vld [vmem:[%s8] sm:$0xff]
          %v2177 = vld [vmem:[%s8 + $0x8] sm:$0xff]
          %v2178 = vld [vmem:[%s9] sm:$0xff]
          %v2179 = vld [vmem:[%s9 + $0x8] sm:$0xff]
          %v2180 = vadd.f32 %v1867, %v1869
          %v2181 = vadd.f32 %v2180, %v1910
          %v2182 = vadd.f32 %v2181, %v1912
          %v2183 = vadd.f32 %v2182, %v1953
          %v2184 = vadd.f32 %v2183, %v1955
          %v2185 = vadd.f32 %v2184, %v1996
          %v2186 = vadd.f32 %v2185, %v1998
          %v2187 = vadd.f32 %v2186, %v2039
          %v2188 = vadd.f32 %v2187, %v2041
          %v2189 = vadd.f32 %v2188, %v2082
          %v2190 = vadd.f32 %v2189, %v2084
          %v2191 = vadd.f32 %v2190, %v2125
          %v2192 = vadd.f32 %v2191, %v2127
          %v2193 = vadd.f32 %v2192, %v2168
          %v2194 = vadd.f32 %v2193, %v2170
          %2195 = vadd.xlane.f32.xlu0 %v2194
          %v2196 = vpop.xlane.xlu0 %2195
          %v2197 = vadd.f32 %v1871, %v1873
          %v2198 = vadd.f32 %v2197, %v1914
          %v2199 = vadd.f32 %v2198, %v1916
          %v2200 = vadd.f32 %v2199, %v1957
          %v2201 = vadd.f32 %v2200, %v1959
          %v2202 = vadd.f32 %v2201, %v2000
          %v2203 = vadd.f32 %v2202, %v2002
          %v2204 = vadd.f32 %v2203, %v2043
          %v2205 = vadd.f32 %v2204, %v2045
          %v2206 = vadd.f32 %v2205, %v2086
          %v2207 = vadd.f32 %v2206, %v2088
          %v2208 = vadd.f32 %v2207, %v2129
          %v2209 = vadd.f32 %v2208, %v2131
          %v2210 = vadd.f32 %v2209, %v2172
          %v2211 = vadd.f32 %v2210, %v2174
          %2212 = vadd.xlane.f32.xlu0 %v2211
          %v2213 = vpop.xlane.xlu0 %2212
          %2214 = vmatprep.subr.mxu0 0.0
          %2215 = vmatpush1.msra.mxu0 %v2196
          %2216 = vmatprep.subr.mxu0 0.0
          %2217 = vmatpush1.msra.mxu0 %v2213
          %2218 = vmatprep.subr.mxu0 0.0
          %2219 = vmatpush1.msra.mxu0 0.0
          %2220 = vmatprep.subr.mxu0 0.0
          %2221 = vmatpush1.msra.mxu0 0.0
          %2222 = vmatprep.subr.mxu0 0.0
          %2223 = vmatpush1.msra.mxu0 0.0
          %2224 = vmatprep.subr.mxu0 0.0
          %2225 = vmatpush1.msra.mxu0 0.0
          %2226 = vmatprep.subr.mxu0 0.0
          %2227 = vmatpush1.msra.mxu0 0.0
          %2228 = vmatprep.subr.mxu0 0.0
          %2229 = vmatpush1.msra.mxu0 0.0
          %2230 = vmatprep.subr.mxu0 0.0
          %2231 = vmatpush1.msra.mxu0 0.0
          %2232 = vmatprep.subr.mxu0 0.0
          %2233 = vmatpush1.msra.mxu0 0.0
          %2234 = vmatprep.subr.mxu0 0.0
          %2235 = vmatpush1.msra.mxu0 0.0
          %2236 = vmatprep.subr.mxu0 0.0
          %2237 = vmatpush1.msra.mxu0 0.0
          %2238 = vmatprep.subr.mxu0 0.0
          %2239 = vmatpush1.msra.mxu0 0.0
          %2240 = vmatprep.subr.mxu0 0.0
          %2241 = vmatpush1.msra.mxu0 0.0
          %2242 = vmatprep.subr.mxu0 0.0
          %2243 = vmatpush1.msra.mxu0 0.0
          %2244 = vmatprep.subr.mxu0 0.0
          %2245 = vmatpush1.msra.mxu0 0.0
          %2246 = vmatprep.subr.mxu0 0.0
          %2247 = vmatpush1.msra.mxu0 0.0
          %2248 = vmatprep.subr.mxu0 0.0
          %2249 = vmatpush1.msra.mxu0 0.0
          %2250 = vmatprep.subr.mxu0 0.0
          %2251 = vmatpush1.msra.mxu0 0.0
          %2252 = vmatprep.subr.mxu0 0.0
          %2253 = vmatpush1.msra.mxu0 0.0
          %2254 = vmatprep.subr.mxu0 0.0
          %2255 = vmatpush1.msra.mxu0 0.0
          %2256 = vmatprep.subr.mxu0 0.0
          %2257 = vmatpush1.msra.mxu0 0.0
          %2258 = vmatprep.subr.mxu0 0.0
          %2259 = vmatpush1.msra.mxu0 0.0
          %2260 = vmatprep.subr.mxu0 0.0
          %2261 = vmatpush1.msra.mxu0 0.0
          %2262 = vmatprep.subr.mxu0 0.0
          %2263 = vmatpush1.msra.mxu0 0.0
          %2264 = vmatprep.subr.mxu0 0.0
          %2265 = vmatpush1.msra.mxu0 0.0
          %2266 = vmatprep.subr.mxu0 0.0
          %2267 = vmatpush1.msra.mxu0 0.0
          %2268 = vmatprep.subr.mxu0 0.0
          %2269 = vmatpush1.msra.mxu0 0.0
          %2270 = vmatprep.subr.mxu0 0.0
          %2271 = vmatpush1.msra.mxu0 0.0
          %2272 = vmatprep.subr.mxu0 0.0
          %2273 = vmatpush1.msra.mxu0 0.0
          %2274 = vmatprep.subr.mxu0 0.0
          %2275 = vmatpush1.msra.mxu0 0.0
          %2276 = vmatprep.subr.mxu0 0.0
          %2277 = vmatpush1.msra.mxu0 0.0
          %2278 = vmatprep.mubr.f32.mxu0 0.0
          %2279 = vmatmul.mubr.f32.gmra.mrb[0].mxu0 %v756
          %v2280 = vpop.f32.mrb[0].mxu0
          %v2281 = vadd.f32 0.0, %v2280
          %v2282 = vpop.f32.mrb[0].mxu0
          %2283 = vmatprep.mubr.f32.mxu0 0.0
          %2284 = vmatmul.mubr.f32.gmra.mrb[0].mxu0 %v759
          %v2285 = vpop.f32.mrb[0].mxu0
          %v2286 = vadd.f32 0.0, %v2285
          %v2287 = vpop.f32.mrb[0].mxu0
          %2288 = vdwg.mxu0
          %v2289 = vmul.f32 %v2281, 0.00024414063
          %v2290 = vmul.f32 %v2286, 0.00024414063
          %2292 = vset.pattern.permute.xlu0 0
          %2293 = vperm.xlu0 %2292, %v2289
          %v2294 = vpop.permute.xlu0 %2293
          %2297 = vset.pattern.permute.xlu0 0
          %2298 = vperm.xlu0 %2297, %v2290
          %v2299 = vpop.permute.xlu0 %2298
          %v2301 = vsub.f32 %v1867, %v2294
          %v2302 = vsub.f32 %v1869, %v2294
          %v2303 = vsub.f32 %v1910, %v2294
          %v2304 = vsub.f32 %v1912, %v2294
          %v2305 = vsub.f32 %v1953, %v2294
          %v2306 = vsub.f32 %v1955, %v2294
          %v2307 = vsub.f32 %v1996, %v2294
          %v2308 = vsub.f32 %v1998, %v2294
          %v2309 = vsub.f32 %v2039, %v2294
          %v2310 = vsub.f32 %v2041, %v2294
          %v2311 = vsub.f32 %v2082, %v2294
          %v2312 = vsub.f32 %v2084, %v2294
          %v2313 = vsub.f32 %v2125, %v2294
          %v2314 = vsub.f32 %v2127, %v2294
          %v2315 = vsub.f32 %v2168, %v2294
          %v2316 = vsub.f32 %v2170, %v2294
          %v2317 = vsub.f32 %v1871, %v2299
          %v2318 = vsub.f32 %v1873, %v2299
          %v2319 = vsub.f32 %v1914, %v2299
          %v2320 = vsub.f32 %v1916, %v2299
          %v2321 = vsub.f32 %v1957, %v2299
          %v2322 = vsub.f32 %v1959, %v2299
          %v2323 = vsub.f32 %v2000, %v2299
          %v2324 = vsub.f32 %v2002, %v2299
          %v2325 = vsub.f32 %v2043, %v2299
          %v2326 = vsub.f32 %v2045, %v2299
          %v2327 = vsub.f32 %v2086, %v2299
          %v2328 = vsub.f32 %v2088, %v2299
          %v2329 = vsub.f32 %v2129, %v2299
          %v2330 = vsub.f32 %v2131, %v2299
          %v2331 = vsub.f32 %v2172, %v2299
          %v2332 = vsub.f32 %v2174, %v2299
          %v2333 = vmul.f32 %v2301, %v2301
          %v2334 = vmul.f32 %v2302, %v2302
          %v2335 = vmul.f32 %v2303, %v2303
          %v2336 = vmul.f32 %v2304, %v2304
          %v2337 = vmul.f32 %v2305, %v2305
          %v2338 = vmul.f32 %v2306, %v2306
          %v2339 = vmul.f32 %v2307, %v2307
          %v2340 = vmul.f32 %v2308, %v2308
          %v2341 = vmul.f32 %v2309, %v2309
          %v2342 = vmul.f32 %v2310, %v2310
          %v2343 = vmul.f32 %v2311, %v2311
          %v2344 = vmul.f32 %v2312, %v2312
          %v2345 = vmul.f32 %v2313, %v2313
          %v2346 = vmul.f32 %v2314, %v2314
          %v2347 = vmul.f32 %v2315, %v2315
          %v2348 = vmul.f32 %v2316, %v2316
          %v2349 = vmul.f32 %v2317, %v2317
          %v2350 = vmul.f32 %v2318, %v2318
          %v2351 = vmul.f32 %v2319, %v2319
          %v2352 = vmul.f32 %v2320, %v2320
          %v2353 = vmul.f32 %v2321, %v2321
          %v2354 = vmul.f32 %v2322, %v2322
          %v2355 = vmul.f32 %v2323, %v2323
          %v2356 = vmul.f32 %v2324, %v2324
          %v2357 = vmul.f32 %v2325, %v2325
          %v2358 = vmul.f32 %v2326, %v2326
          %v2359 = vmul.f32 %v2327, %v2327
          %v2360 = vmul.f32 %v2328, %v2328
          %v2361 = vmul.f32 %v2329, %v2329
          %v2362 = vmul.f32 %v2330, %v2330
          %v2363 = vmul.f32 %v2331, %v2331
          %v2364 = vmul.f32 %v2332, %v2332
          %v2365 = vadd.f32 %v2333, %v2334
          %v2366 = vadd.f32 %v2365, %v2335
          %v2367 = vadd.f32 %v2366, %v2336
          %v2368 = vadd.f32 %v2367, %v2337
          %v2369 = vadd.f32 %v2368, %v2338
          %v2370 = vadd.f32 %v2369, %v2339
          %v2371 = vadd.f32 %v2370, %v2340
          %v2372 = vadd.f32 %v2371, %v2341
          %v2373 = vadd.f32 %v2372, %v2342
          %v2374 = vadd.f32 %v2373, %v2343
          %v2375 = vadd.f32 %v2374, %v2344
          %v2376 = vadd.f32 %v2375, %v2345
          %v2377 = vadd.f32 %v2376, %v2346
          %v2378 = vadd.f32 %v2377, %v2347
          %v2379 = vadd.f32 %v2378, %v2348
          %2380 = vadd.xlane.f32.xlu0 %v2379
          %v2381 = vpop.xlane.xlu0 %2380
          %v2382 = vadd.f32 %v2349, %v2350
          %v2383 = vadd.f32 %v2382, %v2351
          %v2384 = vadd.f32 %v2383, %v2352
          %v2385 = vadd.f32 %v2384, %v2353
          %v2386 = vadd.f32 %v2385, %v2354
          %v2387 = vadd.f32 %v2386, %v2355
          %v2388 = vadd.f32 %v2387, %v2356
          %v2389 = vadd.f32 %v2388, %v2357
          %v2390 = vadd.f32 %v2389, %v2358
          %v2391 = vadd.f32 %v2390, %v2359
          %v2392 = vadd.f32 %v2391, %v2360
          %v2393 = vadd.f32 %v2392, %v2361
          %v2394 = vadd.f32 %v2393, %v2362
          %v2395 = vadd.f32 %v2394, %v2363
          %v2396 = vadd.f32 %v2395, %v2364
          %2397 = vadd.xlane.f32.xlu0 %v2396
          %v2398 = vpop.xlane.xlu0 %2397
          %2399 = vmatprep.subr.mxu0 0.0
          %2400 = vmatpush1.msra.mxu0 %v2381
          %2401 = vmatprep.subr.mxu0 0.0
          %2402 = vmatpush1.msra.mxu0 %v2398
          %2403 = vmatprep.subr.mxu0 0.0
          %2404 = vmatpush1.msra.mxu0 0.0
          %2405 = vmatprep.subr.mxu0 0.0
          %2406 = vmatpush1.msra.mxu0 0.0
          %2407 = vmatprep.subr.mxu0 0.0
          %2408 = vmatpush1.msra.mxu0 0.0
          %2409 = vmatprep.subr.mxu0 0.0
          %2410 = vmatpush1.msra.mxu0 0.0
          %2411 = vmatprep.subr.mxu0 0.0
          %2412 = vmatpush1.msra.mxu0 0.0
          %2413 = vmatprep.subr.mxu0 0.0
          %2414 = vmatpush1.msra.mxu0 0.0
          %2415 = vmatprep.subr.mxu0 0.0
          %2416 = vmatpush1.msra.mxu0 0.0
          %2417 = vmatprep.subr.mxu0 0.0
          %2418 = vmatpush1.msra.mxu0 0.0
          %2419 = vmatprep.subr.mxu0 0.0
          %2420 = vmatpush1.msra.mxu0 0.0
          %2421 = vmatprep.subr.mxu0 0.0
          %2422 = vmatpush1.msra.mxu0 0.0
          %2423 = vmatprep.subr.mxu0 0.0
          %2424 = vmatpush1.msra.mxu0 0.0
          %2425 = vmatprep.subr.mxu0 0.0
          %2426 = vmatpush1.msra.mxu0 0.0
          %2427 = vmatprep.subr.mxu0 0.0
          %2428 = vmatpush1.msra.mxu0 0.0
          %2429 = vmatprep.subr.mxu0 0.0
          %2430 = vmatpush1.msra.mxu0 0.0
          %2431 = vmatprep.subr.mxu0 0.0
          %2432 = vmatpush1.msra.mxu0 0.0
          %2433 = vmatprep.subr.mxu0 0.0
          %2434 = vmatpush1.msra.mxu0 0.0
          %2435 = vmatprep.subr.mxu0 0.0
          %2436 = vmatpush1.msra.mxu0 0.0
          %2437 = vmatprep.subr.mxu0 0.0
          %2438 = vmatpush1.msra.mxu0 0.0
          %2439 = vmatprep.subr.mxu0 0.0
          %2440 = vmatpush1.msra.mxu0 0.0
          %2441 = vmatprep.subr.mxu0 0.0
          %2442 = vmatpush1.msra.mxu0 0.0
          %2443 = vmatprep.subr.mxu0 0.0
          %2444 = vmatpush1.msra.mxu0 0.0
          %2445 = vmatprep.subr.mxu0 0.0
          %2446 = vmatpush1.msra.mxu0 0.0
          %2447 = vmatprep.subr.mxu0 0.0
          %2448 = vmatpush1.msra.mxu0 0.0
          %2449 = vmatprep.subr.mxu0 0.0
          %2450 = vmatpush1.msra.mxu0 0.0
          %2451 = vmatprep.subr.mxu0 0.0
          %2452 = vmatpush1.msra.mxu0 0.0
          %2453 = vmatprep.subr.mxu0 0.0
          %2454 = vmatpush1.msra.mxu0 0.0
          %2455 = vmatprep.subr.mxu0 0.0
          %2456 = vmatpush1.msra.mxu0 0.0
          %2457 = vmatprep.subr.mxu0 0.0
          %2458 = vmatpush1.msra.mxu0 0.0
          %2459 = vmatprep.subr.mxu0 0.0
          %2460 = vmatpush1.msra.mxu0 0.0
          %2461 = vmatprep.subr.mxu0 0.0
          %2462 = vmatpush1.msra.mxu0 0.0
          %2463 = vmatprep.mubr.f32.mxu0 0.0
          %2464 = vmatmul.mubr.f32.gmra.mrb[0].mxu0 %v756
          %v2465 = vpop.f32.mrb[0].mxu0
          %v2466 = vadd.f32 0.0, %v2465
          %v2467 = vpop.f32.mrb[0].mxu0
          %2468 = vmatprep.mubr.f32.mxu0 0.0
          %2469 = vmatmul.mubr.f32.gmra.mrb[0].mxu0 %v759
          %v2470 = vpop.f32.mrb[0].mxu0
          %v2471 = vadd.f32 0.0, %v2470
          %v2472 = vpop.f32.mrb[0].mxu0
          %2473 = vdwg.mxu0
          %v2474 = vmul.f32 %v2466, 0.00024414063
          %v2475 = vmul.f32 %v2471, 0.00024414063
          %v2476 = vadd.f32 %v2474, 1e-05
          %v2477 = vadd.f32 %v2475, 1e-05
          %v2478 = vrsqrt.pop %v2476
          %v2479 = vrsqrt.pop %v2477
          %2481 = vset.pattern.permute.xlu0 0
          %2482 = vperm.xlu0 %2481, %v2478
          %v2483 = vpop.permute.xlu0 %2482
          %2486 = vset.pattern.permute.xlu0 0
          %2487 = vperm.xlu0 %2486, %v2479
          %v2488 = vpop.permute.xlu0 %2487
          %v2490 = vmul.f32 %v2301, %v2483
          %v2491 = vmul.f32 %v2302, %v2483
          %v2492 = vmul.f32 %v2303, %v2483
          %v2493 = vmul.f32 %v2304, %v2483
          %v2494 = vmul.f32 %v2305, %v2483
          %v2495 = vmul.f32 %v2306, %v2483
          %v2496 = vmul.f32 %v2307, %v2483
          %v2497 = vmul.f32 %v2308, %v2483
          %v2498 = vmul.f32 %v2309, %v2483
          %v2499 = vmul.f32 %v2310, %v2483
          %v2500 = vmul.f32 %v2311, %v2483
          %v2501 = vmul.f32 %v2312, %v2483
          %v2502 = vmul.f32 %v2313, %v2483
          %v2503 = vmul.f32 %v2314, %v2483
          %v2504 = vmul.f32 %v2315, %v2483
          %v2505 = vmul.f32 %v2316, %v2483
          %v2506 = vmul.f32 %v2317, %v2488
          %v2507 = vmul.f32 %v2318, %v2488
          %v2508 = vmul.f32 %v2319, %v2488
          %v2509 = vmul.f32 %v2320, %v2488
          %v2510 = vmul.f32 %v2321, %v2488
          %v2511 = vmul.f32 %v2322, %v2488
          %v2512 = vmul.f32 %v2323, %v2488
          %v2513 = vmul.f32 %v2324, %v2488
          %v2514 = vmul.f32 %v2325, %v2488
          %v2515 = vmul.f32 %v2326, %v2488
          %v2516 = vmul.f32 %v2327, %v2488
          %v2517 = vmul.f32 %v2328, %v2488
          %v2518 = vmul.f32 %v2329, %v2488
          %v2519 = vmul.f32 %v2330, %v2488
          %v2520 = vmul.f32 %v2331, %v2488
          %v2521 = vmul.f32 %v2332, %v2488
          %2523 = vset.pattern.permute.xlu0 0
          %2524 = vperm.xlu0 %2523, %v2176
          %v2525 = vpop.permute.xlu0 %2524
          %2528 = vset.pattern.permute.xlu0 0
          %2529 = vperm.xlu0 %2528, %v2177
          %v2530 = vpop.permute.xlu0 %2529
          %v2532 = vmul.f32 %v2490, %v2525
          %v2533 = vmul.f32 %v2491, %v2525
          %v2534 = vmul.f32 %v2492, %v2525
          %v2535 = vmul.f32 %v2493, %v2525
          %v2536 = vmul.f32 %v2494, %v2525
          %v2537 = vmul.f32 %v2495, %v2525
          %v2538 = vmul.f32 %v2496, %v2525
          %v2539 = vmul.f32 %v2497, %v2525
          %v2540 = vmul.f32 %v2498, %v2525
          %v2541 = vmul.f32 %v2499, %v2525
          %v2542 = vmul.f32 %v2500, %v2525
          %v2543 = vmul.f32 %v2501, %v2525
          %v2544 = vmul.f32 %v2502, %v2525
          %v2545 = vmul.f32 %v2503, %v2525
          %v2546 = vmul.f32 %v2504, %v2525
          %v2547 = vmul.f32 %v2505, %v2525
          %v2548 = vmul.f32 %v2506, %v2530
          %v2549 = vmul.f32 %v2507, %v2530
          %v2550 = vmul.f32 %v2508, %v2530
          %v2551 = vmul.f32 %v2509, %v2530
          %v2552 = vmul.f32 %v2510, %v2530
          %v2553 = vmul.f32 %v2511, %v2530
          %v2554 = vmul.f32 %v2512, %v2530
          %v2555 = vmul.f32 %v2513, %v2530
          %v2556 = vmul.f32 %v2514, %v2530
          %v2557 = vmul.f32 %v2515, %v2530
          %v2558 = vmul.f32 %v2516, %v2530
          %v2559 = vmul.f32 %v2517, %v2530
          %v2560 = vmul.f32 %v2518, %v2530
          %v2561 = vmul.f32 %v2519, %v2530
          %v2562 = vmul.f32 %v2520, %v2530
          %v2563 = vmul.f32 %v2521, %v2530
          %2565 = vset.pattern.permute.xlu0 0
          %2566 = vperm.xlu0 %2565, %v2178
          %v2567 = vpop.permute.xlu0 %2566
          %2570 = vset.pattern.permute.xlu0 0
          %2571 = vperm.xlu0 %2570, %v2179
          %v2572 = vpop.permute.xlu0 %2571
          %v2574 = vadd.f32 %v2532, %v2567
          %v2575 = vadd.f32 %v2533, %v2567
          %v2576 = vadd.f32 %v2534, %v2567
          %v2577 = vadd.f32 %v2535, %v2567
          %v2578 = vadd.f32 %v2536, %v2567
          %v2579 = vadd.f32 %v2537, %v2567
          %v2580 = vadd.f32 %v2538, %v2567
          %v2581 = vadd.f32 %v2539, %v2567
          %v2582 = vadd.f32 %v2540, %v2567
          %v2583 = vadd.f32 %v2541, %v2567
          %v2584 = vadd.f32 %v2542, %v2567
          %v2585 = vadd.f32 %v2543, %v2567
          %v2586 = vadd.f32 %v2544, %v2567
          %v2587 = vadd.f32 %v2545, %v2567
          %v2588 = vadd.f32 %v2546, %v2567
          %v2589 = vadd.f32 %v2547, %v2567
          %v2590 = vadd.f32 %v2548, %v2572
          %v2591 = vadd.f32 %v2549, %v2572
          %v2592 = vadd.f32 %v2550, %v2572
          %v2593 = vadd.f32 %v2551, %v2572
          %v2594 = vadd.f32 %v2552, %v2572
          %v2595 = vadd.f32 %v2553, %v2572
          %v2596 = vadd.f32 %v2554, %v2572
          %v2597 = vadd.f32 %v2555, %v2572
          %v2598 = vadd.f32 %v2556, %v2572
          %v2599 = vadd.f32 %v2557, %v2572
          %v2600 = vadd.f32 %v2558, %v2572
          %v2601 = vadd.f32 %v2559, %v2572
          %v2602 = vadd.f32 %v2560, %v2572
          %v2603 = vadd.f32 %v2561, %v2572
          %v2604 = vadd.f32 %v2562, %v2572
          %v2605 = vadd.f32 %v2563, %v2572
          %vm2606 = vcmp.ge.f32.partialorder %v2574, 0.0
          %vm2607 = vcmp.ge.f32.partialorder %v2575, 0.0
          %vm2608 = vcmp.ge.f32.partialorder %v2576, 0.0
          %vm2609 = vcmp.ge.f32.partialorder %v2577, 0.0
          %vm2610 = vcmp.ge.f32.partialorder %v2578, 0.0
          %vm2611 = vcmp.ge.f32.partialorder %v2579, 0.0
          %vm2612 = vcmp.ge.f32.partialorder %v2580, 0.0
          %vm2613 = vcmp.ge.f32.partialorder %v2581, 0.0
          %vm2614 = vcmp.ge.f32.partialorder %v2582, 0.0
          %vm2615 = vcmp.ge.f32.partialorder %v2583, 0.0
          %vm2616 = vcmp.ge.f32.partialorder %v2584, 0.0
          %vm2617 = vcmp.ge.f32.partialorder %v2585, 0.0
          %vm2618 = vcmp.ge.f32.partialorder %v2586, 0.0
          %vm2619 = vcmp.ge.f32.partialorder %v2587, 0.0
          %vm2620 = vcmp.ge.f32.partialorder %v2588, 0.0
          %vm2621 = vcmp.ge.f32.partialorder %v2589, 0.0
          %vm2622 = vcmp.ge.f32.partialorder %v2590, 0.0
          %vm2623 = vcmp.ge.f32.partialorder %v2591, 0.0
          %vm2624 = vcmp.ge.f32.partialorder %v2592, 0.0
          %vm2625 = vcmp.ge.f32.partialorder %v2593, 0.0
          %vm2626 = vcmp.ge.f32.partialorder %v2594, 0.0
          %vm2627 = vcmp.ge.f32.partialorder %v2595, 0.0
          %vm2628 = vcmp.ge.f32.partialorder %v2596, 0.0
          %vm2629 = vcmp.ge.f32.partialorder %v2597, 0.0
          %vm2630 = vcmp.ge.f32.partialorder %v2598, 0.0
          %vm2631 = vcmp.ge.f32.partialorder %v2599, 0.0
          %vm2632 = vcmp.ge.f32.partialorder %v2600, 0.0
          %vm2633 = vcmp.ge.f32.partialorder %v2601, 0.0
          %vm2634 = vcmp.ge.f32.partialorder %v2602, 0.0
          %vm2635 = vcmp.ge.f32.partialorder %v2603, 0.0
          %vm2636 = vcmp.ge.f32.partialorder %v2604, 0.0
          %vm2637 = vcmp.ge.f32.partialorder %v2605, 0.0
          %v2638 = vmul.f32 %v2574, 0.2
          %v2639 = vmul.f32 %v2575, 0.2
          %v2640 = vmul.f32 %v2576, 0.2
          %v2641 = vmul.f32 %v2577, 0.2
          %v2642 = vmul.f32 %v2578, 0.2
          %v2643 = vmul.f32 %v2579, 0.2
          %v2644 = vmul.f32 %v2580, 0.2
          %v2645 = vmul.f32 %v2581, 0.2
          %v2646 = vmul.f32 %v2582, 0.2
          %v2647 = vmul.f32 %v2583, 0.2
          %v2648 = vmul.f32 %v2584, 0.2
          %v2649 = vmul.f32 %v2585, 0.2
          %v2650 = vmul.f32 %v2586, 0.2
          %v2651 = vmul.f32 %v2587, 0.2
          %v2652 = vmul.f32 %v2588, 0.2
          %v2653 = vmul.f32 %v2589, 0.2
          %v2654 = vmul.f32 %v2590, 0.2
          %v2655 = vmul.f32 %v2591, 0.2
          %v2656 = vmul.f32 %v2592, 0.2
          %v2657 = vmul.f32 %v2593, 0.2
          %v2658 = vmul.f32 %v2594, 0.2
          %v2659 = vmul.f32 %v2595, 0.2
          %v2660 = vmul.f32 %v2596, 0.2
          %v2661 = vmul.f32 %v2597, 0.2
          %v2662 = vmul.f32 %v2598, 0.2
          %v2663 = vmul.f32 %v2599, 0.2
          %v2664 = vmul.f32 %v2600, 0.2
          %v2665 = vmul.f32 %v2601, 0.2
          %v2666 = vmul.f32 %v2602, 0.2
          %v2667 = vmul.f32 %v2603, 0.2
          %v2668 = vmul.f32 %v2604, 0.2
          %v2669 = vmul.f32 %v2605, 0.2
          %v2670 = vsel %vm2606, %v2574, %v2638
          %v2671 = vsel %vm2607, %v2575, %v2639
          %v2672 = vsel %vm2608, %v2576, %v2640
          %v2673 = vsel %vm2609, %v2577, %v2641
          %v2674 = vsel %vm2610, %v2578, %v2642
          %v2675 = vsel %vm2611, %v2579, %v2643
          %v2676 = vsel %vm2612, %v2580, %v2644
          %v2677 = vsel %vm2613, %v2581, %v2645
          %v2678 = vsel %vm2614, %v2582, %v2646
          %v2679 = vsel %vm2615, %v2583, %v2647
          %v2680 = vsel %vm2616, %v2584, %v2648
          %v2681 = vsel %vm2617, %v2585, %v2649
          %v2682 = vsel %vm2618, %v2586, %v2650
          %v2683 = vsel %vm2619, %v2587, %v2651
          %v2684 = vsel %vm2620, %v2588, %v2652
          %v2685 = vsel %vm2621, %v2589, %v2653
          %v2686 = vsel %vm2622, %v2590, %v2654
          %v2687 = vsel %vm2623, %v2591, %v2655
          %v2688 = vsel %vm2624, %v2592, %v2656
          %v2689 = vsel %vm2625, %v2593, %v2657
          %v2690 = vsel %vm2626, %v2594, %v2658
          %v2691 = vsel %vm2627, %v2595, %v2659
          %v2692 = vsel %vm2628, %v2596, %v2660
          %v2693 = vsel %vm2629, %v2597, %v2661
          %v2694 = vsel %vm2630, %v2598, %v2662
          %v2695 = vsel %vm2631, %v2599, %v2663
          %v2696 = vsel %vm2632, %v2600, %v2664
          %v2697 = vsel %vm2633, %v2601, %v2665
          %v2698 = vsel %vm2634, %v2602, %v2666
          %v2699 = vsel %vm2635, %v2603, %v2667
          %v2700 = vsel %vm2636, %v2604, %v2668
          %v2701 = vsel %vm2637, %v2605, %v2669
          %v2702 = vpack.c.bf16 %v2686, %v2670
          %v2703 = vpack.c.bf16 %v2687, %v2671
          %v2704 = vpack.c.bf16 %v2688, %v2672
          %v2705 = vpack.c.bf16 %v2689, %v2673
          %v2706 = vpack.c.bf16 %v2690, %v2674
          %v2707 = vpack.c.bf16 %v2691, %v2675
          %v2708 = vpack.c.bf16 %v2692, %v2676
          %v2709 = vpack.c.bf16 %v2693, %v2677
          %v2710 = vpack.c.bf16 %v2694, %v2678
          %v2711 = vpack.c.bf16 %v2695, %v2679
          %v2712 = vpack.c.bf16 %v2696, %v2680
          %v2713 = vpack.c.bf16 %v2697, %v2681
          %v2714 = vpack.c.bf16 %v2698, %v2682
          %v2715 = vpack.c.bf16 %v2699, %v2683
          %v2716 = vpack.c.bf16 %v2700, %v2684
          %v2717 = vpack.c.bf16 %v2701, %v2685
          %2718 = vst [vmem:[#allocation2] sm:$0xff] %v2702
          %2719 = vst [vmem:[#allocation2 + $0x8] sm:$0xff] %v2703
          %2720 = vst [vmem:[#allocation2 + $0x10] sm:$0xff] %v2704
          %2721 = vst [vmem:[#allocation2 + $0x18] sm:$0xff] %v2705
          %2722 = vst [vmem:[#allocation2 + $0x20] sm:$0xff] %v2706
          %2723 = vst [vmem:[#allocation2 + $0x28] sm:$0xff] %v2707
          %2724 = vst [vmem:[#allocation2 + $0x30] sm:$0xff] %v2708
          %2725 = vst [vmem:[#allocation2 + $0x38] sm:$0xff] %v2709
          %2726 = vst [vmem:[#allocation2 + $0x40] sm:$0xff] %v2710
          %2727 = vst [vmem:[#allocation2 + $0x48] sm:$0xff] %v2711
          %2728 = vst [vmem:[#allocation2 + $0x50] sm:$0xff] %v2712
          %2729 = vst [vmem:[#allocation2 + $0x58] sm:$0xff] %v2713
          %2730 = vst [vmem:[#allocation2 + $0x60] sm:$0xff] %v2714
          %2731 = vst [vmem:[#allocation2 + $0x68] sm:$0xff] %v2715
          %2732 = vst [vmem:[#allocation2 + $0x70] sm:$0xff] %v2716
          %2733 = vst [vmem:[#allocation2 + $0x78] sm:$0xff] %v2717
        $region112: #{generator_forward.1} parent=83 // pred_fallthru
          _
        // Predicated region
        $region113: #{generator_forward.1} parent=83 // pred_check
          %p2734 = pneg %p668
        $region114: #{generator_forward.1} parent=83 // pred_check_branch
          %2736 = sbr.rel (%p2734) target = $region116
        $region115: #{generator_forward.1} parent=83 // pred_region
          %2737 = vst [vmem:[#allocation3] sm:$0xff] 0.0
          %2738 = vst [vmem:[#allocation3 + $0x8] sm:$0xff] 0.0
          %2739 = vst [vmem:[#allocation3 + $0x10] sm:$0xff] 0.0
          %2740 = vst [vmem:[#allocation3 + $0x18] sm:$0xff] 0.0
          %2741 = vst [vmem:[#allocation3 + $0x20] sm:$0xff] 0.0
          %2742 = vst [vmem:[#allocation3 + $0x28] sm:$0xff] 0.0
          %2743 = vst [vmem:[#allocation3 + $0x30] sm:$0xff] 0.0
          %2744 = vst [vmem:[#allocation3 + $0x38] sm:$0xff] 0.0
          %2745 = vst [vmem:[#allocation3 + $0x40] sm:$0xff] 0.0
          %2746 = vst [vmem:[#allocation3 + $0x48] sm:$0xff] 0.0
          %2747 = vst [vmem:[#allocation3 + $0x50] sm:$0xff] 0.0
          %2748 = vst [vmem:[#allocation3 + $0x58] sm:$0xff] 0.0
          %2749 = vst [vmem:[#allocation3 + $0x60] sm:$0xff] 0.0
          %2750 = vst [vmem:[#allocation3 + $0x68] sm:$0xff] 0.0
          %2751 = vst [vmem:[#allocation3 + $0x70] sm:$0xff] 0.0
          %2752 = vst [vmem:[#allocation3 + $0x78] sm:$0xff] 0.0
          %2753 = vst [vmem:[#allocation3 + $0x80] sm:$0xff] 0.0
          %2754 = vst [vmem:[#allocation3 + $0x88] sm:$0xff] 0.0
          %2755 = vst [vmem:[#allocation3 + $0x90] sm:$0xff] 0.0
          %2756 = vst [vmem:[#allocation3 + $0x98] sm:$0xff] 0.0
          %2757 = vst [vmem:[#allocation3 + $0xa0] sm:$0xff] 0.0
          %2758 = vst [vmem:[#allocation3 + $0xa8] sm:$0xff] 0.0
          %2759 = vst [vmem:[#allocation3 + $0xb0] sm:$0xff] 0.0
          %2760 = vst [vmem:[#allocation3 + $0xb8] sm:$0xff] 0.0
          %2761 = vst [vmem:[#allocation3 + $0xc0] sm:$0xff] 0.0
          %2762 = vst [vmem:[#allocation3 + $0xc8] sm:$0xff] 0.0
          %2763 = vst [vmem:[#allocation3 + $0xd0] sm:$0xff] 0.0
          %2764 = vst [vmem:[#allocation3 + $0xd8] sm:$0xff] 0.0
          %2765 = vst [vmem:[#allocation3 + $0xe0] sm:$0xff] 0.0
          %2766 = vst [vmem:[#allocation3 + $0xe8] sm:$0xff] 0.0
          %2767 = vst [vmem:[#allocation3 + $0xf0] sm:$0xff] 0.0
          %2768 = vst [vmem:[#allocation3 + $0xf8] sm:$0xff] 0.0
        $region116: #{generator_forward.1} parent=83 // pred_fallthru
          _
        %s2769 = smul.u32 %s35, 512
        %s2770 = sshra.s32 %s2769, 7
        %s2771 = sand.u32 %s2769, 127
        %s2772 = smul.addr %s2770, 8
        %s2773 = scalar_lea.vmem [#allocation2], %s2772
        %v2774 = vld [vmem:[%s2773] sm:$0xff]
        %v2775 = vld [vmem:[%s2773 + $0x8] sm:$0xff]
        %v2776 = vld [vmem:[%s2773 + $0x10] sm:$0xff]
        %v2777 = vld [vmem:[%s2773 + $0x18] sm:$0xff]
        %v2778 = vld [vmem:[#allocation3] sm:$0xff]
        %v2779 = vld [vmem:[#allocation3 + $0x8] sm:$0xff]
        %v2780 = vld [vmem:[#allocation3 + $0x10] sm:$0xff]
        %v2781 = vld [vmem:[#allocation3 + $0x18] sm:$0xff]
        %v2782 = vld [vmem:[#allocation3 + $0x20] sm:$0xff]
        %v2783 = vld [vmem:[#allocation3 + $0x28] sm:$0xff]
        %v2784 = vld [vmem:[#allocation3 + $0x30] sm:$0xff]
        %v2785 = vld [vmem:[#allocation3 + $0x38] sm:$0xff]
        %v2786 = vld [vmem:[#allocation3 + $0x40] sm:$0xff]
        %v2787 = vld [vmem:[#allocation3 + $0x48] sm:$0xff]
        %v2788 = vld [vmem:[#allocation3 + $0x50] sm:$0xff]
        %v2789 = vld [vmem:[#allocation3 + $0x58] sm:$0xff]
        %v2790 = vld [vmem:[#allocation3 + $0x60] sm:$0xff]
        %v2791 = vld [vmem:[#allocation3 + $0x68] sm:$0xff]
        %v2792 = vld [vmem:[#allocation3 + $0x70] sm:$0xff]
        %v2793 = vld [vmem:[#allocation3 + $0x78] sm:$0xff]
        %v2794 = vld [vmem:[#allocation3 + $0x80] sm:$0xff]
        %v2795 = vld [vmem:[#allocation3 + $0x88] sm:$0xff]
        %v2796 = vld [vmem:[#allocation3 + $0x90] sm:$0xff]
        %v2797 = vld [vmem:[#allocation3 + $0x98] sm:$0xff]
        %v2798 = vld [vmem:[#allocation3 + $0xa0] sm:$0xff]
        %v2799 = vld [vmem:[#allocation3 + $0xa8] sm:$0xff]
        %v2800 = vld [vmem:[#allocation3 + $0xb0] sm:$0xff]
        %v2801 = vld [vmem:[#allocation3 + $0xb8] sm:$0xff]
        %v2802 = vld [vmem:[#allocation3 + $0xc0] sm:$0xff]
        %v2803 = vld [vmem:[#allocation3 + $0xc8] sm:$0xff]
        %v2804 = vld [vmem:[#allocation3 + $0xd0] sm:$0xff]
        %v2805 = vld [vmem:[#allocation3 + $0xd8] sm:$0xff]
        %v2806 = vld [vmem:[#allocation3 + $0xe0] sm:$0xff]
        %v2807 = vld [vmem:[#allocation3 + $0xe8] sm:$0xff]
        %v2808 = vld [vmem:[#allocation3 + $0xf0] sm:$0xff]
        %v2809 = vld [vmem:[#allocation3 + $0xf8] sm:$0xff]
        %v2810 = vld [vmem:[%s589] sm:$0xff]
        %v2811 = vld [vmem:[%s589 + $0x8] sm:$0xff]
        %v2812 = vld [vmem:[%s589 + $0x10] sm:$0xff]
        %v2813 = vld [vmem:[%s589 + $0x18] sm:$0xff]
        %v2814 = vld [vmem:[%s589 + $0x20] sm:$0xff]
        %v2815 = vld [vmem:[%s589 + $0x28] sm:$0xff]
        %v2816 = vld [vmem:[%s589 + $0x30] sm:$0xff]
        %v2817 = vld [vmem:[%s589 + $0x38] sm:$0xff]
        %v2818 = vld [vmem:[%s589 + $0x40] sm:$0xff]
        %v2819 = vld [vmem:[%s589 + $0x48] sm:$0xff]
        %v2820 = vld [vmem:[%s589 + $0x50] sm:$0xff]
        %v2821 = vld [vmem:[%s589 + $0x58] sm:$0xff]
        %v2822 = vld [vmem:[%s589 + $0x60] sm:$0xff]
        %v2823 = vld [vmem:[%s589 + $0x68] sm:$0xff]
        %v2824 = vld [vmem:[%s589 + $0x70] sm:$0xff]
        %v2825 = vld [vmem:[%s589 + $0x78] sm:$0xff]
        %v2826 = vld [vmem:[%s589 + $0x80] sm:$0xff]
        %v2827 = vld [vmem:[%s589 + $0x88] sm:$0xff]
        %v2828 = vld [vmem:[%s589 + $0x90] sm:$0xff]
        %v2829 = vld [vmem:[%s589 + $0x98] sm:$0xff]
        %v2830 = vld [vmem:[%s589 + $0xa0] sm:$0xff]
        %v2831 = vld [vmem:[%s589 + $0xa8] sm:$0xff]
        %v2832 = vld [vmem:[%s589 + $0xb0] sm:$0xff]
        %v2833 = vld [vmem:[%s589 + $0xb8] sm:$0xff]
        %v2834 = vld [vmem:[%s589 + $0xc0] sm:$0xff]
        %v2835 = vld [vmem:[%s589 + $0xc8] sm:$0xff]
        %v2836 = vld [vmem:[%s589 + $0xd0] sm:$0xff]
        %v2837 = vld [vmem:[%s589 + $0xd8] sm:$0xff]
        %v2838 = vld [vmem:[%s589 + $0xe0] sm:$0xff]
        %v2839 = vld [vmem:[%s589 + $0xe8] sm:$0xff]
        %v2840 = vld [vmem:[%s589 + $0xf0] sm:$0xff]
        %v2841 = vld [vmem:[%s589 + $0xf8] sm:$0xff]
        %v2842 = vld [vmem:[%s589 + $0x100] sm:$0xff]
        %v2843 = vld [vmem:[%s589 + $0x108] sm:$0xff]
        %v2844 = vld [vmem:[%s589 + $0x110] sm:$0xff]
        %v2845 = vld [vmem:[%s589 + $0x118] sm:$0xff]
        %v2846 = vld [vmem:[%s589 + $0x120] sm:$0xff]
        %v2847 = vld [vmem:[%s589 + $0x128] sm:$0xff]
        %v2848 = vld [vmem:[%s589 + $0x130] sm:$0xff]
        %v2849 = vld [vmem:[%s589 + $0x138] sm:$0xff]
        %v2850 = vld [vmem:[%s589 + $0x140] sm:$0xff]
        %v2851 = vld [vmem:[%s589 + $0x148] sm:$0xff]
        %v2852 = vld [vmem:[%s589 + $0x150] sm:$0xff]
        %v2853 = vld [vmem:[%s589 + $0x158] sm:$0xff]
        %v2854 = vld [vmem:[%s589 + $0x160] sm:$0xff]
        %v2855 = vld [vmem:[%s589 + $0x168] sm:$0xff]
        %v2856 = vld [vmem:[%s589 + $0x170] sm:$0xff]
        %v2857 = vld [vmem:[%s589 + $0x178] sm:$0xff]
        %v2858 = vld [vmem:[%s589 + $0x180] sm:$0xff]
        %v2859 = vld [vmem:[%s589 + $0x188] sm:$0xff]
        %v2860 = vld [vmem:[%s589 + $0x190] sm:$0xff]
        %v2861 = vld [vmem:[%s589 + $0x198] sm:$0xff]
        %v2862 = vld [vmem:[%s589 + $0x1a0] sm:$0xff]
        %v2863 = vld [vmem:[%s589 + $0x1a8] sm:$0xff]
        %v2864 = vld [vmem:[%s589 + $0x1b0] sm:$0xff]
        %v2865 = vld [vmem:[%s589 + $0x1b8] sm:$0xff]
        %v2866 = vld [vmem:[%s589 + $0x1c0] sm:$0xff]
        %v2867 = vld [vmem:[%s589 + $0x1c8] sm:$0xff]
        %v2868 = vld [vmem:[%s589 + $0x1d0] sm:$0xff]
        %v2869 = vld [vmem:[%s589 + $0x1d8] sm:$0xff]
        %v2870 = vld [vmem:[%s589 + $0x1e0] sm:$0xff]
        %v2871 = vld [vmem:[%s589 + $0x1e8] sm:$0xff]
        %v2872 = vld [vmem:[%s589 + $0x1f0] sm:$0xff]
        %v2873 = vld [vmem:[%s589 + $0x1f8] sm:$0xff]
        %v2874 = vld [vmem:[%s589 + $0x200] sm:$0xff]
        %v2875 = vld [vmem:[%s589 + $0x208] sm:$0xff]
        %v2876 = vld [vmem:[%s589 + $0x210] sm:$0xff]
        %v2877 = vld [vmem:[%s589 + $0x218] sm:$0xff]
        %v2878 = vld [vmem:[%s589 + $0x220] sm:$0xff]
        %v2879 = vld [vmem:[%s589 + $0x228] sm:$0xff]
        %v2880 = vld [vmem:[%s589 + $0x230] sm:$0xff]
        %v2881 = vld [vmem:[%s589 + $0x238] sm:$0xff]
        %v2882 = vld [vmem:[%s589 + $0x240] sm:$0xff]
        %v2883 = vld [vmem:[%s589 + $0x248] sm:$0xff]
        %v2884 = vld [vmem:[%s589 + $0x250] sm:$0xff]
        %v2885 = vld [vmem:[%s589 + $0x258] sm:$0xff]
        %v2886 = vld [vmem:[%s589 + $0x260] sm:$0xff]
        %v2887 = vld [vmem:[%s589 + $0x268] sm:$0xff]
        %v2888 = vld [vmem:[%s589 + $0x270] sm:$0xff]
        %v2889 = vld [vmem:[%s589 + $0x278] sm:$0xff]
        %v2890 = vld [vmem:[%s589 + $0x280] sm:$0xff]
        %v2891 = vld [vmem:[%s589 + $0x288] sm:$0xff]
        %v2892 = vld [vmem:[%s589 + $0x290] sm:$0xff]
        %v2893 = vld [vmem:[%s589 + $0x298] sm:$0xff]
        %v2894 = vld [vmem:[%s589 + $0x2a0] sm:$0xff]
        %v2895 = vld [vmem:[%s589 + $0x2a8] sm:$0xff]
        %v2896 = vld [vmem:[%s589 + $0x2b0] sm:$0xff]
        %v2897 = vld [vmem:[%s589 + $0x2b8] sm:$0xff]
        %v2898 = vld [vmem:[%s589 + $0x2c0] sm:$0xff]
        %v2899 = vld [vmem:[%s589 + $0x2c8] sm:$0xff]
        %v2900 = vld [vmem:[%s589 + $0x2d0] sm:$0xff]
        %v2901 = vld [vmem:[%s589 + $0x2d8] sm:$0xff]
        %v2902 = vld [vmem:[%s589 + $0x2e0] sm:$0xff]
        %v2903 = vld [vmem:[%s589 + $0x2e8] sm:$0xff]
        %v2904 = vld [vmem:[%s589 + $0x2f0] sm:$0xff]
        %v2905 = vld [vmem:[%s589 + $0x2f8] sm:$0xff]
        %v2906 = vld [vmem:[%s589 + $0x300] sm:$0xff]
        %v2907 = vld [vmem:[%s589 + $0x308] sm:$0xff]
        %v2908 = vld [vmem:[%s589 + $0x310] sm:$0xff]
        %v2909 = vld [vmem:[%s589 + $0x318] sm:$0xff]
        %v2910 = vld [vmem:[%s589 + $0x320] sm:$0xff]
        %v2911 = vld [vmem:[%s589 + $0x328] sm:$0xff]
        %v2912 = vld [vmem:[%s589 + $0x330] sm:$0xff]
        %v2913 = vld [vmem:[%s589 + $0x338] sm:$0xff]
        %v2914 = vld [vmem:[%s589 + $0x340] sm:$0xff]
        %v2915 = vld [vmem:[%s589 + $0x348] sm:$0xff]
        %v2916 = vld [vmem:[%s589 + $0x350] sm:$0xff]
        %v2917 = vld [vmem:[%s589 + $0x358] sm:$0xff]
        %v2918 = vld [vmem:[%s589 + $0x360] sm:$0xff]
        %v2919 = vld [vmem:[%s589 + $0x368] sm:$0xff]
        %v2920 = vld [vmem:[%s589 + $0x370] sm:$0xff]
        %v2921 = vld [vmem:[%s589 + $0x378] sm:$0xff]
        %v2922 = vld [vmem:[%s589 + $0x380] sm:$0xff]
        %v2923 = vld [vmem:[%s589 + $0x388] sm:$0xff]
        %v2924 = vld [vmem:[%s589 + $0x390] sm:$0xff]
        %v2925 = vld [vmem:[%s589 + $0x398] sm:$0xff]
        %v2926 = vld [vmem:[%s589 + $0x3a0] sm:$0xff]
        %v2927 = vld [vmem:[%s589 + $0x3a8] sm:$0xff]
        %v2928 = vld [vmem:[%s589 + $0x3b0] sm:$0xff]
        %v2929 = vld [vmem:[%s589 + $0x3b8] sm:$0xff]
        %v2930 = vld [vmem:[%s589 + $0x3c0] sm:$0xff]
        %v2931 = vld [vmem:[%s589 + $0x3c8] sm:$0xff]
        %v2932 = vld [vmem:[%s589 + $0x3d0] sm:$0xff]
        %v2933 = vld [vmem:[%s589 + $0x3d8] sm:$0xff]
        %v2934 = vld [vmem:[%s589 + $0x3e0] sm:$0xff]
        %v2935 = vld [vmem:[%s589 + $0x3e8] sm:$0xff]
        %v2936 = vld [vmem:[%s589 + $0x3f0] sm:$0xff]
        %v2937 = vld [vmem:[%s589 + $0x3f8] sm:$0xff]
        %v2938 = vld [vmem:[%s589 + $0x400] sm:$0xff]
        %v2939 = vld [vmem:[%s589 + $0x408] sm:$0xff]
        %v2940 = vld [vmem:[%s589 + $0x410] sm:$0xff]
        %v2941 = vld [vmem:[%s589 + $0x418] sm:$0xff]
        %v2942 = vld [vmem:[%s589 + $0x420] sm:$0xff]
        %v2943 = vld [vmem:[%s589 + $0x428] sm:$0xff]
        %v2944 = vld [vmem:[%s589 + $0x430] sm:$0xff]
        %v2945 = vld [vmem:[%s589 + $0x438] sm:$0xff]
        %v2946 = vld [vmem:[%s589 + $0x440] sm:$0xff]
        %v2947 = vld [vmem:[%s589 + $0x448] sm:$0xff]
        %v2948 = vld [vmem:[%s589 + $0x450] sm:$0xff]
        %v2949 = vld [vmem:[%s589 + $0x458] sm:$0xff]
        %v2950 = vld [vmem:[%s589 + $0x460] sm:$0xff]
        %v2951 = vld [vmem:[%s589 + $0x468] sm:$0xff]
        %v2952 = vld [vmem:[%s589 + $0x470] sm:$0xff]
        %v2953 = vld [vmem:[%s589 + $0x478] sm:$0xff]
        %v2954 = vld [vmem:[%s589 + $0x480] sm:$0xff]
        %v2955 = vld [vmem:[%s589 + $0x488] sm:$0xff]
        %v2956 = vld [vmem:[%s589 + $0x490] sm:$0xff]
        %v2957 = vld [vmem:[%s589 + $0x498] sm:$0xff]
        %v2958 = vld [vmem:[%s589 + $0x4a0] sm:$0xff]
        %v2959 = vld [vmem:[%s589 + $0x4a8] sm:$0xff]
        %v2960 = vld [vmem:[%s589 + $0x4b0] sm:$0xff]
        %v2961 = vld [vmem:[%s589 + $0x4b8] sm:$0xff]
        %v2962 = vld [vmem:[%s589 + $0x4c0] sm:$0xff]
        %v2963 = vld [vmem:[%s589 + $0x4c8] sm:$0xff]
        %v2964 = vld [vmem:[%s589 + $0x4d0] sm:$0xff]
        %v2965 = vld [vmem:[%s589 + $0x4d8] sm:$0xff]
        %v2966 = vld [vmem:[%s589 + $0x4e0] sm:$0xff]
        %v2967 = vld [vmem:[%s589 + $0x4e8] sm:$0xff]
        %v2968 = vld [vmem:[%s589 + $0x4f0] sm:$0xff]
        %v2969 = vld [vmem:[%s589 + $0x4f8] sm:$0xff]
        %v2970 = vld [vmem:[%s589 + $0x500] sm:$0xff]
        %v2971 = vld [vmem:[%s589 + $0x508] sm:$0xff]
        %v2972 = vld [vmem:[%s589 + $0x510] sm:$0xff]
        %v2973 = vld [vmem:[%s589 + $0x518] sm:$0xff]
        %v2974 = vld [vmem:[%s589 + $0x520] sm:$0xff]
        %v2975 = vld [vmem:[%s589 + $0x528] sm:$0xff]
        %v2976 = vld [vmem:[%s589 + $0x530] sm:$0xff]
        %v2977 = vld [vmem:[%s589 + $0x538] sm:$0xff]
        %v2978 = vld [vmem:[%s589 + $0x540] sm:$0xff]
        %v2979 = vld [vmem:[%s589 + $0x548] sm:$0xff]
        %v2980 = vld [vmem:[%s589 + $0x550] sm:$0xff]
        %v2981 = vld [vmem:[%s589 + $0x558] sm:$0xff]
        %v2982 = vld [vmem:[%s589 + $0x560] sm:$0xff]
        %v2983 = vld [vmem:[%s589 + $0x568] sm:$0xff]
        %v2984 = vld [vmem:[%s589 + $0x570] sm:$0xff]
        %v2985 = vld [vmem:[%s589 + $0x578] sm:$0xff]
        %v2986 = vld [vmem:[%s589 + $0x580] sm:$0xff]
        %v2987 = vld [vmem:[%s589 + $0x588] sm:$0xff]
        %v2988 = vld [vmem:[%s589 + $0x590] sm:$0xff]
        %v2989 = vld [vmem:[%s589 + $0x598] sm:$0xff]
        %v2990 = vld [vmem:[%s589 + $0x5a0] sm:$0xff]
        %v2991 = vld [vmem:[%s589 + $0x5a8] sm:$0xff]
        %v2992 = vld [vmem:[%s589 + $0x5b0] sm:$0xff]
        %v2993 = vld [vmem:[%s589 + $0x5b8] sm:$0xff]
        %v2994 = vld [vmem:[%s589 + $0x5c0] sm:$0xff]
        %v2995 = vld [vmem:[%s589 + $0x5c8] sm:$0xff]
        %v2996 = vld [vmem:[%s589 + $0x5d0] sm:$0xff]
        %v2997 = vld [vmem:[%s589 + $0x5d8] sm:$0xff]
        %v2998 = vld [vmem:[%s589 + $0x5e0] sm:$0xff]
        %v2999 = vld [vmem:[%s589 + $0x5e8] sm:$0xff]
        %v3000 = vld [vmem:[%s589 + $0x5f0] sm:$0xff]
        %v3001 = vld [vmem:[%s589 + $0x5f8] sm:$0xff]
        %v3002 = vld [vmem:[%s589 + $0x600] sm:$0xff]
        %v3003 = vld [vmem:[%s589 + $0x608] sm:$0xff]
        %v3004 = vld [vmem:[%s589 + $0x610] sm:$0xff]
        %v3005 = vld [vmem:[%s589 + $0x618] sm:$0xff]
        %v3006 = vld [vmem:[%s589 + $0x620] sm:$0xff]
        %v3007 = vld [vmem:[%s589 + $0x628] sm:$0xff]
        %v3008 = vld [vmem:[%s589 + $0x630] sm:$0xff]
        %v3009 = vld [vmem:[%s589 + $0x638] sm:$0xff]
        %v3010 = vld [vmem:[%s589 + $0x640] sm:$0xff]
        %v3011 = vld [vmem:[%s589 + $0x648] sm:$0xff]
        %v3012 = vld [vmem:[%s589 + $0x650] sm:$0xff]
        %v3013 = vld [vmem:[%s589 + $0x658] sm:$0xff]
        %v3014 = vld [vmem:[%s589 + $0x660] sm:$0xff]
        %v3015 = vld [vmem:[%s589 + $0x668] sm:$0xff]
        %v3016 = vld [vmem:[%s589 + $0x670] sm:$0xff]
        %v3017 = vld [vmem:[%s589 + $0x678] sm:$0xff]
        %v3018 = vld [vmem:[%s589 + $0x680] sm:$0xff]
        %v3019 = vld [vmem:[%s589 + $0x688] sm:$0xff]
        %v3020 = vld [vmem:[%s589 + $0x690] sm:$0xff]
        %v3021 = vld [vmem:[%s589 + $0x698] sm:$0xff]
        %v3022 = vld [vmem:[%s589 + $0x6a0] sm:$0xff]
        %v3023 = vld [vmem:[%s589 + $0x6a8] sm:$0xff]
        %v3024 = vld [vmem:[%s589 + $0x6b0] sm:$0xff]
        %v3025 = vld [vmem:[%s589 + $0x6b8] sm:$0xff]
        %v3026 = vld [vmem:[%s589 + $0x6c0] sm:$0xff]
        %v3027 = vld [vmem:[%s589 + $0x6c8] sm:$0xff]
        %v3028 = vld [vmem:[%s589 + $0x6d0] sm:$0xff]
        %v3029 = vld [vmem:[%s589 + $0x6d8] sm:$0xff]
        %v3030 = vld [vmem:[%s589 + $0x6e0] sm:$0xff]
        %v3031 = vld [vmem:[%s589 + $0x6e8] sm:$0xff]
        %v3032 = vld [vmem:[%s589 + $0x6f0] sm:$0xff]
        %v3033 = vld [vmem:[%s589 + $0x6f8] sm:$0xff]
        %v3034 = vld [vmem:[%s589 + $0x700] sm:$0xff]
        %v3035 = vld [vmem:[%s589 + $0x708] sm:$0xff]
        %v3036 = vld [vmem:[%s589 + $0x710] sm:$0xff]
        %v3037 = vld [vmem:[%s589 + $0x718] sm:$0xff]
        %v3038 = vld [vmem:[%s589 + $0x720] sm:$0xff]
        %v3039 = vld [vmem:[%s589 + $0x728] sm:$0xff]
        %v3040 = vld [vmem:[%s589 + $0x730] sm:$0xff]
        %v3041 = vld [vmem:[%s589 + $0x738] sm:$0xff]
        %v3042 = vld [vmem:[%s589 + $0x740] sm:$0xff]
        %v3043 = vld [vmem:[%s589 + $0x748] sm:$0xff]
        %v3044 = vld [vmem:[%s589 + $0x750] sm:$0xff]
        %v3045 = vld [vmem:[%s589 + $0x758] sm:$0xff]
        %v3046 = vld [vmem:[%s589 + $0x760] sm:$0xff]
        %v3047 = vld [vmem:[%s589 + $0x768] sm:$0xff]
        %v3048 = vld [vmem:[%s589 + $0x770] sm:$0xff]
        %v3049 = vld [vmem:[%s589 + $0x778] sm:$0xff]
        %v3050 = vld [vmem:[%s589 + $0x780] sm:$0xff]
        %v3051 = vld [vmem:[%s589 + $0x788] sm:$0xff]
        %v3052 = vld [vmem:[%s589 + $0x790] sm:$0xff]
        %v3053 = vld [vmem:[%s589 + $0x798] sm:$0xff]
        %v3054 = vld [vmem:[%s589 + $0x7a0] sm:$0xff]
        %v3055 = vld [vmem:[%s589 + $0x7a8] sm:$0xff]
        %v3056 = vld [vmem:[%s589 + $0x7b0] sm:$0xff]
        %v3057 = vld [vmem:[%s589 + $0x7b8] sm:$0xff]
        %v3058 = vld [vmem:[%s589 + $0x7c0] sm:$0xff]
        %v3059 = vld [vmem:[%s589 + $0x7c8] sm:$0xff]
        %v3060 = vld [vmem:[%s589 + $0x7d0] sm:$0xff]
        %v3061 = vld [vmem:[%s589 + $0x7d8] sm:$0xff]
        %v3062 = vld [vmem:[%s589 + $0x7e0] sm:$0xff]
        %v3063 = vld [vmem:[%s589 + $0x7e8] sm:$0xff]
        %v3064 = vld [vmem:[%s589 + $0x7f0] sm:$0xff]
        %v3065 = vld [vmem:[%s589 + $0x7f8] sm:$0xff]
        %v3066 = vld [vmem:[%s589 + $0x800] sm:$0xff]
        %v3067 = vld [vmem:[%s589 + $0x808] sm:$0xff]
        %v3068 = vld [vmem:[%s589 + $0x810] sm:$0xff]
        %v3069 = vld [vmem:[%s589 + $0x818] sm:$0xff]
        %v3070 = vld [vmem:[%s589 + $0x820] sm:$0xff]
        %v3071 = vld [vmem:[%s589 + $0x828] sm:$0xff]
        %v3072 = vld [vmem:[%s589 + $0x830] sm:$0xff]
        %v3073 = vld [vmem:[%s589 + $0x838] sm:$0xff]
        %v3074 = vld [vmem:[%s589 + $0x840] sm:$0xff]
        %v3075 = vld [vmem:[%s589 + $0x848] sm:$0xff]
        %v3076 = vld [vmem:[%s589 + $0x850] sm:$0xff]
        %v3077 = vld [vmem:[%s589 + $0x858] sm:$0xff]
        %v3078 = vld [vmem:[%s589 + $0x860] sm:$0xff]
        %v3079 = vld [vmem:[%s589 + $0x868] sm:$0xff]
        %v3080 = vld [vmem:[%s589 + $0x870] sm:$0xff]
        %v3081 = vld [vmem:[%s589 + $0x878] sm:$0xff]
        %v3082 = vld [vmem:[%s589 + $0x880] sm:$0xff]
        %v3083 = vld [vmem:[%s589 + $0x888] sm:$0xff]
        %v3084 = vld [vmem:[%s589 + $0x890] sm:$0xff]
        %v3085 = vld [vmem:[%s589 + $0x898] sm:$0xff]
        %v3086 = vld [vmem:[%s589 + $0x8a0] sm:$0xff]
        %v3087 = vld [vmem:[%s589 + $0x8a8] sm:$0xff]
        %v3088 = vld [vmem:[%s589 + $0x8b0] sm:$0xff]
        %v3089 = vld [vmem:[%s589 + $0x8b8] sm:$0xff]
        %v3090 = vld [vmem:[%s589 + $0x8c0] sm:$0xff]
        %v3091 = vld [vmem:[%s589 + $0x8c8] sm:$0xff]
        %v3092 = vld [vmem:[%s589 + $0x8d0] sm:$0xff]
        %v3093 = vld [vmem:[%s589 + $0x8d8] sm:$0xff]
        %v3094 = vld [vmem:[%s589 + $0x8e0] sm:$0xff]
        %v3095 = vld [vmem:[%s589 + $0x8e8] sm:$0xff]
        %v3096 = vld [vmem:[%s589 + $0x8f0] sm:$0xff]
        %v3097 = vld [vmem:[%s589 + $0x8f8] sm:$0xff]
        %v3098 = vld [vmem:[%s589 + $0x900] sm:$0xff]
        %v3099 = vld [vmem:[%s589 + $0x908] sm:$0xff]
        %v3100 = vld [vmem:[%s589 + $0x910] sm:$0xff]
        %v3101 = vld [vmem:[%s589 + $0x918] sm:$0xff]
        %v3102 = vld [vmem:[%s589 + $0x920] sm:$0xff]
        %v3103 = vld [vmem:[%s589 + $0x928] sm:$0xff]
        %v3104 = vld [vmem:[%s589 + $0x930] sm:$0xff]
        %v3105 = vld [vmem:[%s589 + $0x938] sm:$0xff]
        %v3106 = vld [vmem:[%s589 + $0x940] sm:$0xff]
        %v3107 = vld [vmem:[%s589 + $0x948] sm:$0xff]
        %v3108 = vld [vmem:[%s589 + $0x950] sm:$0xff]
        %v3109 = vld [vmem:[%s589 + $0x958] sm:$0xff]
        %v3110 = vld [vmem:[%s589 + $0x960] sm:$0xff]
        %v3111 = vld [vmem:[%s589 + $0x968] sm:$0xff]
        %v3112 = vld [vmem:[%s589 + $0x970] sm:$0xff]
        %v3113 = vld [vmem:[%s589 + $0x978] sm:$0xff]
        %v3114 = vld [vmem:[%s589 + $0x980] sm:$0xff]
        %v3115 = vld [vmem:[%s589 + $0x988] sm:$0xff]
        %v3116 = vld [vmem:[%s589 + $0x990] sm:$0xff]
        %v3117 = vld [vmem:[%s589 + $0x998] sm:$0xff]
        %v3118 = vld [vmem:[%s589 + $0x9a0] sm:$0xff]
        %v3119 = vld [vmem:[%s589 + $0x9a8] sm:$0xff]
        %v3120 = vld [vmem:[%s589 + $0x9b0] sm:$0xff]
        %v3121 = vld [vmem:[%s589 + $0x9b8] sm:$0xff]
        %v3122 = vld [vmem:[%s589 + $0x9c0] sm:$0xff]
        %v3123 = vld [vmem:[%s589 + $0x9c8] sm:$0xff]
        %v3124 = vld [vmem:[%s589 + $0x9d0] sm:$0xff]
        %v3125 = vld [vmem:[%s589 + $0x9d8] sm:$0xff]
        %v3126 = vld [vmem:[%s589 + $0x9e0] sm:$0xff]
        %v3127 = vld [vmem:[%s589 + $0x9e8] sm:$0xff]
        %v3128 = vld [vmem:[%s589 + $0x9f0] sm:$0xff]
        %v3129 = vld [vmem:[%s589 + $0x9f8] sm:$0xff]
        %v3130 = vld [vmem:[%s589 + $0xa00] sm:$0xff]
        %v3131 = vld [vmem:[%s589 + $0xa08] sm:$0xff]
        %v3132 = vld [vmem:[%s589 + $0xa10] sm:$0xff]
        %v3133 = vld [vmem:[%s589 + $0xa18] sm:$0xff]
        %v3134 = vld [vmem:[%s589 + $0xa20] sm:$0xff]
        %v3135 = vld [vmem:[%s589 + $0xa28] sm:$0xff]
        %v3136 = vld [vmem:[%s589 + $0xa30] sm:$0xff]
        %v3137 = vld [vmem:[%s589 + $0xa38] sm:$0xff]
        %v3138 = vld [vmem:[%s589 + $0xa40] sm:$0xff]
        %v3139 = vld [vmem:[%s589 + $0xa48] sm:$0xff]
        %v3140 = vld [vmem:[%s589 + $0xa50] sm:$0xff]
        %v3141 = vld [vmem:[%s589 + $0xa58] sm:$0xff]
        %v3142 = vld [vmem:[%s589 + $0xa60] sm:$0xff]
        %v3143 = vld [vmem:[%s589 + $0xa68] sm:$0xff]
        %v3144 = vld [vmem:[%s589 + $0xa70] sm:$0xff]
        %v3145 = vld [vmem:[%s589 + $0xa78] sm:$0xff]
        %v3146 = vld [vmem:[%s589 + $0xa80] sm:$0xff]
        %v3147 = vld [vmem:[%s589 + $0xa88] sm:$0xff]
        %v3148 = vld [vmem:[%s589 + $0xa90] sm:$0xff]
        %v3149 = vld [vmem:[%s589 + $0xa98] sm:$0xff]
        %v3150 = vld [vmem:[%s589 + $0xaa0] sm:$0xff]
        %v3151 = vld [vmem:[%s589 + $0xaa8] sm:$0xff]
        %v3152 = vld [vmem:[%s589 + $0xab0] sm:$0xff]
        %v3153 = vld [vmem:[%s589 + $0xab8] sm:$0xff]
        %v3154 = vld [vmem:[%s589 + $0xac0] sm:$0xff]
        %v3155 = vld [vmem:[%s589 + $0xac8] sm:$0xff]
        %v3156 = vld [vmem:[%s589 + $0xad0] sm:$0xff]
        %v3157 = vld [vmem:[%s589 + $0xad8] sm:$0xff]
        %v3158 = vld [vmem:[%s589 + $0xae0] sm:$0xff]
        %v3159 = vld [vmem:[%s589 + $0xae8] sm:$0xff]
        %v3160 = vld [vmem:[%s589 + $0xaf0] sm:$0xff]
        %v3161 = vld [vmem:[%s589 + $0xaf8] sm:$0xff]
        %v3162 = vld [vmem:[%s589 + $0xb00] sm:$0xff]
        %v3163 = vld [vmem:[%s589 + $0xb08] sm:$0xff]
        %v3164 = vld [vmem:[%s589 + $0xb10] sm:$0xff]
        %v3165 = vld [vmem:[%s589 + $0xb18] sm:$0xff]
        %v3166 = vld [vmem:[%s589 + $0xb20] sm:$0xff]
        %v3167 = vld [vmem:[%s589 + $0xb28] sm:$0xff]
        %v3168 = vld [vmem:[%s589 + $0xb30] sm:$0xff]
        %v3169 = vld [vmem:[%s589 + $0xb38] sm:$0xff]
        %v3170 = vld [vmem:[%s589 + $0xb40] sm:$0xff]
        %v3171 = vld [vmem:[%s589 + $0xb48] sm:$0xff]
        %v3172 = vld [vmem:[%s589 + $0xb50] sm:$0xff]
        %v3173 = vld [vmem:[%s589 + $0xb58] sm:$0xff]
        %v3174 = vld [vmem:[%s589 + $0xb60] sm:$0xff]
        %v3175 = vld [vmem:[%s589 + $0xb68] sm:$0xff]
        %v3176 = vld [vmem:[%s589 + $0xb70] sm:$0xff]
        %v3177 = vld [vmem:[%s589 + $0xb78] sm:$0xff]
        %v3178 = vld [vmem:[%s589 + $0xb80] sm:$0xff]
        %v3179 = vld [vmem:[%s589 + $0xb88] sm:$0xff]
        %v3180 = vld [vmem:[%s589 + $0xb90] sm:$0xff]
        %v3181 = vld [vmem:[%s589 + $0xb98] sm:$0xff]
        %v3182 = vld [vmem:[%s589 + $0xba0] sm:$0xff]
        %v3183 = vld [vmem:[%s589 + $0xba8] sm:$0xff]
        %v3184 = vld [vmem:[%s589 + $0xbb0] sm:$0xff]
        %v3185 = vld [vmem:[%s589 + $0xbb8] sm:$0xff]
        %v3186 = vld [vmem:[%s589 + $0xbc0] sm:$0xff]
        %v3187 = vld [vmem:[%s589 + $0xbc8] sm:$0xff]
        %v3188 = vld [vmem:[%s589 + $0xbd0] sm:$0xff]
        %v3189 = vld [vmem:[%s589 + $0xbd8] sm:$0xff]
        %v3190 = vld [vmem:[%s589 + $0xbe0] sm:$0xff]
        %v3191 = vld [vmem:[%s589 + $0xbe8] sm:$0xff]
        %v3192 = vld [vmem:[%s589 + $0xbf0] sm:$0xff]
        %v3193 = vld [vmem:[%s589 + $0xbf8] sm:$0xff]
        %v3194 = vld [vmem:[%s589 + $0xc00] sm:$0xff]
        %v3195 = vld [vmem:[%s589 + $0xc08] sm:$0xff]
        %v3196 = vld [vmem:[%s589 + $0xc10] sm:$0xff]
        %v3197 = vld [vmem:[%s589 + $0xc18] sm:$0xff]
        %v3198 = vld [vmem:[%s589 + $0xc20] sm:$0xff]
        %v3199 = vld [vmem:[%s589 + $0xc28] sm:$0xff]
        %v3200 = vld [vmem:[%s589 + $0xc30] sm:$0xff]
        %v3201 = vld [vmem:[%s589 + $0xc38] sm:$0xff]
        %v3202 = vld [vmem:[%s589 + $0xc40] sm:$0xff]
        %v3203 = vld [vmem:[%s589 + $0xc48] sm:$0xff]
        %v3204 = vld [vmem:[%s589 + $0xc50] sm:$0xff]
        %v3205 = vld [vmem:[%s589 + $0xc58] sm:$0xff]
        %v3206 = vld [vmem:[%s589 + $0xc60] sm:$0xff]
        %v3207 = vld [vmem:[%s589 + $0xc68] sm:$0xff]
        %v3208 = vld [vmem:[%s589 + $0xc70] sm:$0xff]
        %v3209 = vld [vmem:[%s589 + $0xc78] sm:$0xff]
        %v3210 = vld [vmem:[%s589 + $0xc80] sm:$0xff]
        %v3211 = vld [vmem:[%s589 + $0xc88] sm:$0xff]
        %v3212 = vld [vmem:[%s589 + $0xc90] sm:$0xff]
        %v3213 = vld [vmem:[%s589 + $0xc98] sm:$0xff]
        %v3214 = vld [vmem:[%s589 + $0xca0] sm:$0xff]
        %v3215 = vld [vmem:[%s589 + $0xca8] sm:$0xff]
        %v3216 = vld [vmem:[%s589 + $0xcb0] sm:$0xff]
        %v3217 = vld [vmem:[%s589 + $0xcb8] sm:$0xff]
        %v3218 = vld [vmem:[%s589 + $0xcc0] sm:$0xff]
        %v3219 = vld [vmem:[%s589 + $0xcc8] sm:$0xff]
        %v3220 = vld [vmem:[%s589 + $0xcd0] sm:$0xff]
        %v3221 = vld [vmem:[%s589 + $0xcd8] sm:$0xff]
        %v3222 = vld [vmem:[%s589 + $0xce0] sm:$0xff]
        %v3223 = vld [vmem:[%s589 + $0xce8] sm:$0xff]
        %v3224 = vld [vmem:[%s589 + $0xcf0] sm:$0xff]
        %v3225 = vld [vmem:[%s589 + $0xcf8] sm:$0xff]
        %v3226 = vld [vmem:[%s589 + $0xd00] sm:$0xff]
        %v3227 = vld [vmem:[%s589 + $0xd08] sm:$0xff]
        %v3228 = vld [vmem:[%s589 + $0xd10] sm:$0xff]
        %v3229 = vld [vmem:[%s589 + $0xd18] sm:$0xff]
        %v3230 = vld [vmem:[%s589 + $0xd20] sm:$0xff]
        %v3231 = vld [vmem:[%s589 + $0xd28] sm:$0xff]
        %v3232 = vld [vmem:[%s589 + $0xd30] sm:$0xff]
        %v3233 = vld [vmem:[%s589 + $0xd38] sm:$0xff]
        %v3234 = vld [vmem:[%s589 + $0xd40] sm:$0xff]
        %v3235 = vld [vmem:[%s589 + $0xd48] sm:$0xff]
        %v3236 = vld [vmem:[%s589 + $0xd50] sm:$0xff]
        %v3237 = vld [vmem:[%s589 + $0xd58] sm:$0xff]
        %v3238 = vld [vmem:[%s589 + $0xd60] sm:$0xff]
        %v3239 = vld [vmem:[%s589 + $0xd68] sm:$0xff]
        %v3240 = vld [vmem:[%s589 + $0xd70] sm:$0xff]
        %v3241 = vld [vmem:[%s589 + $0xd78] sm:$0xff]
        %v3242 = vld [vmem:[%s589 + $0xd80] sm:$0xff]
        %v3243 = vld [vmem:[%s589 + $0xd88] sm:$0xff]
        %v3244 = vld [vmem:[%s589 + $0xd90] sm:$0xff]
        %v3245 = vld [vmem:[%s589 + $0xd98] sm:$0xff]
        %v3246 = vld [vmem:[%s589 + $0xda0] sm:$0xff]
        %v3247 = vld [vmem:[%s589 + $0xda8] sm:$0xff]
        %v3248 = vld [vmem:[%s589 + $0xdb0] sm:$0xff]
        %v3249 = vld [vmem:[%s589 + $0xdb8] sm:$0xff]
        %v3250 = vld [vmem:[%s589 + $0xdc0] sm:$0xff]
        %v3251 = vld [vmem:[%s589 + $0xdc8] sm:$0xff]
        %v3252 = vld [vmem:[%s589 + $0xdd0] sm:$0xff]
        %v3253 = vld [vmem:[%s589 + $0xdd8] sm:$0xff]
        %v3254 = vld [vmem:[%s589 + $0xde0] sm:$0xff]
        %v3255 = vld [vmem:[%s589 + $0xde8] sm:$0xff]
        %v3256 = vld [vmem:[%s589 + $0xdf0] sm:$0xff]
        %v3257 = vld [vmem:[%s589 + $0xdf8] sm:$0xff]
        %v3258 = vld [vmem:[%s589 + $0xe00] sm:$0xff]
        %v3259 = vld [vmem:[%s589 + $0xe08] sm:$0xff]
        %v3260 = vld [vmem:[%s589 + $0xe10] sm:$0xff]
        %v3261 = vld [vmem:[%s589 + $0xe18] sm:$0xff]
        %v3262 = vld [vmem:[%s589 + $0xe20] sm:$0xff]
        %v3263 = vld [vmem:[%s589 + $0xe28] sm:$0xff]
        %v3264 = vld [vmem:[%s589 + $0xe30] sm:$0xff]
        %v3265 = vld [vmem:[%s589 + $0xe38] sm:$0xff]
        %v3266 = vld [vmem:[%s589 + $0xe40] sm:$0xff]
        %v3267 = vld [vmem:[%s589 + $0xe48] sm:$0xff]
        %v3268 = vld [vmem:[%s589 + $0xe50] sm:$0xff]
        %v3269 = vld [vmem:[%s589 + $0xe58] sm:$0xff]
        %v3270 = vld [vmem:[%s589 + $0xe60] sm:$0xff]
        %v3271 = vld [vmem:[%s589 + $0xe68] sm:$0xff]
        %v3272 = vld [vmem:[%s589 + $0xe70] sm:$0xff]
        %v3273 = vld [vmem:[%s589 + $0xe78] sm:$0xff]
        %v3274 = vld [vmem:[%s589 + $0xe80] sm:$0xff]
        %v3275 = vld [vmem:[%s589 + $0xe88] sm:$0xff]
        %v3276 = vld [vmem:[%s589 + $0xe90] sm:$0xff]
        %v3277 = vld [vmem:[%s589 + $0xe98] sm:$0xff]
        %v3278 = vld [vmem:[%s589 + $0xea0] sm:$0xff]
        %v3279 = vld [vmem:[%s589 + $0xea8] sm:$0xff]
        %v3280 = vld [vmem:[%s589 + $0xeb0] sm:$0xff]
        %v3281 = vld [vmem:[%s589 + $0xeb8] sm:$0xff]
        %v3282 = vld [vmem:[%s589 + $0xec0] sm:$0xff]
        %v3283 = vld [vmem:[%s589 + $0xec8] sm:$0xff]
        %v3284 = vld [vmem:[%s589 + $0xed0] sm:$0xff]
        %v3285 = vld [vmem:[%s589 + $0xed8] sm:$0xff]
        %v3286 = vld [vmem:[%s589 + $0xee0] sm:$0xff]
        %v3287 = vld [vmem:[%s589 + $0xee8] sm:$0xff]
        %v3288 = vld [vmem:[%s589 + $0xef0] sm:$0xff]
        %v3289 = vld [vmem:[%s589 + $0xef8] sm:$0xff]
        %v3290 = vld [vmem:[%s589 + $0xf00] sm:$0xff]
        %v3291 = vld [vmem:[%s589 + $0xf08] sm:$0xff]
        %v3292 = vld [vmem:[%s589 + $0xf10] sm:$0xff]
        %v3293 = vld [vmem:[%s589 + $0xf18] sm:$0xff]
        %v3294 = vld [vmem:[%s589 + $0xf20] sm:$0xff]
        %v3295 = vld [vmem:[%s589 + $0xf28] sm:$0xff]
        %v3296 = vld [vmem:[%s589 + $0xf30] sm:$0xff]
        %v3297 = vld [vmem:[%s589 + $0xf38] sm:$0xff]
        %v3298 = vld [vmem:[%s589 + $0xf40] sm:$0xff]
        %v3299 = vld [vmem:[%s589 + $0xf48] sm:$0xff]
        %v3300 = vld [vmem:[%s589 + $0xf50] sm:$0xff]
        %v3301 = vld [vmem:[%s589 + $0xf58] sm:$0xff]
        %v3302 = vld [vmem:[%s589 + $0xf60] sm:$0xff]
        %v3303 = vld [vmem:[%s589 + $0xf68] sm:$0xff]
        %v3304 = vld [vmem:[%s589 + $0xf70] sm:$0xff]
        %v3305 = vld [vmem:[%s589 + $0xf78] sm:$0xff]
        %v3306 = vld [vmem:[%s589 + $0xf80] sm:$0xff]
        %v3307 = vld [vmem:[%s589 + $0xf88] sm:$0xff]
        %v3308 = vld [vmem:[%s589 + $0xf90] sm:$0xff]
        %v3309 = vld [vmem:[%s589 + $0xf98] sm:$0xff]
        %v3310 = vld [vmem:[%s589 + $0xfa0] sm:$0xff]
        %v3311 = vld [vmem:[%s589 + $0xfa8] sm:$0xff]
        %v3312 = vld [vmem:[%s589 + $0xfb0] sm:$0xff]
        %v3313 = vld [vmem:[%s589 + $0xfb8] sm:$0xff]
        %v3314 = vld [vmem:[%s589 + $0xfc0] sm:$0xff]
        %v3315 = vld [vmem:[%s589 + $0xfc8] sm:$0xff]
        %v3316 = vld [vmem:[%s589 + $0xfd0] sm:$0xff]
        %v3317 = vld [vmem:[%s589 + $0xfd8] sm:$0xff]
        %v3318 = vld [vmem:[%s589 + $0xfe0] sm:$0xff]
        %v3319 = vld [vmem:[%s589 + $0xfe8] sm:$0xff]
        %v3320 = vld [vmem:[%s589 + $0xff0] sm:$0xff]
        %v3321 = vld [vmem:[%s589 + $0xff8] sm:$0xff]
        %v3834 = vunpack.c.l.b16 %v2810
        %v3835 = vunpack.c.h.b16 %v2810
        %v3836 = vunpack.c.l.b16 %v2811
        %v3837 = vunpack.c.h.b16 %v2811
        %v3838 = vunpack.c.l.b16 %v2812
        %v3839 = vunpack.c.h.b16 %v2812
        %v3840 = vunpack.c.l.b16 %v2813
        %v3841 = vunpack.c.h.b16 %v2813
        %v3842 = vunpack.c.l.b16 %v2814
        %v3843 = vunpack.c.h.b16 %v2814
        %v3844 = vunpack.c.l.b16 %v2815
        %v3845 = vunpack.c.h.b16 %v2815
        %v3846 = vunpack.c.l.b16 %v2816
        %v3847 = vunpack.c.h.b16 %v2816
        %v3848 = vunpack.c.l.b16 %v2817
        %v3849 = vunpack.c.h.b16 %v2817
        %v3850 = vunpack.c.l.b16 %v2818
        %v3851 = vunpack.c.h.b16 %v2818
        %v3852 = vunpack.c.l.b16 %v2819
        %v3853 = vunpack.c.h.b16 %v2819
        %v3854 = vunpack.c.l.b16 %v2820
        %v3855 = vunpack.c.h.b16 %v2820
        %v3856 = vunpack.c.l.b16 %v2821
        %v3857 = vunpack.c.h.b16 %v2821
        %v3858 = vunpack.c.l.b16 %v2822
        %v3859 = vunpack.c.h.b16 %v2822
        %v3860 = vunpack.c.l.b16 %v2823
        %v3861 = vunpack.c.h.b16 %v2823
        %v3862 = vunpack.c.l.b16 %v2824
        %v3863 = vunpack.c.h.b16 %v2824
        %v3864 = vunpack.c.l.b16 %v2825
        %v3865 = vunpack.c.h.b16 %v2825
        %v3866 = vunpack.c.l.b16 %v2826
        %v3867 = vunpack.c.h.b16 %v2826
        %v3868 = vunpack.c.l.b16 %v2827
        %v3869 = vunpack.c.h.b16 %v2827
        %v3870 = vunpack.c.l.b16 %v2828
        %v3871 = vunpack.c.h.b16 %v2828
        %v3872 = vunpack.c.l.b16 %v2829
        %v3873 = vunpack.c.h.b16 %v2829
        %v3874 = vunpack.c.l.b16 %v2830
        %v3875 = vunpack.c.h.b16 %v2830
        %v3876 = vunpack.c.l.b16 %v2831
        %v3877 = vunpack.c.h.b16 %v2831
        %v3878 = vunpack.c.l.b16 %v2832
        %v3879 = vunpack.c.h.b16 %v2832
        %v3880 = vunpack.c.l.b16 %v2833
        %v3881 = vunpack.c.h.b16 %v2833
        %v3882 = vunpack.c.l.b16 %v2834
        %v3883 = vunpack.c.h.b16 %v2834
        %v3884 = vunpack.c.l.b16 %v2835
        %v3885 = vunpack.c.h.b16 %v2835
        %v3886 = vunpack.c.l.b16 %v2836
        %v3887 = vunpack.c.h.b16 %v2836
        %v3888 = vunpack.c.l.b16 %v2837
        %v3889 = vunpack.c.h.b16 %v2837
        %v3890 = vunpack.c.l.b16 %v2838
        %v3891 = vunpack.c.h.b16 %v2838
        %v3892 = vunpack.c.l.b16 %v2839
        %v3893 = vunpack.c.h.b16 %v2839
        %v3894 = vunpack.c.l.b16 %v2840
        %v3895 = vunpack.c.h.b16 %v2840
        %v3896 = vunpack.c.l.b16 %v2841
        %v3897 = vunpack.c.h.b16 %v2841
        %v3898 = vunpack.c.l.b16 %v2842
        %v3899 = vunpack.c.h.b16 %v2842
        %v3900 = vunpack.c.l.b16 %v2843
        %v3901 = vunpack.c.h.b16 %v2843
        %v3902 = vunpack.c.l.b16 %v2844
        %v3903 = vunpack.c.h.b16 %v2844
        %v3904 = vunpack.c.l.b16 %v2845
        %v3905 = vunpack.c.h.b16 %v2845
        %v3906 = vunpack.c.l.b16 %v2846
        %v3907 = vunpack.c.h.b16 %v2846
        %v3908 = vunpack.c.l.b16 %v2847
        %v3909 = vunpack.c.h.b16 %v2847
        %v3910 = vunpack.c.l.b16 %v2848
        %v3911 = vunpack.c.h.b16 %v2848
        %v3912 = vunpack.c.l.b16 %v2849
        %v3913 = vunpack.c.h.b16 %v2849
        %v3914 = vunpack.c.l.b16 %v2850
        %v3915 = vunpack.c.h.b16 %v2850
        %v3916 = vunpack.c.l.b16 %v2851
        %v3917 = vunpack.c.h.b16 %v2851
        %v3918 = vunpack.c.l.b16 %v2852
        %v3919 = vunpack.c.h.b16 %v2852
        %v3920 = vunpack.c.l.b16 %v2853
        %v3921 = vunpack.c.h.b16 %v2853
        %v3922 = vunpack.c.l.b16 %v2854
        %v3923 = vunpack.c.h.b16 %v2854
        %v3924 = vunpack.c.l.b16 %v2855
        %v3925 = vunpack.c.h.b16 %v2855
        %v3926 = vunpack.c.l.b16 %v2856
        %v3927 = vunpack.c.h.b16 %v2856
        %v3928 = vunpack.c.l.b16 %v2857
        %v3929 = vunpack.c.h.b16 %v2857
        %v3930 = vunpack.c.l.b16 %v2858
        %v3931 = vunpack.c.h.b16 %v2858
        %v3932 = vunpack.c.l.b16 %v2859
        %v3933 = vunpack.c.h.b16 %v2859
        %v3934 = vunpack.c.l.b16 %v2860
        %v3935 = vunpack.c.h.b16 %v2860
        %v3936 = vunpack.c.l.b16 %v2861
        %v3937 = vunpack.c.h.b16 %v2861
        %v3938 = vunpack.c.l.b16 %v2862
        %v3939 = vunpack.c.h.b16 %v2862
        %v3940 = vunpack.c.l.b16 %v2863
        %v3941 = vunpack.c.h.b16 %v2863
        %v3942 = vunpack.c.l.b16 %v2864
        %v3943 = vunpack.c.h.b16 %v2864
        %v3944 = vunpack.c.l.b16 %v2865
        %v3945 = vunpack.c.h.b16 %v2865
        %v3946 = vunpack.c.l.b16 %v2866
        %v3947 = vunpack.c.h.b16 %v2866
        %v3948 = vunpack.c.l.b16 %v2867
        %v3949 = vunpack.c.h.b16 %v2867
        %v3950 = vunpack.c.l.b16 %v2868
        %v3951 = vunpack.c.h.b16 %v2868
        %v3952 = vunpack.c.l.b16 %v2869
        %v3953 = vunpack.c.h.b16 %v2869
        %v3954 = vunpack.c.l.b16 %v2870
        %v3955 = vunpack.c.h.b16 %v2870
        %v3956 = vunpack.c.l.b16 %v2871
        %v3957 = vunpack.c.h.b16 %v2871
        %v3958 = vunpack.c.l.b16 %v2872
        %v3959 = vunpack.c.h.b16 %v2872
        %v3960 = vunpack.c.l.b16 %v2873
        %v3961 = vunpack.c.h.b16 %v2873
        %v3962 = vunpack.c.l.b16 %v2874
        %v3963 = vunpack.c.h.b16 %v2874
        %v3964 = vunpack.c.l.b16 %v2875
        %v3965 = vunpack.c.h.b16 %v2875
        %v3966 = vunpack.c.l.b16 %v2876
        %v3967 = vunpack.c.h.b16 %v2876
        %v3968 = vunpack.c.l.b16 %v2877
        %v3969 = vunpack.c.h.b16 %v2877
        %v3970 = vunpack.c.l.b16 %v2878
        %v3971 = vunpack.c.h.b16 %v2878
        %v3972 = vunpack.c.l.b16 %v2879
        %v3973 = vunpack.c.h.b16 %v2879
        %v3974 = vunpack.c.l.b16 %v2880
        %v3975 = vunpack.c.h.b16 %v2880
        %v3976 = vunpack.c.l.b16 %v2881
        %v3977 = vunpack.c.h.b16 %v2881
        %v3978 = vunpack.c.l.b16 %v2882
        %v3979 = vunpack.c.h.b16 %v2882
        %v3980 = vunpack.c.l.b16 %v2883
        %v3981 = vunpack.c.h.b16 %v2883
        %v3982 = vunpack.c.l.b16 %v2884
        %v3983 = vunpack.c.h.b16 %v2884
        %v3984 = vunpack.c.l.b16 %v2885
        %v3985 = vunpack.c.h.b16 %v2885
        %v3986 = vunpack.c.l.b16 %v2886
        %v3987 = vunpack.c.h.b16 %v2886
        %v3988 = vunpack.c.l.b16 %v2887
        %v3989 = vunpack.c.h.b16 %v2887
        %v3990 = vunpack.c.l.b16 %v2888
        %v3991 = vunpack.c.h.b16 %v2888
        %v3992 = vunpack.c.l.b16 %v2889
        %v3993 = vunpack.c.h.b16 %v2889
        %v3994 = vunpack.c.l.b16 %v2890
        %v3995 = vunpack.c.h.b16 %v2890
        %v3996 = vunpack.c.l.b16 %v2891
        %v3997 = vunpack.c.h.b16 %v2891
        %v3998 = vunpack.c.l.b16 %v2892
        %v3999 = vunpack.c.h.b16 %v2892
        %v4000 = vunpack.c.l.b16 %v2893
        %v4001 = vunpack.c.h.b16 %v2893
        %v4002 = vunpack.c.l.b16 %v2894
        %v4003 = vunpack.c.h.b16 %v2894
        %v4004 = vunpack.c.l.b16 %v2895
        %v4005 = vunpack.c.h.b16 %v2895
        %v4006 = vunpack.c.l.b16 %v2896
        %v4007 = vunpack.c.h.b16 %v2896
        %v4008 = vunpack.c.l.b16 %v2897
        %v4009 = vunpack.c.h.b16 %v2897
        %v4010 = vunpack.c.l.b16 %v2898
        %v4011 = vunpack.c.h.b16 %v2898
        %v4012 = vunpack.c.l.b16 %v2899
        %v4013 = vunpack.c.h.b16 %v2899
        %v4014 = vunpack.c.l.b16 %v2900
        %v4015 = vunpack.c.h.b16 %v2900
        %v4016 = vunpack.c.l.b16 %v2901
        %v4017 = vunpack.c.h.b16 %v2901
        %v4018 = vunpack.c.l.b16 %v2902
        %v4019 = vunpack.c.h.b16 %v2902
        %v4020 = vunpack.c.l.b16 %v2903
        %v4021 = vunpack.c.h.b16 %v2903
        %v4022 = vunpack.c.l.b16 %v2904
        %v4023 = vunpack.c.h.b16 %v2904
        %v4024 = vunpack.c.l.b16 %v2905
        %v4025 = vunpack.c.h.b16 %v2905
        %v4026 = vunpack.c.l.b16 %v2906
        %v4027 = vunpack.c.h.b16 %v2906
        %v4028 = vunpack.c.l.b16 %v2907
        %v4029 = vunpack.c.h.b16 %v2907
        %v4030 = vunpack.c.l.b16 %v2908
        %v4031 = vunpack.c.h.b16 %v2908
        %v4032 = vunpack.c.l.b16 %v2909
        %v4033 = vunpack.c.h.b16 %v2909
        %v4034 = vunpack.c.l.b16 %v2910
        %v4035 = vunpack.c.h.b16 %v2910
        %v4036 = vunpack.c.l.b16 %v2911
        %v4037 = vunpack.c.h.b16 %v2911
        %v4038 = vunpack.c.l.b16 %v2912
        %v4039 = vunpack.c.h.b16 %v2912
        %v4040 = vunpack.c.l.b16 %v2913
        %v4041 = vunpack.c.h.b16 %v2913
        %v4042 = vunpack.c.l.b16 %v2914
        %v4043 = vunpack.c.h.b16 %v2914
        %v4044 = vunpack.c.l.b16 %v2915
        %v4045 = vunpack.c.h.b16 %v2915
        %v4046 = vunpack.c.l.b16 %v2916
        %v4047 = vunpack.c.h.b16 %v2916
        %v4048 = vunpack.c.l.b16 %v2917
        %v4049 = vunpack.c.h.b16 %v2917
        %v4050 = vunpack.c.l.b16 %v2918
        %v4051 = vunpack.c.h.b16 %v2918
        %v4052 = vunpack.c.l.b16 %v2919
        %v4053 = vunpack.c.h.b16 %v2919
        %v4054 = vunpack.c.l.b16 %v2920
        %v4055 = vunpack.c.h.b16 %v2920
        %v4056 = vunpack.c.l.b16 %v2921
        %v4057 = vunpack.c.h.b16 %v2921
        %v4058 = vunpack.c.l.b16 %v2922
        %v4059 = vunpack.c.h.b16 %v2922
        %v4060 = vunpack.c.l.b16 %v2923
        %v4061 = vunpack.c.h.b16 %v2923
        %v4062 = vunpack.c.l.b16 %v2924
        %v4063 = vunpack.c.h.b16 %v2924
        %v4064 = vunpack.c.l.b16 %v2925
        %v4065 = vunpack.c.h.b16 %v2925
        %v4066 = vunpack.c.l.b16 %v2926
        %v4067 = vunpack.c.h.b16 %v2926
        %v4068 = vunpack.c.l.b16 %v2927
        %v4069 = vunpack.c.h.b16 %v2927
        %v4070 = vunpack.c.l.b16 %v2928
        %v4071 = vunpack.c.h.b16 %v2928
        %v4072 = vunpack.c.l.b16 %v2929
        %v4073 = vunpack.c.h.b16 %v2929
        %v4074 = vunpack.c.l.b16 %v2930
        %v4075 = vunpack.c.h.b16 %v2930
        %v4076 = vunpack.c.l.b16 %v2931
        %v4077 = vunpack.c.h.b16 %v2931
        %v4078 = vunpack.c.l.b16 %v2932
        %v4079 = vunpack.c.h.b16 %v2932
        %v4080 = vunpack.c.l.b16 %v2933
        %v4081 = vunpack.c.h.b16 %v2933
        %v4082 = vunpack.c.l.b16 %v2934
        %v4083 = vunpack.c.h.b16 %v2934
        %v4084 = vunpack.c.l.b16 %v2935
        %v4085 = vunpack.c.h.b16 %v2935
        %v4086 = vunpack.c.l.b16 %v2936
        %v4087 = vunpack.c.h.b16 %v2936
        %v4088 = vunpack.c.l.b16 %v2937
        %v4089 = vunpack.c.h.b16 %v2937
        %v4090 = vunpack.c.l.b16 %v2938
        %v4091 = vunpack.c.h.b16 %v2938
        %v4092 = vunpack.c.l.b16 %v2939
        %v4093 = vunpack.c.h.b16 %v2939
        %v4094 = vunpack.c.l.b16 %v2940
        %v4095 = vunpack.c.h.b16 %v2940
        %v4096 = vunpack.c.l.b16 %v2941
        %v4097 = vunpack.c.h.b16 %v2941
        %v4098 = vunpack.c.l.b16 %v2942
        %v4099 = vunpack.c.h.b16 %v2942
        %v4100 = vunpack.c.l.b16 %v2943
        %v4101 = vunpack.c.h.b16 %v2943
        %v4102 = vunpack.c.l.b16 %v2944
        %v4103 = vunpack.c.h.b16 %v2944
        %v4104 = vunpack.c.l.b16 %v2945
        %v4105 = vunpack.c.h.b16 %v2945
        %v4106 = vunpack.c.l.b16 %v2946
        %v4107 = vunpack.c.h.b16 %v2946
        %v4108 = vunpack.c.l.b16 %v2947
        %v4109 = vunpack.c.h.b16 %v2947
        %v4110 = vunpack.c.l.b16 %v2948
        %v4111 = vunpack.c.h.b16 %v2948
        %v4112 = vunpack.c.l.b16 %v2949
        %v4113 = vunpack.c.h.b16 %v2949
        %v4114 = vunpack.c.l.b16 %v2950
        %v4115 = vunpack.c.h.b16 %v2950
        %v4116 = vunpack.c.l.b16 %v2951
        %v4117 = vunpack.c.h.b16 %v2951
        %v4118 = vunpack.c.l.b16 %v2952
        %v4119 = vunpack.c.h.b16 %v2952
        %v4120 = vunpack.c.l.b16 %v2953
        %v4121 = vunpack.c.h.b16 %v2953
        %v4122 = vunpack.c.l.b16 %v2954
        %v4123 = vunpack.c.h.b16 %v2954
        %v4124 = vunpack.c.l.b16 %v2955
        %v4125 = vunpack.c.h.b16 %v2955
        %v4126 = vunpack.c.l.b16 %v2956
        %v4127 = vunpack.c.h.b16 %v2956
        %v4128 = vunpack.c.l.b16 %v2957
        %v4129 = vunpack.c.h.b16 %v2957
        %v4130 = vunpack.c.l.b16 %v2958
        %v4131 = vunpack.c.h.b16 %v2958
        %v4132 = vunpack.c.l.b16 %v2959
        %v4133 = vunpack.c.h.b16 %v2959
        %v4134 = vunpack.c.l.b16 %v2960
        %v4135 = vunpack.c.h.b16 %v2960
        %v4136 = vunpack.c.l.b16 %v2961
        %v4137 = vunpack.c.h.b16 %v2961
        %v4138 = vunpack.c.l.b16 %v2962
        %v4139 = vunpack.c.h.b16 %v2962
        %v4140 = vunpack.c.l.b16 %v2963
        %v4141 = vunpack.c.h.b16 %v2963
        %v4142 = vunpack.c.l.b16 %v2964
        %v4143 = vunpack.c.h.b16 %v2964
        %v4144 = vunpack.c.l.b16 %v2965
        %v4145 = vunpack.c.h.b16 %v2965
        %v4146 = vunpack.c.l.b16 %v2966
        %v4147 = vunpack.c.h.b16 %v2966
        %v4148 = vunpack.c.l.b16 %v2967
        %v4149 = vunpack.c.h.b16 %v2967
        %v4150 = vunpack.c.l.b16 %v2968
        %v4151 = vunpack.c.h.b16 %v2968
        %v4152 = vunpack.c.l.b16 %v2969
        %v4153 = vunpack.c.h.b16 %v2969
        %v4154 = vunpack.c.l.b16 %v2970
        %v4155 = vunpack.c.h.b16 %v2970
        %v4156 = vunpack.c.l.b16 %v2971
        %v4157 = vunpack.c.h.b16 %v2971
        %v4158 = vunpack.c.l.b16 %v2972
        %v4159 = vunpack.c.h.b16 %v2972
        %v4160 = vunpack.c.l.b16 %v2973
        %v4161 = vunpack.c.h.b16 %v2973
        %v4162 = vunpack.c.l.b16 %v2974
        %v4163 = vunpack.c.h.b16 %v2974
        %v4164 = vunpack.c.l.b16 %v2975
        %v4165 = vunpack.c.h.b16 %v2975
        %v4166 = vunpack.c.l.b16 %v2976
        %v4167 = vunpack.c.h.b16 %v2976
        %v4168 = vunpack.c.l.b16 %v2977
        %v4169 = vunpack.c.h.b16 %v2977
        %v4170 = vunpack.c.l.b16 %v2978
        %v4171 = vunpack.c.h.b16 %v2978
        %v4172 = vunpack.c.l.b16 %v2979
        %v4173 = vunpack.c.h.b16 %v2979
        %v4174 = vunpack.c.l.b16 %v2980
        %v4175 = vunpack.c.h.b16 %v2980
        %v4176 = vunpack.c.l.b16 %v2981
        %v4177 = vunpack.c.h.b16 %v2981
        %v4178 = vunpack.c.l.b16 %v2982
        %v4179 = vunpack.c.h.b16 %v2982
        %v4180 = vunpack.c.l.b16 %v2983
        %v4181 = vunpack.c.h.b16 %v2983
        %v4182 = vunpack.c.l.b16 %v2984
        %v4183 = vunpack.c.h.b16 %v2984
        %v4184 = vunpack.c.l.b16 %v2985
        %v4185 = vunpack.c.h.b16 %v2985
        %v4186 = vunpack.c.l.b16 %v2986
        %v4187 = vunpack.c.h.b16 %v2986
        %v4188 = vunpack.c.l.b16 %v2987
        %v4189 = vunpack.c.h.b16 %v2987
        %v4190 = vunpack.c.l.b16 %v2988
        %v4191 = vunpack.c.h.b16 %v2988
        %v4192 = vunpack.c.l.b16 %v2989
        %v4193 = vunpack.c.h.b16 %v2989
        %v4194 = vunpack.c.l.b16 %v2990
        %v4195 = vunpack.c.h.b16 %v2990
        %v4196 = vunpack.c.l.b16 %v2991
        %v4197 = vunpack.c.h.b16 %v2991
        %v4198 = vunpack.c.l.b16 %v2992
        %v4199 = vunpack.c.h.b16 %v2992
        %v4200 = vunpack.c.l.b16 %v2993
        %v4201 = vunpack.c.h.b16 %v2993
        %v4202 = vunpack.c.l.b16 %v2994
        %v4203 = vunpack.c.h.b16 %v2994
        %v4204 = vunpack.c.l.b16 %v2995
        %v4205 = vunpack.c.h.b16 %v2995
        %v4206 = vunpack.c.l.b16 %v2996
        %v4207 = vunpack.c.h.b16 %v2996
        %v4208 = vunpack.c.l.b16 %v2997
        %v4209 = vunpack.c.h.b16 %v2997
        %v4210 = vunpack.c.l.b16 %v2998
        %v4211 = vunpack.c.h.b16 %v2998
        %v4212 = vunpack.c.l.b16 %v2999
        %v4213 = vunpack.c.h.b16 %v2999
        %v4214 = vunpack.c.l.b16 %v3000
        %v4215 = vunpack.c.h.b16 %v3000
        %v4216 = vunpack.c.l.b16 %v3001
        %v4217 = vunpack.c.h.b16 %v3001
        %v4218 = vunpack.c.l.b16 %v3002
        %v4219 = vunpack.c.h.b16 %v3002
        %v4220 = vunpack.c.l.b16 %v3003
        %v4221 = vunpack.c.h.b16 %v3003
        %v4222 = vunpack.c.l.b16 %v3004
        %v4223 = vunpack.c.h.b16 %v3004
        %v4224 = vunpack.c.l.b16 %v3005
        %v4225 = vunpack.c.h.b16 %v3005
        %v4226 = vunpack.c.l.b16 %v3006
        %v4227 = vunpack.c.h.b16 %v3006
        %v4228 = vunpack.c.l.b16 %v3007
        %v4229 = vunpack.c.h.b16 %v3007
        %v4230 = vunpack.c.l.b16 %v3008
        %v4231 = vunpack.c.h.b16 %v3008
        %v4232 = vunpack.c.l.b16 %v3009
        %v4233 = vunpack.c.h.b16 %v3009
        %v4234 = vunpack.c.l.b16 %v3010
        %v4235 = vunpack.c.h.b16 %v3010
        %v4236 = vunpack.c.l.b16 %v3011
        %v4237 = vunpack.c.h.b16 %v3011
        %v4238 = vunpack.c.l.b16 %v3012
        %v4239 = vunpack.c.h.b16 %v3012
        %v4240 = vunpack.c.l.b16 %v3013
        %v4241 = vunpack.c.h.b16 %v3013
        %v4242 = vunpack.c.l.b16 %v3014
        %v4243 = vunpack.c.h.b16 %v3014
        %v4244 = vunpack.c.l.b16 %v3015
        %v4245 = vunpack.c.h.b16 %v3015
        %v4246 = vunpack.c.l.b16 %v3016
        %v4247 = vunpack.c.h.b16 %v3016
        %v4248 = vunpack.c.l.b16 %v3017
        %v4249 = vunpack.c.h.b16 %v3017
        %v4250 = vunpack.c.l.b16 %v3018
        %v4251 = vunpack.c.h.b16 %v3018
        %v4252 = vunpack.c.l.b16 %v3019
        %v4253 = vunpack.c.h.b16 %v3019
        %v4254 = vunpack.c.l.b16 %v3020
        %v4255 = vunpack.c.h.b16 %v3020
        %v4256 = vunpack.c.l.b16 %v3021
        %v4257 = vunpack.c.h.b16 %v3021
        %v4258 = vunpack.c.l.b16 %v3022
        %v4259 = vunpack.c.h.b16 %v3022
        %v4260 = vunpack.c.l.b16 %v3023
        %v4261 = vunpack.c.h.b16 %v3023
        %v4262 = vunpack.c.l.b16 %v3024
        %v4263 = vunpack.c.h.b16 %v3024
        %v4264 = vunpack.c.l.b16 %v3025
        %v4265 = vunpack.c.h.b16 %v3025
        %v4266 = vunpack.c.l.b16 %v3026
        %v4267 = vunpack.c.h.b16 %v3026
        %v4268 = vunpack.c.l.b16 %v3027
        %v4269 = vunpack.c.h.b16 %v3027
        %v4270 = vunpack.c.l.b16 %v3028
        %v4271 = vunpack.c.h.b16 %v3028
        %v4272 = vunpack.c.l.b16 %v3029
        %v4273 = vunpack.c.h.b16 %v3029
        %v4274 = vunpack.c.l.b16 %v3030
        %v4275 = vunpack.c.h.b16 %v3030
        %v4276 = vunpack.c.l.b16 %v3031
        %v4277 = vunpack.c.h.b16 %v3031
        %v4278 = vunpack.c.l.b16 %v3032
        %v4279 = vunpack.c.h.b16 %v3032
        %v4280 = vunpack.c.l.b16 %v3033
        %v4281 = vunpack.c.h.b16 %v3033
        %v4282 = vunpack.c.l.b16 %v3034
        %v4283 = vunpack.c.h.b16 %v3034
        %v4284 = vunpack.c.l.b16 %v3035
        %v4285 = vunpack.c.h.b16 %v3035
        %v4286 = vunpack.c.l.b16 %v3036
        %v4287 = vunpack.c.h.b16 %v3036
        %v4288 = vunpack.c.l.b16 %v3037
        %v4289 = vunpack.c.h.b16 %v3037
        %v4290 = vunpack.c.l.b16 %v3038
        %v4291 = vunpack.c.h.b16 %v3038
        %v4292 = vunpack.c.l.b16 %v3039
        %v4293 = vunpack.c.h.b16 %v3039
        %v4294 = vunpack.c.l.b16 %v3040
        %v4295 = vunpack.c.h.b16 %v3040
        %v4296 = vunpack.c.l.b16 %v3041
        %v4297 = vunpack.c.h.b16 %v3041
        %v4298 = vunpack.c.l.b16 %v3042
        %v4299 = vunpack.c.h.b16 %v3042
        %v4300 = vunpack.c.l.b16 %v3043
        %v4301 = vunpack.c.h.b16 %v3043
        %v4302 = vunpack.c.l.b16 %v3044
        %v4303 = vunpack.c.h.b16 %v3044
        %v4304 = vunpack.c.l.b16 %v3045
        %v4305 = vunpack.c.h.b16 %v3045
        %v4306 = vunpack.c.l.b16 %v3046
        %v4307 = vunpack.c.h.b16 %v3046
        %v4308 = vunpack.c.l.b16 %v3047
        %v4309 = vunpack.c.h.b16 %v3047
        %v4310 = vunpack.c.l.b16 %v3048
        %v4311 = vunpack.c.h.b16 %v3048
        %v4312 = vunpack.c.l.b16 %v3049
        %v4313 = vunpack.c.h.b16 %v3049
        %v4314 = vunpack.c.l.b16 %v3050
        %v4315 = vunpack.c.h.b16 %v3050
        %v4316 = vunpack.c.l.b16 %v3051
        %v4317 = vunpack.c.h.b16 %v3051
        %v4318 = vunpack.c.l.b16 %v3052
        %v4319 = vunpack.c.h.b16 %v3052
        %v4320 = vunpack.c.l.b16 %v3053
        %v4321 = vunpack.c.h.b16 %v3053
        %v4322 = vunpack.c.l.b16 %v3054
        %v4323 = vunpack.c.h.b16 %v3054
        %v4324 = vunpack.c.l.b16 %v3055
        %v4325 = vunpack.c.h.b16 %v3055
        %v4326 = vunpack.c.l.b16 %v3056
        %v4327 = vunpack.c.h.b16 %v3056
        %v4328 = vunpack.c.l.b16 %v3057
        %v4329 = vunpack.c.h.b16 %v3057
        %v4330 = vunpack.c.l.b16 %v3058
        %v4331 = vunpack.c.h.b16 %v3058
        %v4332 = vunpack.c.l.b16 %v3059
        %v4333 = vunpack.c.h.b16 %v3059
        %v4334 = vunpack.c.l.b16 %v3060
        %v4335 = vunpack.c.h.b16 %v3060
        %v4336 = vunpack.c.l.b16 %v3061
        %v4337 = vunpack.c.h.b16 %v3061
        %v4338 = vunpack.c.l.b16 %v3062
        %v4339 = vunpack.c.h.b16 %v3062
        %v4340 = vunpack.c.l.b16 %v3063
        %v4341 = vunpack.c.h.b16 %v3063
        %v4342 = vunpack.c.l.b16 %v3064
        %v4343 = vunpack.c.h.b16 %v3064
        %v4344 = vunpack.c.l.b16 %v3065
        %v4345 = vunpack.c.h.b16 %v3065
        %v4346 = vunpack.c.l.b16 %v3066
        %v4347 = vunpack.c.h.b16 %v3066
        %v4348 = vunpack.c.l.b16 %v3067
        %v4349 = vunpack.c.h.b16 %v3067
        %v4350 = vunpack.c.l.b16 %v3068
        %v4351 = vunpack.c.h.b16 %v3068
        %v4352 = vunpack.c.l.b16 %v3069
        %v4353 = vunpack.c.h.b16 %v3069
        %v4354 = vunpack.c.l.b16 %v3070
        %v4355 = vunpack.c.h.b16 %v3070
        %v4356 = vunpack.c.l.b16 %v3071
        %v4357 = vunpack.c.h.b16 %v3071
        %v4358 = vunpack.c.l.b16 %v3072
        %v4359 = vunpack.c.h.b16 %v3072
        %v4360 = vunpack.c.l.b16 %v3073
        %v4361 = vunpack.c.h.b16 %v3073
        %v4362 = vunpack.c.l.b16 %v3074
        %v4363 = vunpack.c.h.b16 %v3074
        %v4364 = vunpack.c.l.b16 %v3075
        %v4365 = vunpack.c.h.b16 %v3075
        %v4366 = vunpack.c.l.b16 %v3076
        %v4367 = vunpack.c.h.b16 %v3076
        %v4368 = vunpack.c.l.b16 %v3077
        %v4369 = vunpack.c.h.b16 %v3077
        %v4370 = vunpack.c.l.b16 %v3078
        %v4371 = vunpack.c.h.b16 %v3078
        %v4372 = vunpack.c.l.b16 %v3079
        %v4373 = vunpack.c.h.b16 %v3079
        %v4374 = vunpack.c.l.b16 %v3080
        %v4375 = vunpack.c.h.b16 %v3080
        %v4376 = vunpack.c.l.b16 %v3081
        %v4377 = vunpack.c.h.b16 %v3081
        %v4378 = vunpack.c.l.b16 %v3082
        %v4379 = vunpack.c.h.b16 %v3082
        %v4380 = vunpack.c.l.b16 %v3083
        %v4381 = vunpack.c.h.b16 %v3083
        %v4382 = vunpack.c.l.b16 %v3084
        %v4383 = vunpack.c.h.b16 %v3084
        %v4384 = vunpack.c.l.b16 %v3085
        %v4385 = vunpack.c.h.b16 %v3085
        %v4386 = vunpack.c.l.b16 %v3086
        %v4387 = vunpack.c.h.b16 %v3086
        %v4388 = vunpack.c.l.b16 %v3087
        %v4389 = vunpack.c.h.b16 %v3087
        %v4390 = vunpack.c.l.b16 %v3088
        %v4391 = vunpack.c.h.b16 %v3088
        %v4392 = vunpack.c.l.b16 %v3089
        %v4393 = vunpack.c.h.b16 %v3089
        %v4394 = vunpack.c.l.b16 %v3090
        %v4395 = vunpack.c.h.b16 %v3090
        %v4396 = vunpack.c.l.b16 %v3091
        %v4397 = vunpack.c.h.b16 %v3091
        %v4398 = vunpack.c.l.b16 %v3092
        %v4399 = vunpack.c.h.b16 %v3092
        %v4400 = vunpack.c.l.b16 %v3093
        %v4401 = vunpack.c.h.b16 %v3093
        %v4402 = vunpack.c.l.b16 %v3094
        %v4403 = vunpack.c.h.b16 %v3094
        %v4404 = vunpack.c.l.b16 %v3095
        %v4405 = vunpack.c.h.b16 %v3095
        %v4406 = vunpack.c.l.b16 %v3096
        %v4407 = vunpack.c.h.b16 %v3096
        %v4408 = vunpack.c.l.b16 %v3097
        %v4409 = vunpack.c.h.b16 %v3097
        %v4410 = vunpack.c.l.b16 %v3098
        %v4411 = vunpack.c.h.b16 %v3098
        %v4412 = vunpack.c.l.b16 %v3099
        %v4413 = vunpack.c.h.b16 %v3099
        %v4414 = vunpack.c.l.b16 %v3100
        %v4415 = vunpack.c.h.b16 %v3100
        %v4416 = vunpack.c.l.b16 %v3101
        %v4417 = vunpack.c.h.b16 %v3101
        %v4418 = vunpack.c.l.b16 %v3102
        %v4419 = vunpack.c.h.b16 %v3102
        %v4420 = vunpack.c.l.b16 %v3103
        %v4421 = vunpack.c.h.b16 %v3103
        %v4422 = vunpack.c.l.b16 %v3104
        %v4423 = vunpack.c.h.b16 %v3104
        %v4424 = vunpack.c.l.b16 %v3105
        %v4425 = vunpack.c.h.b16 %v3105
        %v4426 = vunpack.c.l.b16 %v3106
        %v4427 = vunpack.c.h.b16 %v3106
        %v4428 = vunpack.c.l.b16 %v3107
        %v4429 = vunpack.c.h.b16 %v3107
        %v4430 = vunpack.c.l.b16 %v3108
        %v4431 = vunpack.c.h.b16 %v3108
        %v4432 = vunpack.c.l.b16 %v3109
        %v4433 = vunpack.c.h.b16 %v3109
        %v4434 = vunpack.c.l.b16 %v3110
        %v4435 = vunpack.c.h.b16 %v3110
        %v4436 = vunpack.c.l.b16 %v3111
        %v4437 = vunpack.c.h.b16 %v3111
        %v4438 = vunpack.c.l.b16 %v3112
        %v4439 = vunpack.c.h.b16 %v3112
        %v4440 = vunpack.c.l.b16 %v3113
        %v4441 = vunpack.c.h.b16 %v3113
        %v4442 = vunpack.c.l.b16 %v3114
        %v4443 = vunpack.c.h.b16 %v3114
        %v4444 = vunpack.c.l.b16 %v3115
        %v4445 = vunpack.c.h.b16 %v3115
        %v4446 = vunpack.c.l.b16 %v3116
        %v4447 = vunpack.c.h.b16 %v3116
        %v4448 = vunpack.c.l.b16 %v3117
        %v4449 = vunpack.c.h.b16 %v3117
        %v4450 = vunpack.c.l.b16 %v3118
        %v4451 = vunpack.c.h.b16 %v3118
        %v4452 = vunpack.c.l.b16 %v3119
        %v4453 = vunpack.c.h.b16 %v3119
        %v4454 = vunpack.c.l.b16 %v3120
        %v4455 = vunpack.c.h.b16 %v3120
        %v4456 = vunpack.c.l.b16 %v3121
        %v4457 = vunpack.c.h.b16 %v3121
        %v4458 = vunpack.c.l.b16 %v3122
        %v4459 = vunpack.c.h.b16 %v3122
        %v4460 = vunpack.c.l.b16 %v3123
        %v4461 = vunpack.c.h.b16 %v3123
        %v4462 = vunpack.c.l.b16 %v3124
        %v4463 = vunpack.c.h.b16 %v3124
        %v4464 = vunpack.c.l.b16 %v3125
        %v4465 = vunpack.c.h.b16 %v3125
        %v4466 = vunpack.c.l.b16 %v3126
        %v4467 = vunpack.c.h.b16 %v3126
        %v4468 = vunpack.c.l.b16 %v3127
        %v4469 = vunpack.c.h.b16 %v3127
        %v4470 = vunpack.c.l.b16 %v3128
        %v4471 = vunpack.c.h.b16 %v3128
        %v4472 = vunpack.c.l.b16 %v3129
        %v4473 = vunpack.c.h.b16 %v3129
        %v4474 = vunpack.c.l.b16 %v3130
        %v4475 = vunpack.c.h.b16 %v3130
        %v4476 = vunpack.c.l.b16 %v3131
        %v4477 = vunpack.c.h.b16 %v3131
        %v4478 = vunpack.c.l.b16 %v3132
        %v4479 = vunpack.c.h.b16 %v3132
        %v4480 = vunpack.c.l.b16 %v3133
        %v4481 = vunpack.c.h.b16 %v3133
        %v4482 = vunpack.c.l.b16 %v3134
        %v4483 = vunpack.c.h.b16 %v3134
        %v4484 = vunpack.c.l.b16 %v3135
        %v4485 = vunpack.c.h.b16 %v3135
        %v4486 = vunpack.c.l.b16 %v3136
        %v4487 = vunpack.c.h.b16 %v3136
        %v4488 = vunpack.c.l.b16 %v3137
        %v4489 = vunpack.c.h.b16 %v3137
        %v4490 = vunpack.c.l.b16 %v3138
        %v4491 = vunpack.c.h.b16 %v3138
        %v4492 = vunpack.c.l.b16 %v3139
        %v4493 = vunpack.c.h.b16 %v3139
        %v4494 = vunpack.c.l.b16 %v3140
        %v4495 = vunpack.c.h.b16 %v3140
        %v4496 = vunpack.c.l.b16 %v3141
        %v4497 = vunpack.c.h.b16 %v3141
        %v4498 = vunpack.c.l.b16 %v3142
        %v4499 = vunpack.c.h.b16 %v3142
        %v4500 = vunpack.c.l.b16 %v3143
        %v4501 = vunpack.c.h.b16 %v3143
        %v4502 = vunpack.c.l.b16 %v3144
        %v4503 = vunpack.c.h.b16 %v3144
        %v4504 = vunpack.c.l.b16 %v3145
        %v4505 = vunpack.c.h.b16 %v3145
        %v4506 = vunpack.c.l.b16 %v3146
        %v4507 = vunpack.c.h.b16 %v3146
        %v4508 = vunpack.c.l.b16 %v3147
        %v4509 = vunpack.c.h.b16 %v3147
        %v4510 = vunpack.c.l.b16 %v3148
        %v4511 = vunpack.c.h.b16 %v3148
        %v4512 = vunpack.c.l.b16 %v3149
        %v4513 = vunpack.c.h.b16 %v3149
        %v4514 = vunpack.c.l.b16 %v3150
        %v4515 = vunpack.c.h.b16 %v3150
        %v4516 = vunpack.c.l.b16 %v3151
        %v4517 = vunpack.c.h.b16 %v3151
        %v4518 = vunpack.c.l.b16 %v3152
        %v4519 = vunpack.c.h.b16 %v3152
        %v4520 = vunpack.c.l.b16 %v3153
        %v4521 = vunpack.c.h.b16 %v3153
        %v4522 = vunpack.c.l.b16 %v3154
        %v4523 = vunpack.c.h.b16 %v3154
        %v4524 = vunpack.c.l.b16 %v3155
        %v4525 = vunpack.c.h.b16 %v3155
        %v4526 = vunpack.c.l.b16 %v3156
        %v4527 = vunpack.c.h.b16 %v3156
        %v4528 = vunpack.c.l.b16 %v3157
        %v4529 = vunpack.c.h.b16 %v3157
        %v4530 = vunpack.c.l.b16 %v3158
        %v4531 = vunpack.c.h.b16 %v3158
        %v4532 = vunpack.c.l.b16 %v3159
        %v4533 = vunpack.c.h.b16 %v3159
        %v4534 = vunpack.c.l.b16 %v3160
        %v4535 = vunpack.c.h.b16 %v3160
        %v4536 = vunpack.c.l.b16 %v3161
        %v4537 = vunpack.c.h.b16 %v3161
        %v4538 = vunpack.c.l.b16 %v3162
        %v4539 = vunpack.c.h.b16 %v3162
        %v4540 = vunpack.c.l.b16 %v3163
        %v4541 = vunpack.c.h.b16 %v3163
        %v4542 = vunpack.c.l.b16 %v3164
        %v4543 = vunpack.c.h.b16 %v3164
        %v4544 = vunpack.c.l.b16 %v3165
        %v4545 = vunpack.c.h.b16 %v3165
        %v4546 = vunpack.c.l.b16 %v3166
        %v4547 = vunpack.c.h.b16 %v3166
        %v4548 = vunpack.c.l.b16 %v3167
        %v4549 = vunpack.c.h.b16 %v3167
        %v4550 = vunpack.c.l.b16 %v3168
        %v4551 = vunpack.c.h.b16 %v3168
        %v4552 = vunpack.c.l.b16 %v3169
        %v4553 = vunpack.c.h.b16 %v3169
        %v4554 = vunpack.c.l.b16 %v3170
        %v4555 = vunpack.c.h.b16 %v3170
        %v4556 = vunpack.c.l.b16 %v3171
        %v4557 = vunpack.c.h.b16 %v3171
        %v4558 = vunpack.c.l.b16 %v3172
        %v4559 = vunpack.c.h.b16 %v3172
        %v4560 = vunpack.c.l.b16 %v3173
        %v4561 = vunpack.c.h.b16 %v3173
        %v4562 = vunpack.c.l.b16 %v3174
        %v4563 = vunpack.c.h.b16 %v3174
        %v4564 = vunpack.c.l.b16 %v3175
        %v4565 = vunpack.c.h.b16 %v3175
        %v4566 = vunpack.c.l.b16 %v3176
        %v4567 = vunpack.c.h.b16 %v3176
        %v4568 = vunpack.c.l.b16 %v3177
        %v4569 = vunpack.c.h.b16 %v3177
        %v4570 = vunpack.c.l.b16 %v3178
        %v4571 = vunpack.c.h.b16 %v3178
        %v4572 = vunpack.c.l.b16 %v3179
        %v4573 = vunpack.c.h.b16 %v3179
        %v4574 = vunpack.c.l.b16 %v3180
        %v4575 = vunpack.c.h.b16 %v3180
        %v4576 = vunpack.c.l.b16 %v3181
        %v4577 = vunpack.c.h.b16 %v3181
        %v4578 = vunpack.c.l.b16 %v3182
        %v4579 = vunpack.c.h.b16 %v3182
        %v4580 = vunpack.c.l.b16 %v3183
        %v4581 = vunpack.c.h.b16 %v3183
        %v4582 = vunpack.c.l.b16 %v3184
        %v4583 = vunpack.c.h.b16 %v3184
        %v4584 = vunpack.c.l.b16 %v3185
        %v4585 = vunpack.c.h.b16 %v3185
        %v4586 = vunpack.c.l.b16 %v3186
        %v4587 = vunpack.c.h.b16 %v3186
        %v4588 = vunpack.c.l.b16 %v3187
        %v4589 = vunpack.c.h.b16 %v3187
        %v4590 = vunpack.c.l.b16 %v3188
        %v4591 = vunpack.c.h.b16 %v3188
        %v4592 = vunpack.c.l.b16 %v3189
        %v4593 = vunpack.c.h.b16 %v3189
        %v4594 = vunpack.c.l.b16 %v3190
        %v4595 = vunpack.c.h.b16 %v3190
        %v4596 = vunpack.c.l.b16 %v3191
        %v4597 = vunpack.c.h.b16 %v3191
        %v4598 = vunpack.c.l.b16 %v3192
        %v4599 = vunpack.c.h.b16 %v3192
        %v4600 = vunpack.c.l.b16 %v3193
        %v4601 = vunpack.c.h.b16 %v3193
        %v4602 = vunpack.c.l.b16 %v3194
        %v4603 = vunpack.c.h.b16 %v3194
        %v4604 = vunpack.c.l.b16 %v3195
        %v4605 = vunpack.c.h.b16 %v3195
        %v4606 = vunpack.c.l.b16 %v3196
        %v4607 = vunpack.c.h.b16 %v3196
        %v4608 = vunpack.c.l.b16 %v3197
        %v4609 = vunpack.c.h.b16 %v3197
        %v4610 = vunpack.c.l.b16 %v3198
        %v4611 = vunpack.c.h.b16 %v3198
        %v4612 = vunpack.c.l.b16 %v3199
        %v4613 = vunpack.c.h.b16 %v3199
        %v4614 = vunpack.c.l.b16 %v3200
        %v4615 = vunpack.c.h.b16 %v3200
        %v4616 = vunpack.c.l.b16 %v3201
        %v4617 = vunpack.c.h.b16 %v3201
        %v4618 = vunpack.c.l.b16 %v3202
        %v4619 = vunpack.c.h.b16 %v3202
        %v4620 = vunpack.c.l.b16 %v3203
        %v4621 = vunpack.c.h.b16 %v3203
        %v4622 = vunpack.c.l.b16 %v3204
        %v4623 = vunpack.c.h.b16 %v3204
        %v4624 = vunpack.c.l.b16 %v3205
        %v4625 = vunpack.c.h.b16 %v3205
        %v4626 = vunpack.c.l.b16 %v3206
        %v4627 = vunpack.c.h.b16 %v3206
        %v4628 = vunpack.c.l.b16 %v3207
        %v4629 = vunpack.c.h.b16 %v3207
        %v4630 = vunpack.c.l.b16 %v3208
        %v4631 = vunpack.c.h.b16 %v3208
        %v4632 = vunpack.c.l.b16 %v3209
        %v4633 = vunpack.c.h.b16 %v3209
        %v4634 = vunpack.c.l.b16 %v3210
        %v4635 = vunpack.c.h.b16 %v3210
        %v4636 = vunpack.c.l.b16 %v3211
        %v4637 = vunpack.c.h.b16 %v3211
        %v4638 = vunpack.c.l.b16 %v3212
        %v4639 = vunpack.c.h.b16 %v3212
        %v4640 = vunpack.c.l.b16 %v3213
        %v4641 = vunpack.c.h.b16 %v3213
        %v4642 = vunpack.c.l.b16 %v3214
        %v4643 = vunpack.c.h.b16 %v3214
        %v4644 = vunpack.c.l.b16 %v3215
        %v4645 = vunpack.c.h.b16 %v3215
        %v4646 = vunpack.c.l.b16 %v3216
        %v4647 = vunpack.c.h.b16 %v3216
        %v4648 = vunpack.c.l.b16 %v3217
        %v4649 = vunpack.c.h.b16 %v3217
        %v4650 = vunpack.c.l.b16 %v3218
        %v4651 = vunpack.c.h.b16 %v3218
        %v4652 = vunpack.c.l.b16 %v3219
        %v4653 = vunpack.c.h.b16 %v3219
        %v4654 = vunpack.c.l.b16 %v3220
        %v4655 = vunpack.c.h.b16 %v3220
        %v4656 = vunpack.c.l.b16 %v3221
        %v4657 = vunpack.c.h.b16 %v3221
        %v4658 = vunpack.c.l.b16 %v3222
        %v4659 = vunpack.c.h.b16 %v3222
        %v4660 = vunpack.c.l.b16 %v3223
        %v4661 = vunpack.c.h.b16 %v3223
        %v4662 = vunpack.c.l.b16 %v3224
        %v4663 = vunpack.c.h.b16 %v3224
        %v4664 = vunpack.c.l.b16 %v3225
        %v4665 = vunpack.c.h.b16 %v3225
        %v4666 = vunpack.c.l.b16 %v3226
        %v4667 = vunpack.c.h.b16 %v3226
        %v4668 = vunpack.c.l.b16 %v3227
        %v4669 = vunpack.c.h.b16 %v3227
        %v4670 = vunpack.c.l.b16 %v3228
        %v4671 = vunpack.c.h.b16 %v3228
        %v4672 = vunpack.c.l.b16 %v3229
        %v4673 = vunpack.c.h.b16 %v3229
        %v4674 = vunpack.c.l.b16 %v3230
        %v4675 = vunpack.c.h.b16 %v3230
        %v4676 = vunpack.c.l.b16 %v3231
        %v4677 = vunpack.c.h.b16 %v3231
        %v4678 = vunpack.c.l.b16 %v3232
        %v4679 = vunpack.c.h.b16 %v3232
        %v4680 = vunpack.c.l.b16 %v3233
        %v4681 = vunpack.c.h.b16 %v3233
        %v4682 = vunpack.c.l.b16 %v3234
        %v4683 = vunpack.c.h.b16 %v3234
        %v4684 = vunpack.c.l.b16 %v3235
        %v4685 = vunpack.c.h.b16 %v3235
        %v4686 = vunpack.c.l.b16 %v3236
        %v4687 = vunpack.c.h.b16 %v3236
        %v4688 = vunpack.c.l.b16 %v3237
        %v4689 = vunpack.c.h.b16 %v3237
        %v4690 = vunpack.c.l.b16 %v3238
        %v4691 = vunpack.c.h.b16 %v3238
        %v4692 = vunpack.c.l.b16 %v3239
        %v4693 = vunpack.c.h.b16 %v3239
        %v4694 = vunpack.c.l.b16 %v3240
        %v4695 = vunpack.c.h.b16 %v3240
        %v4696 = vunpack.c.l.b16 %v3241
        %v4697 = vunpack.c.h.b16 %v3241
        %v4698 = vunpack.c.l.b16 %v3242
        %v4699 = vunpack.c.h.b16 %v3242
        %v4700 = vunpack.c.l.b16 %v3243
        %v4701 = vunpack.c.h.b16 %v3243
        %v4702 = vunpack.c.l.b16 %v3244
        %v4703 = vunpack.c.h.b16 %v3244
        %v4704 = vunpack.c.l.b16 %v3245
        %v4705 = vunpack.c.h.b16 %v3245
        %v4706 = vunpack.c.l.b16 %v3246
        %v4707 = vunpack.c.h.b16 %v3246
        %v4708 = vunpack.c.l.b16 %v3247
        %v4709 = vunpack.c.h.b16 %v3247
        %v4710 = vunpack.c.l.b16 %v3248
        %v4711 = vunpack.c.h.b16 %v3248
        %v4712 = vunpack.c.l.b16 %v3249
        %v4713 = vunpack.c.h.b16 %v3249
        %v4714 = vunpack.c.l.b16 %v3250
        %v4715 = vunpack.c.h.b16 %v3250
        %v4716 = vunpack.c.l.b16 %v3251
        %v4717 = vunpack.c.h.b16 %v3251
        %v4718 = vunpack.c.l.b16 %v3252
        %v4719 = vunpack.c.h.b16 %v3252
        %v4720 = vunpack.c.l.b16 %v3253
        %v4721 = vunpack.c.h.b16 %v3253
        %v4722 = vunpack.c.l.b16 %v3254
        %v4723 = vunpack.c.h.b16 %v3254
        %v4724 = vunpack.c.l.b16 %v3255
        %v4725 = vunpack.c.h.b16 %v3255
        %v4726 = vunpack.c.l.b16 %v3256
        %v4727 = vunpack.c.h.b16 %v3256
        %v4728 = vunpack.c.l.b16 %v3257
        %v4729 = vunpack.c.h.b16 %v3257
        %v4730 = vunpack.c.l.b16 %v3258
        %v4731 = vunpack.c.h.b16 %v3258
        %v4732 = vunpack.c.l.b16 %v3259
        %v4733 = vunpack.c.h.b16 %v3259
        %v4734 = vunpack.c.l.b16 %v3260
        %v4735 = vunpack.c.h.b16 %v3260
        %v4736 = vunpack.c.l.b16 %v3261
        %v4737 = vunpack.c.h.b16 %v3261
        %v4738 = vunpack.c.l.b16 %v3262
        %v4739 = vunpack.c.h.b16 %v3262
        %v4740 = vunpack.c.l.b16 %v3263
        %v4741 = vunpack.c.h.b16 %v3263
        %v4742 = vunpack.c.l.b16 %v3264
        %v4743 = vunpack.c.h.b16 %v3264
        %v4744 = vunpack.c.l.b16 %v3265
        %v4745 = vunpack.c.h.b16 %v3265
        %v4746 = vunpack.c.l.b16 %v3266
        %v4747 = vunpack.c.h.b16 %v3266
        %v4748 = vunpack.c.l.b16 %v3267
        %v4749 = vunpack.c.h.b16 %v3267
        %v4750 = vunpack.c.l.b16 %v3268
        %v4751 = vunpack.c.h.b16 %v3268
        %v4752 = vunpack.c.l.b16 %v3269
        %v4753 = vunpack.c.h.b16 %v3269
        %v4754 = vunpack.c.l.b16 %v3270
        %v4755 = vunpack.c.h.b16 %v3270
        %v4756 = vunpack.c.l.b16 %v3271
        %v4757 = vunpack.c.h.b16 %v3271
        %v4758 = vunpack.c.l.b16 %v3272
        %v4759 = vunpack.c.h.b16 %v3272
        %v4760 = vunpack.c.l.b16 %v3273
        %v4761 = vunpack.c.h.b16 %v3273
        %v4762 = vunpack.c.l.b16 %v3274
        %v4763 = vunpack.c.h.b16 %v3274
        %v4764 = vunpack.c.l.b16 %v3275
        %v4765 = vunpack.c.h.b16 %v3275
        %v4766 = vunpack.c.l.b16 %v3276
        %v4767 = vunpack.c.h.b16 %v3276
        %v4768 = vunpack.c.l.b16 %v3277
        %v4769 = vunpack.c.h.b16 %v3277
        %v4770 = vunpack.c.l.b16 %v3278
        %v4771 = vunpack.c.h.b16 %v3278
        %v4772 = vunpack.c.l.b16 %v3279
        %v4773 = vunpack.c.h.b16 %v3279
        %v4774 = vunpack.c.l.b16 %v3280
        %v4775 = vunpack.c.h.b16 %v3280
        %v4776 = vunpack.c.l.b16 %v3281
        %v4777 = vunpack.c.h.b16 %v3281
        %v4778 = vunpack.c.l.b16 %v3282
        %v4779 = vunpack.c.h.b16 %v3282
        %v4780 = vunpack.c.l.b16 %v3283
        %v4781 = vunpack.c.h.b16 %v3283
        %v4782 = vunpack.c.l.b16 %v3284
        %v4783 = vunpack.c.h.b16 %v3284
        %v4784 = vunpack.c.l.b16 %v3285
        %v4785 = vunpack.c.h.b16 %v3285
        %v4786 = vunpack.c.l.b16 %v3286
        %v4787 = vunpack.c.h.b16 %v3286
        %v4788 = vunpack.c.l.b16 %v3287
        %v4789 = vunpack.c.h.b16 %v3287
        %v4790 = vunpack.c.l.b16 %v3288
        %v4791 = vunpack.c.h.b16 %v3288
        %v4792 = vunpack.c.l.b16 %v3289
        %v4793 = vunpack.c.h.b16 %v3289
        %v4794 = vunpack.c.l.b16 %v3290
        %v4795 = vunpack.c.h.b16 %v3290
        %v4796 = vunpack.c.l.b16 %v3291
        %v4797 = vunpack.c.h.b16 %v3291
        %v4798 = vunpack.c.l.b16 %v3292
        %v4799 = vunpack.c.h.b16 %v3292
        %v4800 = vunpack.c.l.b16 %v3293
        %v4801 = vunpack.c.h.b16 %v3293
        %v4802 = vunpack.c.l.b16 %v3294
        %v4803 = vunpack.c.h.b16 %v3294
        %v4804 = vunpack.c.l.b16 %v3295
        %v4805 = vunpack.c.h.b16 %v3295
        %v4806 = vunpack.c.l.b16 %v3296
        %v4807 = vunpack.c.h.b16 %v3296
        %v4808 = vunpack.c.l.b16 %v3297
        %v4809 = vunpack.c.h.b16 %v3297
        %v4810 = vunpack.c.l.b16 %v3298
        %v4811 = vunpack.c.h.b16 %v3298
        %v4812 = vunpack.c.l.b16 %v3299
        %v4813 = vunpack.c.h.b16 %v3299
        %v4814 = vunpack.c.l.b16 %v3300
        %v4815 = vunpack.c.h.b16 %v3300
        %v4816 = vunpack.c.l.b16 %v3301
        %v4817 = vunpack.c.h.b16 %v3301
        %v4818 = vunpack.c.l.b16 %v3302
        %v4819 = vunpack.c.h.b16 %v3302
        %v4820 = vunpack.c.l.b16 %v3303
        %v4821 = vunpack.c.h.b16 %v3303
        %v4822 = vunpack.c.l.b16 %v3304
        %v4823 = vunpack.c.h.b16 %v3304
        %v4824 = vunpack.c.l.b16 %v3305
        %v4825 = vunpack.c.h.b16 %v3305
        %v4826 = vunpack.c.l.b16 %v3306
        %v4827 = vunpack.c.h.b16 %v3306
        %v4828 = vunpack.c.l.b16 %v3307
        %v4829 = vunpack.c.h.b16 %v3307
        %v4830 = vunpack.c.l.b16 %v3308
        %v4831 = vunpack.c.h.b16 %v3308
        %v4832 = vunpack.c.l.b16 %v3309
        %v4833 = vunpack.c.h.b16 %v3309
        %v4834 = vunpack.c.l.b16 %v3310
        %v4835 = vunpack.c.h.b16 %v3310
        %v4836 = vunpack.c.l.b16 %v3311
        %v4837 = vunpack.c.h.b16 %v3311
        %v4838 = vunpack.c.l.b16 %v3312
        %v4839 = vunpack.c.h.b16 %v3312
        %v4840 = vunpack.c.l.b16 %v3313
        %v4841 = vunpack.c.h.b16 %v3313
        %v4842 = vunpack.c.l.b16 %v3314
        %v4843 = vunpack.c.h.b16 %v3314
        %v4844 = vunpack.c.l.b16 %v3315
        %v4845 = vunpack.c.h.b16 %v3315
        %v4846 = vunpack.c.l.b16 %v3316
        %v4847 = vunpack.c.h.b16 %v3316
        %v4848 = vunpack.c.l.b16 %v3317
        %v4849 = vunpack.c.h.b16 %v3317
        %v4850 = vunpack.c.l.b16 %v3318
        %v4851 = vunpack.c.h.b16 %v3318
        %v4852 = vunpack.c.l.b16 %v3319
        %v4853 = vunpack.c.h.b16 %v3319
        %v4854 = vunpack.c.l.b16 %v3320
        %v4855 = vunpack.c.h.b16 %v3320
        %v4856 = vunpack.c.l.b16 %v3321
        %v4857 = vunpack.c.h.b16 %v3321
        %v4858 = vpack.c.b16 %v3850, %v3834
        %v4859 = vpack.c.b16 %v3851, %v3835
        %v4860 = vpack.c.b16 %v3852, %v3836
        %v4861 = vpack.c.b16 %v3853, %v3837
        %v4862 = vpack.c.b16 %v3854, %v3838
        %v4863 = vpack.c.b16 %v3855, %v3839
        %v4864 = vpack.c.b16 %v3856, %v3840
        %v4865 = vpack.c.b16 %v3857, %v3841
        %v4866 = vpack.c.b16 %v3858, %v3842
        %v4867 = vpack.c.b16 %v3859, %v3843
        %v4868 = vpack.c.b16 %v3860, %v3844
        %v4869 = vpack.c.b16 %v3861, %v3845
        %v4870 = vpack.c.b16 %v3862, %v3846
        %v4871 = vpack.c.b16 %v3863, %v3847
        %v4872 = vpack.c.b16 %v3864, %v3848
        %v4873 = vpack.c.b16 %v3865, %v3849
        %v4874 = vpack.c.b16 %v3882, %v3866
        %v4875 = vpack.c.b16 %v3883, %v3867
        %v4876 = vpack.c.b16 %v3884, %v3868
        %v4877 = vpack.c.b16 %v3885, %v3869
        %v4878 = vpack.c.b16 %v3886, %v3870
        %v4879 = vpack.c.b16 %v3887, %v3871
        %v4880 = vpack.c.b16 %v3888, %v3872
        %v4881 = vpack.c.b16 %v3889, %v3873
        %v4882 = vpack.c.b16 %v3890, %v3874
        %v4883 = vpack.c.b16 %v3891, %v3875
        %v4884 = vpack.c.b16 %v3892, %v3876
        %v4885 = vpack.c.b16 %v3893, %v3877
        %v4886 = vpack.c.b16 %v3894, %v3878
        %v4887 = vpack.c.b16 %v3895, %v3879
        %v4888 = vpack.c.b16 %v3896, %v3880
        %v4889 = vpack.c.b16 %v3897, %v3881
        %v4890 = vpack.c.b16 %v3914, %v3898
        %v4891 = vpack.c.b16 %v3915, %v3899
        %v4892 = vpack.c.b16 %v3916, %v3900
        %v4893 = vpack.c.b16 %v3917, %v3901
        %v4894 = vpack.c.b16 %v3918, %v3902
        %v4895 = vpack.c.b16 %v3919, %v3903
        %v4896 = vpack.c.b16 %v3920, %v3904
        %v4897 = vpack.c.b16 %v3921, %v3905
        %v4898 = vpack.c.b16 %v3922, %v3906
        %v4899 = vpack.c.b16 %v3923, %v3907
        %v4900 = vpack.c.b16 %v3924, %v3908
        %v4901 = vpack.c.b16 %v3925, %v3909
        %v4902 = vpack.c.b16 %v3926, %v3910
        %v4903 = vpack.c.b16 %v3927, %v3911
        %v4904 = vpack.c.b16 %v3928, %v3912
        %v4905 = vpack.c.b16 %v3929, %v3913
        %v4906 = vpack.c.b16 %v3946, %v3930
        %v4907 = vpack.c.b16 %v3947, %v3931
        %v4908 = vpack.c.b16 %v3948, %v3932
        %v4909 = vpack.c.b16 %v3949, %v3933
        %v4910 = vpack.c.b16 %v3950, %v3934
        %v4911 = vpack.c.b16 %v3951, %v3935
        %v4912 = vpack.c.b16 %v3952, %v3936
        %v4913 = vpack.c.b16 %v3953, %v3937
        %v4914 = vpack.c.b16 %v3954, %v3938
        %v4915 = vpack.c.b16 %v3955, %v3939
        %v4916 = vpack.c.b16 %v3956, %v3940
        %v4917 = vpack.c.b16 %v3957, %v3941
        %v4918 = vpack.c.b16 %v3958, %v3942
        %v4919 = vpack.c.b16 %v3959, %v3943
        %v4920 = vpack.c.b16 %v3960, %v3944
        %v4921 = vpack.c.b16 %v3961, %v3945
        %v4922 = vpack.c.b16 %v3978, %v3962
        %v4923 = vpack.c.b16 %v3979, %v3963
        %v4924 = vpack.c.b16 %v3980, %v3964
        %v4925 = vpack.c.b16 %v3981, %v3965
        %v4926 = vpack.c.b16 %v3982, %v3966
        %v4927 = vpack.c.b16 %v3983, %v3967
        %v4928 = vpack.c.b16 %v3984, %v3968
        %v4929 = vpack.c.b16 %v3985, %v3969
        %v4930 = vpack.c.b16 %v3986, %v3970
        %v4931 = vpack.c.b16 %v3987, %v3971
        %v4932 = vpack.c.b16 %v3988, %v3972
        %v4933 = vpack.c.b16 %v3989, %v3973
        %v4934 = vpack.c.b16 %v3990, %v3974
        %v4935 = vpack.c.b16 %v3991, %v3975
        %v4936 = vpack.c.b16 %v3992, %v3976
        %v4937 = vpack.c.b16 %v3993, %v3977
        %v4938 = vpack.c.b16 %v4010, %v3994
        %v4939 = vpack.c.b16 %v4011, %v3995
        %v4940 = vpack.c.b16 %v4012, %v3996
        %v4941 = vpack.c.b16 %v4013, %v3997
        %v4942 = vpack.c.b16 %v4014, %v3998
        %v4943 = vpack.c.b16 %v4015, %v3999
        %v4944 = vpack.c.b16 %v4016, %v4000
        %v4945 = vpack.c.b16 %v4017, %v4001
        %v4946 = vpack.c.b16 %v4018, %v4002
        %v4947 = vpack.c.b16 %v4019, %v4003
        %v4948 = vpack.c.b16 %v4020, %v4004
        %v4949 = vpack.c.b16 %v4021, %v4005
        %v4950 = vpack.c.b16 %v4022, %v4006
        %v4951 = vpack.c.b16 %v4023, %v4007
        %v4952 = vpack.c.b16 %v4024, %v4008
        %v4953 = vpack.c.b16 %v4025, %v4009
        %v4954 = vpack.c.b16 %v4042, %v4026
        %v4955 = vpack.c.b16 %v4043, %v4027
        %v4956 = vpack.c.b16 %v4044, %v4028
        %v4957 = vpack.c.b16 %v4045, %v4029
        %v4958 = vpack.c.b16 %v4046, %v4030
        %v4959 = vpack.c.b16 %v4047, %v4031
        %v4960 = vpack.c.b16 %v4048, %v4032
        %v4961 = vpack.c.b16 %v4049, %v4033
        %v4962 = vpack.c.b16 %v4050, %v4034
        %v4963 = vpack.c.b16 %v4051, %v4035
        %v4964 = vpack.c.b16 %v4052, %v4036
        %v4965 = vpack.c.b16 %v4053, %v4037
        %v4966 = vpack.c.b16 %v4054, %v4038
        %v4967 = vpack.c.b16 %v4055, %v4039
        %v4968 = vpack.c.b16 %v4056, %v4040
        %v4969 = vpack.c.b16 %v4057, %v4041
        %v4970 = vpack.c.b16 %v4074, %v4058
        %v4971 = vpack.c.b16 %v4075, %v4059
        %v4972 = vpack.c.b16 %v4076, %v4060
        %v4973 = vpack.c.b16 %v4077, %v4061
        %v4974 = vpack.c.b16 %v4078, %v4062
        %v4975 = vpack.c.b16 %v4079, %v4063
        %v4976 = vpack.c.b16 %v4080, %v4064
        %v4977 = vpack.c.b16 %v4081, %v4065
        %v4978 = vpack.c.b16 %v4082, %v4066
        %v4979 = vpack.c.b16 %v4083, %v4067
        %v4980 = vpack.c.b16 %v4084, %v4068
        %v4981 = vpack.c.b16 %v4085, %v4069
        %v4982 = vpack.c.b16 %v4086, %v4070
        %v4983 = vpack.c.b16 %v4087, %v4071
        %v4984 = vpack.c.b16 %v4088, %v4072
        %v4985 = vpack.c.b16 %v4089, %v4073
        %v4986 = vpack.c.b16 %v4106, %v4090
        %v4987 = vpack.c.b16 %v4107, %v4091
        %v4988 = vpack.c.b16 %v4108, %v4092
        %v4989 = vpack.c.b16 %v4109, %v4093
        %v4990 = vpack.c.b16 %v4110, %v4094
        %v4991 = vpack.c.b16 %v4111, %v4095
        %v4992 = vpack.c.b16 %v4112, %v4096
        %v4993 = vpack.c.b16 %v4113, %v4097
        %v4994 = vpack.c.b16 %v4114, %v4098
        %v4995 = vpack.c.b16 %v4115, %v4099
        %v4996 = vpack.c.b16 %v4116, %v4100
        %v4997 = vpack.c.b16 %v4117, %v4101
        %v4998 = vpack.c.b16 %v4118, %v4102
        %v4999 = vpack.c.b16 %v4119, %v4103
        %v5000 = vpack.c.b16 %v4120, %v4104
        %v5001 = vpack.c.b16 %v4121, %v4105
        %v5002 = vpack.c.b16 %v4138, %v4122
        %v5003 = vpack.c.b16 %v4139, %v4123
        %v5004 = vpack.c.b16 %v4140, %v4124
        %v5005 = vpack.c.b16 %v4141, %v4125
        %v5006 = vpack.c.b16 %v4142, %v4126
        %v5007 = vpack.c.b16 %v4143, %v4127
        %v5008 = vpack.c.b16 %v4144, %v4128
        %v5009 = vpack.c.b16 %v4145, %v4129
        %v5010 = vpack.c.b16 %v4146, %v4130
        %v5011 = vpack.c.b16 %v4147, %v4131
        %v5012 = vpack.c.b16 %v4148, %v4132
        %v5013 = vpack.c.b16 %v4149, %v4133
        %v5014 = vpack.c.b16 %v4150, %v4134
        %v5015 = vpack.c.b16 %v4151, %v4135
        %v5016 = vpack.c.b16 %v4152, %v4136
        %v5017 = vpack.c.b16 %v4153, %v4137
        %v5018 = vpack.c.b16 %v4170, %v4154
        %v5019 = vpack.c.b16 %v4171, %v4155
        %v5020 = vpack.c.b16 %v4172, %v4156
        %v5021 = vpack.c.b16 %v4173, %v4157
        %v5022 = vpack.c.b16 %v4174, %v4158
        %v5023 = vpack.c.b16 %v4175, %v4159
        %v5024 = vpack.c.b16 %v4176, %v4160
        %v5025 = vpack.c.b16 %v4177, %v4161
        %v5026 = vpack.c.b16 %v4178, %v4162
        %v5027 = vpack.c.b16 %v4179, %v4163
        %v5028 = vpack.c.b16 %v4180, %v4164
        %v5029 = vpack.c.b16 %v4181, %v4165
        %v5030 = vpack.c.b16 %v4182, %v4166
        %v5031 = vpack.c.b16 %v4183, %v4167
        %v5032 = vpack.c.b16 %v4184, %v4168
        %v5033 = vpack.c.b16 %v4185, %v4169
        %v5034 = vpack.c.b16 %v4202, %v4186
        %v5035 = vpack.c.b16 %v4203, %v4187
        %v5036 = vpack.c.b16 %v4204, %v4188
        %v5037 = vpack.c.b16 %v4205, %v4189
        %v5038 = vpack.c.b16 %v4206, %v4190
        %v5039 = vpack.c.b16 %v4207, %v4191
        %v5040 = vpack.c.b16 %v4208, %v4192
        %v5041 = vpack.c.b16 %v4209, %v4193
        %v5042 = vpack.c.b16 %v4210, %v4194
        %v5043 = vpack.c.b16 %v4211, %v4195
        %v5044 = vpack.c.b16 %v4212, %v4196
        %v5045 = vpack.c.b16 %v4213, %v4197
        %v5046 = vpack.c.b16 %v4214, %v4198
        %v5047 = vpack.c.b16 %v4215, %v4199
        %v5048 = vpack.c.b16 %v4216, %v4200
        %v5049 = vpack.c.b16 %v4217, %v4201
        %v5050 = vpack.c.b16 %v4234, %v4218
        %v5051 = vpack.c.b16 %v4235, %v4219
        %v5052 = vpack.c.b16 %v4236, %v4220
        %v5053 = vpack.c.b16 %v4237, %v4221
        %v5054 = vpack.c.b16 %v4238, %v4222
        %v5055 = vpack.c.b16 %v4239, %v4223
        %v5056 = vpack.c.b16 %v4240, %v4224
        %v5057 = vpack.c.b16 %v4241, %v4225
        %v5058 = vpack.c.b16 %v4242, %v4226
        %v5059 = vpack.c.b16 %v4243, %v4227
        %v5060 = vpack.c.b16 %v4244, %v4228
        %v5061 = vpack.c.b16 %v4245, %v4229
        %v5062 = vpack.c.b16 %v4246, %v4230
        %v5063 = vpack.c.b16 %v4247, %v4231
        %v5064 = vpack.c.b16 %v4248, %v4232
        %v5065 = vpack.c.b16 %v4249, %v4233
        %v5066 = vpack.c.b16 %v4266, %v4250
        %v5067 = vpack.c.b16 %v4267, %v4251
        %v5068 = vpack.c.b16 %v4268, %v4252
        %v5069 = vpack.c.b16 %v4269, %v4253
        %v5070 = vpack.c.b16 %v4270, %v4254
        %v5071 = vpack.c.b16 %v4271, %v4255
        %v5072 = vpack.c.b16 %v4272, %v4256
        %v5073 = vpack.c.b16 %v4273, %v4257
        %v5074 = vpack.c.b16 %v4274, %v4258
        %v5075 = vpack.c.b16 %v4275, %v4259
        %v5076 = vpack.c.b16 %v4276, %v4260
        %v5077 = vpack.c.b16 %v4277, %v4261
        %v5078 = vpack.c.b16 %v4278, %v4262
        %v5079 = vpack.c.b16 %v4279, %v4263
        %v5080 = vpack.c.b16 %v4280, %v4264
        %v5081 = vpack.c.b16 %v4281, %v4265
        %v5082 = vpack.c.b16 %v4298, %v4282
        %v5083 = vpack.c.b16 %v4299, %v4283
        %v5084 = vpack.c.b16 %v4300, %v4284
        %v5085 = vpack.c.b16 %v4301, %v4285
        %v5086 = vpack.c.b16 %v4302, %v4286
        %v5087 = vpack.c.b16 %v4303, %v4287
        %v5088 = vpack.c.b16 %v4304, %v4288
        %v5089 = vpack.c.b16 %v4305, %v4289
        %v5090 = vpack.c.b16 %v4306, %v4290
        %v5091 = vpack.c.b16 %v4307, %v4291
        %v5092 = vpack.c.b16 %v4308, %v4292
        %v5093 = vpack.c.b16 %v4309, %v4293
        %v5094 = vpack.c.b16 %v4310, %v4294
        %v5095 = vpack.c.b16 %v4311, %v4295
        %v5096 = vpack.c.b16 %v4312, %v4296
        %v5097 = vpack.c.b16 %v4313, %v4297
        %v5098 = vpack.c.b16 %v4330, %v4314
        %v5099 = vpack.c.b16 %v4331, %v4315
        %v5100 = vpack.c.b16 %v4332, %v4316
        %v5101 = vpack.c.b16 %v4333, %v4317
        %v5102 = vpack.c.b16 %v4334, %v4318
        %v5103 = vpack.c.b16 %v4335, %v4319
        %v5104 = vpack.c.b16 %v4336, %v4320
        %v5105 = vpack.c.b16 %v4337, %v4321
        %v5106 = vpack.c.b16 %v4338, %v4322
        %v5107 = vpack.c.b16 %v4339, %v4323
        %v5108 = vpack.c.b16 %v4340, %v4324
        %v5109 = vpack.c.b16 %v4341, %v4325
        %v5110 = vpack.c.b16 %v4342, %v4326
        %v5111 = vpack.c.b16 %v4343, %v4327
        %v5112 = vpack.c.b16 %v4344, %v4328
        %v5113 = vpack.c.b16 %v4345, %v4329
        %v5114 = vpack.c.b16 %v4362, %v4346
        %v5115 = vpack.c.b16 %v4363, %v4347
        %v5116 = vpack.c.b16 %v4364, %v4348
        %v5117 = vpack.c.b16 %v4365, %v4349
        %v5118 = vpack.c.b16 %v4366, %v4350
        %v5119 = vpack.c.b16 %v4367, %v4351
        %v5120 = vpack.c.b16 %v4368, %v4352
        %v5121 = vpack.c.b16 %v4369, %v4353
        %v5122 = vpack.c.b16 %v4370, %v4354
        %v5123 = vpack.c.b16 %v4371, %v4355
        %v5124 = vpack.c.b16 %v4372, %v4356
        %v5125 = vpack.c.b16 %v4373, %v4357
        %v5126 = vpack.c.b16 %v4374, %v4358
        %v5127 = vpack.c.b16 %v4375, %v4359
        %v5128 = vpack.c.b16 %v4376, %v4360
        %v5129 = vpack.c.b16 %v4377, %v4361
        %v5130 = vpack.c.b16 %v4394, %v4378
        %v5131 = vpack.c.b16 %v4395, %v4379
        %v5132 = vpack.c.b16 %v4396, %v4380
        %v5133 = vpack.c.b16 %v4397, %v4381
        %v5134 = vpack.c.b16 %v4398, %v4382
        %v5135 = vpack.c.b16 %v4399, %v4383
        %v5136 = vpack.c.b16 %v4400, %v4384
        %v5137 = vpack.c.b16 %v4401, %v4385
        %v5138 = vpack.c.b16 %v4402, %v4386
        %v5139 = vpack.c.b16 %v4403, %v4387
        %v5140 = vpack.c.b16 %v4404, %v4388
        %v5141 = vpack.c.b16 %v4405, %v4389
        %v5142 = vpack.c.b16 %v4406, %v4390
        %v5143 = vpack.c.b16 %v4407, %v4391
        %v5144 = vpack.c.b16 %v4408, %v4392
        %v5145 = vpack.c.b16 %v4409, %v4393
        %v5146 = vpack.c.b16 %v4426, %v4410
        %v5147 = vpack.c.b16 %v4427, %v4411
        %v5148 = vpack.c.b16 %v4428, %v4412
        %v5149 = vpack.c.b16 %v4429, %v4413
        %v5150 = vpack.c.b16 %v4430, %v4414
        %v5151 = vpack.c.b16 %v4431, %v4415
        %v5152 = vpack.c.b16 %v4432, %v4416
        %v5153 = vpack.c.b16 %v4433, %v4417
        %v5154 = vpack.c.b16 %v4434, %v4418
        %v5155 = vpack.c.b16 %v4435, %v4419
        %v5156 = vpack.c.b16 %v4436, %v4420
        %v5157 = vpack.c.b16 %v4437, %v4421
        %v5158 = vpack.c.b16 %v4438, %v4422
        %v5159 = vpack.c.b16 %v4439, %v4423
        %v5160 = vpack.c.b16 %v4440, %v4424
        %v5161 = vpack.c.b16 %v4441, %v4425
        %v5162 = vpack.c.b16 %v4458, %v4442
        %v5163 = vpack.c.b16 %v4459, %v4443
        %v5164 = vpack.c.b16 %v4460, %v4444
        %v5165 = vpack.c.b16 %v4461, %v4445
        %v5166 = vpack.c.b16 %v4462, %v4446
        %v5167 = vpack.c.b16 %v4463, %v4447
        %v5168 = vpack.c.b16 %v4464, %v4448
        %v5169 = vpack.c.b16 %v4465, %v4449
        %v5170 = vpack.c.b16 %v4466, %v4450
        %v5171 = vpack.c.b16 %v4467, %v4451
        %v5172 = vpack.c.b16 %v4468, %v4452
        %v5173 = vpack.c.b16 %v4469, %v4453
        %v5174 = vpack.c.b16 %v4470, %v4454
        %v5175 = vpack.c.b16 %v4471, %v4455
        %v5176 = vpack.c.b16 %v4472, %v4456
        %v5177 = vpack.c.b16 %v4473, %v4457
        %v5178 = vpack.c.b16 %v4490, %v4474
        %v5179 = vpack.c.b16 %v4491, %v4475
        %v5180 = vpack.c.b16 %v4492, %v4476
        %v5181 = vpack.c.b16 %v4493, %v4477
        %v5182 = vpack.c.b16 %v4494, %v4478
        %v5183 = vpack.c.b16 %v4495, %v4479
        %v5184 = vpack.c.b16 %v4496, %v4480
        %v5185 = vpack.c.b16 %v4497, %v4481
        %v5186 = vpack.c.b16 %v4498, %v4482
        %v5187 = vpack.c.b16 %v4499, %v4483
        %v5188 = vpack.c.b16 %v4500, %v4484
        %v5189 = vpack.c.b16 %v4501, %v4485
        %v5190 = vpack.c.b16 %v4502, %v4486
        %v5191 = vpack.c.b16 %v4503, %v4487
        %v5192 = vpack.c.b16 %v4504, %v4488
        %v5193 = vpack.c.b16 %v4505, %v4489
        %v5194 = vpack.c.b16 %v4522, %v4506
        %v5195 = vpack.c.b16 %v4523, %v4507
        %v5196 = vpack.c.b16 %v4524, %v4508
        %v5197 = vpack.c.b16 %v4525, %v4509
        %v5198 = vpack.c.b16 %v4526, %v4510
        %v5199 = vpack.c.b16 %v4527, %v4511
        %v5200 = vpack.c.b16 %v4528, %v4512
        %v5201 = vpack.c.b16 %v4529, %v4513
        %v5202 = vpack.c.b16 %v4530, %v4514
        %v5203 = vpack.c.b16 %v4531, %v4515
        %v5204 = vpack.c.b16 %v4532, %v4516
        %v5205 = vpack.c.b16 %v4533, %v4517
        %v5206 = vpack.c.b16 %v4534, %v4518
        %v5207 = vpack.c.b16 %v4535, %v4519
        %v5208 = vpack.c.b16 %v4536, %v4520
        %v5209 = vpack.c.b16 %v4537, %v4521
        %v5210 = vpack.c.b16 %v4554, %v4538
        %v5211 = vpack.c.b16 %v4555, %v4539
        %v5212 = vpack.c.b16 %v4556, %v4540
        %v5213 = vpack.c.b16 %v4557, %v4541
        %v5214 = vpack.c.b16 %v4558, %v4542
        %v5215 = vpack.c.b16 %v4559, %v4543
        %v5216 = vpack.c.b16 %v4560, %v4544
        %v5217 = vpack.c.b16 %v4561, %v4545
        %v5218 = vpack.c.b16 %v4562, %v4546
        %v5219 = vpack.c.b16 %v4563, %v4547
        %v5220 = vpack.c.b16 %v4564, %v4548
        %v5221 = vpack.c.b16 %v4565, %v4549
        %v5222 = vpack.c.b16 %v4566, %v4550
        %v5223 = vpack.c.b16 %v4567, %v4551
        %v5224 = vpack.c.b16 %v4568, %v4552
        %v5225 = vpack.c.b16 %v4569, %v4553
        %v5226 = vpack.c.b16 %v4586, %v4570
        %v5227 = vpack.c.b16 %v4587, %v4571
        %v5228 = vpack.c.b16 %v4588, %v4572
        %v5229 = vpack.c.b16 %v4589, %v4573
        %v5230 = vpack.c.b16 %v4590, %v4574
        %v5231 = vpack.c.b16 %v4591, %v4575
        %v5232 = vpack.c.b16 %v4592, %v4576
        %v5233 = vpack.c.b16 %v4593, %v4577
        %v5234 = vpack.c.b16 %v4594, %v4578
        %v5235 = vpack.c.b16 %v4595, %v4579
        %v5236 = vpack.c.b16 %v4596, %v4580
        %v5237 = vpack.c.b16 %v4597, %v4581
        %v5238 = vpack.c.b16 %v4598, %v4582
        %v5239 = vpack.c.b16 %v4599, %v4583
        %v5240 = vpack.c.b16 %v4600, %v4584
        %v5241 = vpack.c.b16 %v4601, %v4585
        %v5242 = vpack.c.b16 %v4618, %v4602
        %v5243 = vpack.c.b16 %v4619, %v4603
        %v5244 = vpack.c.b16 %v4620, %v4604
        %v5245 = vpack.c.b16 %v4621, %v4605
        %v5246 = vpack.c.b16 %v4622, %v4606
        %v5247 = vpack.c.b16 %v4623, %v4607
        %v5248 = vpack.c.b16 %v4624, %v4608
        %v5249 = vpack.c.b16 %v4625, %v4609
        %v5250 = vpack.c.b16 %v4626, %v4610
        %v5251 = vpack.c.b16 %v4627, %v4611
        %v5252 = vpack.c.b16 %v4628, %v4612
        %v5253 = vpack.c.b16 %v4629, %v4613
        %v5254 = vpack.c.b16 %v4630, %v4614
        %v5255 = vpack.c.b16 %v4631, %v4615
        %v5256 = vpack.c.b16 %v4632, %v4616
        %v5257 = vpack.c.b16 %v4633, %v4617
        %v5258 = vpack.c.b16 %v4650, %v4634
        %v5259 = vpack.c.b16 %v4651, %v4635
        %v5260 = vpack.c.b16 %v4652, %v4636
        %v5261 = vpack.c.b16 %v4653, %v4637
        %v5262 = vpack.c.b16 %v4654, %v4638
        %v5263 = vpack.c.b16 %v4655, %v4639
        %v5264 = vpack.c.b16 %v4656, %v4640
        %v5265 = vpack.c.b16 %v4657, %v4641
        %v5266 = vpack.c.b16 %v4658, %v4642
        %v5267 = vpack.c.b16 %v4659, %v4643
        %v5268 = vpack.c.b16 %v4660, %v4644
        %v5269 = vpack.c.b16 %v4661, %v4645
        %v5270 = vpack.c.b16 %v4662, %v4646
        %v5271 = vpack.c.b16 %v4663, %v4647
        %v5272 = vpack.c.b16 %v4664, %v4648
        %v5273 = vpack.c.b16 %v4665, %v4649
        %v5274 = vpack.c.b16 %v4682, %v4666
        %v5275 = vpack.c.b16 %v4683, %v4667
        %v5276 = vpack.c.b16 %v4684, %v4668
        %v5277 = vpack.c.b16 %v4685, %v4669
        %v5278 = vpack.c.b16 %v4686, %v4670
        %v5279 = vpack.c.b16 %v4687, %v4671
        %v5280 = vpack.c.b16 %v4688, %v4672
        %v5281 = vpack.c.b16 %v4689, %v4673
        %v5282 = vpack.c.b16 %v4690, %v4674
        %v5283 = vpack.c.b16 %v4691, %v4675
        %v5284 = vpack.c.b16 %v4692, %v4676
        %v5285 = vpack.c.b16 %v4693, %v4677
        %v5286 = vpack.c.b16 %v4694, %v4678
        %v5287 = vpack.c.b16 %v4695, %v4679
        %v5288 = vpack.c.b16 %v4696, %v4680
        %v5289 = vpack.c.b16 %v4697, %v4681
        %v5290 = vpack.c.b16 %v4714, %v4698
        %v5291 = vpack.c.b16 %v4715, %v4699
        %v5292 = vpack.c.b16 %v4716, %v4700
        %v5293 = vpack.c.b16 %v4717, %v4701
        %v5294 = vpack.c.b16 %v4718, %v4702
        %v5295 = vpack.c.b16 %v4719, %v4703
        %v5296 = vpack.c.b16 %v4720, %v4704
        %v5297 = vpack.c.b16 %v4721, %v4705
        %v5298 = vpack.c.b16 %v4722, %v4706
        %v5299 = vpack.c.b16 %v4723, %v4707
        %v5300 = vpack.c.b16 %v4724, %v4708
        %v5301 = vpack.c.b16 %v4725, %v4709
        %v5302 = vpack.c.b16 %v4726, %v4710
        %v5303 = vpack.c.b16 %v4727, %v4711
        %v5304 = vpack.c.b16 %v4728, %v4712
        %v5305 = vpack.c.b16 %v4729, %v4713
        %v5306 = vpack.c.b16 %v4746, %v4730
        %v5307 = vpack.c.b16 %v4747, %v4731
        %v5308 = vpack.c.b16 %v4748, %v4732
        %v5309 = vpack.c.b16 %v4749, %v4733
        %v5310 = vpack.c.b16 %v4750, %v4734
        %v5311 = vpack.c.b16 %v4751, %v4735
        %v5312 = vpack.c.b16 %v4752, %v4736
        %v5313 = vpack.c.b16 %v4753, %v4737
        %v5314 = vpack.c.b16 %v4754, %v4738
        %v5315 = vpack.c.b16 %v4755, %v4739
        %v5316 = vpack.c.b16 %v4756, %v4740
        %v5317 = vpack.c.b16 %v4757, %v4741
        %v5318 = vpack.c.b16 %v4758, %v4742
        %v5319 = vpack.c.b16 %v4759, %v4743
        %v5320 = vpack.c.b16 %v4760, %v4744
        %v5321 = vpack.c.b16 %v4761, %v4745
        %v5322 = vpack.c.b16 %v4778, %v4762
        %v5323 = vpack.c.b16 %v4779, %v4763
        %v5324 = vpack.c.b16 %v4780, %v4764
        %v5325 = vpack.c.b16 %v4781, %v4765
        %v5326 = vpack.c.b16 %v4782, %v4766
        %v5327 = vpack.c.b16 %v4783, %v4767
        %v5328 = vpack.c.b16 %v4784, %v4768
        %v5329 = vpack.c.b16 %v4785, %v4769
        %v5330 = vpack.c.b16 %v4786, %v4770
        %v5331 = vpack.c.b16 %v4787, %v4771
        %v5332 = vpack.c.b16 %v4788, %v4772
        %v5333 = vpack.c.b16 %v4789, %v4773
        %v5334 = vpack.c.b16 %v4790, %v4774
        %v5335 = vpack.c.b16 %v4791, %v4775
        %v5336 = vpack.c.b16 %v4792, %v4776
        %v5337 = vpack.c.b16 %v4793, %v4777
        %v5338 = vpack.c.b16 %v4810, %v4794
        %v5339 = vpack.c.b16 %v4811, %v4795
        %v5340 = vpack.c.b16 %v4812, %v4796
        %v5341 = vpack.c.b16 %v4813, %v4797
        %v5342 = vpack.c.b16 %v4814, %v4798
        %v5343 = vpack.c.b16 %v4815, %v4799
        %v5344 = vpack.c.b16 %v4816, %v4800
        %v5345 = vpack.c.b16 %v4817, %v4801
        %v5346 = vpack.c.b16 %v4818, %v4802
        %v5347 = vpack.c.b16 %v4819, %v4803
        %v5348 = vpack.c.b16 %v4820, %v4804
        %v5349 = vpack.c.b16 %v4821, %v4805
        %v5350 = vpack.c.b16 %v4822, %v4806
        %v5351 = vpack.c.b16 %v4823, %v4807
        %v5352 = vpack.c.b16 %v4824, %v4808
        %v5353 = vpack.c.b16 %v4825, %v4809
        %v5354 = vpack.c.b16 %v4842, %v4826
        %v5355 = vpack.c.b16 %v4843, %v4827
        %v5356 = vpack.c.b16 %v4844, %v4828
        %v5357 = vpack.c.b16 %v4845, %v4829
        %v5358 = vpack.c.b16 %v4846, %v4830
        %v5359 = vpack.c.b16 %v4847, %v4831
        %v5360 = vpack.c.b16 %v4848, %v4832
        %v5361 = vpack.c.b16 %v4849, %v4833
        %v5362 = vpack.c.b16 %v4850, %v4834
        %v5363 = vpack.c.b16 %v4851, %v4835
        %v5364 = vpack.c.b16 %v4852, %v4836
        %v5365 = vpack.c.b16 %v4853, %v4837
        %v5366 = vpack.c.b16 %v4854, %v4838
        %v5367 = vpack.c.b16 %v4855, %v4839
        %v5368 = vpack.c.b16 %v4856, %v4840
        %v5369 = vpack.c.b16 %v4857, %v4841
        %5882 = vmatprep.subr.bf16.mxu0 %v4859
        %5883 = vmatpush1.bf16.msra.mxu0 %v4858
        %5884 = vmatprep.subr.bf16.mxu0 %v4875
        %5885 = vmatpush1.bf16.msra.mxu0 %v4874
        %5886 = vmatprep.subr.bf16.mxu0 %v4891
        %5887 = vmatpush1.bf16.msra.mxu0 %v4890
        %5888 = vmatprep.subr.bf16.mxu0 %v4907
        %5889 = vmatpush1.bf16.msra.mxu0 %v4906
        %5890 = vmatprep.subr.bf16.mxu0 %v4923
        %5891 = vmatpush1.bf16.msra.mxu0 %v4922
        %5892 = vmatprep.subr.bf16.mxu0 %v4939
        %5893 = vmatpush1.bf16.msra.mxu0 %v4938
        %5894 = vmatprep.subr.bf16.mxu0 %v4955
        %5895 = vmatpush1.bf16.msra.mxu0 %v4954
        %5896 = vmatprep.subr.bf16.mxu0 %v4971
        %5897 = vmatpush1.bf16.msra.mxu0 %v4970
        %5898 = vmatprep.subr.bf16.mxu0 %v4987
        %5899 = vmatpush1.bf16.msra.mxu0 %v4986
        %5900 = vmatprep.subr.bf16.mxu0 %v5003
        %5901 = vmatpush1.bf16.msra.mxu0 %v5002
        %5902 = vmatprep.subr.bf16.mxu0 %v5019
        %5903 = vmatpush1.bf16.msra.mxu0 %v5018
        %5904 = vmatprep.subr.bf16.mxu0 %v5035
        %5905 = vmatpush1.bf16.msra.mxu0 %v5034
        %5906 = vmatprep.subr.bf16.mxu0 %v5051
        %5907 = vmatpush1.bf16.msra.mxu0 %v5050
        %5908 = vmatprep.subr.bf16.mxu0 %v5067
        %5909 = vmatpush1.bf16.msra.mxu0 %v5066
        %5910 = vmatprep.subr.bf16.mxu0 %v5083
        %5911 = vmatpush1.bf16.msra.mxu0 %v5082
        %5912 = vmatprep.subr.bf16.mxu0 %v5099
        %5913 = vmatpush1.bf16.msra.mxu0 %v5098
        %5914 = vmatprep.mubr.bf16.mxu0 %v2775
        %5915 = vmatmul.mubr.bf16.gmra.mrb[0].mxu0 %v2774
        %v5916 = vpop.f32.mrb[0].mxu0
        %v5917 = vadd.f32 0.0, %v5916
        %v5918 = vpop.f32.mrb[0].mxu0
        %v5919 = vadd.f32 0.0, %v5918
        %v5920 = vpop.f32.mrb[0].mxu0
        %v5921 = vadd.f32 0.0, %v5920
        %v5922 = vpop.f32.mrb[0].mxu0
        %v5923 = vadd.f32 0.0, %v5922
        %5924 = vdwg.mxu0
        %5925 = vmatprep.subr.bf16.mxu0 %v5115
        %5926 = vmatpush1.bf16.msra.mxu0 %v5114
        %5927 = vmatprep.subr.bf16.mxu0 %v5131
        %5928 = vmatpush1.bf16.msra.mxu0 %v5130
        %5929 = vmatprep.subr.bf16.mxu0 %v5147
        %5930 = vmatpush1.bf16.msra.mxu0 %v5146
        %5931 = vmatprep.subr.bf16.mxu0 %v5163
        %5932 = vmatpush1.bf16.msra.mxu0 %v5162
        %5933 = vmatprep.subr.bf16.mxu0 %v5179
        %5934 = vmatpush1.bf16.msra.mxu0 %v5178
        %5935 = vmatprep.subr.bf16.mxu0 %v5195
        %5936 = vmatpush1.bf16.msra.mxu0 %v5194
        %5937 = vmatprep.subr.bf16.mxu0 %v5211
        %5938 = vmatpush1.bf16.msra.mxu0 %v5210
        %5939 = vmatprep.subr.bf16.mxu0 %v5227
        %5940 = vmatpush1.bf16.msra.mxu0 %v5226
        %5941 = vmatprep.subr.bf16.mxu0 %v5243
        %5942 = vmatpush1.bf16.msra.mxu0 %v5242
        %5943 = vmatprep.subr.bf16.mxu0 %v5259
        %5944 = vmatpush1.bf16.msra.mxu0 %v5258
        %5945 = vmatprep.subr.bf16.mxu0 %v5275
        %5946 = vmatpush1.bf16.msra.mxu0 %v5274
        %5947 = vmatprep.subr.bf16.mxu0 %v5291
        %5948 = vmatpush1.bf16.msra.mxu0 %v5290
        %5949 = vmatprep.subr.bf16.mxu0 %v5307
        %5950 = vmatpush1.bf16.msra.mxu0 %v5306
        %5951 = vmatprep.subr.bf16.mxu0 %v5323
        %5952 = vmatpush1.bf16.msra.mxu0 %v5322
        %5953 = vmatprep.subr.bf16.mxu0 %v5339
        %5954 = vmatpush1.bf16.msra.mxu0 %v5338
        %5955 = vmatprep.subr.bf16.mxu0 %v5355
        %5956 = vmatpush1.bf16.msra.mxu0 %v5354
        %5957 = vmatprep.mubr.bf16.mxu0 %v2777
        %5958 = vmatmul.mubr.bf16.gmra.mrb[0].mxu0 %v2776
        %v5959 = vpop.f32.mrb[0].mxu0
        %v5960 = vadd.f32 %v5917, %v5959
        %v5961 = vpop.f32.mrb[0].mxu0
        %v5962 = vadd.f32 %v5919, %v5961
        %v5963 = vpop.f32.mrb[0].mxu0
        %v5964 = vadd.f32 %v5921, %v5963
        %v5965 = vpop.f32.mrb[0].mxu0
        %v5966 = vadd.f32 %v5923, %v5965
        %5967 = vdwg.mxu0
        %5968 = vmatprep.subr.bf16.mxu0 %v4861
        %5969 = vmatpush1.bf16.msra.mxu0 %v4860
        %5970 = vmatprep.subr.bf16.mxu0 %v4877
        %5971 = vmatpush1.bf16.msra.mxu0 %v4876
        %5972 = vmatprep.subr.bf16.mxu0 %v4893
        %5973 = vmatpush1.bf16.msra.mxu0 %v4892
        %5974 = vmatprep.subr.bf16.mxu0 %v4909
        %5975 = vmatpush1.bf16.msra.mxu0 %v4908
        %5976 = vmatprep.subr.bf16.mxu0 %v4925
        %5977 = vmatpush1.bf16.msra.mxu0 %v4924
        %5978 = vmatprep.subr.bf16.mxu0 %v4941
        %5979 = vmatpush1.bf16.msra.mxu0 %v4940
        %5980 = vmatprep.subr.bf16.mxu0 %v4957
        %5981 = vmatpush1.bf16.msra.mxu0 %v4956
        %5982 = vmatprep.subr.bf16.mxu0 %v4973
        %5983 = vmatpush1.bf16.msra.mxu0 %v4972
        %5984 = vmatprep.subr.bf16.mxu0 %v4989
        %5985 = vmatpush1.bf16.msra.mxu0 %v4988
        %5986 = vmatprep.subr.bf16.mxu0 %v5005
        %5987 = vmatpush1.bf16.msra.mxu0 %v5004
        %5988 = vmatprep.subr.bf16.mxu0 %v5021
        %5989 = vmatpush1.bf16.msra.mxu0 %v5020
        %5990 = vmatprep.subr.bf16.mxu0 %v5037
        %5991 = vmatpush1.bf16.msra.mxu0 %v5036
        %5992 = vmatprep.subr.bf16.mxu0 %v5053
        %5993 = vmatpush1.bf16.msra.mxu0 %v5052
        %5994 = vmatprep.subr.bf16.mxu0 %v5069
        %5995 = vmatpush1.bf16.msra.mxu0 %v5068
        %5996 = vmatprep.subr.bf16.mxu0 %v5085
        %5997 = vmatpush1.bf16.msra.mxu0 %v5084
        %5998 = vmatprep.subr.bf16.mxu0 %v5101
        %5999 = vmatpush1.bf16.msra.mxu0 %v5100
        %6000 = vmatprep.mubr.bf16.mxu0 %v2775
        %6001 = vmatmul.mubr.bf16.gmra.mrb[0].mxu0 %v2774
        %v6002 = vpop.f32.mrb[0].mxu0
        %v6003 = vadd.f32 0.0, %v6002
        %v6004 = vpop.f32.mrb[0].mxu0
        %v6005 = vadd.f32 0.0, %v6004
        %v6006 = vpop.f32.mrb[0].mxu0
        %v6007 = vadd.f32 0.0, %v6006
        %v6008 = vpop.f32.mrb[0].mxu0
        %v6009 = vadd.f32 0.0, %v6008
        %6010 = vdwg.mxu0
        %6011 = vmatprep.subr.bf16.mxu0 %v5117
        %6012 = vmatpush1.bf16.msra.mxu0 %v5116
        %6013 = vmatprep.subr.bf16.mxu0 %v5133
        %6014 = vmatpush1.bf16.msra.mxu0 %v5132
        %6015 = vmatprep.subr.bf16.mxu0 %v5149
        %6016 = vmatpush1.bf16.msra.mxu0 %v5148
        %6017 = vmatprep.subr.bf16.mxu0 %v5165
        %6018 = vmatpush1.bf16.msra.mxu0 %v5164
        %6019 = vmatprep.subr.bf16.mxu0 %v5181
        %6020 = vmatpush1.bf16.msra.mxu0 %v5180
        %6021 = vmatprep.subr.bf16.mxu0 %v5197
        %6022 = vmatpush1.bf16.msra.mxu0 %v5196
        %6023 = vmatprep.subr.bf16.mxu0 %v5213
        %6024 = vmatpush1.bf16.msra.mxu0 %v5212
        %6025 = vmatprep.subr.bf16.mxu0 %v5229
        %6026 = vmatpush1.bf16.msra.mxu0 %v5228
        %6027 = vmatprep.subr.bf16.mxu0 %v5245
        %6028 = vmatpush1.bf16.msra.mxu0 %v5244
        %6029 = vmatprep.subr.bf16.mxu0 %v5261
        %6030 = vmatpush1.bf16.msra.mxu0 %v5260
        %6031 = vmatprep.subr.bf16.mxu0 %v5277
        %6032 = vmatpush1.bf16.msra.mxu0 %v5276
        %6033 = vmatprep.subr.bf16.mxu0 %v5293
        %6034 = vmatpush1.bf16.msra.mxu0 %v5292
        %6035 = vmatprep.subr.bf16.mxu0 %v5309
        %6036 = vmatpush1.bf16.msra.mxu0 %v5308
        %6037 = vmatprep.subr.bf16.mxu0 %v5325
        %6038 = vmatpush1.bf16.msra.mxu0 %v5324
        %6039 = vmatprep.subr.bf16.mxu0 %v5341
        %6040 = vmatpush1.bf16.msra.mxu0 %v5340
        %6041 = vmatprep.subr.bf16.mxu0 %v5357
        %6042 = vmatpush1.bf16.msra.mxu0 %v5356
        %6043 = vmatprep.mubr.bf16.mxu0 %v2777
        %6044 = vmatmul.mubr.bf16.gmra.mrb[0].mxu0 %v2776
        %v6045 = vpop.f32.mrb[0].mxu0
        %v6046 = vadd.f32 %v6003, %v6045
        %v6047 = vpop.f32.mrb[0].mxu0
        %v6048 = vadd.f32 %v6005, %v6047
        %v6049 = vpop.f32.mrb[0].mxu0
        %v6050 = vadd.f32 %v6007, %v6049
        %v6051 = vpop.f32.mrb[0].mxu0
        %v6052 = vadd.f32 %v6009, %v6051
        %6053 = vdwg.mxu0
        %6054 = vmatprep.subr.bf16.mxu0 %v4863
        %6055 = vmatpush1.bf16.msra.mxu0 %v4862
        %6056 = vmatprep.subr.bf16.mxu0 %v4879
        %6057 = vmatpush1.bf16.msra.mxu0 %v4878
        %6058 = vmatprep.subr.bf16.mxu0 %v4895
        %6059 = vmatpush1.bf16.msra.mxu0 %v4894
        %6060 = vmatprep.subr.bf16.mxu0 %v4911
        %6061 = vmatpush1.bf16.msra.mxu0 %v4910
        %6062 = vmatprep.subr.bf16.mxu0 %v4927
        %6063 = vmatpush1.bf16.msra.mxu0 %v4926
        %6064 = vmatprep.subr.bf16.mxu0 %v4943
        %6065 = vmatpush1.bf16.msra.mxu0 %v4942
        %6066 = vmatprep.subr.bf16.mxu0 %v4959
        %6067 = vmatpush1.bf16.msra.mxu0 %v4958
        %6068 = vmatprep.subr.bf16.mxu0 %v4975
        %6069 = vmatpush1.bf16.msra.mxu0 %v4974
        %6070 = vmatprep.subr.bf16.mxu0 %v4991
        %6071 = vmatpush1.bf16.msra.mxu0 %v4990
        %6072 = vmatprep.subr.bf16.mxu0 %v5007
        %6073 = vmatpush1.bf16.msra.mxu0 %v5006
        %6074 = vmatprep.subr.bf16.mxu0 %v5023
        %6075 = vmatpush1.bf16.msra.mxu0 %v5022
        %6076 = vmatprep.subr.bf16.mxu0 %v5039
        %6077 = vmatpush1.bf16.msra.mxu0 %v5038
        %6078 = vmatprep.subr.bf16.mxu0 %v5055
        %6079 = vmatpush1.bf16.msra.mxu0 %v5054
        %6080 = vmatprep.subr.bf16.mxu0 %v5071
        %6081 = vmatpush1.bf16.msra.mxu0 %v5070
        %6082 = vmatprep.subr.bf16.mxu0 %v5087
        %6083 = vmatpush1.bf16.msra.mxu0 %v5086
        %6084 = vmatprep.subr.bf16.mxu0 %v5103
        %6085 = vmatpush1.bf16.msra.mxu0 %v5102
        %6086 = vmatprep.mubr.bf16.mxu0 %v2775
        %6087 = vmatmul.mubr.bf16.gmra.mrb[0].mxu0 %v2774
        %v6088 = vpop.f32.mrb[0].mxu0
        %v6089 = vadd.f32 0.0, %v6088
        %v6090 = vpop.f32.mrb[0].mxu0
        %v6091 = vadd.f32 0.0, %v6090
        %v6092 = vpop.f32.mrb[0].mxu0
        %v6093 = vadd.f32 0.0, %v6092
        %v6094 = vpop.f32.mrb[0].mxu0
        %v6095 = vadd.f32 0.0, %v6094
        %6096 = vdwg.mxu0
        %6097 = vmatprep.subr.bf16.mxu0 %v5119
        %6098 = vmatpush1.bf16.msra.mxu0 %v5118
        %6099 = vmatprep.subr.bf16.mxu0 %v5135
        %6100 = vmatpush1.bf16.msra.mxu0 %v5134
        %6101 = vmatprep.subr.bf16.mxu0 %v5151
        %6102 = vmatpush1.bf16.msra.mxu0 %v5150
        %6103 = vmatprep.subr.bf16.mxu0 %v5167
        %6104 = vmatpush1.bf16.msra.mxu0 %v5166
        %6105 = vmatprep.subr.bf16.mxu0 %v5183
        %6106 = vmatpush1.bf16.msra.mxu0 %v5182
        %6107 = vmatprep.subr.bf16.mxu0 %v5199
        %6108 = vmatpush1.bf16.msra.mxu0 %v5198
        %6109 = vmatprep.subr.bf16.mxu0 %v5215
        %6110 = vmatpush1.bf16.msra.mxu0 %v5214
        %6111 = vmatprep.subr.bf16.mxu0 %v5231
        %6112 = vmatpush1.bf16.msra.mxu0 %v5230
        %6113 = vmatprep.subr.bf16.mxu0 %v5247
        %6114 = vmatpush1.bf16.msra.mxu0 %v5246
        %6115 = vmatprep.subr.bf16.mxu0 %v5263
        %6116 = vmatpush1.bf16.msra.mxu0 %v5262
        %6117 = vmatprep.subr.bf16.mxu0 %v5279
        %6118 = vmatpush1.bf16.msra.mxu0 %v5278
        %6119 = vmatprep.subr.bf16.mxu0 %v5295
        %6120 = vmatpush1.bf16.msra.mxu0 %v5294
        %6121 = vmatprep.subr.bf16.mxu0 %v5311
        %6122 = vmatpush1.bf16.msra.mxu0 %v5310
        %6123 = vmatprep.subr.bf16.mxu0 %v5327
        %6124 = vmatpush1.bf16.msra.mxu0 %v5326
        %6125 = vmatprep.subr.bf16.mxu0 %v5343
        %6126 = vmatpush1.bf16.msra.mxu0 %v5342
        %6127 = vmatprep.subr.bf16.mxu0 %v5359
        %6128 = vmatpush1.bf16.msra.mxu0 %v5358
        %6129 = vmatprep.mubr.bf16.mxu0 %v2777
        %6130 = vmatmul.mubr.bf16.gmra.mrb[0].mxu0 %v2776
        %v6131 = vpop.f32.mrb[0].mxu0
        %v6132 = vadd.f32 %v6089, %v6131
        %v6133 = vpop.f32.mrb[0].mxu0
        %v6134 = vadd.f32 %v6091, %v6133
        %v6135 = vpop.f32.mrb[0].mxu0
        %v6136 = vadd.f32 %v6093, %v6135
        %v6137 = vpop.f32.mrb[0].mxu0
        %v6138 = vadd.f32 %v6095, %v6137
        %6139 = vdwg.mxu0
        %6140 = vmatprep.subr.bf16.mxu0 %v4865
        %6141 = vmatpush1.bf16.msra.mxu0 %v4864
        %6142 = vmatprep.subr.bf16.mxu0 %v4881
        %6143 = vmatpush1.bf16.msra.mxu0 %v4880
        %6144 = vmatprep.subr.bf16.mxu0 %v4897
        %6145 = vmatpush1.bf16.msra.mxu0 %v4896
        %6146 = vmatprep.subr.bf16.mxu0 %v4913
        %6147 = vmatpush1.bf16.msra.mxu0 %v4912
        %6148 = vmatprep.subr.bf16.mxu0 %v4929
        %6149 = vmatpush1.bf16.msra.mxu0 %v4928
        %6150 = vmatprep.subr.bf16.mxu0 %v4945
        %6151 = vmatpush1.bf16.msra.mxu0 %v4944
        %6152 = vmatprep.subr.bf16.mxu0 %v4961
        %6153 = vmatpush1.bf16.msra.mxu0 %v4960
        %6154 = vmatprep.subr.bf16.mxu0 %v4977
        %6155 = vmatpush1.bf16.msra.mxu0 %v4976
        %6156 = vmatprep.subr.bf16.mxu0 %v4993
        %6157 = vmatpush1.bf16.msra.mxu0 %v4992
        %6158 = vmatprep.subr.bf16.mxu0 %v5009
        %6159 = vmatpush1.bf16.msra.mxu0 %v5008
        %6160 = vmatprep.subr.bf16.mxu0 %v5025
        %6161 = vmatpush1.bf16.msra.mxu0 %v5024
        %6162 = vmatprep.subr.bf16.mxu0 %v5041
        %6163 = vmatpush1.bf16.msra.mxu0 %v5040
        %6164 = vmatprep.subr.bf16.mxu0 %v5057
        %6165 = vmatpush1.bf16.msra.mxu0 %v5056
        %6166 = vmatprep.subr.bf16.mxu0 %v5073
        %6167 = vmatpush1.bf16.msra.mxu0 %v5072
        %6168 = vmatprep.subr.bf16.mxu0 %v5089
        %6169 = vmatpush1.bf16.msra.mxu0 %v5088
        %6170 = vmatprep.subr.bf16.mxu0 %v5105
        %6171 = vmatpush1.bf16.msra.mxu0 %v5104
        %6172 = vmatprep.mubr.bf16.mxu0 %v2775
        %6173 = vmatmul.mubr.bf16.gmra.mrb[0].mxu0 %v2774
        %v6174 = vpop.f32.mrb[0].mxu0
        %v6175 = vadd.f32 0.0, %v6174
        %v6176 = vpop.f32.mrb[0].mxu0
        %v6177 = vadd.f32 0.0, %v6176
        %v6178 = vpop.f32.mrb[0].mxu0
        %v6179 = vadd.f32 0.0, %v6178
        %v6180 = vpop.f32.mrb[0].mxu0
        %v6181 = vadd.f32 0.0, %v6180
        %6182 = vdwg.mxu0
        %6183 = vmatprep.subr.bf16.mxu0 %v5121
        %6184 = vmatpush1.bf16.msra.mxu0 %v5120
        %6185 = vmatprep.subr.bf16.mxu0 %v5137
        %6186 = vmatpush1.bf16.msra.mxu0 %v5136
        %6187 = vmatprep.subr.bf16.mxu0 %v5153
        %6188 = vmatpush1.bf16.msra.mxu0 %v5152
        %6189 = vmatprep.subr.bf16.mxu0 %v5169
        %6190 = vmatpush1.bf16.msra.mxu0 %v5168
        %6191 = vmatprep.subr.bf16.mxu0 %v5185
        %6192 = vmatpush1.bf16.msra.mxu0 %v5184
        %6193 = vmatprep.subr.bf16.mxu0 %v5201
        %6194 = vmatpush1.bf16.msra.mxu0 %v5200
        %6195 = vmatprep.subr.bf16.mxu0 %v5217
        %6196 = vmatpush1.bf16.msra.mxu0 %v5216
        %6197 = vmatprep.subr.bf16.mxu0 %v5233
        %6198 = vmatpush1.bf16.msra.mxu0 %v5232
        %6199 = vmatprep.subr.bf16.mxu0 %v5249
        %6200 = vmatpush1.bf16.msra.mxu0 %v5248
        %6201 = vmatprep.subr.bf16.mxu0 %v5265
        %6202 = vmatpush1.bf16.msra.mxu0 %v5264
        %6203 = vmatprep.subr.bf16.mxu0 %v5281
        %6204 = vmatpush1.bf16.msra.mxu0 %v5280
        %6205 = vmatprep.subr.bf16.mxu0 %v5297
        %6206 = vmatpush1.bf16.msra.mxu0 %v5296
        %6207 = vmatprep.subr.bf16.mxu0 %v5313
        %6208 = vmatpush1.bf16.msra.mxu0 %v5312
        %6209 = vmatprep.subr.bf16.mxu0 %v5329
        %6210 = vmatpush1.bf16.msra.mxu0 %v5328
        %6211 = vmatprep.subr.bf16.mxu0 %v5345
        %6212 = vmatpush1.bf16.msra.mxu0 %v5344
        %6213 = vmatprep.subr.bf16.mxu0 %v5361
        %6214 = vmatpush1.bf16.msra.mxu0 %v5360
        %6215 = vmatprep.mubr.bf16.mxu0 %v2777
        %6216 = vmatmul.mubr.bf16.gmra.mrb[0].mxu0 %v2776
        %v6217 = vpop.f32.mrb[0].mxu0
        %v6218 = vadd.f32 %v6175, %v6217
        %v6219 = vpop.f32.mrb[0].mxu0
        %v6220 = vadd.f32 %v6177, %v6219
        %v6221 = vpop.f32.mrb[0].mxu0
        %v6222 = vadd.f32 %v6179, %v6221
        %v6223 = vpop.f32.mrb[0].mxu0
        %v6224 = vadd.f32 %v6181, %v6223
        %6225 = vdwg.mxu0
        %6226 = vmatprep.subr.bf16.mxu0 %v4867
        %6227 = vmatpush1.bf16.msra.mxu0 %v4866
        %6228 = vmatprep.subr.bf16.mxu0 %v4883
        %6229 = vmatpush1.bf16.msra.mxu0 %v4882
        %6230 = vmatprep.subr.bf16.mxu0 %v4899
        %6231 = vmatpush1.bf16.msra.mxu0 %v4898
        %6232 = vmatprep.subr.bf16.mxu0 %v4915
        %6233 = vmatpush1.bf16.msra.mxu0 %v4914
        %6234 = vmatprep.subr.bf16.mxu0 %v4931
        %6235 = vmatpush1.bf16.msra.mxu0 %v4930
        %6236 = vmatprep.subr.bf16.mxu0 %v4947
        %6237 = vmatpush1.bf16.msra.mxu0 %v4946
        %6238 = vmatprep.subr.bf16.mxu0 %v4963
        %6239 = vmatpush1.bf16.msra.mxu0 %v4962
        %6240 = vmatprep.subr.bf16.mxu0 %v4979
        %6241 = vmatpush1.bf16.msra.mxu0 %v4978
        %6242 = vmatprep.subr.bf16.mxu0 %v4995
        %6243 = vmatpush1.bf16.msra.mxu0 %v4994
        %6244 = vmatprep.subr.bf16.mxu0 %v5011
        %6245 = vmatpush1.bf16.msra.mxu0 %v5010
        %6246 = vmatprep.subr.bf16.mxu0 %v5027
        %6247 = vmatpush1.bf16.msra.mxu0 %v5026
        %6248 = vmatprep.subr.bf16.mxu0 %v5043
        %6249 = vmatpush1.bf16.msra.mxu0 %v5042
        %6250 = vmatprep.subr.bf16.mxu0 %v5059
        %6251 = vmatpush1.bf16.msra.mxu0 %v5058
        %6252 = vmatprep.subr.bf16.mxu0 %v5075
        %6253 = vmatpush1.bf16.msra.mxu0 %v5074
        %6254 = vmatprep.subr.bf16.mxu0 %v5091
        %6255 = vmatpush1.bf16.msra.mxu0 %v5090
        %6256 = vmatprep.subr.bf16.mxu0 %v5107
        %6257 = vmatpush1.bf16.msra.mxu0 %v5106
        %6258 = vmatprep.mubr.bf16.mxu0 %v2775
        %6259 = vmatmul.mubr.bf16.gmra.mrb[0].mxu0 %v2774
        %v6260 = vpop.f32.mrb[0].mxu0
        %v6261 = vadd.f32 0.0, %v6260
        %v6262 = vpop.f32.mrb[0].mxu0
        %v6263 = vadd.f32 0.0, %v6262
        %v6264 = vpop.f32.mrb[0].mxu0
        %v6265 = vadd.f32 0.0, %v6264
        %v6266 = vpop.f32.mrb[0].mxu0
        %v6267 = vadd.f32 0.0, %v6266
        %6268 = vdwg.mxu0
        %6269 = vmatprep.subr.bf16.mxu0 %v5123
        %6270 = vmatpush1.bf16.msra.mxu0 %v5122
        %6271 = vmatprep.subr.bf16.mxu0 %v5139
        %6272 = vmatpush1.bf16.msra.mxu0 %v5138
        %6273 = vmatprep.subr.bf16.mxu0 %v5155
        %6274 = vmatpush1.bf16.msra.mxu0 %v5154
        %6275 = vmatprep.subr.bf16.mxu0 %v5171
        %6276 = vmatpush1.bf16.msra.mxu0 %v5170
        %6277 = vmatprep.subr.bf16.mxu0 %v5187
        %6278 = vmatpush1.bf16.msra.mxu0 %v5186
        %6279 = vmatprep.subr.bf16.mxu0 %v5203
        %6280 = vmatpush1.bf16.msra.mxu0 %v5202
        %6281 = vmatprep.subr.bf16.mxu0 %v5219
        %6282 = vmatpush1.bf16.msra.mxu0 %v5218
        %6283 = vmatprep.subr.bf16.mxu0 %v5235
        %6284 = vmatpush1.bf16.msra.mxu0 %v5234
        %6285 = vmatprep.subr.bf16.mxu0 %v5251
        %6286 = vmatpush1.bf16.msra.mxu0 %v5250
        %6287 = vmatprep.subr.bf16.mxu0 %v5267
        %6288 = vmatpush1.bf16.msra.mxu0 %v5266
        %6289 = vmatprep.subr.bf16.mxu0 %v5283
        %6290 = vmatpush1.bf16.msra.mxu0 %v5282
        %6291 = vmatprep.subr.bf16.mxu0 %v5299
        %6292 = vmatpush1.bf16.msra.mxu0 %v5298
        %6293 = vmatprep.subr.bf16.mxu0 %v5315
        %6294 = vmatpush1.bf16.msra.mxu0 %v5314
        %6295 = vmatprep.subr.bf16.mxu0 %v5331
        %6296 = vmatpush1.bf16.msra.mxu0 %v5330
        %6297 = vmatprep.subr.bf16.mxu0 %v5347
        %6298 = vmatpush1.bf16.msra.mxu0 %v5346
        %6299 = vmatprep.subr.bf16.mxu0 %v5363
        %6300 = vmatpush1.bf16.msra.mxu0 %v5362
        %6301 = vmatprep.mubr.bf16.mxu0 %v2777
        %6302 = vmatmul.mubr.bf16.gmra.mrb[0].mxu0 %v2776
        %v6303 = vpop.f32.mrb[0].mxu0
        %v6304 = vadd.f32 %v6261, %v6303
        %v6305 = vpop.f32.mrb[0].mxu0
        %v6306 = vadd.f32 %v6263, %v6305
        %v6307 = vpop.f32.mrb[0].mxu0
        %v6308 = vadd.f32 %v6265, %v6307
        %v6309 = vpop.f32.mrb[0].mxu0
        %v6310 = vadd.f32 %v6267, %v6309
        %6311 = vdwg.mxu0
        %6312 = vmatprep.subr.bf16.mxu0 %v4869
        %6313 = vmatpush1.bf16.msra.mxu0 %v4868
        %6314 = vmatprep.subr.bf16.mxu0 %v4885
        %6315 = vmatpush1.bf16.msra.mxu0 %v4884
        %6316 = vmatprep.subr.bf16.mxu0 %v4901
        %6317 = vmatpush1.bf16.msra.mxu0 %v4900
        %6318 = vmatprep.subr.bf16.mxu0 %v4917
        %6319 = vmatpush1.bf16.msra.mxu0 %v4916
        %6320 = vmatprep.subr.bf16.mxu0 %v4933
        %6321 = vmatpush1.bf16.msra.mxu0 %v4932
        %6322 = vmatprep.subr.bf16.mxu0 %v4949
        %6323 = vmatpush1.bf16.msra.mxu0 %v4948
        %6324 = vmatprep.subr.bf16.mxu0 %v4965
        %6325 = vmatpush1.bf16.msra.mxu0 %v4964
        %6326 = vmatprep.subr.bf16.mxu0 %v4981
        %6327 = vmatpush1.bf16.msra.mxu0 %v4980
        %6328 = vmatprep.subr.bf16.mxu0 %v4997
        %6329 = vmatpush1.bf16.msra.mxu0 %v4996
        %6330 = vmatprep.subr.bf16.mxu0 %v5013
        %6331 = vmatpush1.bf16.msra.mxu0 %v5012
        %6332 = vmatprep.subr.bf16.mxu0 %v5029
        %6333 = vmatpush1.bf16.msra.mxu0 %v5028
        %6334 = vmatprep.subr.bf16.mxu0 %v5045
        %6335 = vmatpush1.bf16.msra.mxu0 %v5044
        %6336 = vmatprep.subr.bf16.mxu0 %v5061
        %6337 = vmatpush1.bf16.msra.mxu0 %v5060
        %6338 = vmatprep.subr.bf16.mxu0 %v5077
        %6339 = vmatpush1.bf16.msra.mxu0 %v5076
        %6340 = vmatprep.subr.bf16.mxu0 %v5093
        %6341 = vmatpush1.bf16.msra.mxu0 %v5092
        %6342 = vmatprep.subr.bf16.mxu0 %v5109
        %6343 = vmatpush1.bf16.msra.mxu0 %v5108
        %6344 = vmatprep.mubr.bf16.mxu0 %v2775
        %6345 = vmatmul.mubr.bf16.gmra.mrb[0].mxu0 %v2774
        %v6346 = vpop.f32.mrb[0].mxu0
        %v6347 = vadd.f32 0.0, %v6346
        %v6348 = vpop.f32.mrb[0].mxu0
        %v6349 = vadd.f32 0.0, %v6348
        %v6350 = vpop.f32.mrb[0].mxu0
        %v6351 = vadd.f32 0.0, %v6350
        %v6352 = vpop.f32.mrb[0].mxu0
        %v6353 = vadd.f32 0.0, %v6352
        %6354 = vdwg.mxu0
        %6355 = vmatprep.subr.bf16.mxu0 %v5125
        %6356 = vmatpush1.bf16.msra.mxu0 %v5124
        %6357 = vmatprep.subr.bf16.mxu0 %v5141
        %6358 = vmatpush1.bf16.msra.mxu0 %v5140
        %6359 = vmatprep.subr.bf16.mxu0 %v5157
        %6360 = vmatpush1.bf16.msra.mxu0 %v5156
        %6361 = vmatprep.subr.bf16.mxu0 %v5173
        %6362 = vmatpush1.bf16.msra.mxu0 %v5172
        %6363 = vmatprep.subr.bf16.mxu0 %v5189
        %6364 = vmatpush1.bf16.msra.mxu0 %v5188
        %6365 = vmatprep.subr.bf16.mxu0 %v5205
        %6366 = vmatpush1.bf16.msra.mxu0 %v5204
        %6367 = vmatprep.subr.bf16.mxu0 %v5221
        %6368 = vmatpush1.bf16.msra.mxu0 %v5220
        %6369 = vmatprep.subr.bf16.mxu0 %v5237
        %6370 = vmatpush1.bf16.msra.mxu0 %v5236
        %6371 = vmatprep.subr.bf16.mxu0 %v5253
        %6372 = vmatpush1.bf16.msra.mxu0 %v5252
        %6373 = vmatprep.subr.bf16.mxu0 %v5269
        %6374 = vmatpush1.bf16.msra.mxu0 %v5268
        %6375 = vmatprep.subr.bf16.mxu0 %v5285
        %6376 = vmatpush1.bf16.msra.mxu0 %v5284
        %6377 = vmatprep.subr.bf16.mxu0 %v5301
        %6378 = vmatpush1.bf16.msra.mxu0 %v5300
        %6379 = vmatprep.subr.bf16.mxu0 %v5317
        %6380 = vmatpush1.bf16.msra.mxu0 %v5316
        %6381 = vmatprep.subr.bf16.mxu0 %v5333
        %6382 = vmatpush1.bf16.msra.mxu0 %v5332
        %6383 = vmatprep.subr.bf16.mxu0 %v5349
        %6384 = vmatpush1.bf16.msra.mxu0 %v5348
        %6385 = vmatprep.subr.bf16.mxu0 %v5365
        %6386 = vmatpush1.bf16.msra.mxu0 %v5364
        %6387 = vmatprep.mubr.bf16.mxu0 %v2777
        %6388 = vmatmul.mubr.bf16.gmra.mrb[0].mxu0 %v2776
        %v6389 = vpop.f32.mrb[0].mxu0
        %v6390 = vadd.f32 %v6347, %v6389
        %v6391 = vpop.f32.mrb[0].mxu0
        %v6392 = vadd.f32 %v6349, %v6391
        %v6393 = vpop.f32.mrb[0].mxu0
        %v6394 = vadd.f32 %v6351, %v6393
        %v6395 = vpop.f32.mrb[0].mxu0
        %v6396 = vadd.f32 %v6353, %v6395
        %6397 = vdwg.mxu0
        %6398 = vmatprep.subr.bf16.mxu0 %v4871
        %6399 = vmatpush1.bf16.msra.mxu0 %v4870
        %6400 = vmatprep.subr.bf16.mxu0 %v4887
        %6401 = vmatpush1.bf16.msra.mxu0 %v4886
        %6402 = vmatprep.subr.bf16.mxu0 %v4903
        %6403 = vmatpush1.bf16.msra.mxu0 %v4902
        %6404 = vmatprep.subr.bf16.mxu0 %v4919
        %6405 = vmatpush1.bf16.msra.mxu0 %v4918
        %6406 = vmatprep.subr.bf16.mxu0 %v4935
        %6407 = vmatpush1.bf16.msra.mxu0 %v4934
        %6408 = vmatprep.subr.bf16.mxu0 %v4951
        %6409 = vmatpush1.bf16.msra.mxu0 %v4950
        %6410 = vmatprep.subr.bf16.mxu0 %v4967
        %6411 = vmatpush1.bf16.msra.mxu0 %v4966
        %6412 = vmatprep.subr.bf16.mxu0 %v4983
        %6413 = vmatpush1.bf16.msra.mxu0 %v4982
        %6414 = vmatprep.subr.bf16.mxu0 %v4999
        %6415 = vmatpush1.bf16.msra.mxu0 %v4998
        %6416 = vmatprep.subr.bf16.mxu0 %v5015
        %6417 = vmatpush1.bf16.msra.mxu0 %v5014
        %6418 = vmatprep.subr.bf16.mxu0 %v5031
        %6419 = vmatpush1.bf16.msra.mxu0 %v5030
        %6420 = vmatprep.subr.bf16.mxu0 %v5047
        %6421 = vmatpush1.bf16.msra.mxu0 %v5046
        %6422 = vmatprep.subr.bf16.mxu0 %v5063
        %6423 = vmatpush1.bf16.msra.mxu0 %v5062
        %6424 = vmatprep.subr.bf16.mxu0 %v5079
        %6425 = vmatpush1.bf16.msra.mxu0 %v5078
        %6426 = vmatprep.subr.bf16.mxu0 %v5095
        %6427 = vmatpush1.bf16.msra.mxu0 %v5094
        %6428 = vmatprep.subr.bf16.mxu0 %v5111
        %6429 = vmatpush1.bf16.msra.mxu0 %v5110
        %6430 = vmatprep.mubr.bf16.mxu0 %v2775
        %6431 = vmatmul.mubr.bf16.gmra.mrb[0].mxu0 %v2774
        %v6432 = vpop.f32.mrb[0].mxu0
        %v6433 = vadd.f32 0.0, %v6432
        %v6434 = vpop.f32.mrb[0].mxu0
        %v6435 = vadd.f32 0.0, %v6434
        %v6436 = vpop.f32.mrb[0].mxu0
        %v6437 = vadd.f32 0.0, %v6436
        %v6438 = vpop.f32.mrb[0].mxu0
        %v6439 = vadd.f32 0.0, %v6438
        %6440 = vdwg.mxu0
        %6441 = vmatprep.subr.bf16.mxu0 %v5127
        %6442 = vmatpush1.bf16.msra.mxu0 %v5126
        %6443 = vmatprep.subr.bf16.mxu0 %v5143
        %6444 = vmatpush1.bf16.msra.mxu0 %v5142
        %6445 = vmatprep.subr.bf16.mxu0 %v5159
        %6446 = vmatpush1.bf16.msra.mxu0 %v5158
        %6447 = vmatprep.subr.bf16.mxu0 %v5175
        %6448 = vmatpush1.bf16.msra.mxu0 %v5174
        %6449 = vmatprep.subr.bf16.mxu0 %v5191
        %6450 = vmatpush1.bf16.msra.mxu0 %v5190
        %6451 = vmatprep.subr.bf16.mxu0 %v5207
        %6452 = vmatpush1.bf16.msra.mxu0 %v5206
        %6453 = vmatprep.subr.bf16.mxu0 %v5223
        %6454 = vmatpush1.bf16.msra.mxu0 %v5222
        %6455 = vmatprep.subr.bf16.mxu0 %v5239
        %6456 = vmatpush1.bf16.msra.mxu0 %v5238
        %6457 = vmatprep.subr.bf16.mxu0 %v5255
        %6458 = vmatpush1.bf16.msra.mxu0 %v5254
        %6459 = vmatprep.subr.bf16.mxu0 %v5271
        %6460 = vmatpush1.bf16.msra.mxu0 %v5270
        %6461 = vmatprep.subr.bf16.mxu0 %v5287
        %6462 = vmatpush1.bf16.msra.mxu0 %v5286
        %6463 = vmatprep.subr.bf16.mxu0 %v5303
        %6464 = vmatpush1.bf16.msra.mxu0 %v5302
        %6465 = vmatprep.subr.bf16.mxu0 %v5319
        %6466 = vmatpush1.bf16.msra.mxu0 %v5318
        %6467 = vmatprep.subr.bf16.mxu0 %v5335
        %6468 = vmatpush1.bf16.msra.mxu0 %v5334
        %6469 = vmatprep.subr.bf16.mxu0 %v5351
        %6470 = vmatpush1.bf16.msra.mxu0 %v5350
        %6471 = vmatprep.subr.bf16.mxu0 %v5367
        %6472 = vmatpush1.bf16.msra.mxu0 %v5366
        %6473 = vmatprep.mubr.bf16.mxu0 %v2777
        %6474 = vmatmul.mubr.bf16.gmra.mrb[0].mxu0 %v2776
        %v6475 = vpop.f32.mrb[0].mxu0
        %v6476 = vadd.f32 %v6433, %v6475
        %v6477 = vpop.f32.mrb[0].mxu0
        %v6478 = vadd.f32 %v6435, %v6477
        %v6479 = vpop.f32.mrb[0].mxu0
        %v6480 = vadd.f32 %v6437, %v6479
        %v6481 = vpop.f32.mrb[0].mxu0
        %v6482 = vadd.f32 %v6439, %v6481
        %6483 = vdwg.mxu0
        %6484 = vmatprep.subr.bf16.mxu0 %v4873
        %6485 = vmatpush1.bf16.msra.mxu0 %v4872
        %6486 = vmatprep.subr.bf16.mxu0 %v4889
        %6487 = vmatpush1.bf16.msra.mxu0 %v4888
        %6488 = vmatprep.subr.bf16.mxu0 %v4905
        %6489 = vmatpush1.bf16.msra.mxu0 %v4904
        %6490 = vmatprep.subr.bf16.mxu0 %v4921
        %6491 = vmatpush1.bf16.msra.mxu0 %v4920
        %6492 = vmatprep.subr.bf16.mxu0 %v4937
        %6493 = vmatpush1.bf16.msra.mxu0 %v4936
        %6494 = vmatprep.subr.bf16.mxu0 %v4953
        %6495 = vmatpush1.bf16.msra.mxu0 %v4952
        %6496 = vmatprep.subr.bf16.mxu0 %v4969
        %6497 = vmatpush1.bf16.msra.mxu0 %v4968
        %6498 = vmatprep.subr.bf16.mxu0 %v4985
        %6499 = vmatpush1.bf16.msra.mxu0 %v4984
        %6500 = vmatprep.subr.bf16.mxu0 %v5001
        %6501 = vmatpush1.bf16.msra.mxu0 %v5000
        %6502 = vmatprep.subr.bf16.mxu0 %v5017
        %6503 = vmatpush1.bf16.msra.mxu0 %v5016
        %6504 = vmatprep.subr.bf16.mxu0 %v5033
        %6505 = vmatpush1.bf16.msra.mxu0 %v5032
        %6506 = vmatprep.subr.bf16.mxu0 %v5049
        %6507 = vmatpush1.bf16.msra.mxu0 %v5048
        %6508 = vmatprep.subr.bf16.mxu0 %v5065
        %6509 = vmatpush1.bf16.msra.mxu0 %v5064
        %6510 = vmatprep.subr.bf16.mxu0 %v5081
        %6511 = vmatpush1.bf16.msra.mxu0 %v5080
        %6512 = vmatprep.subr.bf16.mxu0 %v5097
        %6513 = vmatpush1.bf16.msra.mxu0 %v5096
        %6514 = vmatprep.subr.bf16.mxu0 %v5113
        %6515 = vmatpush1.bf16.msra.mxu0 %v5112
        %6516 = vmatprep.mubr.bf16.mxu0 %v2775
        %6517 = vmatmul.mubr.bf16.gmra.mrb[0].mxu0 %v2774
        %v6518 = vpop.f32.mrb[0].mxu0
        %v6519 = vadd.f32 0.0, %v6518
        %v6520 = vpop.f32.mrb[0].mxu0
        %v6521 = vadd.f32 0.0, %v6520
        %v6522 = vpop.f32.mrb[0].mxu0
        %v6523 = vadd.f32 0.0, %v6522
        %v6524 = vpop.f32.mrb[0].mxu0
        %v6525 = vadd.f32 0.0, %v6524
        %6526 = vdwg.mxu0
        %6527 = vmatprep.subr.bf16.mxu0 %v5129
        %6528 = vmatpush1.bf16.msra.mxu0 %v5128
        %6529 = vmatprep.subr.bf16.mxu0 %v5145
        %6530 = vmatpush1.bf16.msra.mxu0 %v5144
        %6531 = vmatprep.subr.bf16.mxu0 %v5161
        %6532 = vmatpush1.bf16.msra.mxu0 %v5160
        %6533 = vmatprep.subr.bf16.mxu0 %v5177
        %6534 = vmatpush1.bf16.msra.mxu0 %v5176
        %6535 = vmatprep.subr.bf16.mxu0 %v5193
        %6536 = vmatpush1.bf16.msra.mxu0 %v5192
        %6537 = vmatprep.subr.bf16.mxu0 %v5209
        %6538 = vmatpush1.bf16.msra.mxu0 %v5208
        %6539 = vmatprep.subr.bf16.mxu0 %v5225
        %6540 = vmatpush1.bf16.msra.mxu0 %v5224
        %6541 = vmatprep.subr.bf16.mxu0 %v5241
        %6542 = vmatpush1.bf16.msra.mxu0 %v5240
        %6543 = vmatprep.subr.bf16.mxu0 %v5257
        %6544 = vmatpush1.bf16.msra.mxu0 %v5256
        %6545 = vmatprep.subr.bf16.mxu0 %v5273
        %6546 = vmatpush1.bf16.msra.mxu0 %v5272
        %6547 = vmatprep.subr.bf16.mxu0 %v5289
        %6548 = vmatpush1.bf16.msra.mxu0 %v5288
        %6549 = vmatprep.subr.bf16.mxu0 %v5305
        %6550 = vmatpush1.bf16.msra.mxu0 %v5304
        %6551 = vmatprep.subr.bf16.mxu0 %v5321
        %6552 = vmatpush1.bf16.msra.mxu0 %v5320
        %6553 = vmatprep.subr.bf16.mxu0 %v5337
        %6554 = vmatpush1.bf16.msra.mxu0 %v5336
        %6555 = vmatprep.subr.bf16.mxu0 %v5353
        %6556 = vmatpush1.bf16.msra.mxu0 %v5352
        %6557 = vmatprep.subr.bf16.mxu0 %v5369
        %6558 = vmatpush1.bf16.msra.mxu0 %v5368
        %6559 = vmatprep.mubr.bf16.mxu0 %v2777
        %6560 = vmatmul.mubr.bf16.gmra.mrb[0].mxu0 %v2776
        %v6561 = vpop.f32.mrb[0].mxu0
        %v6562 = vadd.f32 %v6519, %v6561
        %v6563 = vpop.f32.mrb[0].mxu0
        %v6564 = vadd.f32 %v6521, %v6563
        %v6565 = vpop.f32.mrb[0].mxu0
        %v6566 = vadd.f32 %v6523, %v6565
        %v6567 = vpop.f32.mrb[0].mxu0
        %v6568 = vadd.f32 %v6525, %v6567
        %6569 = vdwg.mxu0
        %v6570 = vadd.f32 %v2778, %v5960
        %v6571 = vadd.f32 %v2779, %v5962
        %v6572 = vadd.f32 %v2780, %v6046
        %v6573 = vadd.f32 %v2781, %v6048
        %v6574 = vadd.f32 %v2782, %v6132
        %v6575 = vadd.f32 %v2783, %v6134
        %v6576 = vadd.f32 %v2784, %v6218
        %v6577 = vadd.f32 %v2785, %v6220
        %v6578 = vadd.f32 %v2786, %v6304
        %v6579 = vadd.f32 %v2787, %v6306
        %v6580 = vadd.f32 %v2788, %v6390
        %v6581 = vadd.f32 %v2789, %v6392
        %v6582 = vadd.f32 %v2790, %v6476
        %v6583 = vadd.f32 %v2791, %v6478
        %v6584 = vadd.f32 %v2792, %v6562
        %v6585 = vadd.f32 %v2793, %v6564
        %v6586 = vadd.f32 %v2794, %v5964
        %v6587 = vadd.f32 %v2795, %v5966
        %v6588 = vadd.f32 %v2796, %v6050
        %v6589 = vadd.f32 %v2797, %v6052
        %v6590 = vadd.f32 %v2798, %v6136
        %v6591 = vadd.f32 %v2799, %v6138
        %v6592 = vadd.f32 %v2800, %v6222
        %v6593 = vadd.f32 %v2801, %v6224
        %v6594 = vadd.f32 %v2802, %v6308
        %v6595 = vadd.f32 %v2803, %v6310
        %v6596 = vadd.f32 %v2804, %v6394
        %v6597 = vadd.f32 %v2805, %v6396
        %v6598 = vadd.f32 %v2806, %v6480
        %v6599 = vadd.f32 %v2807, %v6482
        %v6600 = vadd.f32 %v2808, %v6566
        %v6601 = vadd.f32 %v2809, %v6568
        %6602 = vst [vmem:[#allocation3] sm:$0xff] %v6570
        %6603 = vst [vmem:[#allocation3 + $0x8] sm:$0xff] %v6571
        %6604 = vst [vmem:[#allocation3 + $0x10] sm:$0xff] %v6572
        %6605 = vst [vmem:[#allocation3 + $0x18] sm:$0xff] %v6573
        %6606 = vst [vmem:[#allocation3 + $0x20] sm:$0xff] %v6574
        %6607 = vst [vmem:[#allocation3 + $0x28] sm:$0xff] %v6575
        %6608 = vst [vmem:[#allocation3 + $0x30] sm:$0xff] %v6576
        %6609 = vst [vmem:[#allocation3 + $0x38] sm:$0xff] %v6577
        %6610 = vst [vmem:[#allocation3 + $0x40] sm:$0xff] %v6578
        %6611 = vst [vmem:[#allocation3 + $0x48] sm:$0xff] %v6579
        %6612 = vst [vmem:[#allocation3 + $0x50] sm:$0xff] %v6580
        %6613 = vst [vmem:[#allocation3 + $0x58] sm:$0xff] %v6581
        %6614 = vst [vmem:[#allocation3 + $0x60] sm:$0xff] %v6582
        %6615 = vst [vmem:[#allocation3 + $0x68] sm:$0xff] %v6583
        %6616 = vst [vmem:[#allocation3 + $0x70] sm:$0xff] %v6584
        %6617 = vst [vmem:[#allocation3 + $0x78] sm:$0xff] %v6585
        %6618 = vst [vmem:[#allocation3 + $0x80] sm:$0xff] %v6586
        %6619 = vst [vmem:[#allocation3 + $0x88] sm:$0xff] %v6587
        %6620 = vst [vmem:[#allocation3 + $0x90] sm:$0xff] %v6588
        %6621 = vst [vmem:[#allocation3 + $0x98] sm:$0xff] %v6589
        %6622 = vst [vmem:[#allocation3 + $0xa0] sm:$0xff] %v6590
        %6623 = vst [vmem:[#allocation3 + $0xa8] sm:$0xff] %v6591
        %6624 = vst [vmem:[#allocation3 + $0xb0] sm:$0xff] %v6592
        %6625 = vst [vmem:[#allocation3 + $0xb8] sm:$0xff] %v6593
        %6626 = vst [vmem:[#allocation3 + $0xc0] sm:$0xff] %v6594
        %6627 = vst [vmem:[#allocation3 + $0xc8] sm:$0xff] %v6595
        %6628 = vst [vmem:[#allocation3 + $0xd0] sm:$0xff] %v6596
        %6629 = vst [vmem:[#allocation3 + $0xd8] sm:$0xff] %v6597
        %6630 = vst [vmem:[#allocation3 + $0xe0] sm:$0xff] %v6598
        %6631 = vst [vmem:[#allocation3 + $0xe8] sm:$0xff] %v6599
        %6632 = vst [vmem:[#allocation3 + $0xf0] sm:$0xff] %v6600
        %6633 = vst [vmem:[#allocation3 + $0xf8] sm:$0xff] %v6601
        %p6634 = scmp.eq.s32.totalorder %s35, 3
        %p6635 = pnand %p667, %p6634
        %p6636 = pneg %p6635
        // Predicated region
        $region117: #{generator_forward.1} parent=83 // pred_check
          _
        $region118: #{generator_forward.1} parent=83 // pred_check_branch
          %6638 = sbr.rel (%p6635) target = $region120
        $region119: #{generator_forward.1} parent=83 // pred_region
          %v6639 = vld [vmem:[#allocation3] sm:$0xff]
          %v6640 = vld [vmem:[#allocation3 + $0x8] sm:$0xff]
          %v6641 = vld [vmem:[#allocation3 + $0x10] sm:$0xff]
          %v6642 = vld [vmem:[#allocation3 + $0x18] sm:$0xff]
          %v6643 = vld [vmem:[#allocation3 + $0x20] sm:$0xff]
          %v6644 = vld [vmem:[#allocation3 + $0x28] sm:$0xff]
          %v6645 = vld [vmem:[#allocation3 + $0x30] sm:$0xff]
          %v6646 = vld [vmem:[#allocation3 + $0x38] sm:$0xff]
          %v6647 = vld [vmem:[#allocation3 + $0x40] sm:$0xff]
          %v6648 = vld [vmem:[#allocation3 + $0x48] sm:$0xff]
          %v6649 = vld [vmem:[#allocation3 + $0x50] sm:$0xff]
          %v6650 = vld [vmem:[#allocation3 + $0x58] sm:$0xff]
          %v6651 = vld [vmem:[#allocation3 + $0x60] sm:$0xff]
          %v6652 = vld [vmem:[#allocation3 + $0x68] sm:$0xff]
          %v6653 = vld [vmem:[#allocation3 + $0x70] sm:$0xff]
          %v6654 = vld [vmem:[#allocation3 + $0x78] sm:$0xff]
          %v6655 = vld [vmem:[#allocation3 + $0x80] sm:$0xff]
          %v6656 = vld [vmem:[#allocation3 + $0x88] sm:$0xff]
          %v6657 = vld [vmem:[#allocation3 + $0x90] sm:$0xff]
          %v6658 = vld [vmem:[#allocation3 + $0x98] sm:$0xff]
          %v6659 = vld [vmem:[#allocation3 + $0xa0] sm:$0xff]
          %v6660 = vld [vmem:[#allocation3 + $0xa8] sm:$0xff]
          %v6661 = vld [vmem:[#allocation3 + $0xb0] sm:$0xff]
          %v6662 = vld [vmem:[#allocation3 + $0xb8] sm:$0xff]
          %v6663 = vld [vmem:[#allocation3 + $0xc0] sm:$0xff]
          %v6664 = vld [vmem:[#allocation3 + $0xc8] sm:$0xff]
          %v6665 = vld [vmem:[#allocation3 + $0xd0] sm:$0xff]
          %v6666 = vld [vmem:[#allocation3 + $0xd8] sm:$0xff]
          %v6667 = vld [vmem:[#allocation3 + $0xe0] sm:$0xff]
          %v6668 = vld [vmem:[#allocation3 + $0xe8] sm:$0xff]
          %v6669 = vld [vmem:[#allocation3 + $0xf0] sm:$0xff]
          %v6670 = vld [vmem:[#allocation3 + $0xf8] sm:$0xff]
          %v6671 = vld [vmem:[%s655] sm:$0xff]
          %v6672 = vld [vmem:[%s655 + $0x8] sm:$0xff]
          %v6675 = vlaneseq
          %v6676 = vshrl.u32 %v6675, 7
          %v6677 = vsub.s32 0, %v6676
          %v6678 = vrot.slane %v6671, %v6677
          %v6679 = vlaneseq
          %v6680 = vshrl.u32 %v6679, 7
          %v6681 = vsub.s32 1, %v6680
          %v6682 = vrot.slane %v6671, %v6681
          %v6683 = vlaneseq
          %v6684 = vshrl.u32 %v6683, 7
          %v6685 = vsub.s32 2, %v6684
          %v6686 = vrot.slane %v6671, %v6685
          %v6687 = vlaneseq
          %v6688 = vshrl.u32 %v6687, 7
          %v6689 = vsub.s32 3, %v6688
          %v6690 = vrot.slane %v6671, %v6689
          %v6691 = vlaneseq
          %v6692 = vshrl.u32 %v6691, 7
          %v6693 = vsub.s32 4, %v6692
          %v6694 = vrot.slane %v6671, %v6693
          %v6695 = vlaneseq
          %v6696 = vshrl.u32 %v6695, 7
          %v6697 = vsub.s32 5, %v6696
          %v6698 = vrot.slane %v6671, %v6697
          %v6699 = vlaneseq
          %v6700 = vshrl.u32 %v6699, 7
          %v6701 = vsub.s32 6, %v6700
          %v6702 = vrot.slane %v6671, %v6701
          %v6703 = vlaneseq
          %v6704 = vshrl.u32 %v6703, 7
          %v6705 = vsub.s32 7, %v6704
          %v6706 = vrot.slane %v6671, %v6705
          %v6707 = vlaneseq
          %v6708 = vshrl.u32 %v6707, 7
          %v6709 = vsub.s32 0, %v6708
          %v6710 = vrot.slane %v6672, %v6709
          %v6711 = vlaneseq
          %v6712 = vshrl.u32 %v6711, 7
          %v6713 = vsub.s32 1, %v6712
          %v6714 = vrot.slane %v6672, %v6713
          %v6715 = vlaneseq
          %v6716 = vshrl.u32 %v6715, 7
          %v6717 = vsub.s32 2, %v6716
          %v6718 = vrot.slane %v6672, %v6717
          %v6719 = vlaneseq
          %v6720 = vshrl.u32 %v6719, 7
          %v6721 = vsub.s32 3, %v6720
          %v6722 = vrot.slane %v6672, %v6721
          %v6723 = vlaneseq
          %v6724 = vshrl.u32 %v6723, 7
          %v6725 = vsub.s32 4, %v6724
          %v6726 = vrot.slane %v6672, %v6725
          %v6727 = vlaneseq
          %v6728 = vshrl.u32 %v6727, 7
          %v6729 = vsub.s32 5, %v6728
          %v6730 = vrot.slane %v6672, %v6729
          %v6731 = vlaneseq
          %v6732 = vshrl.u32 %v6731, 7
          %v6733 = vsub.s32 6, %v6732
          %v6734 = vrot.slane %v6672, %v6733
          %v6735 = vlaneseq
          %v6736 = vshrl.u32 %v6735, 7
          %v6737 = vsub.s32 7, %v6736
          %v6738 = vrot.slane %v6672, %v6737
          %v6755 = vadd.f32 %v6639, %v6678
          %v6756 = vadd.f32 %v6640, %v6682
          %v6757 = vadd.f32 %v6641, %v6686
          %v6758 = vadd.f32 %v6642, %v6690
          %v6759 = vadd.f32 %v6643, %v6694
          %v6760 = vadd.f32 %v6644, %v6698
          %v6761 = vadd.f32 %v6645, %v6702
          %v6762 = vadd.f32 %v6646, %v6706
          %v6763 = vadd.f32 %v6647, %v6710
          %v6764 = vadd.f32 %v6648, %v6714
          %v6765 = vadd.f32 %v6649, %v6718
          %v6766 = vadd.f32 %v6650, %v6722
          %v6767 = vadd.f32 %v6651, %v6726
          %v6768 = vadd.f32 %v6652, %v6730
          %v6769 = vadd.f32 %v6653, %v6734
          %v6770 = vadd.f32 %v6654, %v6738
          %v6771 = vadd.f32 %v6655, %v6678
          %v6772 = vadd.f32 %v6656, %v6682
          %v6773 = vadd.f32 %v6657, %v6686
          %v6774 = vadd.f32 %v6658, %v6690
          %v6775 = vadd.f32 %v6659, %v6694
          %v6776 = vadd.f32 %v6660, %v6698
          %v6777 = vadd.f32 %v6661, %v6702
          %v6778 = vadd.f32 %v6662, %v6706
          %v6779 = vadd.f32 %v6663, %v6710
          %v6780 = vadd.f32 %v6664, %v6714
          %v6781 = vadd.f32 %v6665, %v6718
          %v6782 = vadd.f32 %v6666, %v6722
          %v6783 = vadd.f32 %v6667, %v6726
          %v6784 = vadd.f32 %v6668, %v6730
          %v6785 = vadd.f32 %v6669, %v6734
          %v6786 = vadd.f32 %v6670, %v6738
          %v6787 = vld [vmem:[%s660] sm:$0xff]
          %v6788 = vld [vmem:[%s660 + $0x8] sm:$0xff]
          %v6789 = vld [vmem:[%s665] sm:$0xff]
          %v6790 = vld [vmem:[%s665 + $0x8] sm:$0xff]
          %v6791 = vld [vmem:[%s1] sm:$0xff]
          %v6792 = vld [vmem:[%s1 + $0x8] sm:$0xff]
          %v6793 = vadd.f32 %v6755, %v6756
          %v6794 = vadd.f32 %v6793, %v6757
          %v6795 = vadd.f32 %v6794, %v6758
          %v6796 = vadd.f32 %v6795, %v6759
          %v6797 = vadd.f32 %v6796, %v6760
          %v6798 = vadd.f32 %v6797, %v6761
          %v6799 = vadd.f32 %v6798, %v6762
          %v6800 = vadd.f32 %v6799, %v6763
          %v6801 = vadd.f32 %v6800, %v6764
          %v6802 = vadd.f32 %v6801, %v6765
          %v6803 = vadd.f32 %v6802, %v6766
          %v6804 = vadd.f32 %v6803, %v6767
          %v6805 = vadd.f32 %v6804, %v6768
          %v6806 = vadd.f32 %v6805, %v6769
          %v6807 = vadd.f32 %v6806, %v6770
          %6808 = vadd.xlane.f32.xlu0 %v6807
          %v6809 = vpop.xlane.xlu0 %6808
          %v6810 = vadd.f32 %v6771, %v6772
          %v6811 = vadd.f32 %v6810, %v6773
          %v6812 = vadd.f32 %v6811, %v6774
          %v6813 = vadd.f32 %v6812, %v6775
          %v6814 = vadd.f32 %v6813, %v6776
          %v6815 = vadd.f32 %v6814, %v6777
          %v6816 = vadd.f32 %v6815, %v6778
          %v6817 = vadd.f32 %v6816, %v6779
          %v6818 = vadd.f32 %v6817, %v6780
          %v6819 = vadd.f32 %v6818, %v6781
          %v6820 = vadd.f32 %v6819, %v6782
          %v6821 = vadd.f32 %v6820, %v6783
          %v6822 = vadd.f32 %v6821, %v6784
          %v6823 = vadd.f32 %v6822, %v6785
          %v6824 = vadd.f32 %v6823, %v6786
          %6825 = vadd.xlane.f32.xlu0 %v6824
          %v6826 = vpop.xlane.xlu0 %6825
          %vm6827 = vcmask 130048
          %v6829 = vsel %vm6827, %v6791, 0
          %v6832 = vsel %vm6827, %v6792, 0
          %6834 = vmatprep.subr.mxu0 0.0
          %6835 = vmatpush1.msra.mxu0 %v6809
          %6836 = vmatprep.subr.mxu0 0.0
          %6837 = vmatpush1.msra.mxu0 %v6826
          %6838 = vmatprep.subr.mxu0 0.0
          %6839 = vmatpush1.msra.mxu0 0.0
          %6840 = vmatprep.subr.mxu0 0.0
          %6841 = vmatpush1.msra.mxu0 0.0
          %6842 = vmatprep.subr.mxu0 0.0
          %6843 = vmatpush1.msra.mxu0 0.0
          %6844 = vmatprep.subr.mxu0 0.0
          %6845 = vmatpush1.msra.mxu0 0.0
          %6846 = vmatprep.subr.mxu0 0.0
          %6847 = vmatpush1.msra.mxu0 0.0
          %6848 = vmatprep.subr.mxu0 0.0
          %6849 = vmatpush1.msra.mxu0 0.0
          %6850 = vmatprep.subr.mxu0 0.0
          %6851 = vmatpush1.msra.mxu0 0.0
          %6852 = vmatprep.subr.mxu0 0.0
          %6853 = vmatpush1.msra.mxu0 0.0
          %6854 = vmatprep.subr.mxu0 0.0
          %6855 = vmatpush1.msra.mxu0 0.0
          %6856 = vmatprep.subr.mxu0 0.0
          %6857 = vmatpush1.msra.mxu0 0.0
          %6858 = vmatprep.subr.mxu0 0.0
          %6859 = vmatpush1.msra.mxu0 0.0
          %6860 = vmatprep.subr.mxu0 0.0
          %6861 = vmatpush1.msra.mxu0 0.0
          %6862 = vmatprep.subr.mxu0 0.0
          %6863 = vmatpush1.msra.mxu0 0.0
          %6864 = vmatprep.subr.mxu0 0.0
          %6865 = vmatpush1.msra.mxu0 0.0
          %6866 = vmatprep.subr.mxu0 0.0
          %6867 = vmatpush1.msra.mxu0 0.0
          %6868 = vmatprep.subr.mxu0 0.0
          %6869 = vmatpush1.msra.mxu0 0.0
          %6870 = vmatprep.subr.mxu0 0.0
          %6871 = vmatpush1.msra.mxu0 0.0
          %6872 = vmatprep.subr.mxu0 0.0
          %6873 = vmatpush1.msra.mxu0 0.0
          %6874 = vmatprep.subr.mxu0 0.0
          %6875 = vmatpush1.msra.mxu0 0.0
          %6876 = vmatprep.subr.mxu0 0.0
          %6877 = vmatpush1.msra.mxu0 0.0
          %6878 = vmatprep.subr.mxu0 0.0
          %6879 = vmatpush1.msra.mxu0 0.0
          %6880 = vmatprep.subr.mxu0 0.0
          %6881 = vmatpush1.msra.mxu0 0.0
          %6882 = vmatprep.subr.mxu0 0.0
          %6883 = vmatpush1.msra.mxu0 0.0
          %6884 = vmatprep.subr.mxu0 0.0
          %6885 = vmatpush1.msra.mxu0 0.0
          %6886 = vmatprep.subr.mxu0 0.0
          %6887 = vmatpush1.msra.mxu0 0.0
          %6888 = vmatprep.subr.mxu0 0.0
          %6889 = vmatpush1.msra.mxu0 0.0
          %6890 = vmatprep.subr.mxu0 0.0
          %6891 = vmatpush1.msra.mxu0 0.0
          %6892 = vmatprep.subr.mxu0 0.0
          %6893 = vmatpush1.msra.mxu0 0.0
          %6894 = vmatprep.subr.mxu0 0.0
          %6895 = vmatpush1.msra.mxu0 0.0
          %6896 = vmatprep.subr.mxu0 0.0
          %6897 = vmatpush1.msra.mxu0 0.0
          %6898 = vmatprep.mubr.f32.mxu0 0.0
          %6899 = vmatmul.mubr.f32.gmra.mrb[0].mxu0 %v6829
          %v6900 = vpop.f32.mrb[0].mxu0
          %v6901 = vadd.f32 0.0, %v6900
          %v6902 = vpop.f32.mrb[0].mxu0
          %6903 = vmatprep.mubr.f32.mxu0 0.0
          %6904 = vmatmul.mubr.f32.gmra.mrb[0].mxu0 %v6832
          %v6905 = vpop.f32.mrb[0].mxu0
          %v6906 = vadd.f32 0.0, %v6905
          %v6907 = vpop.f32.mrb[0].mxu0
          %6908 = vdwg.mxu0
          %v6909 = vmul.f32 %v6901, 0.00024414063
          %v6910 = vmul.f32 %v6906, 0.00024414063
          %6912 = vset.pattern.permute.xlu0 0
          %6913 = vperm.xlu0 %6912, %v6909
          %v6914 = vpop.permute.xlu0 %6913
          %6917 = vset.pattern.permute.xlu0 0
          %6918 = vperm.xlu0 %6917, %v6910
          %v6919 = vpop.permute.xlu0 %6918
          %v6921 = vsub.f32 %v6755, %v6914
          %v6922 = vsub.f32 %v6756, %v6914
          %v6923 = vsub.f32 %v6757, %v6914
          %v6924 = vsub.f32 %v6758, %v6914
          %v6925 = vsub.f32 %v6759, %v6914
          %v6926 = vsub.f32 %v6760, %v6914
          %v6927 = vsub.f32 %v6761, %v6914
          %v6928 = vsub.f32 %v6762, %v6914
          %v6929 = vsub.f32 %v6763, %v6914
          %v6930 = vsub.f32 %v6764, %v6914
          %v6931 = vsub.f32 %v6765, %v6914
          %v6932 = vsub.f32 %v6766, %v6914
          %v6933 = vsub.f32 %v6767, %v6914
          %v6934 = vsub.f32 %v6768, %v6914
          %v6935 = vsub.f32 %v6769, %v6914
          %v6936 = vsub.f32 %v6770, %v6914
          %v6937 = vsub.f32 %v6771, %v6919
          %v6938 = vsub.f32 %v6772, %v6919
          %v6939 = vsub.f32 %v6773, %v6919
          %v6940 = vsub.f32 %v6774, %v6919
          %v6941 = vsub.f32 %v6775, %v6919
          %v6942 = vsub.f32 %v6776, %v6919
          %v6943 = vsub.f32 %v6777, %v6919
          %v6944 = vsub.f32 %v6778, %v6919
          %v6945 = vsub.f32 %v6779, %v6919
          %v6946 = vsub.f32 %v6780, %v6919
          %v6947 = vsub.f32 %v6781, %v6919
          %v6948 = vsub.f32 %v6782, %v6919
          %v6949 = vsub.f32 %v6783, %v6919
          %v6950 = vsub.f32 %v6784, %v6919
          %v6951 = vsub.f32 %v6785, %v6919
          %v6952 = vsub.f32 %v6786, %v6919
          %v6953 = vmul.f32 %v6921, %v6921
          %v6954 = vmul.f32 %v6922, %v6922
          %v6955 = vmul.f32 %v6923, %v6923
          %v6956 = vmul.f32 %v6924, %v6924
          %v6957 = vmul.f32 %v6925, %v6925
          %v6958 = vmul.f32 %v6926, %v6926
          %v6959 = vmul.f32 %v6927, %v6927
          %v6960 = vmul.f32 %v6928, %v6928
          %v6961 = vmul.f32 %v6929, %v6929
          %v6962 = vmul.f32 %v6930, %v6930
          %v6963 = vmul.f32 %v6931, %v6931
          %v6964 = vmul.f32 %v6932, %v6932
          %v6965 = vmul.f32 %v6933, %v6933
          %v6966 = vmul.f32 %v6934, %v6934
          %v6967 = vmul.f32 %v6935, %v6935
          %v6968 = vmul.f32 %v6936, %v6936
          %v6969 = vmul.f32 %v6937, %v6937
          %v6970 = vmul.f32 %v6938, %v6938
          %v6971 = vmul.f32 %v6939, %v6939
          %v6972 = vmul.f32 %v6940, %v6940
          %v6973 = vmul.f32 %v6941, %v6941
          %v6974 = vmul.f32 %v6942, %v6942
          %v6975 = vmul.f32 %v6943, %v6943
          %v6976 = vmul.f32 %v6944, %v6944
          %v6977 = vmul.f32 %v6945, %v6945
          %v6978 = vmul.f32 %v6946, %v6946
          %v6979 = vmul.f32 %v6947, %v6947
          %v6980 = vmul.f32 %v6948, %v6948
          %v6981 = vmul.f32 %v6949, %v6949
          %v6982 = vmul.f32 %v6950, %v6950
          %v6983 = vmul.f32 %v6951, %v6951
          %v6984 = vmul.f32 %v6952, %v6952
          %v6985 = vadd.f32 %v6953, %v6954
          %v6986 = vadd.f32 %v6985, %v6955
          %v6987 = vadd.f32 %v6986, %v6956
          %v6988 = vadd.f32 %v6987, %v6957
          %v6989 = vadd.f32 %v6988, %v6958
          %v6990 = vadd.f32 %v6989, %v6959
          %v6991 = vadd.f32 %v6990, %v6960
          %v6992 = vadd.f32 %v6991, %v6961
          %v6993 = vadd.f32 %v6992, %v6962
          %v6994 = vadd.f32 %v6993, %v6963
          %v6995 = vadd.f32 %v6994, %v6964
          %v6996 = vadd.f32 %v6995, %v6965
          %v6997 = vadd.f32 %v6996, %v6966
          %v6998 = vadd.f32 %v6997, %v6967
          %v6999 = vadd.f32 %v6998, %v6968
          %7000 = vadd.xlane.f32.xlu0 %v6999
          %v7001 = vpop.xlane.xlu0 %7000
          %v7002 = vadd.f32 %v6969, %v6970
          %v7003 = vadd.f32 %v7002, %v6971
          %v7004 = vadd.f32 %v7003, %v6972
          %v7005 = vadd.f32 %v7004, %v6973
          %v7006 = vadd.f32 %v7005, %v6974
          %v7007 = vadd.f32 %v7006, %v6975
          %v7008 = vadd.f32 %v7007, %v6976
          %v7009 = vadd.f32 %v7008, %v6977
          %v7010 = vadd.f32 %v7009, %v6978
          %v7011 = vadd.f32 %v7010, %v6979
          %v7012 = vadd.f32 %v7011, %v6980
          %v7013 = vadd.f32 %v7012, %v6981
          %v7014 = vadd.f32 %v7013, %v6982
          %v7015 = vadd.f32 %v7014, %v6983
          %v7016 = vadd.f32 %v7015, %v6984
          %7017 = vadd.xlane.f32.xlu0 %v7016
          %v7018 = vpop.xlane.xlu0 %7017
          %7019 = vmatprep.subr.mxu0 0.0
          %7020 = vmatpush1.msra.mxu0 %v7001
          %7021 = vmatprep.subr.mxu0 0.0
          %7022 = vmatpush1.msra.mxu0 %v7018
          %7023 = vmatprep.subr.mxu0 0.0
          %7024 = vmatpush1.msra.mxu0 0.0
          %7025 = vmatprep.subr.mxu0 0.0
          %7026 = vmatpush1.msra.mxu0 0.0
          %7027 = vmatprep.subr.mxu0 0.0
          %7028 = vmatpush1.msra.mxu0 0.0
          %7029 = vmatprep.subr.mxu0 0.0
          %7030 = vmatpush1.msra.mxu0 0.0
          %7031 = vmatprep.subr.mxu0 0.0
          %7032 = vmatpush1.msra.mxu0 0.0
          %7033 = vmatprep.subr.mxu0 0.0
          %7034 = vmatpush1.msra.mxu0 0.0
          %7035 = vmatprep.subr.mxu0 0.0
          %7036 = vmatpush1.msra.mxu0 0.0
          %7037 = vmatprep.subr.mxu0 0.0
          %7038 = vmatpush1.msra.mxu0 0.0
          %7039 = vmatprep.subr.mxu0 0.0
          %7040 = vmatpush1.msra.mxu0 0.0
          %7041 = vmatprep.subr.mxu0 0.0
          %7042 = vmatpush1.msra.mxu0 0.0
          %7043 = vmatprep.subr.mxu0 0.0
          %7044 = vmatpush1.msra.mxu0 0.0
          %7045 = vmatprep.subr.mxu0 0.0
          %7046 = vmatpush1.msra.mxu0 0.0
          %7047 = vmatprep.subr.mxu0 0.0
          %7048 = vmatpush1.msra.mxu0 0.0
          %7049 = vmatprep.subr.mxu0 0.0
          %7050 = vmatpush1.msra.mxu0 0.0
          %7051 = vmatprep.subr.mxu0 0.0
          %7052 = vmatpush1.msra.mxu0 0.0
          %7053 = vmatprep.subr.mxu0 0.0
          %7054 = vmatpush1.msra.mxu0 0.0
          %7055 = vmatprep.subr.mxu0 0.0
          %7056 = vmatpush1.msra.mxu0 0.0
          %7057 = vmatprep.subr.mxu0 0.0
          %7058 = vmatpush1.msra.mxu0 0.0
          %7059 = vmatprep.subr.mxu0 0.0
          %7060 = vmatpush1.msra.mxu0 0.0
          %7061 = vmatprep.subr.mxu0 0.0
          %7062 = vmatpush1.msra.mxu0 0.0
          %7063 = vmatprep.subr.mxu0 0.0
          %7064 = vmatpush1.msra.mxu0 0.0
          %7065 = vmatprep.subr.mxu0 0.0
          %7066 = vmatpush1.msra.mxu0 0.0
          %7067 = vmatprep.subr.mxu0 0.0
          %7068 = vmatpush1.msra.mxu0 0.0
          %7069 = vmatprep.subr.mxu0 0.0
          %7070 = vmatpush1.msra.mxu0 0.0
          %7071 = vmatprep.subr.mxu0 0.0
          %7072 = vmatpush1.msra.mxu0 0.0
          %7073 = vmatprep.subr.mxu0 0.0
          %7074 = vmatpush1.msra.mxu0 0.0
          %7075 = vmatprep.subr.mxu0 0.0
          %7076 = vmatpush1.msra.mxu0 0.0
          %7077 = vmatprep.subr.mxu0 0.0
          %7078 = vmatpush1.msra.mxu0 0.0
          %7079 = vmatprep.subr.mxu0 0.0
          %7080 = vmatpush1.msra.mxu0 0.0
          %7081 = vmatprep.subr.mxu0 0.0
          %7082 = vmatpush1.msra.mxu0 0.0
          %7083 = vmatprep.mubr.f32.mxu0 0.0
          %7084 = vmatmul.mubr.f32.gmra.mrb[0].mxu0 %v6829
          %v7085 = vpop.f32.mrb[0].mxu0
          %v7086 = vadd.f32 0.0, %v7085
          %v7087 = vpop.f32.mrb[0].mxu0
          %7088 = vmatprep.mubr.f32.mxu0 0.0
          %7089 = vmatmul.mubr.f32.gmra.mrb[0].mxu0 %v6832
          %v7090 = vpop.f32.mrb[0].mxu0
          %v7091 = vadd.f32 0.0, %v7090
          %v7092 = vpop.f32.mrb[0].mxu0
          %7093 = vdwg.mxu0
          %v7094 = vmul.f32 %v7086, 0.00024414063
          %v7095 = vmul.f32 %v7091, 0.00024414063
          %v7096 = vadd.f32 %v7094, 1e-05
          %v7097 = vadd.f32 %v7095, 1e-05
          %v7098 = vrsqrt.pop %v7096
          %v7099 = vrsqrt.pop %v7097
          %7101 = vset.pattern.permute.xlu0 0
          %7102 = vperm.xlu0 %7101, %v7098
          %v7103 = vpop.permute.xlu0 %7102
          %7106 = vset.pattern.permute.xlu0 0
          %7107 = vperm.xlu0 %7106, %v7099
          %v7108 = vpop.permute.xlu0 %7107
          %v7110 = vmul.f32 %v6921, %v7103
          %v7111 = vmul.f32 %v6922, %v7103
          %v7112 = vmul.f32 %v6923, %v7103
          %v7113 = vmul.f32 %v6924, %v7103
          %v7114 = vmul.f32 %v6925, %v7103
          %v7115 = vmul.f32 %v6926, %v7103
          %v7116 = vmul.f32 %v6927, %v7103
          %v7117 = vmul.f32 %v6928, %v7103
          %v7118 = vmul.f32 %v6929, %v7103
          %v7119 = vmul.f32 %v6930, %v7103
          %v7120 = vmul.f32 %v6931, %v7103
          %v7121 = vmul.f32 %v6932, %v7103
          %v7122 = vmul.f32 %v6933, %v7103
          %v7123 = vmul.f32 %v6934, %v7103
          %v7124 = vmul.f32 %v6935, %v7103
          %v7125 = vmul.f32 %v6936, %v7103
          %v7126 = vmul.f32 %v6937, %v7108
          %v7127 = vmul.f32 %v6938, %v7108
          %v7128 = vmul.f32 %v6939, %v7108
          %v7129 = vmul.f32 %v6940, %v7108
          %v7130 = vmul.f32 %v6941, %v7108
          %v7131 = vmul.f32 %v6942, %v7108
          %v7132 = vmul.f32 %v6943, %v7108
          %v7133 = vmul.f32 %v6944, %v7108
          %v7134 = vmul.f32 %v6945, %v7108
          %v7135 = vmul.f32 %v6946, %v7108
          %v7136 = vmul.f32 %v6947, %v7108
          %v7137 = vmul.f32 %v6948, %v7108
          %v7138 = vmul.f32 %v6949, %v7108
          %v7139 = vmul.f32 %v6950, %v7108
          %v7140 = vmul.f32 %v6951, %v7108
          %v7141 = vmul.f32 %v6952, %v7108
          %7143 = vset.pattern.permute.xlu0 0
          %7144 = vperm.xlu0 %7143, %v6787
          %v7145 = vpop.permute.xlu0 %7144
          %7148 = vset.pattern.permute.xlu0 0
          %7149 = vperm.xlu0 %7148, %v6788
          %v7150 = vpop.permute.xlu0 %7149
          %v7152 = vmul.f32 %v7110, %v7145
          %v7153 = vmul.f32 %v7111, %v7145
          %v7154 = vmul.f32 %v7112, %v7145
          %v7155 = vmul.f32 %v7113, %v7145
          %v7156 = vmul.f32 %v7114, %v7145
          %v7157 = vmul.f32 %v7115, %v7145
          %v7158 = vmul.f32 %v7116, %v7145
          %v7159 = vmul.f32 %v7117, %v7145
          %v7160 = vmul.f32 %v7118, %v7145
          %v7161 = vmul.f32 %v7119, %v7145
          %v7162 = vmul.f32 %v7120, %v7145
          %v7163 = vmul.f32 %v7121, %v7145
          %v7164 = vmul.f32 %v7122, %v7145
          %v7165 = vmul.f32 %v7123, %v7145
          %v7166 = vmul.f32 %v7124, %v7145
          %v7167 = vmul.f32 %v7125, %v7145
          %v7168 = vmul.f32 %v7126, %v7150
          %v7169 = vmul.f32 %v7127, %v7150
          %v7170 = vmul.f32 %v7128, %v7150
          %v7171 = vmul.f32 %v7129, %v7150
          %v7172 = vmul.f32 %v7130, %v7150
          %v7173 = vmul.f32 %v7131, %v7150
          %v7174 = vmul.f32 %v7132, %v7150
          %v7175 = vmul.f32 %v7133, %v7150
          %v7176 = vmul.f32 %v7134, %v7150
          %v7177 = vmul.f32 %v7135, %v7150
          %v7178 = vmul.f32 %v7136, %v7150
          %v7179 = vmul.f32 %v7137, %v7150
          %v7180 = vmul.f32 %v7138, %v7150
          %v7181 = vmul.f32 %v7139, %v7150
          %v7182 = vmul.f32 %v7140, %v7150
          %v7183 = vmul.f32 %v7141, %v7150
          %7185 = vset.pattern.permute.xlu0 0
          %7186 = vperm.xlu0 %7185, %v6789
          %v7187 = vpop.permute.xlu0 %7186
          %7190 = vset.pattern.permute.xlu0 0
          %7191 = vperm.xlu0 %7190, %v6790
          %v7192 = vpop.permute.xlu0 %7191
          %v7194 = vadd.f32 %v7152, %v7187
          %v7195 = vadd.f32 %v7153, %v7187
          %v7196 = vadd.f32 %v7154, %v7187
          %v7197 = vadd.f32 %v7155, %v7187
          %v7198 = vadd.f32 %v7156, %v7187
          %v7199 = vadd.f32 %v7157, %v7187
          %v7200 = vadd.f32 %v7158, %v7187
          %v7201 = vadd.f32 %v7159, %v7187
          %v7202 = vadd.f32 %v7160, %v7187
          %v7203 = vadd.f32 %v7161, %v7187
          %v7204 = vadd.f32 %v7162, %v7187
          %v7205 = vadd.f32 %v7163, %v7187
          %v7206 = vadd.f32 %v7164, %v7187
          %v7207 = vadd.f32 %v7165, %v7187
          %v7208 = vadd.f32 %v7166, %v7187
          %v7209 = vadd.f32 %v7167, %v7187
          %v7210 = vadd.f32 %v7168, %v7192
          %v7211 = vadd.f32 %v7169, %v7192
          %v7212 = vadd.f32 %v7170, %v7192
          %v7213 = vadd.f32 %v7171, %v7192
          %v7214 = vadd.f32 %v7172, %v7192
          %v7215 = vadd.f32 %v7173, %v7192
          %v7216 = vadd.f32 %v7174, %v7192
          %v7217 = vadd.f32 %v7175, %v7192
          %v7218 = vadd.f32 %v7176, %v7192
          %v7219 = vadd.f32 %v7177, %v7192
          %v7220 = vadd.f32 %v7178, %v7192
          %v7221 = vadd.f32 %v7179, %v7192
          %v7222 = vadd.f32 %v7180, %v7192
          %v7223 = vadd.f32 %v7181, %v7192
          %v7224 = vadd.f32 %v7182, %v7192
          %v7225 = vadd.f32 %v7183, %v7192
          %vm7226 = vcmp.ge.f32.partialorder %v7194, 0.0
          %vm7227 = vcmp.ge.f32.partialorder %v7195, 0.0
          %vm7228 = vcmp.ge.f32.partialorder %v7196, 0.0
          %vm7229 = vcmp.ge.f32.partialorder %v7197, 0.0
          %vm7230 = vcmp.ge.f32.partialorder %v7198, 0.0
          %vm7231 = vcmp.ge.f32.partialorder %v7199, 0.0
          %vm7232 = vcmp.ge.f32.partialorder %v7200, 0.0
          %vm7233 = vcmp.ge.f32.partialorder %v7201, 0.0
          %vm7234 = vcmp.ge.f32.partialorder %v7202, 0.0
          %vm7235 = vcmp.ge.f32.partialorder %v7203, 0.0
          %vm7236 = vcmp.ge.f32.partialorder %v7204, 0.0
          %vm7237 = vcmp.ge.f32.partialorder %v7205, 0.0
          %vm7238 = vcmp.ge.f32.partialorder %v7206, 0.0
          %vm7239 = vcmp.ge.f32.partialorder %v7207, 0.0
          %vm7240 = vcmp.ge.f32.partialorder %v7208, 0.0
          %vm7241 = vcmp.ge.f32.partialorder %v7209, 0.0
          %vm7242 = vcmp.ge.f32.partialorder %v7210, 0.0
          %vm7243 = vcmp.ge.f32.partialorder %v7211, 0.0
          %vm7244 = vcmp.ge.f32.partialorder %v7212, 0.0
          %vm7245 = vcmp.ge.f32.partialorder %v7213, 0.0
          %vm7246 = vcmp.ge.f32.partialorder %v7214, 0.0
          %vm7247 = vcmp.ge.f32.partialorder %v7215, 0.0
          %vm7248 = vcmp.ge.f32.partialorder %v7216, 0.0
          %vm7249 = vcmp.ge.f32.partialorder %v7217, 0.0
          %vm7250 = vcmp.ge.f32.partialorder %v7218, 0.0
          %vm7251 = vcmp.ge.f32.partialorder %v7219, 0.0
          %vm7252 = vcmp.ge.f32.partialorder %v7220, 0.0
          %vm7253 = vcmp.ge.f32.partialorder %v7221, 0.0
          %vm7254 = vcmp.ge.f32.partialorder %v7222, 0.0
          %vm7255 = vcmp.ge.f32.partialorder %v7223, 0.0
          %vm7256 = vcmp.ge.f32.partialorder %v7224, 0.0
          %vm7257 = vcmp.ge.f32.partialorder %v7225, 0.0
          %v7258 = vmul.f32 %v7194, 0.2
          %v7259 = vmul.f32 %v7195, 0.2
          %v7260 = vmul.f32 %v7196, 0.2
          %v7261 = vmul.f32 %v7197, 0.2
          %v7262 = vmul.f32 %v7198, 0.2
          %v7263 = vmul.f32 %v7199, 0.2
          %v7264 = vmul.f32 %v7200, 0.2
          %v7265 = vmul.f32 %v7201, 0.2
          %v7266 = vmul.f32 %v7202, 0.2
          %v7267 = vmul.f32 %v7203, 0.2
          %v7268 = vmul.f32 %v7204, 0.2
          %v7269 = vmul.f32 %v7205, 0.2
          %v7270 = vmul.f32 %v7206, 0.2
          %v7271 = vmul.f32 %v7207, 0.2
          %v7272 = vmul.f32 %v7208, 0.2
          %v7273 = vmul.f32 %v7209, 0.2
          %v7274 = vmul.f32 %v7210, 0.2
          %v7275 = vmul.f32 %v7211, 0.2
          %v7276 = vmul.f32 %v7212, 0.2
          %v7277 = vmul.f32 %v7213, 0.2
          %v7278 = vmul.f32 %v7214, 0.2
          %v7279 = vmul.f32 %v7215, 0.2
          %v7280 = vmul.f32 %v7216, 0.2
          %v7281 = vmul.f32 %v7217, 0.2
          %v7282 = vmul.f32 %v7218, 0.2
          %v7283 = vmul.f32 %v7219, 0.2
          %v7284 = vmul.f32 %v7220, 0.2
          %v7285 = vmul.f32 %v7221, 0.2
          %v7286 = vmul.f32 %v7222, 0.2
          %v7287 = vmul.f32 %v7223, 0.2
          %v7288 = vmul.f32 %v7224, 0.2
          %v7289 = vmul.f32 %v7225, 0.2
          %v7290 = vsel %vm7226, %v7194, %v7258
          %v7291 = vsel %vm7227, %v7195, %v7259
          %v7292 = vsel %vm7228, %v7196, %v7260
          %v7293 = vsel %vm7229, %v7197, %v7261
          %v7294 = vsel %vm7230, %v7198, %v7262
          %v7295 = vsel %vm7231, %v7199, %v7263
          %v7296 = vsel %vm7232, %v7200, %v7264
          %v7297 = vsel %vm7233, %v7201, %v7265
          %v7298 = vsel %vm7234, %v7202, %v7266
          %v7299 = vsel %vm7235, %v7203, %v7267
          %v7300 = vsel %vm7236, %v7204, %v7268
          %v7301 = vsel %vm7237, %v7205, %v7269
          %v7302 = vsel %vm7238, %v7206, %v7270
          %v7303 = vsel %vm7239, %v7207, %v7271
          %v7304 = vsel %vm7240, %v7208, %v7272
          %v7305 = vsel %vm7241, %v7209, %v7273
          %v7306 = vsel %vm7242, %v7210, %v7274
          %v7307 = vsel %vm7243, %v7211, %v7275
          %v7308 = vsel %vm7244, %v7212, %v7276
          %v7309 = vsel %vm7245, %v7213, %v7277
          %v7310 = vsel %vm7246, %v7214, %v7278
          %v7311 = vsel %vm7247, %v7215, %v7279
          %v7312 = vsel %vm7248, %v7216, %v7280
          %v7313 = vsel %vm7249, %v7217, %v7281
          %v7314 = vsel %vm7250, %v7218, %v7282
          %v7315 = vsel %vm7251, %v7219, %v7283
          %v7316 = vsel %vm7252, %v7220, %v7284
          %v7317 = vsel %vm7253, %v7221, %v7285
          %v7318 = vsel %vm7254, %v7222, %v7286
          %v7319 = vsel %vm7255, %v7223, %v7287
          %v7320 = vsel %vm7256, %v7224, %v7288
          %v7321 = vsel %vm7257, %v7225, %v7289
          %v7322 = vpack.c.bf16 %v7306, %v7290
          %v7323 = vpack.c.bf16 %v7307, %v7291
          %v7324 = vpack.c.bf16 %v7308, %v7292
          %v7325 = vpack.c.bf16 %v7309, %v7293
          %v7326 = vpack.c.bf16 %v7310, %v7294
          %v7327 = vpack.c.bf16 %v7311, %v7295
          %v7328 = vpack.c.bf16 %v7312, %v7296
          %v7329 = vpack.c.bf16 %v7313, %v7297
          %v7330 = vpack.c.bf16 %v7314, %v7298
          %v7331 = vpack.c.bf16 %v7315, %v7299
          %v7332 = vpack.c.bf16 %v7316, %v7300
          %v7333 = vpack.c.bf16 %v7317, %v7301
          %v7334 = vpack.c.bf16 %v7318, %v7302
          %v7335 = vpack.c.bf16 %v7319, %v7303
          %v7336 = vpack.c.bf16 %v7320, %v7304
          %v7337 = vpack.c.bf16 %v7321, %v7305
          %7338 = vst [vmem:[#allocation2] sm:$0xff] %v7322
          %7339 = vst [vmem:[#allocation2 + $0x8] sm:$0xff] %v7323
          %7340 = vst [vmem:[#allocation2 + $0x10] sm:$0xff] %v7324
          %7341 = vst [vmem:[#allocation2 + $0x18] sm:$0xff] %v7325
          %7342 = vst [vmem:[#allocation2 + $0x20] sm:$0xff] %v7326
          %7343 = vst [vmem:[#allocation2 + $0x28] sm:$0xff] %v7327
          %7344 = vst [vmem:[#allocation2 + $0x30] sm:$0xff] %v7328
          %7345 = vst [vmem:[#allocation2 + $0x38] sm:$0xff] %v7329
          %7346 = vst [vmem:[#allocation2 + $0x40] sm:$0xff] %v7330
          %7347 = vst [vmem:[#allocation2 + $0x48] sm:$0xff] %v7331
          %7348 = vst [vmem:[#allocation2 + $0x50] sm:$0xff] %v7332
          %7349 = vst [vmem:[#allocation2 + $0x58] sm:$0xff] %v7333
          %7350 = vst [vmem:[#allocation2 + $0x60] sm:$0xff] %v7334
          %7351 = vst [vmem:[#allocation2 + $0x68] sm:$0xff] %v7335
          %7352 = vst [vmem:[#allocation2 + $0x70] sm:$0xff] %v7336
          %7353 = vst [vmem:[#allocation2 + $0x78] sm:$0xff] %v7337
        $region120: #{generator_forward.1} parent=83 // pred_fallthru
          _
        %p7354 = scmp.eq.s32.totalorder %s34, 1
        %p7355 = pnand %p7354, %p6634
        %p7356 = pneg %p7355
        // Predicated region
        $region121: #{generator_forward.1} parent=83 // pred_check
          _
        $region122: #{generator_forward.1} parent=83 // pred_check_branch
          %7358 = sbr.rel (%p7355) target = $region124
        $region123: #{generator_forward.1} parent=83 // pred_region
          %v7359 = vld [vmem:[#allocation3] sm:$0xff]
          %v7360 = vld [vmem:[#allocation3 + $0x8] sm:$0xff]
          %v7361 = vld [vmem:[#allocation3 + $0x10] sm:$0xff]
          %v7362 = vld [vmem:[#allocation3 + $0x18] sm:$0xff]
          %v7363 = vld [vmem:[#allocation3 + $0x20] sm:$0xff]
          %v7364 = vld [vmem:[#allocation3 + $0x28] sm:$0xff]
          %v7365 = vld [vmem:[#allocation3 + $0x30] sm:$0xff]
          %v7366 = vld [vmem:[#allocation3 + $0x38] sm:$0xff]
          %v7367 = vld [vmem:[#allocation3 + $0x40] sm:$0xff]
          %v7368 = vld [vmem:[#allocation3 + $0x48] sm:$0xff]
          %v7369 = vld [vmem:[#allocation3 + $0x50] sm:$0xff]
          %v7370 = vld [vmem:[#allocation3 + $0x58] sm:$0xff]
          %v7371 = vld [vmem:[#allocation3 + $0x60] sm:$0xff]
          %v7372 = vld [vmem:[#allocation3 + $0x68] sm:$0xff]
          %v7373 = vld [vmem:[#allocation3 + $0x70] sm:$0xff]
          %v7374 = vld [vmem:[#allocation3 + $0x78] sm:$0xff]
          %v7375 = vld [vmem:[#allocation3 + $0x80] sm:$0xff]
          %v7376 = vld [vmem:[#allocation3 + $0x88] sm:$0xff]
          %v7377 = vld [vmem:[#allocation3 + $0x90] sm:$0xff]
          %v7378 = vld [vmem:[#allocation3 + $0x98] sm:$0xff]
          %v7379 = vld [vmem:[#allocation3 + $0xa0] sm:$0xff]
          %v7380 = vld [vmem:[#allocation3 + $0xa8] sm:$0xff]
          %v7381 = vld [vmem:[#allocation3 + $0xb0] sm:$0xff]
          %v7382 = vld [vmem:[#allocation3 + $0xb8] sm:$0xff]
          %v7383 = vld [vmem:[#allocation3 + $0xc0] sm:$0xff]
          %v7384 = vld [vmem:[#allocation3 + $0xc8] sm:$0xff]
          %v7385 = vld [vmem:[#allocation3 + $0xd0] sm:$0xff]
          %v7386 = vld [vmem:[#allocation3 + $0xd8] sm:$0xff]
          %v7387 = vld [vmem:[#allocation3 + $0xe0] sm:$0xff]
          %v7388 = vld [vmem:[#allocation3 + $0xe8] sm:$0xff]
          %v7389 = vld [vmem:[#allocation3 + $0xf0] sm:$0xff]
          %v7390 = vld [vmem:[#allocation3 + $0xf8] sm:$0xff]
          %v7391 = vld [vmem:[%s655] sm:$0xff]
          %v7392 = vld [vmem:[%s655 + $0x8] sm:$0xff]
          %v7395 = vlaneseq
          %v7396 = vshrl.u32 %v7395, 7
          %v7397 = vsub.s32 0, %v7396
          %v7398 = vrot.slane %v7391, %v7397
          %v7399 = vlaneseq
          %v7400 = vshrl.u32 %v7399, 7
          %v7401 = vsub.s32 1, %v7400
          %v7402 = vrot.slane %v7391, %v7401
          %v7403 = vlaneseq
          %v7404 = vshrl.u32 %v7403, 7
          %v7405 = vsub.s32 2, %v7404
          %v7406 = vrot.slane %v7391, %v7405
          %v7407 = vlaneseq
          %v7408 = vshrl.u32 %v7407, 7
          %v7409 = vsub.s32 3, %v7408
          %v7410 = vrot.slane %v7391, %v7409
          %v7411 = vlaneseq
          %v7412 = vshrl.u32 %v7411, 7
          %v7413 = vsub.s32 4, %v7412
          %v7414 = vrot.slane %v7391, %v7413
          %v7415 = vlaneseq
          %v7416 = vshrl.u32 %v7415, 7
          %v7417 = vsub.s32 5, %v7416
          %v7418 = vrot.slane %v7391, %v7417
          %v7419 = vlaneseq
          %v7420 = vshrl.u32 %v7419, 7
          %v7421 = vsub.s32 6, %v7420
          %v7422 = vrot.slane %v7391, %v7421
          %v7423 = vlaneseq
          %v7424 = vshrl.u32 %v7423, 7
          %v7425 = vsub.s32 7, %v7424
          %v7426 = vrot.slane %v7391, %v7425
          %v7427 = vlaneseq
          %v7428 = vshrl.u32 %v7427, 7
          %v7429 = vsub.s32 0, %v7428
          %v7430 = vrot.slane %v7392, %v7429
          %v7431 = vlaneseq
          %v7432 = vshrl.u32 %v7431, 7
          %v7433 = vsub.s32 1, %v7432
          %v7434 = vrot.slane %v7392, %v7433
          %v7435 = vlaneseq
          %v7436 = vshrl.u32 %v7435, 7
          %v7437 = vsub.s32 2, %v7436
          %v7438 = vrot.slane %v7392, %v7437
          %v7439 = vlaneseq
          %v7440 = vshrl.u32 %v7439, 7
          %v7441 = vsub.s32 3, %v7440
          %v7442 = vrot.slane %v7392, %v7441
          %v7443 = vlaneseq
          %v7444 = vshrl.u32 %v7443, 7
          %v7445 = vsub.s32 4, %v7444
          %v7446 = vrot.slane %v7392, %v7445
          %v7447 = vlaneseq
          %v7448 = vshrl.u32 %v7447, 7
          %v7449 = vsub.s32 5, %v7448
          %v7450 = vrot.slane %v7392, %v7449
          %v7451 = vlaneseq
          %v7452 = vshrl.u32 %v7451, 7
          %v7453 = vsub.s32 6, %v7452
          %v7454 = vrot.slane %v7392, %v7453
          %v7455 = vlaneseq
          %v7456 = vshrl.u32 %v7455, 7
          %v7457 = vsub.s32 7, %v7456
          %v7458 = vrot.slane %v7392, %v7457
          %v7475 = vadd.f32 %v7359, %v7398
          %v7476 = vadd.f32 %v7360, %v7402
          %v7477 = vadd.f32 %v7361, %v7406
          %v7478 = vadd.f32 %v7362, %v7410
          %v7479 = vadd.f32 %v7363, %v7414
          %v7480 = vadd.f32 %v7364, %v7418
          %v7481 = vadd.f32 %v7365, %v7422
          %v7482 = vadd.f32 %v7366, %v7426
          %v7483 = vadd.f32 %v7367, %v7430
          %v7484 = vadd.f32 %v7368, %v7434
          %v7485 = vadd.f32 %v7369, %v7438
          %v7486 = vadd.f32 %v7370, %v7442
          %v7487 = vadd.f32 %v7371, %v7446
          %v7488 = vadd.f32 %v7372, %v7450
          %v7489 = vadd.f32 %v7373, %v7454
          %v7490 = vadd.f32 %v7374, %v7458
          %v7491 = vadd.f32 %v7375, %v7398
          %v7492 = vadd.f32 %v7376, %v7402
          %v7493 = vadd.f32 %v7377, %v7406
          %v7494 = vadd.f32 %v7378, %v7410
          %v7495 = vadd.f32 %v7379, %v7414
          %v7496 = vadd.f32 %v7380, %v7418
          %v7497 = vadd.f32 %v7381, %v7422
          %v7498 = vadd.f32 %v7382, %v7426
          %v7499 = vadd.f32 %v7383, %v7430
          %v7500 = vadd.f32 %v7384, %v7434
          %v7501 = vadd.f32 %v7385, %v7438
          %v7502 = vadd.f32 %v7386, %v7442
          %v7503 = vadd.f32 %v7387, %v7446
          %v7504 = vadd.f32 %v7388, %v7450
          %v7505 = vadd.f32 %v7389, %v7454
          %v7506 = vadd.f32 %v7390, %v7458
          %v7507 = vld [vmem:[%s660] sm:$0xff]
          %v7508 = vld [vmem:[%s660 + $0x8] sm:$0xff]
          %v7509 = vld [vmem:[%s665] sm:$0xff]
          %v7510 = vld [vmem:[%s665 + $0x8] sm:$0xff]
          %v7511 = vld [vmem:[%s1] sm:$0xff]
          %v7512 = vld [vmem:[%s1 + $0x8] sm:$0xff]
          %v7513 = vadd.f32 %v7475, %v7476
          %v7514 = vadd.f32 %v7513, %v7477
          %v7515 = vadd.f32 %v7514, %v7478
          %v7516 = vadd.f32 %v7515, %v7479
          %v7517 = vadd.f32 %v7516, %v7480
          %v7518 = vadd.f32 %v7517, %v7481
          %v7519 = vadd.f32 %v7518, %v7482
          %v7520 = vadd.f32 %v7519, %v7483
          %v7521 = vadd.f32 %v7520, %v7484
          %v7522 = vadd.f32 %v7521, %v7485
          %v7523 = vadd.f32 %v7522, %v7486
          %v7524 = vadd.f32 %v7523, %v7487
          %v7525 = vadd.f32 %v7524, %v7488
          %v7526 = vadd.f32 %v7525, %v7489
          %v7527 = vadd.f32 %v7526, %v7490
          %7528 = vadd.xlane.f32.xlu0 %v7527
          %v7529 = vpop.xlane.xlu0 %7528
          %v7530 = vadd.f32 %v7491, %v7492
          %v7531 = vadd.f32 %v7530, %v7493
          %v7532 = vadd.f32 %v7531, %v7494
          %v7533 = vadd.f32 %v7532, %v7495
          %v7534 = vadd.f32 %v7533, %v7496
          %v7535 = vadd.f32 %v7534, %v7497
          %v7536 = vadd.f32 %v7535, %v7498
          %v7537 = vadd.f32 %v7536, %v7499
          %v7538 = vadd.f32 %v7537, %v7500
          %v7539 = vadd.f32 %v7538, %v7501
          %v7540 = vadd.f32 %v7539, %v7502
          %v7541 = vadd.f32 %v7540, %v7503
          %v7542 = vadd.f32 %v7541, %v7504
          %v7543 = vadd.f32 %v7542, %v7505
          %v7544 = vadd.f32 %v7543, %v7506
          %7545 = vadd.xlane.f32.xlu0 %v7544
          %v7546 = vpop.xlane.xlu0 %7545
          %vm7547 = vcmask 130048
          %v7549 = vsel %vm7547, %v7511, 0
          %v7552 = vsel %vm7547, %v7512, 0
          %7554 = vmatprep.subr.mxu0 0.0
          %7555 = vmatpush1.msra.mxu0 %v7529
          %7556 = vmatprep.subr.mxu0 0.0
          %7557 = vmatpush1.msra.mxu0 %v7546
          %7558 = vmatprep.subr.mxu0 0.0
          %7559 = vmatpush1.msra.mxu0 0.0
          %7560 = vmatprep.subr.mxu0 0.0
          %7561 = vmatpush1.msra.mxu0 0.0
          %7562 = vmatprep.subr.mxu0 0.0
          %7563 = vmatpush1.msra.mxu0 0.0
          %7564 = vmatprep.subr.mxu0 0.0
          %7565 = vmatpush1.msra.mxu0 0.0
          %7566 = vmatprep.subr.mxu0 0.0
          %7567 = vmatpush1.msra.mxu0 0.0
          %7568 = vmatprep.subr.mxu0 0.0
          %7569 = vmatpush1.msra.mxu0 0.0
          %7570 = vmatprep.subr.mxu0 0.0
          %7571 = vmatpush1.msra.mxu0 0.0
          %7572 = vmatprep.subr.mxu0 0.0
          %7573 = vmatpush1.msra.mxu0 0.0
          %7574 = vmatprep.subr.mxu0 0.0
          %7575 = vmatpush1.msra.mxu0 0.0
          %7576 = vmatprep.subr.mxu0 0.0
          %7577 = vmatpush1.msra.mxu0 0.0
          %7578 = vmatprep.subr.mxu0 0.0
          %7579 = vmatpush1.msra.mxu0 0.0
          %7580 = vmatprep.subr.mxu0 0.0
          %7581 = vmatpush1.msra.mxu0 0.0
          %7582 = vmatprep.subr.mxu0 0.0
          %7583 = vmatpush1.msra.mxu0 0.0
          %7584 = vmatprep.subr.mxu0 0.0
          %7585 = vmatpush1.msra.mxu0 0.0
          %7586 = vmatprep.subr.mxu0 0.0
          %7587 = vmatpush1.msra.mxu0 0.0
          %7588 = vmatprep.subr.mxu0 0.0
          %7589 = vmatpush1.msra.mxu0 0.0
          %7590 = vmatprep.subr.mxu0 0.0
          %7591 = vmatpush1.msra.mxu0 0.0
          %7592 = vmatprep.subr.mxu0 0.0
          %7593 = vmatpush1.msra.mxu0 0.0
          %7594 = vmatprep.subr.mxu0 0.0
          %7595 = vmatpush1.msra.mxu0 0.0
          %7596 = vmatprep.subr.mxu0 0.0
          %7597 = vmatpush1.msra.mxu0 0.0
          %7598 = vmatprep.subr.mxu0 0.0
          %7599 = vmatpush1.msra.mxu0 0.0
          %7600 = vmatprep.subr.mxu0 0.0
          %7601 = vmatpush1.msra.mxu0 0.0
          %7602 = vmatprep.subr.mxu0 0.0
          %7603 = vmatpush1.msra.mxu0 0.0
          %7604 = vmatprep.subr.mxu0 0.0
          %7605 = vmatpush1.msra.mxu0 0.0
          %7606 = vmatprep.subr.mxu0 0.0
          %7607 = vmatpush1.msra.mxu0 0.0
          %7608 = vmatprep.subr.mxu0 0.0
          %7609 = vmatpush1.msra.mxu0 0.0
          %7610 = vmatprep.subr.mxu0 0.0
          %7611 = vmatpush1.msra.mxu0 0.0
          %7612 = vmatprep.subr.mxu0 0.0
          %7613 = vmatpush1.msra.mxu0 0.0
          %7614 = vmatprep.subr.mxu0 0.0
          %7615 = vmatpush1.msra.mxu0 0.0
          %7616 = vmatprep.subr.mxu0 0.0
          %7617 = vmatpush1.msra.mxu0 0.0
          %7618 = vmatprep.mubr.f32.mxu0 0.0
          %7619 = vmatmul.mubr.f32.gmra.mrb[0].mxu0 %v7549
          %v7620 = vpop.f32.mrb[0].mxu0
          %v7621 = vadd.f32 0.0, %v7620
          %v7622 = vpop.f32.mrb[0].mxu0
          %7623 = vmatprep.mubr.f32.mxu0 0.0
          %7624 = vmatmul.mubr.f32.gmra.mrb[0].mxu0 %v7552
          %v7625 = vpop.f32.mrb[0].mxu0
          %v7626 = vadd.f32 0.0, %v7625
          %v7627 = vpop.f32.mrb[0].mxu0
          %7628 = vdwg.mxu0
          %v7629 = vmul.f32 %v7621, 0.00024414063
          %v7630 = vmul.f32 %v7626, 0.00024414063
          %7632 = vset.pattern.permute.xlu0 0
          %7633 = vperm.xlu0 %7632, %v7629
          %v7634 = vpop.permute.xlu0 %7633
          %7637 = vset.pattern.permute.xlu0 0
          %7638 = vperm.xlu0 %7637, %v7630
          %v7639 = vpop.permute.xlu0 %7638
          %v7641 = vsub.f32 %v7475, %v7634
          %v7642 = vsub.f32 %v7476, %v7634
          %v7643 = vsub.f32 %v7477, %v7634
          %v7644 = vsub.f32 %v7478, %v7634
          %v7645 = vsub.f32 %v7479, %v7634
          %v7646 = vsub.f32 %v7480, %v7634
          %v7647 = vsub.f32 %v7481, %v7634
          %v7648 = vsub.f32 %v7482, %v7634
          %v7649 = vsub.f32 %v7483, %v7634
          %v7650 = vsub.f32 %v7484, %v7634
          %v7651 = vsub.f32 %v7485, %v7634
          %v7652 = vsub.f32 %v7486, %v7634
          %v7653 = vsub.f32 %v7487, %v7634
          %v7654 = vsub.f32 %v7488, %v7634
          %v7655 = vsub.f32 %v7489, %v7634
          %v7656 = vsub.f32 %v7490, %v7634
          %v7657 = vsub.f32 %v7491, %v7639
          %v7658 = vsub.f32 %v7492, %v7639
          %v7659 = vsub.f32 %v7493, %v7639
          %v7660 = vsub.f32 %v7494, %v7639
          %v7661 = vsub.f32 %v7495, %v7639
          %v7662 = vsub.f32 %v7496, %v7639
          %v7663 = vsub.f32 %v7497, %v7639
          %v7664 = vsub.f32 %v7498, %v7639
          %v7665 = vsub.f32 %v7499, %v7639
          %v7666 = vsub.f32 %v7500, %v7639
          %v7667 = vsub.f32 %v7501, %v7639
          %v7668 = vsub.f32 %v7502, %v7639
          %v7669 = vsub.f32 %v7503, %v7639
          %v7670 = vsub.f32 %v7504, %v7639
          %v7671 = vsub.f32 %v7505, %v7639
          %v7672 = vsub.f32 %v7506, %v7639
          %v7673 = vmul.f32 %v7641, %v7641
          %v7674 = vmul.f32 %v7642, %v7642
          %v7675 = vmul.f32 %v7643, %v7643
          %v7676 = vmul.f32 %v7644, %v7644
          %v7677 = vmul.f32 %v7645, %v7645
          %v7678 = vmul.f32 %v7646, %v7646
          %v7679 = vmul.f32 %v7647, %v7647
          %v7680 = vmul.f32 %v7648, %v7648
          %v7681 = vmul.f32 %v7649, %v7649
          %v7682 = vmul.f32 %v7650, %v7650
          %v7683 = vmul.f32 %v7651, %v7651
          %v7684 = vmul.f32 %v7652, %v7652
          %v7685 = vmul.f32 %v7653, %v7653
          %v7686 = vmul.f32 %v7654, %v7654
          %v7687 = vmul.f32 %v7655, %v7655
          %v7688 = vmul.f32 %v7656, %v7656
          %v7689 = vmul.f32 %v7657, %v7657
          %v7690 = vmul.f32 %v7658, %v7658
          %v7691 = vmul.f32 %v7659, %v7659
          %v7692 = vmul.f32 %v7660, %v7660
          %v7693 = vmul.f32 %v7661, %v7661
          %v7694 = vmul.f32 %v7662, %v7662
          %v7695 = vmul.f32 %v7663, %v7663
          %v7696 = vmul.f32 %v7664, %v7664
          %v7697 = vmul.f32 %v7665, %v7665
          %v7698 = vmul.f32 %v7666, %v7666
          %v7699 = vmul.f32 %v7667, %v7667
          %v7700 = vmul.f32 %v7668, %v7668
          %v7701 = vmul.f32 %v7669, %v7669
          %v7702 = vmul.f32 %v7670, %v7670
          %v7703 = vmul.f32 %v7671, %v7671
          %v7704 = vmul.f32 %v7672, %v7672
          %v7705 = vadd.f32 %v7673, %v7674
          %v7706 = vadd.f32 %v7705, %v7675
          %v7707 = vadd.f32 %v7706, %v7676
          %v7708 = vadd.f32 %v7707, %v7677
          %v7709 = vadd.f32 %v7708, %v7678
          %v7710 = vadd.f32 %v7709, %v7679
          %v7711 = vadd.f32 %v7710, %v7680
          %v7712 = vadd.f32 %v7711, %v7681
          %v7713 = vadd.f32 %v7712, %v7682
          %v7714 = vadd.f32 %v7713, %v7683
          %v7715 = vadd.f32 %v7714, %v7684
          %v7716 = vadd.f32 %v7715, %v7685
          %v7717 = vadd.f32 %v7716, %v7686
          %v7718 = vadd.f32 %v7717, %v7687
          %v7719 = vadd.f32 %v7718, %v7688
          %7720 = vadd.xlane.f32.xlu0 %v7719
          %v7721 = vpop.xlane.xlu0 %7720
          %v7722 = vadd.f32 %v7689, %v7690
          %v7723 = vadd.f32 %v7722, %v7691
          %v7724 = vadd.f32 %v7723, %v7692
          %v7725 = vadd.f32 %v7724, %v7693
          %v7726 = vadd.f32 %v7725, %v7694
          %v7727 = vadd.f32 %v7726, %v7695
          %v7728 = vadd.f32 %v7727, %v7696
          %v7729 = vadd.f32 %v7728, %v7697
          %v7730 = vadd.f32 %v7729, %v7698
          %v7731 = vadd.f32 %v7730, %v7699
          %v7732 = vadd.f32 %v7731, %v7700
          %v7733 = vadd.f32 %v7732, %v7701
          %v7734 = vadd.f32 %v7733, %v7702
          %v7735 = vadd.f32 %v7734, %v7703
          %v7736 = vadd.f32 %v7735, %v7704
          %7737 = vadd.xlane.f32.xlu0 %v7736
          %v7738 = vpop.xlane.xlu0 %7737
          %7739 = vmatprep.subr.mxu0 0.0
          %7740 = vmatpush1.msra.mxu0 %v7721
          %7741 = vmatprep.subr.mxu0 0.0
          %7742 = vmatpush1.msra.mxu0 %v7738
          %7743 = vmatprep.subr.mxu0 0.0
          %7744 = vmatpush1.msra.mxu0 0.0
          %7745 = vmatprep.subr.mxu0 0.0
          %7746 = vmatpush1.msra.mxu0 0.0
          %7747 = vmatprep.subr.mxu0 0.0
          %7748 = vmatpush1.msra.mxu0 0.0
          %7749 = vmatprep.subr.mxu0 0.0
          %7750 = vmatpush1.msra.mxu0 0.0
          %7751 = vmatprep.subr.mxu0 0.0
          %7752 = vmatpush1.msra.mxu0 0.0
          %7753 = vmatprep.subr.mxu0 0.0
          %7754 = vmatpush1.msra.mxu0 0.0
          %7755 = vmatprep.subr.mxu0 0.0
          %7756 = vmatpush1.msra.mxu0 0.0
          %7757 = vmatprep.subr.mxu0 0.0
          %7758 = vmatpush1.msra.mxu0 0.0
          %7759 = vmatprep.subr.mxu0 0.0
          %7760 = vmatpush1.msra.mxu0 0.0
          %7761 = vmatprep.subr.mxu0 0.0
          %7762 = vmatpush1.msra.mxu0 0.0
          %7763 = vmatprep.subr.mxu0 0.0
          %7764 = vmatpush1.msra.mxu0 0.0
          %7765 = vmatprep.subr.mxu0 0.0
          %7766 = vmatpush1.msra.mxu0 0.0
          %7767 = vmatprep.subr.mxu0 0.0
          %7768 = vmatpush1.msra.mxu0 0.0
          %7769 = vmatprep.subr.mxu0 0.0
          %7770 = vmatpush1.msra.mxu0 0.0
          %7771 = vmatprep.subr.mxu0 0.0
          %7772 = vmatpush1.msra.mxu0 0.0
          %7773 = vmatprep.subr.mxu0 0.0
          %7774 = vmatpush1.msra.mxu0 0.0
          %7775 = vmatprep.subr.mxu0 0.0
          %7776 = vmatpush1.msra.mxu0 0.0
          %7777 = vmatprep.subr.mxu0 0.0
          %7778 = vmatpush1.msra.mxu0 0.0
          %7779 = vmatprep.subr.mxu0 0.0
          %7780 = vmatpush1.msra.mxu0 0.0
          %7781 = vmatprep.subr.mxu0 0.0
          %7782 = vmatpush1.msra.mxu0 0.0
          %7783 = vmatprep.subr.mxu0 0.0
          %7784 = vmatpush1.msra.mxu0 0.0
          %7785 = vmatprep.subr.mxu0 0.0
          %7786 = vmatpush1.msra.mxu0 0.0
          %7787 = vmatprep.subr.mxu0 0.0
          %7788 = vmatpush1.msra.mxu0 0.0
          %7789 = vmatprep.subr.mxu0 0.0
          %7790 = vmatpush1.msra.mxu0 0.0
          %7791 = vmatprep.subr.mxu0 0.0
          %7792 = vmatpush1.msra.mxu0 0.0
          %7793 = vmatprep.subr.mxu0 0.0
          %7794 = vmatpush1.msra.mxu0 0.0
          %7795 = vmatprep.subr.mxu0 0.0
          %7796 = vmatpush1.msra.mxu0 0.0
          %7797 = vmatprep.subr.mxu0 0.0
          %7798 = vmatpush1.msra.mxu0 0.0
          %7799 = vmatprep.subr.mxu0 0.0
          %7800 = vmatpush1.msra.mxu0 0.0
          %7801 = vmatprep.subr.mxu0 0.0
          %7802 = vmatpush1.msra.mxu0 0.0
          %7803 = vmatprep.mubr.f32.mxu0 0.0
          %7804 = vmatmul.mubr.f32.gmra.mrb[0].mxu0 %v7549
          %v7805 = vpop.f32.mrb[0].mxu0
          %v7806 = vadd.f32 0.0, %v7805
          %v7807 = vpop.f32.mrb[0].mxu0
          %7808 = vmatprep.mubr.f32.mxu0 0.0
          %7809 = vmatmul.mubr.f32.gmra.mrb[0].mxu0 %v7552
          %v7810 = vpop.f32.mrb[0].mxu0
          %v7811 = vadd.f32 0.0, %v7810
          %v7812 = vpop.f32.mrb[0].mxu0
          %7813 = vdwg.mxu0
          %v7814 = vmul.f32 %v7806, 0.00024414063
          %v7815 = vmul.f32 %v7811, 0.00024414063
          %v7816 = vadd.f32 %v7814, 1e-05
          %v7817 = vadd.f32 %v7815, 1e-05
          %v7818 = vrsqrt.pop %v7816
          %v7819 = vrsqrt.pop %v7817
          %7821 = vset.pattern.permute.xlu0 0
          %7822 = vperm.xlu0 %7821, %v7818
          %v7823 = vpop.permute.xlu0 %7822
          %7826 = vset.pattern.permute.xlu0 0
          %7827 = vperm.xlu0 %7826, %v7819
          %v7828 = vpop.permute.xlu0 %7827
          %v7830 = vmul.f32 %v7641, %v7823
          %v7831 = vmul.f32 %v7642, %v7823
          %v7832 = vmul.f32 %v7643, %v7823
          %v7833 = vmul.f32 %v7644, %v7823
          %v7834 = vmul.f32 %v7645, %v7823
          %v7835 = vmul.f32 %v7646, %v7823
          %v7836 = vmul.f32 %v7647, %v7823
          %v7837 = vmul.f32 %v7648, %v7823
          %v7838 = vmul.f32 %v7649, %v7823
          %v7839 = vmul.f32 %v7650, %v7823
          %v7840 = vmul.f32 %v7651, %v7823
          %v7841 = vmul.f32 %v7652, %v7823
          %v7842 = vmul.f32 %v7653, %v7823
          %v7843 = vmul.f32 %v7654, %v7823
          %v7844 = vmul.f32 %v7655, %v7823
          %v7845 = vmul.f32 %v7656, %v7823
          %v7846 = vmul.f32 %v7657, %v7828
          %v7847 = vmul.f32 %v7658, %v7828
          %v7848 = vmul.f32 %v7659, %v7828
          %v7849 = vmul.f32 %v7660, %v7828
          %v7850 = vmul.f32 %v7661, %v7828
          %v7851 = vmul.f32 %v7662, %v7828
          %v7852 = vmul.f32 %v7663, %v7828
          %v7853 = vmul.f32 %v7664, %v7828
          %v7854 = vmul.f32 %v7665, %v7828
          %v7855 = vmul.f32 %v7666, %v7828
          %v7856 = vmul.f32 %v7667, %v7828
          %v7857 = vmul.f32 %v7668, %v7828
          %v7858 = vmul.f32 %v7669, %v7828
          %v7859 = vmul.f32 %v7670, %v7828
          %v7860 = vmul.f32 %v7671, %v7828
          %v7861 = vmul.f32 %v7672, %v7828
          %7863 = vset.pattern.permute.xlu0 0
          %7864 = vperm.xlu0 %7863, %v7507
          %v7865 = vpop.permute.xlu0 %7864
          %7868 = vset.pattern.permute.xlu0 0
          %7869 = vperm.xlu0 %7868, %v7508
          %v7870 = vpop.permute.xlu0 %7869
          %v7872 = vmul.f32 %v7830, %v7865
          %v7873 = vmul.f32 %v7831, %v7865
          %v7874 = vmul.f32 %v7832, %v7865
          %v7875 = vmul.f32 %v7833, %v7865
          %v7876 = vmul.f32 %v7834, %v7865
          %v7877 = vmul.f32 %v7835, %v7865
          %v7878 = vmul.f32 %v7836, %v7865
          %v7879 = vmul.f32 %v7837, %v7865
          %v7880 = vmul.f32 %v7838, %v7865
          %v7881 = vmul.f32 %v7839, %v7865
          %v7882 = vmul.f32 %v7840, %v7865
          %v7883 = vmul.f32 %v7841, %v7865
          %v7884 = vmul.f32 %v7842, %v7865
          %v7885 = vmul.f32 %v7843, %v7865
          %v7886 = vmul.f32 %v7844, %v7865
          %v7887 = vmul.f32 %v7845, %v7865
          %v7888 = vmul.f32 %v7846, %v7870
          %v7889 = vmul.f32 %v7847, %v7870
          %v7890 = vmul.f32 %v7848, %v7870
          %v7891 = vmul.f32 %v7849, %v7870
          %v7892 = vmul.f32 %v7850, %v7870
          %v7893 = vmul.f32 %v7851, %v7870
          %v7894 = vmul.f32 %v7852, %v7870
          %v7895 = vmul.f32 %v7853, %v7870
          %v7896 = vmul.f32 %v7854, %v7870
          %v7897 = vmul.f32 %v7855, %v7870
          %v7898 = vmul.f32 %v7856, %v7870
          %v7899 = vmul.f32 %v7857, %v7870
          %v7900 = vmul.f32 %v7858, %v7870
          %v7901 = vmul.f32 %v7859, %v7870
          %v7902 = vmul.f32 %v7860, %v7870
          %v7903 = vmul.f32 %v7861, %v7870
          %7905 = vset.pattern.permute.xlu0 0
          %7906 = vperm.xlu0 %7905, %v7509
          %v7907 = vpop.permute.xlu0 %7906
          %7910 = vset.pattern.permute.xlu0 0
          %7911 = vperm.xlu0 %7910, %v7510
          %v7912 = vpop.permute.xlu0 %7911
          %v7914 = vadd.f32 %v7872, %v7907
          %v7915 = vadd.f32 %v7873, %v7907
          %v7916 = vadd.f32 %v7874, %v7907
          %v7917 = vadd.f32 %v7875, %v7907
          %v7918 = vadd.f32 %v7876, %v7907
          %v7919 = vadd.f32 %v7877, %v7907
          %v7920 = vadd.f32 %v7878, %v7907
          %v7921 = vadd.f32 %v7879, %v7907
          %v7922 = vadd.f32 %v7880, %v7907
          %v7923 = vadd.f32 %v7881, %v7907
          %v7924 = vadd.f32 %v7882, %v7907
          %v7925 = vadd.f32 %v7883, %v7907
          %v7926 = vadd.f32 %v7884, %v7907
          %v7927 = vadd.f32 %v7885, %v7907
          %v7928 = vadd.f32 %v7886, %v7907
          %v7929 = vadd.f32 %v7887, %v7907
          %v7930 = vadd.f32 %v7888, %v7912
          %v7931 = vadd.f32 %v7889, %v7912
          %v7932 = vadd.f32 %v7890, %v7912
          %v7933 = vadd.f32 %v7891, %v7912
          %v7934 = vadd.f32 %v7892, %v7912
          %v7935 = vadd.f32 %v7893, %v7912
          %v7936 = vadd.f32 %v7894, %v7912
          %v7937 = vadd.f32 %v7895, %v7912
          %v7938 = vadd.f32 %v7896, %v7912
          %v7939 = vadd.f32 %v7897, %v7912
          %v7940 = vadd.f32 %v7898, %v7912
          %v7941 = vadd.f32 %v7899, %v7912
          %v7942 = vadd.f32 %v7900, %v7912
          %v7943 = vadd.f32 %v7901, %v7912
          %v7944 = vadd.f32 %v7902, %v7912
          %v7945 = vadd.f32 %v7903, %v7912
          %vm7946 = vcmp.ge.f32.partialorder %v7914, 0.0
          %vm7947 = vcmp.ge.f32.partialorder %v7915, 0.0
          %vm7948 = vcmp.ge.f32.partialorder %v7916, 0.0
          %vm7949 = vcmp.ge.f32.partialorder %v7917, 0.0
          %vm7950 = vcmp.ge.f32.partialorder %v7918, 0.0
          %vm7951 = vcmp.ge.f32.partialorder %v7919, 0.0
          %vm7952 = vcmp.ge.f32.partialorder %v7920, 0.0
          %vm7953 = vcmp.ge.f32.partialorder %v7921, 0.0
          %vm7954 = vcmp.ge.f32.partialorder %v7922, 0.0
          %vm7955 = vcmp.ge.f32.partialorder %v7923, 0.0
          %vm7956 = vcmp.ge.f32.partialorder %v7924, 0.0
          %vm7957 = vcmp.ge.f32.partialorder %v7925, 0.0
          %vm7958 = vcmp.ge.f32.partialorder %v7926, 0.0
          %vm7959 = vcmp.ge.f32.partialorder %v7927, 0.0
          %vm7960 = vcmp.ge.f32.partialorder %v7928, 0.0
          %vm7961 = vcmp.ge.f32.partialorder %v7929, 0.0
          %vm7962 = vcmp.ge.f32.partialorder %v7930, 0.0
          %vm7963 = vcmp.ge.f32.partialorder %v7931, 0.0
          %vm7964 = vcmp.ge.f32.partialorder %v7932, 0.0
          %vm7965 = vcmp.ge.f32.partialorder %v7933, 0.0
          %vm7966 = vcmp.ge.f32.partialorder %v7934, 0.0
          %vm7967 = vcmp.ge.f32.partialorder %v7935, 0.0
          %vm7968 = vcmp.ge.f32.partialorder %v7936, 0.0
          %vm7969 = vcmp.ge.f32.partialorder %v7937, 0.0
          %vm7970 = vcmp.ge.f32.partialorder %v7938, 0.0
          %vm7971 = vcmp.ge.f32.partialorder %v7939, 0.0
          %vm7972 = vcmp.ge.f32.partialorder %v7940, 0.0
          %vm7973 = vcmp.ge.f32.partialorder %v7941, 0.0
          %vm7974 = vcmp.ge.f32.partialorder %v7942, 0.0
          %vm7975 = vcmp.ge.f32.partialorder %v7943, 0.0
          %vm7976 = vcmp.ge.f32.partialorder %v7944, 0.0
          %vm7977 = vcmp.ge.f32.partialorder %v7945, 0.0
          %v7978 = vmul.f32 %v7914, 0.2
          %v7979 = vmul.f32 %v7915, 0.2
          %v7980 = vmul.f32 %v7916, 0.2
          %v7981 = vmul.f32 %v7917, 0.2
          %v7982 = vmul.f32 %v7918, 0.2
          %v7983 = vmul.f32 %v7919, 0.2
          %v7984 = vmul.f32 %v7920, 0.2
          %v7985 = vmul.f32 %v7921, 0.2
          %v7986 = vmul.f32 %v7922, 0.2
          %v7987 = vmul.f32 %v7923, 0.2
          %v7988 = vmul.f32 %v7924, 0.2
          %v7989 = vmul.f32 %v7925, 0.2
          %v7990 = vmul.f32 %v7926, 0.2
          %v7991 = vmul.f32 %v7927, 0.2
          %v7992 = vmul.f32 %v7928, 0.2
          %v7993 = vmul.f32 %v7929, 0.2
          %v7994 = vmul.f32 %v7930, 0.2
          %v7995 = vmul.f32 %v7931, 0.2
          %v7996 = vmul.f32 %v7932, 0.2
          %v7997 = vmul.f32 %v7933, 0.2
          %v7998 = vmul.f32 %v7934, 0.2
          %v7999 = vmul.f32 %v7935, 0.2
          %v8000 = vmul.f32 %v7936, 0.2
          %v8001 = vmul.f32 %v7937, 0.2
          %v8002 = vmul.f32 %v7938, 0.2
          %v8003 = vmul.f32 %v7939, 0.2
          %v8004 = vmul.f32 %v7940, 0.2
          %v8005 = vmul.f32 %v7941, 0.2
          %v8006 = vmul.f32 %v7942, 0.2
          %v8007 = vmul.f32 %v7943, 0.2
          %v8008 = vmul.f32 %v7944, 0.2
          %v8009 = vmul.f32 %v7945, 0.2
          %v8010 = vsel %vm7946, %v7914, %v7978
          %v8011 = vsel %vm7947, %v7915, %v7979
          %v8012 = vsel %vm7948, %v7916, %v7980
          %v8013 = vsel %vm7949, %v7917, %v7981
          %v8014 = vsel %vm7950, %v7918, %v7982
          %v8015 = vsel %vm7951, %v7919, %v7983
          %v8016 = vsel %vm7952, %v7920, %v7984
          %v8017 = vsel %vm7953, %v7921, %v7985
          %v8018 = vsel %vm7954, %v7922, %v7986
          %v8019 = vsel %vm7955, %v7923, %v7987
          %v8020 = vsel %vm7956, %v7924, %v7988
          %v8021 = vsel %vm7957, %v7925, %v7989
          %v8022 = vsel %vm7958, %v7926, %v7990
          %v8023 = vsel %vm7959, %v7927, %v7991
          %v8024 = vsel %vm7960, %v7928, %v7992
          %v8025 = vsel %vm7961, %v7929, %v7993
          %v8026 = vsel %vm7962, %v7930, %v7994
          %v8027 = vsel %vm7963, %v7931, %v7995
          %v8028 = vsel %vm7964, %v7932, %v7996
          %v8029 = vsel %vm7965, %v7933, %v7997
          %v8030 = vsel %vm7966, %v7934, %v7998
          %v8031 = vsel %vm7967, %v7935, %v7999
          %v8032 = vsel %vm7968, %v7936, %v8000
          %v8033 = vsel %vm7969, %v7937, %v8001
          %v8034 = vsel %vm7970, %v7938, %v8002
          %v8035 = vsel %vm7971, %v7939, %v8003
          %v8036 = vsel %vm7972, %v7940, %v8004
          %v8037 = vsel %vm7973, %v7941, %v8005
          %v8038 = vsel %vm7974, %v7942, %v8006
          %v8039 = vsel %vm7975, %v7943, %v8007
          %v8040 = vsel %vm7976, %v7944, %v8008
          %v8041 = vsel %vm7977, %v7945, %v8009
          %v8042 = vpack.c.bf16 %v8026, %v8010
          %v8043 = vpack.c.bf16 %v8027, %v8011
          %v8044 = vpack.c.bf16 %v8028, %v8012
          %v8045 = vpack.c.bf16 %v8029, %v8013
          %v8046 = vpack.c.bf16 %v8030, %v8014
          %v8047 = vpack.c.bf16 %v8031, %v8015
          %v8048 = vpack.c.bf16 %v8032, %v8016
          %v8049 = vpack.c.bf16 %v8033, %v8017
          %v8050 = vpack.c.bf16 %v8034, %v8018
          %v8051 = vpack.c.bf16 %v8035, %v8019
          %v8052 = vpack.c.bf16 %v8036, %v8020
          %v8053 = vpack.c.bf16 %v8037, %v8021
          %v8054 = vpack.c.bf16 %v8038, %v8022
          %v8055 = vpack.c.bf16 %v8039, %v8023
          %v8056 = vpack.c.bf16 %v8040, %v8024
          %v8057 = vpack.c.bf16 %v8041, %v8025
          %v8058 = vld [vmem:[%s14] sm:$0xf]
          %v8059 = vld [vmem:[%s14 + $0x4] sm:$0xf]
          %v8060 = vld [vmem:[%s14 + $0x8] sm:$0xf]
          %v8061 = vld [vmem:[%s14 + $0xc] sm:$0xf]
          %v8062 = vld [vmem:[%s14 + $0x10] sm:$0xf]
          %v8063 = vld [vmem:[%s14 + $0x14] sm:$0xf]
          %v8064 = vld [vmem:[%s14 + $0x18] sm:$0xf]
          %v8065 = vld [vmem:[%s14 + $0x1c] sm:$0xf]
          %v8066 = vld [vmem:[%s14 + $0x20] sm:$0xf]
          %v8067 = vld [vmem:[%s14 + $0x24] sm:$0xf]
          %v8068 = vld [vmem:[%s14 + $0x28] sm:$0xf]
          %v8069 = vld [vmem:[%s14 + $0x2c] sm:$0xf]
          %v8070 = vld [vmem:[%s14 + $0x30] sm:$0xf]
          %v8071 = vld [vmem:[%s14 + $0x34] sm:$0xf]
          %v8072 = vld [vmem:[%s14 + $0x38] sm:$0xf]
          %v8073 = vld [vmem:[%s14 + $0x3c] sm:$0xf]
          %v8074 = vld [vmem:[%s14 + $0x40] sm:$0xf]
          %v8075 = vld [vmem:[%s14 + $0x44] sm:$0xf]
          %v8076 = vld [vmem:[%s14 + $0x48] sm:$0xf]
          %v8077 = vld [vmem:[%s14 + $0x4c] sm:$0xf]
          %v8078 = vld [vmem:[%s14 + $0x50] sm:$0xf]
          %v8079 = vld [vmem:[%s14 + $0x54] sm:$0xf]
          %v8080 = vld [vmem:[%s14 + $0x58] sm:$0xf]
          %v8081 = vld [vmem:[%s14 + $0x5c] sm:$0xf]
          %v8082 = vld [vmem:[%s14 + $0x60] sm:$0xf]
          %v8083 = vld [vmem:[%s14 + $0x64] sm:$0xf]
          %v8084 = vld [vmem:[%s14 + $0x68] sm:$0xf]
          %v8085 = vld [vmem:[%s14 + $0x6c] sm:$0xf]
          %v8086 = vld [vmem:[%s14 + $0x70] sm:$0xf]
          %v8087 = vld [vmem:[%s14 + $0x74] sm:$0xf]
          %v8088 = vld [vmem:[%s14 + $0x78] sm:$0xf]
          %v8089 = vld [vmem:[%s14 + $0x7c] sm:$0xf]
          %v8090 = vld [vmem:[%s14 + $0x80] sm:$0xf]
          %v8091 = vld [vmem:[%s14 + $0x84] sm:$0xf]
          %v8092 = vld [vmem:[%s14 + $0x88] sm:$0xf]
          %v8093 = vld [vmem:[%s14 + $0x8c] sm:$0xf]
          %v8094 = vld [vmem:[%s14 + $0x90] sm:$0xf]
          %v8095 = vld [vmem:[%s14 + $0x94] sm:$0xf]
          %v8096 = vld [vmem:[%s14 + $0x98] sm:$0xf]
          %v8097 = vld [vmem:[%s14 + $0x9c] sm:$0xf]
          %v8098 = vld [vmem:[%s14 + $0xa0] sm:$0xf]
          %v8099 = vld [vmem:[%s14 + $0xa4] sm:$0xf]
          %v8100 = vld [vmem:[%s14 + $0xa8] sm:$0xf]
          %v8101 = vld [vmem:[%s14 + $0xac] sm:$0xf]
          %v8102 = vld [vmem:[%s14 + $0xb0] sm:$0xf]
          %v8103 = vld [vmem:[%s14 + $0xb4] sm:$0xf]
          %v8104 = vld [vmem:[%s14 + $0xb8] sm:$0xf]
          %v8105 = vld [vmem:[%s14 + $0xbc] sm:$0xf]
          %v8106 = vld [vmem:[%s14 + $0xc0] sm:$0xf]
          %v8107 = vld [vmem:[%s14 + $0xc4] sm:$0xf]
          %v8108 = vld [vmem:[%s14 + $0xc8] sm:$0xf]
          %v8109 = vld [vmem:[%s14 + $0xcc] sm:$0xf]
          %v8110 = vld [vmem:[%s14 + $0xd0] sm:$0xf]
          %v8111 = vld [vmem:[%s14 + $0xd4] sm:$0xf]
          %v8112 = vld [vmem:[%s14 + $0xd8] sm:$0xf]
          %v8113 = vld [vmem:[%s14 + $0xdc] sm:$0xf]
          %v8114 = vld [vmem:[%s14 + $0xe0] sm:$0xf]
          %v8115 = vld [vmem:[%s14 + $0xe4] sm:$0xf]
          %v8116 = vld [vmem:[%s14 + $0xe8] sm:$0xf]
          %v8117 = vld [vmem:[%s14 + $0xec] sm:$0xf]
          %v8118 = vld [vmem:[%s14 + $0xf0] sm:$0xf]
          %v8119 = vld [vmem:[%s14 + $0xf4] sm:$0xf]
          %v8120 = vld [vmem:[%s14 + $0xf8] sm:$0xf]
          %v8121 = vld [vmem:[%s14 + $0xfc] sm:$0xf]
          %v8122 = vld [vmem:[%s14 + $0x100] sm:$0xf]
          %v8123 = vld [vmem:[%s14 + $0x104] sm:$0xf]
          %v8124 = vld [vmem:[%s14 + $0x108] sm:$0xf]
          %v8125 = vld [vmem:[%s14 + $0x10c] sm:$0xf]
          %v8126 = vld [vmem:[%s14 + $0x110] sm:$0xf]
          %v8127 = vld [vmem:[%s14 + $0x114] sm:$0xf]
          %v8128 = vld [vmem:[%s14 + $0x118] sm:$0xf]
          %v8129 = vld [vmem:[%s14 + $0x11c] sm:$0xf]
          %v8130 = vld [vmem:[%s14 + $0x120] sm:$0xf]
          %v8131 = vld [vmem:[%s14 + $0x124] sm:$0xf]
          %v8132 = vld [vmem:[%s14 + $0x128] sm:$0xf]
          %v8133 = vld [vmem:[%s14 + $0x12c] sm:$0xf]
          %v8134 = vld [vmem:[%s14 + $0x130] sm:$0xf]
          %v8135 = vld [vmem:[%s14 + $0x134] sm:$0xf]
          %v8136 = vld [vmem:[%s14 + $0x138] sm:$0xf]
          %v8137 = vld [vmem:[%s14 + $0x13c] sm:$0xf]
          %v8138 = vld [vmem:[%s14 + $0x140] sm:$0xf]
          %v8139 = vld [vmem:[%s14 + $0x144] sm:$0xf]
          %v8140 = vld [vmem:[%s14 + $0x148] sm:$0xf]
          %v8141 = vld [vmem:[%s14 + $0x14c] sm:$0xf]
          %v8142 = vld [vmem:[%s14 + $0x150] sm:$0xf]
          %v8143 = vld [vmem:[%s14 + $0x154] sm:$0xf]
          %v8144 = vld [vmem:[%s14 + $0x158] sm:$0xf]
          %v8145 = vld [vmem:[%s14 + $0x15c] sm:$0xf]
          %v8146 = vld [vmem:[%s14 + $0x160] sm:$0xf]
          %v8147 = vld [vmem:[%s14 + $0x164] sm:$0xf]
          %v8148 = vld [vmem:[%s14 + $0x168] sm:$0xf]
          %v8149 = vld [vmem:[%s14 + $0x16c] sm:$0xf]
          %v8150 = vld [vmem:[%s14 + $0x170] sm:$0xf]
          %v8151 = vld [vmem:[%s14 + $0x174] sm:$0xf]
          %v8152 = vld [vmem:[%s14 + $0x178] sm:$0xf]
          %v8153 = vld [vmem:[%s14 + $0x17c] sm:$0xf]
          %v8154 = vld [vmem:[%s14 + $0x180] sm:$0xf]
          %v8155 = vld [vmem:[%s14 + $0x184] sm:$0xf]
          %v8156 = vld [vmem:[%s14 + $0x188] sm:$0xf]
          %v8157 = vld [vmem:[%s14 + $0x18c] sm:$0xf]
          %v8158 = vld [vmem:[%s14 + $0x190] sm:$0xf]
          %v8159 = vld [vmem:[%s14 + $0x194] sm:$0xf]
          %v8160 = vld [vmem:[%s14 + $0x198] sm:$0xf]
          %v8161 = vld [vmem:[%s14 + $0x19c] sm:$0xf]
          %v8162 = vld [vmem:[%s14 + $0x1a0] sm:$0xf]
          %v8163 = vld [vmem:[%s14 + $0x1a4] sm:$0xf]
          %v8164 = vld [vmem:[%s14 + $0x1a8] sm:$0xf]
          %v8165 = vld [vmem:[%s14 + $0x1ac] sm:$0xf]
          %v8166 = vld [vmem:[%s14 + $0x1b0] sm:$0xf]
          %v8167 = vld [vmem:[%s14 + $0x1b4] sm:$0xf]
          %v8168 = vld [vmem:[%s14 + $0x1b8] sm:$0xf]
          %v8169 = vld [vmem:[%s14 + $0x1bc] sm:$0xf]
          %v8170 = vld [vmem:[%s14 + $0x1c0] sm:$0xf]
          %v8171 = vld [vmem:[%s14 + $0x1c4] sm:$0xf]
          %v8172 = vld [vmem:[%s14 + $0x1c8] sm:$0xf]
          %v8173 = vld [vmem:[%s14 + $0x1cc] sm:$0xf]
          %v8174 = vld [vmem:[%s14 + $0x1d0] sm:$0xf]
          %v8175 = vld [vmem:[%s14 + $0x1d4] sm:$0xf]
          %v8176 = vld [vmem:[%s14 + $0x1d8] sm:$0xf]
          %v8177 = vld [vmem:[%s14 + $0x1dc] sm:$0xf]
          %v8178 = vld [vmem:[%s14 + $0x1e0] sm:$0xf]
          %v8179 = vld [vmem:[%s14 + $0x1e4] sm:$0xf]
          %v8180 = vld [vmem:[%s14 + $0x1e8] sm:$0xf]
          %v8181 = vld [vmem:[%s14 + $0x1ec] sm:$0xf]
          %v8182 = vld [vmem:[%s14 + $0x1f0] sm:$0xf]
          %v8183 = vld [vmem:[%s14 + $0x1f4] sm:$0xf]
          %v8184 = vld [vmem:[%s14 + $0x1f8] sm:$0xf]
          %v8185 = vld [vmem:[%s14 + $0x1fc] sm:$0xf]
          %v8186 = vld [vmem:[%s14 + $0x200] sm:$0xf]
          %v8187 = vld [vmem:[%s14 + $0x204] sm:$0xf]
          %v8188 = vld [vmem:[%s14 + $0x208] sm:$0xf]
          %v8189 = vld [vmem:[%s14 + $0x20c] sm:$0xf]
          %v8190 = vld [vmem:[%s14 + $0x210] sm:$0xf]
          %v8191 = vld [vmem:[%s14 + $0x214] sm:$0xf]
          %v8192 = vld [vmem:[%s14 + $0x218] sm:$0xf]
          %v8193 = vld [vmem:[%s14 + $0x21c] sm:$0xf]
          %v8194 = vld [vmem:[%s14 + $0x220] sm:$0xf]
          %v8195 = vld [vmem:[%s14 + $0x224] sm:$0xf]
          %v8196 = vld [vmem:[%s14 + $0x228] sm:$0xf]
          %v8197 = vld [vmem:[%s14 + $0x22c] sm:$0xf]
          %v8198 = vld [vmem:[%s14 + $0x230] sm:$0xf]
          %v8199 = vld [vmem:[%s14 + $0x234] sm:$0xf]
          %v8200 = vld [vmem:[%s14 + $0x238] sm:$0xf]
          %v8201 = vld [vmem:[%s14 + $0x23c] sm:$0xf]
          %v8202 = vld [vmem:[%s14 + $0x240] sm:$0xf]
          %v8203 = vld [vmem:[%s14 + $0x244] sm:$0xf]
          %v8204 = vld [vmem:[%s14 + $0x248] sm:$0xf]
          %v8205 = vld [vmem:[%s14 + $0x24c] sm:$0xf]
          %v8206 = vld [vmem:[%s14 + $0x250] sm:$0xf]
          %v8207 = vld [vmem:[%s14 + $0x254] sm:$0xf]
          %v8208 = vld [vmem:[%s14 + $0x258] sm:$0xf]
          %v8209 = vld [vmem:[%s14 + $0x25c] sm:$0xf]
          %v8210 = vld [vmem:[%s14 + $0x260] sm:$0xf]
          %v8211 = vld [vmem:[%s14 + $0x264] sm:$0xf]
          %v8212 = vld [vmem:[%s14 + $0x268] sm:$0xf]
          %v8213 = vld [vmem:[%s14 + $0x26c] sm:$0xf]
          %v8214 = vld [vmem:[%s14 + $0x270] sm:$0xf]
          %v8215 = vld [vmem:[%s14 + $0x274] sm:$0xf]
          %v8216 = vld [vmem:[%s14 + $0x278] sm:$0xf]
          %v8217 = vld [vmem:[%s14 + $0x27c] sm:$0xf]
          %v8218 = vld [vmem:[%s14 + $0x280] sm:$0xf]
          %v8219 = vld [vmem:[%s14 + $0x284] sm:$0xf]
          %v8220 = vld [vmem:[%s14 + $0x288] sm:$0xf]
          %v8221 = vld [vmem:[%s14 + $0x28c] sm:$0xf]
          %v8222 = vld [vmem:[%s14 + $0x290] sm:$0xf]
          %v8223 = vld [vmem:[%s14 + $0x294] sm:$0xf]
          %v8224 = vld [vmem:[%s14 + $0x298] sm:$0xf]
          %v8225 = vld [vmem:[%s14 + $0x29c] sm:$0xf]
          %v8226 = vld [vmem:[%s14 + $0x2a0] sm:$0xf]
          %v8227 = vld [vmem:[%s14 + $0x2a4] sm:$0xf]
          %v8228 = vld [vmem:[%s14 + $0x2a8] sm:$0xf]
          %v8229 = vld [vmem:[%s14 + $0x2ac] sm:$0xf]
          %v8230 = vld [vmem:[%s14 + $0x2b0] sm:$0xf]
          %v8231 = vld [vmem:[%s14 + $0x2b4] sm:$0xf]
          %v8232 = vld [vmem:[%s14 + $0x2b8] sm:$0xf]
          %v8233 = vld [vmem:[%s14 + $0x2bc] sm:$0xf]
          %v8234 = vld [vmem:[%s14 + $0x2c0] sm:$0xf]
          %v8235 = vld [vmem:[%s14 + $0x2c4] sm:$0xf]
          %v8236 = vld [vmem:[%s14 + $0x2c8] sm:$0xf]
          %v8237 = vld [vmem:[%s14 + $0x2cc] sm:$0xf]
          %v8238 = vld [vmem:[%s14 + $0x2d0] sm:$0xf]
          %v8239 = vld [vmem:[%s14 + $0x2d4] sm:$0xf]
          %v8240 = vld [vmem:[%s14 + $0x2d8] sm:$0xf]
          %v8241 = vld [vmem:[%s14 + $0x2dc] sm:$0xf]
          %v8242 = vld [vmem:[%s14 + $0x2e0] sm:$0xf]
          %v8243 = vld [vmem:[%s14 + $0x2e4] sm:$0xf]
          %v8244 = vld [vmem:[%s14 + $0x2e8] sm:$0xf]
          %v8245 = vld [vmem:[%s14 + $0x2ec] sm:$0xf]
          %v8246 = vld [vmem:[%s14 + $0x2f0] sm:$0xf]
          %v8247 = vld [vmem:[%s14 + $0x2f4] sm:$0xf]
          %v8248 = vld [vmem:[%s14 + $0x2f8] sm:$0xf]
          %v8249 = vld [vmem:[%s14 + $0x2fc] sm:$0xf]
          %v8250 = vld [vmem:[%s14 + $0x300] sm:$0xf]
          %v8251 = vld [vmem:[%s14 + $0x304] sm:$0xf]
          %v8252 = vld [vmem:[%s14 + $0x308] sm:$0xf]
          %v8253 = vld [vmem:[%s14 + $0x30c] sm:$0xf]
          %v8254 = vld [vmem:[%s14 + $0x310] sm:$0xf]
          %v8255 = vld [vmem:[%s14 + $0x314] sm:$0xf]
          %v8256 = vld [vmem:[%s14 + $0x318] sm:$0xf]
          %v8257 = vld [vmem:[%s14 + $0x31c] sm:$0xf]
          %v8258 = vld [vmem:[%s14 + $0x320] sm:$0xf]
          %v8259 = vld [vmem:[%s14 + $0x324] sm:$0xf]
          %v8260 = vld [vmem:[%s14 + $0x328] sm:$0xf]
          %v8261 = vld [vmem:[%s14 + $0x32c] sm:$0xf]
          %v8262 = vld [vmem:[%s14 + $0x330] sm:$0xf]
          %v8263 = vld [vmem:[%s14 + $0x334] sm:$0xf]
          %v8264 = vld [vmem:[%s14 + $0x338] sm:$0xf]
          %v8265 = vld [vmem:[%s14 + $0x33c] sm:$0xf]
          %v8266 = vld [vmem:[%s14 + $0x340] sm:$0xf]
          %v8267 = vld [vmem:[%s14 + $0x344] sm:$0xf]
          %v8268 = vld [vmem:[%s14 + $0x348] sm:$0xf]
          %v8269 = vld [vmem:[%s14 + $0x34c] sm:$0xf]
          %v8270 = vld [vmem:[%s14 + $0x350] sm:$0xf]
          %v8271 = vld [vmem:[%s14 + $0x354] sm:$0xf]
          %v8272 = vld [vmem:[%s14 + $0x358] sm:$0xf]
          %v8273 = vld [vmem:[%s14 + $0x35c] sm:$0xf]
          %v8274 = vld [vmem:[%s14 + $0x360] sm:$0xf]
          %v8275 = vld [vmem:[%s14 + $0x364] sm:$0xf]
          %v8276 = vld [vmem:[%s14 + $0x368] sm:$0xf]
          %v8277 = vld [vmem:[%s14 + $0x36c] sm:$0xf]
          %v8278 = vld [vmem:[%s14 + $0x370] sm:$0xf]
          %v8279 = vld [vmem:[%s14 + $0x374] sm:$0xf]
          %v8280 = vld [vmem:[%s14 + $0x378] sm:$0xf]
          %v8281 = vld [vmem:[%s14 + $0x37c] sm:$0xf]
          %v8282 = vld [vmem:[%s14 + $0x380] sm:$0xf]
          %v8283 = vld [vmem:[%s14 + $0x384] sm:$0xf]
          %v8284 = vld [vmem:[%s14 + $0x388] sm:$0xf]
          %v8285 = vld [vmem:[%s14 + $0x38c] sm:$0xf]
          %v8286 = vld [vmem:[%s14 + $0x390] sm:$0xf]
          %v8287 = vld [vmem:[%s14 + $0x394] sm:$0xf]
          %v8288 = vld [vmem:[%s14 + $0x398] sm:$0xf]
          %v8289 = vld [vmem:[%s14 + $0x39c] sm:$0xf]
          %v8290 = vld [vmem:[%s14 + $0x3a0] sm:$0xf]
          %v8291 = vld [vmem:[%s14 + $0x3a4] sm:$0xf]
          %v8292 = vld [vmem:[%s14 + $0x3a8] sm:$0xf]
          %v8293 = vld [vmem:[%s14 + $0x3ac] sm:$0xf]
          %v8294 = vld [vmem:[%s14 + $0x3b0] sm:$0xf]
          %v8295 = vld [vmem:[%s14 + $0x3b4] sm:$0xf]
          %v8296 = vld [vmem:[%s14 + $0x3b8] sm:$0xf]
          %v8297 = vld [vmem:[%s14 + $0x3bc] sm:$0xf]
          %v8298 = vld [vmem:[%s14 + $0x3c0] sm:$0xf]
          %v8299 = vld [vmem:[%s14 + $0x3c4] sm:$0xf]
          %v8300 = vld [vmem:[%s14 + $0x3c8] sm:$0xf]
          %v8301 = vld [vmem:[%s14 + $0x3cc] sm:$0xf]
          %v8302 = vld [vmem:[%s14 + $0x3d0] sm:$0xf]
          %v8303 = vld [vmem:[%s14 + $0x3d4] sm:$0xf]
          %v8304 = vld [vmem:[%s14 + $0x3d8] sm:$0xf]
          %v8305 = vld [vmem:[%s14 + $0x3dc] sm:$0xf]
          %v8306 = vld [vmem:[%s14 + $0x3e0] sm:$0xf]
          %v8307 = vld [vmem:[%s14 + $0x3e4] sm:$0xf]
          %v8308 = vld [vmem:[%s14 + $0x3e8] sm:$0xf]
          %v8309 = vld [vmem:[%s14 + $0x3ec] sm:$0xf]
          %v8310 = vld [vmem:[%s14 + $0x3f0] sm:$0xf]
          %v8311 = vld [vmem:[%s14 + $0x3f4] sm:$0xf]
          %v8312 = vld [vmem:[%s14 + $0x3f8] sm:$0xf]
          %v8313 = vld [vmem:[%s14 + $0x3fc] sm:$0xf]
          %v8314 = vld [vmem:[#allocation12] sm:$0x1]
          %v8316 = vlaneseq
          %v8317 = vshrl.u32 %v8316, 7
          %v8318 = vsub.s32 0, %v8317
          %v8319 = vrot.slane %v8314, %v8318
          %v8577 = vunpack.c.l.b16 %v8058
          %v8578 = vunpack.c.l.b16 %v8059
          %v8579 = vunpack.c.l.b16 %v8060
          %v8580 = vunpack.c.l.b16 %v8061
          %v8581 = vunpack.c.l.b16 %v8062
          %v8582 = vunpack.c.l.b16 %v8063
          %v8583 = vunpack.c.l.b16 %v8064
          %v8584 = vunpack.c.l.b16 %v8065
          %v8585 = vunpack.c.l.b16 %v8066
          %v8586 = vunpack.c.l.b16 %v8067
          %v8587 = vunpack.c.l.b16 %v8068
          %v8588 = vunpack.c.l.b16 %v8069
          %v8589 = vunpack.c.l.b16 %v8070
          %v8590 = vunpack.c.l.b16 %v8071
          %v8591 = vunpack.c.l.b16 %v8072
          %v8592 = vunpack.c.l.b16 %v8073
          %v8593 = vunpack.c.l.b16 %v8074
          %v8594 = vunpack.c.l.b16 %v8075
          %v8595 = vunpack.c.l.b16 %v8076
          %v8596 = vunpack.c.l.b16 %v8077
          %v8597 = vunpack.c.l.b16 %v8078
          %v8598 = vunpack.c.l.b16 %v8079
          %v8599 = vunpack.c.l.b16 %v8080
          %v8600 = vunpack.c.l.b16 %v8081
          %v8601 = vunpack.c.l.b16 %v8082
          %v8602 = vunpack.c.l.b16 %v8083
          %v8603 = vunpack.c.l.b16 %v8084
          %v8604 = vunpack.c.l.b16 %v8085
          %v8605 = vunpack.c.l.b16 %v8086
          %v8606 = vunpack.c.l.b16 %v8087
          %v8607 = vunpack.c.l.b16 %v8088
          %v8608 = vunpack.c.l.b16 %v8089
          %v8609 = vunpack.c.l.b16 %v8090
          %v8610 = vunpack.c.l.b16 %v8091
          %v8611 = vunpack.c.l.b16 %v8092
          %v8612 = vunpack.c.l.b16 %v8093
          %v8613 = vunpack.c.l.b16 %v8094
          %v8614 = vunpack.c.l.b16 %v8095
          %v8615 = vunpack.c.l.b16 %v8096
          %v8616 = vunpack.c.l.b16 %v8097
          %v8617 = vunpack.c.l.b16 %v8098
          %v8618 = vunpack.c.l.b16 %v8099
          %v8619 = vunpack.c.l.b16 %v8100
          %v8620 = vunpack.c.l.b16 %v8101
          %v8621 = vunpack.c.l.b16 %v8102
          %v8622 = vunpack.c.l.b16 %v8103
          %v8623 = vunpack.c.l.b16 %v8104
          %v8624 = vunpack.c.l.b16 %v8105
          %v8625 = vunpack.c.l.b16 %v8106
          %v8626 = vunpack.c.l.b16 %v8107
          %v8627 = vunpack.c.l.b16 %v8108
          %v8628 = vunpack.c.l.b16 %v8109
          %v8629 = vunpack.c.l.b16 %v8110
          %v8630 = vunpack.c.l.b16 %v8111
          %v8631 = vunpack.c.l.b16 %v8112
          %v8632 = vunpack.c.l.b16 %v8113
          %v8633 = vunpack.c.l.b16 %v8114
          %v8634 = vunpack.c.l.b16 %v8115
          %v8635 = vunpack.c.l.b16 %v8116
          %v8636 = vunpack.c.l.b16 %v8117
          %v8637 = vunpack.c.l.b16 %v8118
          %v8638 = vunpack.c.l.b16 %v8119
          %v8639 = vunpack.c.l.b16 %v8120
          %v8640 = vunpack.c.l.b16 %v8121
          %v8641 = vunpack.c.l.b16 %v8122
          %v8642 = vunpack.c.l.b16 %v8123
          %v8643 = vunpack.c.l.b16 %v8124
          %v8644 = vunpack.c.l.b16 %v8125
          %v8645 = vunpack.c.l.b16 %v8126
          %v8646 = vunpack.c.l.b16 %v8127
          %v8647 = vunpack.c.l.b16 %v8128
          %v8648 = vunpack.c.l.b16 %v8129
          %v8649 = vunpack.c.l.b16 %v8130
          %v8650 = vunpack.c.l.b16 %v8131
          %v8651 = vunpack.c.l.b16 %v8132
          %v8652 = vunpack.c.l.b16 %v8133
          %v8653 = vunpack.c.l.b16 %v8134
          %v8654 = vunpack.c.l.b16 %v8135
          %v8655 = vunpack.c.l.b16 %v8136
          %v8656 = vunpack.c.l.b16 %v8137
          %v8657 = vunpack.c.l.b16 %v8138
          %v8658 = vunpack.c.l.b16 %v8139
          %v8659 = vunpack.c.l.b16 %v8140
          %v8660 = vunpack.c.l.b16 %v8141
          %v8661 = vunpack.c.l.b16 %v8142
          %v8662 = vunpack.c.l.b16 %v8143
          %v8663 = vunpack.c.l.b16 %v8144
          %v8664 = vunpack.c.l.b16 %v8145
          %v8665 = vunpack.c.l.b16 %v8146
          %v8666 = vunpack.c.l.b16 %v8147
          %v8667 = vunpack.c.l.b16 %v8148
          %v8668 = vunpack.c.l.b16 %v8149
          %v8669 = vunpack.c.l.b16 %v8150
          %v8670 = vunpack.c.l.b16 %v8151
          %v8671 = vunpack.c.l.b16 %v8152
          %v8672 = vunpack.c.l.b16 %v8153
          %v8673 = vunpack.c.l.b16 %v8154
          %v8674 = vunpack.c.l.b16 %v8155
          %v8675 = vunpack.c.l.b16 %v8156
          %v8676 = vunpack.c.l.b16 %v8157
          %v8677 = vunpack.c.l.b16 %v8158
          %v8678 = vunpack.c.l.b16 %v8159
          %v8679 = vunpack.c.l.b16 %v8160
          %v8680 = vunpack.c.l.b16 %v8161
          %v8681 = vunpack.c.l.b16 %v8162
          %v8682 = vunpack.c.l.b16 %v8163
          %v8683 = vunpack.c.l.b16 %v8164
          %v8684 = vunpack.c.l.b16 %v8165
          %v8685 = vunpack.c.l.b16 %v8166
          %v8686 = vunpack.c.l.b16 %v8167
          %v8687 = vunpack.c.l.b16 %v8168
          %v8688 = vunpack.c.l.b16 %v8169
          %v8689 = vunpack.c.l.b16 %v8170
          %v8690 = vunpack.c.l.b16 %v8171
          %v8691 = vunpack.c.l.b16 %v8172
          %v8692 = vunpack.c.l.b16 %v8173
          %v8693 = vunpack.c.l.b16 %v8174
          %v8694 = vunpack.c.l.b16 %v8175
          %v8695 = vunpack.c.l.b16 %v8176
          %v8696 = vunpack.c.l.b16 %v8177
          %v8697 = vunpack.c.l.b16 %v8178
          %v8698 = vunpack.c.l.b16 %v8179
          %v8699 = vunpack.c.l.b16 %v8180
          %v8700 = vunpack.c.l.b16 %v8181
          %v8701 = vunpack.c.l.b16 %v8182
          %v8702 = vunpack.c.l.b16 %v8183
          %v8703 = vunpack.c.l.b16 %v8184
          %v8704 = vunpack.c.l.b16 %v8185
          %v8705 = vunpack.c.l.b16 %v8186
          %v8706 = vunpack.c.l.b16 %v8187
          %v8707 = vunpack.c.l.b16 %v8188
          %v8708 = vunpack.c.l.b16 %v8189
          %v8709 = vunpack.c.l.b16 %v8190
          %v8710 = vunpack.c.l.b16 %v8191
          %v8711 = vunpack.c.l.b16 %v8192
          %v8712 = vunpack.c.l.b16 %v8193
          %v8713 = vunpack.c.l.b16 %v8194
          %v8714 = vunpack.c.l.b16 %v8195
          %v8715 = vunpack.c.l.b16 %v8196
          %v8716 = vunpack.c.l.b16 %v8197
          %v8717 = vunpack.c.l.b16 %v8198
          %v8718 = vunpack.c.l.b16 %v8199
          %v8719 = vunpack.c.l.b16 %v8200
          %v8720 = vunpack.c.l.b16 %v8201
          %v8721 = vunpack.c.l.b16 %v8202
          %v8722 = vunpack.c.l.b16 %v8203
          %v8723 = vunpack.c.l.b16 %v8204
          %v8724 = vunpack.c.l.b16 %v8205
          %v8725 = vunpack.c.l.b16 %v8206
          %v8726 = vunpack.c.l.b16 %v8207
          %v8727 = vunpack.c.l.b16 %v8208
          %v8728 = vunpack.c.l.b16 %v8209
          %v8729 = vunpack.c.l.b16 %v8210
          %v8730 = vunpack.c.l.b16 %v8211
          %v8731 = vunpack.c.l.b16 %v8212
          %v8732 = vunpack.c.l.b16 %v8213
          %v8733 = vunpack.c.l.b16 %v8214
          %v8734 = vunpack.c.l.b16 %v8215
          %v8735 = vunpack.c.l.b16 %v8216
          %v8736 = vunpack.c.l.b16 %v8217
          %v8737 = vunpack.c.l.b16 %v8218
          %v8738 = vunpack.c.l.b16 %v8219
          %v8739 = vunpack.c.l.b16 %v8220
          %v8740 = vunpack.c.l.b16 %v8221
          %v8741 = vunpack.c.l.b16 %v8222
          %v8742 = vunpack.c.l.b16 %v8223
          %v8743 = vunpack.c.l.b16 %v8224
          %v8744 = vunpack.c.l.b16 %v8225
          %v8745 = vunpack.c.l.b16 %v8226
          %v8746 = vunpack.c.l.b16 %v8227
          %v8747 = vunpack.c.l.b16 %v8228
          %v8748 = vunpack.c.l.b16 %v8229
          %v8749 = vunpack.c.l.b16 %v8230
          %v8750 = vunpack.c.l.b16 %v8231
          %v8751 = vunpack.c.l.b16 %v8232
          %v8752 = vunpack.c.l.b16 %v8233
          %v8753 = vunpack.c.l.b16 %v8234
          %v8754 = vunpack.c.l.b16 %v8235
          %v8755 = vunpack.c.l.b16 %v8236
          %v8756 = vunpack.c.l.b16 %v8237
          %v8757 = vunpack.c.l.b16 %v8238
          %v8758 = vunpack.c.l.b16 %v8239
          %v8759 = vunpack.c.l.b16 %v8240
          %v8760 = vunpack.c.l.b16 %v8241
          %v8761 = vunpack.c.l.b16 %v8242
          %v8762 = vunpack.c.l.b16 %v8243
          %v8763 = vunpack.c.l.b16 %v8244
          %v8764 = vunpack.c.l.b16 %v8245
          %v8765 = vunpack.c.l.b16 %v8246
          %v8766 = vunpack.c.l.b16 %v8247
          %v8767 = vunpack.c.l.b16 %v8248
          %v8768 = vunpack.c.l.b16 %v8249
          %v8769 = vunpack.c.l.b16 %v8250
          %v8770 = vunpack.c.l.b16 %v8251
          %v8771 = vunpack.c.l.b16 %v8252
          %v8772 = vunpack.c.l.b16 %v8253
          %v8773 = vunpack.c.l.b16 %v8254
          %v8774 = vunpack.c.l.b16 %v8255
          %v8775 = vunpack.c.l.b16 %v8256
          %v8776 = vunpack.c.l.b16 %v8257
          %v8777 = vunpack.c.l.b16 %v8258
          %v8778 = vunpack.c.l.b16 %v8259
          %v8779 = vunpack.c.l.b16 %v8260
          %v8780 = vunpack.c.l.b16 %v8261
          %v8781 = vunpack.c.l.b16 %v8262
          %v8782 = vunpack.c.l.b16 %v8263
          %v8783 = vunpack.c.l.b16 %v8264
          %v8784 = vunpack.c.l.b16 %v8265
          %v8785 = vunpack.c.l.b16 %v8266
          %v8786 = vunpack.c.l.b16 %v8267
          %v8787 = vunpack.c.l.b16 %v8268
          %v8788 = vunpack.c.l.b16 %v8269
          %v8789 = vunpack.c.l.b16 %v8270
          %v8790 = vunpack.c.l.b16 %v8271
          %v8791 = vunpack.c.l.b16 %v8272
          %v8792 = vunpack.c.l.b16 %v8273
          %v8793 = vunpack.c.l.b16 %v8274
          %v8794 = vunpack.c.l.b16 %v8275
          %v8795 = vunpack.c.l.b16 %v8276
          %v8796 = vunpack.c.l.b16 %v8277
          %v8797 = vunpack.c.l.b16 %v8278
          %v8798 = vunpack.c.l.b16 %v8279
          %v8799 = vunpack.c.l.b16 %v8280
          %v8800 = vunpack.c.l.b16 %v8281
          %v8801 = vunpack.c.l.b16 %v8282
          %v8802 = vunpack.c.l.b16 %v8283
          %v8803 = vunpack.c.l.b16 %v8284
          %v8804 = vunpack.c.l.b16 %v8285
          %v8805 = vunpack.c.l.b16 %v8286
          %v8806 = vunpack.c.l.b16 %v8287
          %v8807 = vunpack.c.l.b16 %v8288
          %v8808 = vunpack.c.l.b16 %v8289
          %v8809 = vunpack.c.l.b16 %v8290
          %v8810 = vunpack.c.l.b16 %v8291
          %v8811 = vunpack.c.l.b16 %v8292
          %v8812 = vunpack.c.l.b16 %v8293
          %v8813 = vunpack.c.l.b16 %v8294
          %v8814 = vunpack.c.l.b16 %v8295
          %v8815 = vunpack.c.l.b16 %v8296
          %v8816 = vunpack.c.l.b16 %v8297
          %v8817 = vunpack.c.l.b16 %v8298
          %v8818 = vunpack.c.l.b16 %v8299
          %v8819 = vunpack.c.l.b16 %v8300
          %v8820 = vunpack.c.l.b16 %v8301
          %v8821 = vunpack.c.l.b16 %v8302
          %v8822 = vunpack.c.l.b16 %v8303
          %v8823 = vunpack.c.l.b16 %v8304
          %v8824 = vunpack.c.l.b16 %v8305
          %v8825 = vunpack.c.l.b16 %v8306
          %v8826 = vunpack.c.l.b16 %v8307
          %v8827 = vunpack.c.l.b16 %v8308
          %v8828 = vunpack.c.l.b16 %v8309
          %v8829 = vunpack.c.l.b16 %v8310
          %v8830 = vunpack.c.l.b16 %v8311
          %v8831 = vunpack.c.l.b16 %v8312
          %v8832 = vunpack.c.l.b16 %v8313
          %v8833 = vpack.c.b16 %v8578, %v8577
          %v8834 = vpack.c.b16 %v8580, %v8579
          %v8835 = vpack.c.b16 %v8582, %v8581
          %v8836 = vpack.c.b16 %v8584, %v8583
          %v8837 = vpack.c.b16 %v8586, %v8585
          %v8838 = vpack.c.b16 %v8588, %v8587
          %v8839 = vpack.c.b16 %v8590, %v8589
          %v8840 = vpack.c.b16 %v8592, %v8591
          %v8841 = vpack.c.b16 %v8594, %v8593
          %v8842 = vpack.c.b16 %v8596, %v8595
          %v8843 = vpack.c.b16 %v8598, %v8597
          %v8844 = vpack.c.b16 %v8600, %v8599
          %v8845 = vpack.c.b16 %v8602, %v8601
          %v8846 = vpack.c.b16 %v8604, %v8603
          %v8847 = vpack.c.b16 %v8606, %v8605
          %v8848 = vpack.c.b16 %v8608, %v8607
          %v8849 = vpack.c.b16 %v8610, %v8609
          %v8850 = vpack.c.b16 %v8612, %v8611
          %v8851 = vpack.c.b16 %v8614, %v8613
          %v8852 = vpack.c.b16 %v8616, %v8615
          %v8853 = vpack.c.b16 %v8618, %v8617
          %v8854 = vpack.c.b16 %v8620, %v8619
          %v8855 = vpack.c.b16 %v8622, %v8621
          %v8856 = vpack.c.b16 %v8624, %v8623
          %v8857 = vpack.c.b16 %v8626, %v8625
          %v8858 = vpack.c.b16 %v8628, %v8627
          %v8859 = vpack.c.b16 %v8630, %v8629
          %v8860 = vpack.c.b16 %v8632, %v8631
          %v8861 = vpack.c.b16 %v8634, %v8633
          %v8862 = vpack.c.b16 %v8636, %v8635
          %v8863 = vpack.c.b16 %v8638, %v8637
          %v8864 = vpack.c.b16 %v8640, %v8639
          %v8865 = vpack.c.b16 %v8642, %v8641
          %v8866 = vpack.c.b16 %v8644, %v8643
          %v8867 = vpack.c.b16 %v8646, %v8645
          %v8868 = vpack.c.b16 %v8648, %v8647
          %v8869 = vpack.c.b16 %v8650, %v8649
          %v8870 = vpack.c.b16 %v8652, %v8651
          %v8871 = vpack.c.b16 %v8654, %v8653
          %v8872 = vpack.c.b16 %v8656, %v8655
          %v8873 = vpack.c.b16 %v8658, %v8657
          %v8874 = vpack.c.b16 %v8660, %v8659
          %v8875 = vpack.c.b16 %v8662, %v8661
          %v8876 = vpack.c.b16 %v8664, %v8663
          %v8877 = vpack.c.b16 %v8666, %v8665
          %v8878 = vpack.c.b16 %v8668, %v8667
          %v8879 = vpack.c.b16 %v8670, %v8669
          %v8880 = vpack.c.b16 %v8672, %v8671
          %v8881 = vpack.c.b16 %v8674, %v8673
          %v8882 = vpack.c.b16 %v8676, %v8675
          %v8883 = vpack.c.b16 %v8678, %v8677
          %v8884 = vpack.c.b16 %v8680, %v8679
          %v8885 = vpack.c.b16 %v8682, %v8681
          %v8886 = vpack.c.b16 %v8684, %v8683
          %v8887 = vpack.c.b16 %v8686, %v8685
          %v8888 = vpack.c.b16 %v8688, %v8687
          %v8889 = vpack.c.b16 %v8690, %v8689
          %v8890 = vpack.c.b16 %v8692, %v8691
          %v8891 = vpack.c.b16 %v8694, %v8693
          %v8892 = vpack.c.b16 %v8696, %v8695
          %v8893 = vpack.c.b16 %v8698, %v8697
          %v8894 = vpack.c.b16 %v8700, %v8699
          %v8895 = vpack.c.b16 %v8702, %v8701
          %v8896 = vpack.c.b16 %v8704, %v8703
          %v8897 = vpack.c.b16 %v8706, %v8705
          %v8898 = vpack.c.b16 %v8708, %v8707
          %v8899 = vpack.c.b16 %v8710, %v8709
          %v8900 = vpack.c.b16 %v8712, %v8711
          %v8901 = vpack.c.b16 %v8714, %v8713
          %v8902 = vpack.c.b16 %v8716, %v8715
          %v8903 = vpack.c.b16 %v8718, %v8717
          %v8904 = vpack.c.b16 %v8720, %v8719
          %v8905 = vpack.c.b16 %v8722, %v8721
          %v8906 = vpack.c.b16 %v8724, %v8723
          %v8907 = vpack.c.b16 %v8726, %v8725
          %v8908 = vpack.c.b16 %v8728, %v8727
          %v8909 = vpack.c.b16 %v8730, %v8729
          %v8910 = vpack.c.b16 %v8732, %v8731
          %v8911 = vpack.c.b16 %v8734, %v8733
          %v8912 = vpack.c.b16 %v8736, %v8735
          %v8913 = vpack.c.b16 %v8738, %v8737
          %v8914 = vpack.c.b16 %v8740, %v8739
          %v8915 = vpack.c.b16 %v8742, %v8741
          %v8916 = vpack.c.b16 %v8744, %v8743
          %v8917 = vpack.c.b16 %v8746, %v8745
          %v8918 = vpack.c.b16 %v8748, %v8747
          %v8919 = vpack.c.b16 %v8750, %v8749
          %v8920 = vpack.c.b16 %v8752, %v8751
          %v8921 = vpack.c.b16 %v8754, %v8753
          %v8922 = vpack.c.b16 %v8756, %v8755
          %v8923 = vpack.c.b16 %v8758, %v8757
          %v8924 = vpack.c.b16 %v8760, %v8759
          %v8925 = vpack.c.b16 %v8762, %v8761
          %v8926 = vpack.c.b16 %v8764, %v8763
          %v8927 = vpack.c.b16 %v8766, %v8765
          %v8928 = vpack.c.b16 %v8768, %v8767
          %v8929 = vpack.c.b16 %v8770, %v8769
          %v8930 = vpack.c.b16 %v8772, %v8771
          %v8931 = vpack.c.b16 %v8774, %v8773
          %v8932 = vpack.c.b16 %v8776, %v8775
          %v8933 = vpack.c.b16 %v8778, %v8777
          %v8934 = vpack.c.b16 %v8780, %v8779
          %v8935 = vpack.c.b16 %v8782, %v8781
          %v8936 = vpack.c.b16 %v8784, %v8783
          %v8937 = vpack.c.b16 %v8786, %v8785
          %v8938 = vpack.c.b16 %v8788, %v8787
          %v8939 = vpack.c.b16 %v8790, %v8789
          %v8940 = vpack.c.b16 %v8792, %v8791
          %v8941 = vpack.c.b16 %v8794, %v8793
          %v8942 = vpack.c.b16 %v8796, %v8795
          %v8943 = vpack.c.b16 %v8798, %v8797
          %v8944 = vpack.c.b16 %v8800, %v8799
          %v8945 = vpack.c.b16 %v8802, %v8801
          %v8946 = vpack.c.b16 %v8804, %v8803
          %v8947 = vpack.c.b16 %v8806, %v8805
          %v8948 = vpack.c.b16 %v8808, %v8807
          %v8949 = vpack.c.b16 %v8810, %v8809
          %v8950 = vpack.c.b16 %v8812, %v8811
          %v8951 = vpack.c.b16 %v8814, %v8813
          %v8952 = vpack.c.b16 %v8816, %v8815
          %v8953 = vpack.c.b16 %v8818, %v8817
          %v8954 = vpack.c.b16 %v8820, %v8819
          %v8955 = vpack.c.b16 %v8822, %v8821
          %v8956 = vpack.c.b16 %v8824, %v8823
          %v8957 = vpack.c.b16 %v8826, %v8825
          %v8958 = vpack.c.b16 %v8828, %v8827
          %v8959 = vpack.c.b16 %v8830, %v8829
          %v8960 = vpack.c.b16 %v8832, %v8831
          %9089 = vmatprep.subr.bf16.mxu0 0
          %9090 = vmatpush1.bf16.msra.mxu0 %v8833
          %9091 = vmatprep.subr.bf16.mxu0 0
          %9092 = vmatpush1.bf16.msra.mxu0 %v8834
          %9093 = vmatprep.subr.bf16.mxu0 0
          %9094 = vmatpush1.bf16.msra.mxu0 %v8835
          %9095 = vmatprep.subr.bf16.mxu0 0
          %9096 = vmatpush1.bf16.msra.mxu0 %v8836
          %9097 = vmatprep.subr.bf16.mxu0 0
          %9098 = vmatpush1.bf16.msra.mxu0 %v8837
          %9099 = vmatprep.subr.bf16.mxu0 0
          %9100 = vmatpush1.bf16.msra.mxu0 %v8838
          %9101 = vmatprep.subr.bf16.mxu0 0
          %9102 = vmatpush1.bf16.msra.mxu0 %v8839
          %9103 = vmatprep.subr.bf16.mxu0 0
          %9104 = vmatpush1.bf16.msra.mxu0 %v8840
          %9105 = vmatprep.subr.bf16.mxu0 0
          %9106 = vmatpush1.bf16.msra.mxu0 %v8841
          %9107 = vmatprep.subr.bf16.mxu0 0
          %9108 = vmatpush1.bf16.msra.mxu0 %v8842
          %9109 = vmatprep.subr.bf16.mxu0 0
          %9110 = vmatpush1.bf16.msra.mxu0 %v8843
          %9111 = vmatprep.subr.bf16.mxu0 0
          %9112 = vmatpush1.bf16.msra.mxu0 %v8844
          %9113 = vmatprep.subr.bf16.mxu0 0
          %9114 = vmatpush1.bf16.msra.mxu0 %v8845
          %9115 = vmatprep.subr.bf16.mxu0 0
          %9116 = vmatpush1.bf16.msra.mxu0 %v8846
          %9117 = vmatprep.subr.bf16.mxu0 0
          %9118 = vmatpush1.bf16.msra.mxu0 %v8847
          %9119 = vmatprep.subr.bf16.mxu0 0
          %9120 = vmatpush1.bf16.msra.mxu0 %v8848
          %9121 = vmatprep.mubr.bf16.mxu0 %v8043
          %9122 = vmatmul.mubr.bf16.gmra.mrb[0].mxu0 %v8042
          %v9123 = vpop.f32.mrb[0].mxu0
          %v9124 = vadd.f32 %v8319, %v9123
          %v9125 = vpop.f32.mrb[0].mxu0
          %v9126 = vpop.f32.mrb[0].mxu0
          %v9127 = vadd.f32 %v8319, %v9126
          %v9128 = vpop.f32.mrb[0].mxu0
          %9129 = vdwg.mxu0
          %9130 = vmatprep.subr.bf16.mxu0 0
          %9131 = vmatpush1.bf16.msra.mxu0 %v8849
          %9132 = vmatprep.subr.bf16.mxu0 0
          %9133 = vmatpush1.bf16.msra.mxu0 %v8850
          %9134 = vmatprep.subr.bf16.mxu0 0
          %9135 = vmatpush1.bf16.msra.mxu0 %v8851
          %9136 = vmatprep.subr.bf16.mxu0 0
          %9137 = vmatpush1.bf16.msra.mxu0 %v8852
          %9138 = vmatprep.subr.bf16.mxu0 0
          %9139 = vmatpush1.bf16.msra.mxu0 %v8853
          %9140 = vmatprep.subr.bf16.mxu0 0
          %9141 = vmatpush1.bf16.msra.mxu0 %v8854
          %9142 = vmatprep.subr.bf16.mxu0 0
          %9143 = vmatpush1.bf16.msra.mxu0 %v8855
          %9144 = vmatprep.subr.bf16.mxu0 0
          %9145 = vmatpush1.bf16.msra.mxu0 %v8856
          %9146 = vmatprep.subr.bf16.mxu0 0
          %9147 = vmatpush1.bf16.msra.mxu0 %v8857
          %9148 = vmatprep.subr.bf16.mxu0 0
          %9149 = vmatpush1.bf16.msra.mxu0 %v8858
          %9150 = vmatprep.subr.bf16.mxu0 0
          %9151 = vmatpush1.bf16.msra.mxu0 %v8859
          %9152 = vmatprep.subr.bf16.mxu0 0
          %9153 = vmatpush1.bf16.msra.mxu0 %v8860
          %9154 = vmatprep.subr.bf16.mxu0 0
          %9155 = vmatpush1.bf16.msra.mxu0 %v8861
          %9156 = vmatprep.subr.bf16.mxu0 0
          %9157 = vmatpush1.bf16.msra.mxu0 %v8862
          %9158 = vmatprep.subr.bf16.mxu0 0
          %9159 = vmatpush1.bf16.msra.mxu0 %v8863
          %9160 = vmatprep.subr.bf16.mxu0 0
          %9161 = vmatpush1.bf16.msra.mxu0 %v8864
          %9162 = vmatprep.mubr.bf16.mxu0 %v8045
          %9163 = vmatmul.mubr.bf16.gmra.mrb[0].mxu0 %v8044
          %v9164 = vpop.f32.mrb[0].mxu0
          %v9165 = vadd.f32 %v9124, %v9164
          %v9166 = vpop.f32.mrb[0].mxu0
          %v9167 = vpop.f32.mrb[0].mxu0
          %v9168 = vadd.f32 %v9127, %v9167
          %v9169 = vpop.f32.mrb[0].mxu0
          %9170 = vdwg.mxu0
          %9171 = vmatprep.subr.bf16.mxu0 0
          %9172 = vmatpush1.bf16.msra.mxu0 %v8865
          %9173 = vmatprep.subr.bf16.mxu0 0
          %9174 = vmatpush1.bf16.msra.mxu0 %v8866
          %9175 = vmatprep.subr.bf16.mxu0 0
          %9176 = vmatpush1.bf16.msra.mxu0 %v8867
          %9177 = vmatprep.subr.bf16.mxu0 0
          %9178 = vmatpush1.bf16.msra.mxu0 %v8868
          %9179 = vmatprep.subr.bf16.mxu0 0
          %9180 = vmatpush1.bf16.msra.mxu0 %v8869
          %9181 = vmatprep.subr.bf16.mxu0 0
          %9182 = vmatpush1.bf16.msra.mxu0 %v8870
          %9183 = vmatprep.subr.bf16.mxu0 0
          %9184 = vmatpush1.bf16.msra.mxu0 %v8871
          %9185 = vmatprep.subr.bf16.mxu0 0
          %9186 = vmatpush1.bf16.msra.mxu0 %v8872
          %9187 = vmatprep.subr.bf16.mxu0 0
          %9188 = vmatpush1.bf16.msra.mxu0 %v8873
          %9189 = vmatprep.subr.bf16.mxu0 0
          %9190 = vmatpush1.bf16.msra.mxu0 %v8874
          %9191 = vmatprep.subr.bf16.mxu0 0
          %9192 = vmatpush1.bf16.msra.mxu0 %v8875
          %9193 = vmatprep.subr.bf16.mxu0 0
          %9194 = vmatpush1.bf16.msra.mxu0 %v8876
          %9195 = vmatprep.subr.bf16.mxu0 0
          %9196 = vmatpush1.bf16.msra.mxu0 %v8877
          %9197 = vmatprep.subr.bf16.mxu0 0
          %9198 = vmatpush1.bf16.msra.mxu0 %v8878
          %9199 = vmatprep.subr.bf16.mxu0 0
          %9200 = vmatpush1.bf16.msra.mxu0 %v8879
          %9201 = vmatprep.subr.bf16.mxu0 0
          %9202 = vmatpush1.bf16.msra.mxu0 %v8880
          %9203 = vmatprep.mubr.bf16.mxu0 %v8047
          %9204 = vmatmul.mubr.bf16.gmra.mrb[0].mxu0 %v8046
          %v9205 = vpop.f32.mrb[0].mxu0
          %v9206 = vadd.f32 %v9165, %v9205
          %v9207 = vpop.f32.mrb[0].mxu0
          %v9208 = vpop.f32.mrb[0].mxu0
          %v9209 = vadd.f32 %v9168, %v9208
          %v9210 = vpop.f32.mrb[0].mxu0
          %9211 = vdwg.mxu0
          %9212 = vmatprep.subr.bf16.mxu0 0
          %9213 = vmatpush1.bf16.msra.mxu0 %v8881
          %9214 = vmatprep.subr.bf16.mxu0 0
          %9215 = vmatpush1.bf16.msra.mxu0 %v8882
          %9216 = vmatprep.subr.bf16.mxu0 0
          %9217 = vmatpush1.bf16.msra.mxu0 %v8883
          %9218 = vmatprep.subr.bf16.mxu0 0
          %9219 = vmatpush1.bf16.msra.mxu0 %v8884
          %9220 = vmatprep.subr.bf16.mxu0 0
          %9221 = vmatpush1.bf16.msra.mxu0 %v8885
          %9222 = vmatprep.subr.bf16.mxu0 0
          %9223 = vmatpush1.bf16.msra.mxu0 %v8886
          %9224 = vmatprep.subr.bf16.mxu0 0
          %9225 = vmatpush1.bf16.msra.mxu0 %v8887
          %9226 = vmatprep.subr.bf16.mxu0 0
          %9227 = vmatpush1.bf16.msra.mxu0 %v8888
          %9228 = vmatprep.subr.bf16.mxu0 0
          %9229 = vmatpush1.bf16.msra.mxu0 %v8889
          %9230 = vmatprep.subr.bf16.mxu0 0
          %9231 = vmatpush1.bf16.msra.mxu0 %v8890
          %9232 = vmatprep.subr.bf16.mxu0 0
          %9233 = vmatpush1.bf16.msra.mxu0 %v8891
          %9234 = vmatprep.subr.bf16.mxu0 0
          %9235 = vmatpush1.bf16.msra.mxu0 %v8892
          %9236 = vmatprep.subr.bf16.mxu0 0
          %9237 = vmatpush1.bf16.msra.mxu0 %v8893
          %9238 = vmatprep.subr.bf16.mxu0 0
          %9239 = vmatpush1.bf16.msra.mxu0 %v8894
          %9240 = vmatprep.subr.bf16.mxu0 0
          %9241 = vmatpush1.bf16.msra.mxu0 %v8895
          %9242 = vmatprep.subr.bf16.mxu0 0
          %9243 = vmatpush1.bf16.msra.mxu0 %v8896
          %9244 = vmatprep.mubr.bf16.mxu0 %v8049
          %9245 = vmatmul.mubr.bf16.gmra.mrb[0].mxu0 %v8048
          %v9246 = vpop.f32.mrb[0].mxu0
          %v9247 = vadd.f32 %v9206, %v9246
          %v9248 = vpop.f32.mrb[0].mxu0
          %v9249 = vpop.f32.mrb[0].mxu0
          %v9250 = vadd.f32 %v9209, %v9249
          %v9251 = vpop.f32.mrb[0].mxu0
          %9252 = vdwg.mxu0
          %9253 = vmatprep.subr.bf16.mxu0 0
          %9254 = vmatpush1.bf16.msra.mxu0 %v8897
          %9255 = vmatprep.subr.bf16.mxu0 0
          %9256 = vmatpush1.bf16.msra.mxu0 %v8898
          %9257 = vmatprep.subr.bf16.mxu0 0
          %9258 = vmatpush1.bf16.msra.mxu0 %v8899
          %9259 = vmatprep.subr.bf16.mxu0 0
          %9260 = vmatpush1.bf16.msra.mxu0 %v8900
          %9261 = vmatprep.subr.bf16.mxu0 0
          %9262 = vmatpush1.bf16.msra.mxu0 %v8901
          %9263 = vmatprep.subr.bf16.mxu0 0
          %9264 = vmatpush1.bf16.msra.mxu0 %v8902
          %9265 = vmatprep.subr.bf16.mxu0 0
          %9266 = vmatpush1.bf16.msra.mxu0 %v8903
          %9267 = vmatprep.subr.bf16.mxu0 0
          %9268 = vmatpush1.bf16.msra.mxu0 %v8904
          %9269 = vmatprep.subr.bf16.mxu0 0
          %9270 = vmatpush1.bf16.msra.mxu0 %v8905
          %9271 = vmatprep.subr.bf16.mxu0 0
          %9272 = vmatpush1.bf16.msra.mxu0 %v8906
          %9273 = vmatprep.subr.bf16.mxu0 0
          %9274 = vmatpush1.bf16.msra.mxu0 %v8907
          %9275 = vmatprep.subr.bf16.mxu0 0
          %9276 = vmatpush1.bf16.msra.mxu0 %v8908
          %9277 = vmatprep.subr.bf16.mxu0 0
          %9278 = vmatpush1.bf16.msra.mxu0 %v8909
          %9279 = vmatprep.subr.bf16.mxu0 0
          %9280 = vmatpush1.bf16.msra.mxu0 %v8910
          %9281 = vmatprep.subr.bf16.mxu0 0
          %9282 = vmatpush1.bf16.msra.mxu0 %v8911
          %9283 = vmatprep.subr.bf16.mxu0 0
          %9284 = vmatpush1.bf16.msra.mxu0 %v8912
          %9285 = vmatprep.mubr.bf16.mxu0 %v8051
          %9286 = vmatmul.mubr.bf16.gmra.mrb[0].mxu0 %v8050
          %v9287 = vpop.f32.mrb[0].mxu0
          %v9288 = vadd.f32 %v9247, %v9287
          %v9289 = vpop.f32.mrb[0].mxu0
          %v9290 = vpop.f32.mrb[0].mxu0
          %v9291 = vadd.f32 %v9250, %v9290
          %v9292 = vpop.f32.mrb[0].mxu0
          %9293 = vdwg.mxu0
          %9294 = vmatprep.subr.bf16.mxu0 0
          %9295 = vmatpush1.bf16.msra.mxu0 %v8913
          %9296 = vmatprep.subr.bf16.mxu0 0
          %9297 = vmatpush1.bf16.msra.mxu0 %v8914
          %9298 = vmatprep.subr.bf16.mxu0 0
          %9299 = vmatpush1.bf16.msra.mxu0 %v8915
          %9300 = vmatprep.subr.bf16.mxu0 0
          %9301 = vmatpush1.bf16.msra.mxu0 %v8916
          %9302 = vmatprep.subr.bf16.mxu0 0
          %9303 = vmatpush1.bf16.msra.mxu0 %v8917
          %9304 = vmatprep.subr.bf16.mxu0 0
          %9305 = vmatpush1.bf16.msra.mxu0 %v8918
          %9306 = vmatprep.subr.bf16.mxu0 0
          %9307 = vmatpush1.bf16.msra.mxu0 %v8919
          %9308 = vmatprep.subr.bf16.mxu0 0
          %9309 = vmatpush1.bf16.msra.mxu0 %v8920
          %9310 = vmatprep.subr.bf16.mxu0 0
          %9311 = vmatpush1.bf16.msra.mxu0 %v8921
          %9312 = vmatprep.subr.bf16.mxu0 0
          %9313 = vmatpush1.bf16.msra.mxu0 %v8922
          %9314 = vmatprep.subr.bf16.mxu0 0
          %9315 = vmatpush1.bf16.msra.mxu0 %v8923
          %9316 = vmatprep.subr.bf16.mxu0 0
          %9317 = vmatpush1.bf16.msra.mxu0 %v8924
          %9318 = vmatprep.subr.bf16.mxu0 0
          %9319 = vmatpush1.bf16.msra.mxu0 %v8925
          %9320 = vmatprep.subr.bf16.mxu0 0
          %9321 = vmatpush1.bf16.msra.mxu0 %v8926
          %9322 = vmatprep.subr.bf16.mxu0 0
          %9323 = vmatpush1.bf16.msra.mxu0 %v8927
          %9324 = vmatprep.subr.bf16.mxu0 0
          %9325 = vmatpush1.bf16.msra.mxu0 %v8928
          %9326 = vmatprep.mubr.bf16.mxu0 %v8053
          %9327 = vmatmul.mubr.bf16.gmra.mrb[0].mxu0 %v8052
          %v9328 = vpop.f32.mrb[0].mxu0
          %v9329 = vadd.f32 %v9288, %v9328
          %v9330 = vpop.f32.mrb[0].mxu0
          %v9331 = vpop.f32.mrb[0].mxu0
          %v9332 = vadd.f32 %v9291, %v9331
          %v9333 = vpop.f32.mrb[0].mxu0
          %9334 = vdwg.mxu0
          %9335 = vmatprep.subr.bf16.mxu0 0
          %9336 = vmatpush1.bf16.msra.mxu0 %v8929
          %9337 = vmatprep.subr.bf16.mxu0 0
          %9338 = vmatpush1.bf16.msra.mxu0 %v8930
          %9339 = vmatprep.subr.bf16.mxu0 0
          %9340 = vmatpush1.bf16.msra.mxu0 %v8931
          %9341 = vmatprep.subr.bf16.mxu0 0
          %9342 = vmatpush1.bf16.msra.mxu0 %v8932
          %9343 = vmatprep.subr.bf16.mxu0 0
          %9344 = vmatpush1.bf16.msra.mxu0 %v8933
          %9345 = vmatprep.subr.bf16.mxu0 0
          %9346 = vmatpush1.bf16.msra.mxu0 %v8934
          %9347 = vmatprep.subr.bf16.mxu0 0
          %9348 = vmatpush1.bf16.msra.mxu0 %v8935
          %9349 = vmatprep.subr.bf16.mxu0 0
          %9350 = vmatpush1.bf16.msra.mxu0 %v8936
          %9351 = vmatprep.subr.bf16.mxu0 0
          %9352 = vmatpush1.bf16.msra.mxu0 %v8937
          %9353 = vmatprep.subr.bf16.mxu0 0
          %9354 = vmatpush1.bf16.msra.mxu0 %v8938
          %9355 = vmatprep.subr.bf16.mxu0 0
          %9356 = vmatpush1.bf16.msra.mxu0 %v8939
          %9357 = vmatprep.subr.bf16.mxu0 0
          %9358 = vmatpush1.bf16.msra.mxu0 %v8940
          %9359 = vmatprep.subr.bf16.mxu0 0
          %9360 = vmatpush1.bf16.msra.mxu0 %v8941
          %9361 = vmatprep.subr.bf16.mxu0 0
          %9362 = vmatpush1.bf16.msra.mxu0 %v8942
          %9363 = vmatprep.subr.bf16.mxu0 0
          %9364 = vmatpush1.bf16.msra.mxu0 %v8943
          %9365 = vmatprep.subr.bf16.mxu0 0
          %9366 = vmatpush1.bf16.msra.mxu0 %v8944
          %9367 = vmatprep.mubr.bf16.mxu0 %v8055
          %9368 = vmatmul.mubr.bf16.gmra.mrb[0].mxu0 %v8054
          %v9369 = vpop.f32.mrb[0].mxu0
          %v9370 = vadd.f32 %v9329, %v9369
          %v9371 = vpop.f32.mrb[0].mxu0
          %v9372 = vpop.f32.mrb[0].mxu0
          %v9373 = vadd.f32 %v9332, %v9372
          %v9374 = vpop.f32.mrb[0].mxu0
          %9375 = vdwg.mxu0
          %9376 = vmatprep.subr.bf16.mxu0 0
          %9377 = vmatpush1.bf16.msra.mxu0 %v8945
          %9378 = vmatprep.subr.bf16.mxu0 0
          %9379 = vmatpush1.bf16.msra.mxu0 %v8946
          %9380 = vmatprep.subr.bf16.mxu0 0
          %9381 = vmatpush1.bf16.msra.mxu0 %v8947
          %9382 = vmatprep.subr.bf16.mxu0 0
          %9383 = vmatpush1.bf16.msra.mxu0 %v8948
          %9384 = vmatprep.subr.bf16.mxu0 0
          %9385 = vmatpush1.bf16.msra.mxu0 %v8949
          %9386 = vmatprep.subr.bf16.mxu0 0
          %9387 = vmatpush1.bf16.msra.mxu0 %v8950
          %9388 = vmatprep.subr.bf16.mxu0 0
          %9389 = vmatpush1.bf16.msra.mxu0 %v8951
          %9390 = vmatprep.subr.bf16.mxu0 0
          %9391 = vmatpush1.bf16.msra.mxu0 %v8952
          %9392 = vmatprep.subr.bf16.mxu0 0
          %9393 = vmatpush1.bf16.msra.mxu0 %v8953
          %9394 = vmatprep.subr.bf16.mxu0 0
          %9395 = vmatpush1.bf16.msra.mxu0 %v8954
          %9396 = vmatprep.subr.bf16.mxu0 0
          %9397 = vmatpush1.bf16.msra.mxu0 %v8955
          %9398 = vmatprep.subr.bf16.mxu0 0
          %9399 = vmatpush1.bf16.msra.mxu0 %v8956
          %9400 = vmatprep.subr.bf16.mxu0 0
          %9401 = vmatpush1.bf16.msra.mxu0 %v8957
          %9402 = vmatprep.subr.bf16.mxu0 0
          %9403 = vmatpush1.bf16.msra.mxu0 %v8958
          %9404 = vmatprep.subr.bf16.mxu0 0
          %9405 = vmatpush1.bf16.msra.mxu0 %v8959
          %9406 = vmatprep.subr.bf16.mxu0 0
          %9407 = vmatpush1.bf16.msra.mxu0 %v8960
          %9408 = vmatprep.mubr.bf16.mxu0 %v8057
          %9409 = vmatmul.mubr.bf16.gmra.mrb[0].mxu0 %v8056
          %v9410 = vpop.f32.mrb[0].mxu0
          %v9411 = vadd.f32 %v9370, %v9410
          %v9412 = vpop.f32.mrb[0].mxu0
          %v9413 = vpop.f32.mrb[0].mxu0
          %v9414 = vadd.f32 %v9373, %v9413
          %v9415 = vpop.f32.mrb[0].mxu0
          %9416 = vdwg.mxu0
          %v9417 = vtanh.pop %v9411
          %v9418 = vtanh.pop %v9414
          %vm9419 = vcmask 523264
          %9420 = vst.msk [vmem:[%s16] sm:$0xff] %vm9419, %v9417
          %9421 = vst.msk [vmem:[%s16 + $0x8] sm:$0xff] %vm9419, %v9418
        $region124: #{generator_forward.1} parent=83 // pred_fallthru
          _
        // Predicated region
        $region125: #{generator_forward.1} parent=83 // pred_check
          %p9422 = pneg %p413
        $region126: #{generator_forward.1} parent=83 // pred_check_branch
          %9424 = sbr.rel (%p9422) target = $region128
        $region127: #{generator_forward.1} parent=83 // pred_region
          _
        $region128: #{generator_forward.1} parent=83 // pred_fallthru
          _
        // Predicated region
        $region129: #{generator_forward.1} parent=83 // pred_check
          %p9425 = pneg %p413
        $region130: #{generator_forward.1} parent=83 // pred_check_branch
          %9427 = sbr.rel (%p9425) target = $region132
        $region131: #{generator_forward.1} parent=83 // pred_region
          _
        $region132: #{generator_forward.1} parent=83 // pred_fallthru
          _
      $region84: #{generator_forward.1} parent=5 // pred_fallthru
        _
      %p9428 = scmp.le.s32.totalorder 2, %s25
      // Predicated region
      $region133: #{generator_forward.1} parent=5 // pred_check
        %p9429 = pneg %p9428
      $region134: #{generator_forward.1} parent=5 // pred_check_branch
        %9431 = sbr.rel (%p9429) target = $region136
      $region135: #{generator_forward.1} parent=5 // pred_region
        %s9432 = ssub.s32 %s25, 2
      $region136: #{generator_forward.1} parent=5 // pred_fallthru
        _
    $region6: #{generator_forward.1} parent=1 // loop_footer
      %s29 = sadd.s32 1, %s25
    $region7: #{generator_forward.1} parent=1 // loop_footer_branch
      %24 = sbr.rel target = $region3
    $region8: #{generator_forward.1} parent=1 // loop_exit
      _
    %9433 = vsyncpa [#allocation5], 1
    %s9434 = scalar_lea.sflag [#allocation5], 1
    %9435 = vsyncpa %s9434, 1
    %9436 = vsyncpa [#allocation7], 1
    %9437 = vsyncpa [#allocation10], 1

</llo_original>
